<compile_context>
chip_gen: v7x
topology: tpu7x:2x2x1
jax: 0.10.0
libtpu: 0.0.40
codegen_flags: <defaults>
</compile_context>

<pallas_src>
import functools
import math

import jax
import jax.numpy as jnp
from jax.experimental import pallas as pl
from jax.experimental.pallas import tpu as pltpu

EPS_LN = 1e-5
EPS_BN = 1e-5
_SQRT_HALF = 1.0 / math.sqrt(2.0)
_VMEM_LIMIT = 48 * 1024 * 1024   # > v5e(16MiB)/v6e(32MiB) scoped defaults, < v7x 64MiB


def _pick_tile(total, target, mult):
    """Largest divisor of `total` that is a multiple of `mult` and <= max(target, mult).
    Falls back to `total` (a full-extent block is always a legal BlockSpec)."""
    hi = min(total, max(target, mult))
    for cand in range(hi, mult - 1, -1):
        if cand % mult == 0 and total % cand == 0:
            return cand
    return total


def _vec(a):
    return a.reshape(1, -1)


# --------------------------------------------------------------------------
# Kernel 1: per-channel partial batch statistics (training-mode BatchNorm3d)
# --------------------------------------------------------------------------

def _bn_partial_kernel(x_ref, o_ref):
    x = x_ref[...]                                       # (rt, D) f32
    d = x.shape[1]
    s1 = jnp.sum(x, axis=0, keepdims=True)
    s2 = jnp.sum(x * x, axis=0, keepdims=True)
    pad = jnp.zeros((6, d), jnp.float32)
    o_ref[...] = jnp.concatenate([s1, s2, pad], axis=0).reshape(1, 8, d)


def bn_partial_stats(x2d, *, row_target=512):
    m, d = x2d.shape
    rt = _pick_tile(m, row_target, 8)
    tiles = m // rt
    return pl.pallas_call(
        _bn_partial_kernel,
        grid=(tiles,),
        in_specs=[pl.BlockSpec((rt, d), lambda i: (i, 0))],
        out_specs=pl.BlockSpec((1, 8, d), lambda i: (i, 0, 0)),
        out_shape=jax.ShapeDtypeStruct((tiles, 8, d), jnp.float32),
        compiler_params=pltpu.CompilerParams(
            dimension_semantics=("parallel",), vmem_limit_bytes=_VMEM_LIMIT),
    )(x2d)


def _finish_stats(part, count, eps):
    # part: (tiles, 8, d) with row0 = sum, row1 = sumsq.  Tiny reduce in JAX.
    s1 = jnp.sum(part[:, 0, :], axis=0, keepdims=True)
    s2 = jnp.sum(part[:, 1, :], axis=0, keepdims=True)
    mean = s1 / count
    var = s2 / count - mean * mean      # biased variance (f32; cancellation noted)
    return mean, jax.lax.rsqrt(var + eps)


# --------------------------------------------------------------------------
# Kernel 2: fused conv branch  x + pw2(dw_temporal(pw1(BN1(x))))
# Rows are (patch, batch, frame)-ordered, so frame t-1/t+1 are the previous /
# next rows; boundaries are masked with precomputed (rows, 1) masks.
# --------------------------------------------------------------------------

def _conv_branch_kernel(x_ref, mp_ref, mn_ref, mu_ref, rs_ref, g_ref, b_ref,
                        w1_ref, b1_ref, dw_ref, db_ref, w2_ref, b2_ref, o_ref):
    x = x_ref[...]                                       # (rt, D) f32
    xn = (x - mu_ref[...]) * rs_ref[...] * g_ref[...] + b_ref[...]     # BN1

    # pw_conv1: channel matmul (bf16 in, f32 acc)
    y1 = jnp.dot(xn.astype(jnp.bfloat16), w1_ref[...],
                 preferred_element_type=jnp.float32) + b1_ref[...]      # (rt, S)
    s = y1.shape[1]
    zrow = jnp.zeros((1, s), jnp.float32)

    # depthwise 3x1x1 temporal conv as shifted adds (no scratch, no per-t loop)
    y_prev = jnp.concatenate([zrow, y1[:-1, :]], axis=0) * mp_ref[...]  # frame t-1
    y_next = jnp.concatenate([y1[1:, :], zrow], axis=0) * mn_ref[...]   # frame t+1
    y2 = (y1 * dw_ref[1:2, :] + y_prev * dw_ref[0:1, :]
          + y_next * dw_ref[2:3, :] + db_ref[...])

    # pw_conv2 + residual
    y3 = jnp.dot(y2.astype(jnp.bfloat16), w2_ref[...],
                 preferred_element_type=jnp.float32) + b2_ref[...]
    o_ref[...] = x + y3


def conv_branch(x_rows, mask_prev, mask_next, mean, rstd, p, *, t_frames, row_target=512):
    m, d = x_rows.shape
    s = p["pw1_w"].shape[1]
    mult = (8 * t_frames) // math.gcd(8, t_frames)       # row tiles start at frame 0
    rt = _pick_tile(m, row_target, mult)
    full2 = lambda shape: pl.BlockSpec(shape, lambda i: (0, 0))
    return pl.pallas_call(
        _conv_branch_kernel,
        grid=(m // rt,),
        in_specs=[
            pl.BlockSpec((rt, d), lambda i: (i, 0)),
            pl.BlockSpec((rt, 1), lambda i: (i, 0)),     # mask: has previous frame
            pl.BlockSpec((rt, 1), lambda i: (i, 0)),     # mask: has next frame
            full2((1, d)), full2((1, d)),                # mean, rstd
            full2((1, d)), full2((1, d)),                # bn gamma, beta
            full2((d, s)), full2((1, s)),                # pw1
            full2((3, s)), full2((1, s)),                # dw taps (prev, center, next)
            full2((s, d)), full2((1, d)),                # pw2
        ],
        out_specs=pl.BlockSpec((rt, d), lambda i: (i, 0)),
        out_shape=jax.ShapeDtypeStruct((m, d), jnp.float32),
        compiler_params=pltpu.CompilerParams(
            dimension_semantics=("parallel",), vmem_limit_bytes=_VMEM_LIMIT),
    )(x_rows, mask_prev, mask_next, mean, rstd, _vec(p["bn1_g"]), _vec(p["bn1_b"]),
      p["pw1_w"], _vec(p["pw1_b"]), p["dw_w"], _vec(p["dw_b"]),
      p["pw2_w"], _vec(p["pw2_b"]))


# --------------------------------------------------------------------------
# Kernel 3: fused LN1 + MHA + out-proj + residual (+ BN2 partial statistics)
# x1 stays in its (n, bt, d) layout; per-sample columns are gathered in-kernel
# (no XLA transpose).  Token is appended at the END of the sequence; only the
# n patch queries are computed since the token output row is discarded.
# --------------------------------------------------------------------------

def _attn_kernel(x1_ref, tok_ref, pos_ref, lng_ref, lnb_ref,
                 wqkv_ref, bqkv_ref, wo_ref, bo_ref,
                 o_ref, bn_ref, *, num_heads):
    n, bt_tile, e = x1_ref.shape
    dh = e // num_heads
    scale = 1.0 / math.sqrt(dh)                          # PyTorch folds scale into q

    pos = pos_ref[...]                                   # (n, e)
    lg = lng_ref[...]
    lb = lnb_ref[...]
    wqkv = wqkv_ref[...]                                 # (e, 3e) bf16
    bqkv = bqkv_ref[...]
    bo = bo_ref[...]
    wo_h = [wo_ref[h * dh:(h + 1) * dh, :] for h in range(num_heads)]

    s1 = jnp.zeros((1, e), jnp.float32)                  # BN2 partial sums
    s2 = jnp.zeros((1, e), jnp.float32)

    for bi in range(bt_tile):                            # static unroll over samples
        xb = x1_ref[:, bi, :]                            # (n, e) conv-branch output
        tb = tok_ref[bi]                                 # (1, e) shifted token (+pos0)
        h_in = jnp.concatenate([xb + pos, tb], axis=0)   # (n+1, e), token last

        # LayerNorm (f32)
        mu = jnp.mean(h_in, axis=-1, keepdims=True)
        var = jnp.mean((h_in - mu) ** 2, axis=-1, keepdims=True)
        hln = (h_in - mu) * jax.lax.rsqrt(var + EPS_LN) * lg + lb

        # in-projection for all heads at once (bf16 MXU, f32 acc)
        qkv = jnp.dot(hln.astype(jnp.bfloat16), wqkv,
                      preferred_element_type=jnp.float32) + bqkv        # (n+1, 3e)

        acc = jnp.zeros((n, e), jnp.float32)
        for h in range(num_heads):                       # accumulate into out-proj
            q = qkv[:n, h * dh:(h + 1) * dh] * scale     # patch queries only
            k = qkv[:, e + h * dh:e + (h + 1) * dh]
            v = qkv[:, 2 * e + h * dh:2 * e + (h + 1) * dh]
            s = jax.lax.dot_general(q.astype(jnp.bfloat16), k.astype(jnp.bfloat16),
                                    (((1,), (1,)), ((), ())),
                                    preferred_element_type=jnp.float32)  # (n, n+1)
            m = jnp.max(s, axis=-1, keepdims=True)
            pexp = jnp.exp(s - m)                        # f32 softmax (exact divide)
            l = jnp.sum(pexp, axis=-1, keepdims=True)
            ctx = jnp.dot(pexp.astype(jnp.bfloat16), v.astype(jnp.bfloat16),
                          preferred_element_type=jnp.float32) / l        # (n, dh)
            acc = acc + jnp.dot(ctx.astype(jnp.bfloat16), wo_h[h],
                                preferred_element_type=jnp.float32)

        res = xb + acc + bo                              # residual uses x1 (no pos)
        o_ref[:, bi, :] = res
        s1 = s1 + jnp.sum(res, axis=0, keepdims=True)
        s2 = s2 + jnp.sum(res * res, axis=0, keepdims=True)

    bn_ref[...] = jnp.concatenate(
        [s1, s2, jnp.zeros((6, e), jnp.float32)], axis=0).reshape(1, 8, e)


def fused_attention(x1, tok, pos_patch, p, *, num_heads, bt_target=8):
    n, bt, e = x1.shape
    btile = _pick_tile(bt, bt_target, 8)
    tiles = bt // btile
    full2 = lambda shape: pl.BlockSpec(shape, lambda i: (0, 0))
    return pl.pallas_call(
        functools.partial(_attn_kernel, num_heads=num_heads),
        grid=(tiles,),
        in_specs=[
            pl.BlockSpec((n, btile, e), lambda i: (0, i, 0)),   # conv output
            pl.BlockSpec((btile, 1, e), lambda i: (i, 0, 0)),   # shifted token (+pos0)
            full2((n, e)),                                       # patch pos embeddings
            full2((1, e)), full2((1, e)),                        # ln gamma, beta
            full2((e, 3 * e)), full2((1, 3 * e)),                # in-proj
            full2((e, e)), full2((1, e)),                        # out-proj
        ],
        out_specs=[pl.BlockSpec((n, btile, e), lambda i: (0, i, 0)),
                   pl.BlockSpec((1, 8, e), lambda i: (i, 0, 0))],
        out_shape=[jax.ShapeDtypeStruct((n, bt, e), jnp.float32),
                   jax.ShapeDtypeStruct((tiles, 8, e), jnp.float32)],
        compiler_params=pltpu.CompilerParams(
            dimension_semantics=("parallel",), vmem_limit_bytes=_VMEM_LIMIT),
    )(x1, tok, pos_patch, _vec(p["ln1_g"]), _vec(p["ln1_b"]),
      p["attn_in_w"], _vec(p["attn_in_b"]), p["attn_out_w"], _vec(p["attn_out_b"]))


# --------------------------------------------------------------------------
# Kernel 4: fused BN2 + CMlp (fc1 -> exact GELU -> fc2) + residual
# --------------------------------------------------------------------------

def _bn_mlp_kernel(x_ref, mu_ref, rs_ref, g_ref, b_ref,
                   w1_ref, b1_ref, w2_ref, b2_ref, o_ref):
    x = x_ref[...]                                       # (rt, D) f32
    y = (x - mu_ref[...]) * rs_ref[...] * g_ref[...] + b_ref[...]
    h = jnp.dot(y.astype(jnp.bfloat16), w1_ref[...],
                preferred_element_type=jnp.float32) + b1_ref[...]
    # exact nn.GELU (erf); tanh-approx would offload to the EUP but changes numerics
    h = 0.5 * h * (1.0 + jax.lax.erf(h * _SQRT_HALF))
    y2 = jnp.dot(h.astype(jnp.bfloat16), w2_ref[...],
                 preferred_element_type=jnp.float32) + b2_ref[...]
    o_ref[...] = x + y2


def fused_bn_mlp(x2d, mean, rstd, p, *, row_target=512):
    m, d = x2d.shape
    hdim = p["fc1_w"].shape[1]
    rt = _pick_tile(m, row_target, 8)
    full2 = lambda shape: pl.BlockSpec(shape, lambda i: (0, 0))
    return pl.pallas_call(
        _bn_mlp_kernel,
        grid=(m // rt,),
        in_specs=[
            pl.BlockSpec((rt, d), lambda i: (i, 0)),
            full2((1, d)), full2((1, d)),                # mean, rstd
            full2((1, d)), full2((1, d)),                # bn gamma, beta
            full2((d, hdim)), full2((1, hdim)),          # fc1
            full2((hdim, d)), full2((1, d)),             # fc2
        ],
        out_specs=pl.BlockSpec((rt, d), lambda i: (i, 0)),
        out_shape=jax.ShapeDtypeStruct((m, d), jnp.float32),
        compiler_params=pltpu.CompilerParams(
            dimension_semantics=("parallel",), vmem_limit_bytes=_VMEM_LIMIT),
    )(x2d, mean, rstd, _vec(p["bn2_g"]), _vec(p["bn2_b"]),
      p["fc1_w"], _vec(p["fc1_b"]), p["fc2_w"], _vec(p["fc2_b"]))


# --------------------------------------------------------------------------
# AttnCBlock forward
# --------------------------------------------------------------------------

def shift_token(x_token, b, t_frames):
    """AttnCBlock.shift_token with slices (no zeros + scatter).  -> (bt, d)."""
    _, bt, d = x_token.shape
    fold = d // 2
    tok = x_token.reshape(b, t_frames, d)
    zf = jnp.zeros((b, 1, fold), tok.dtype)
    zs = jnp.zeros((b, 1, d - fold), tok.dtype)
    first = jnp.concatenate([tok[:, 1:, :fold], zf], axis=1)       # out[t] = in[t+1]
    second = jnp.concatenate([zs, tok[:, :-1, fold:]], axis=1)     # out[t] = in[t-1]
    return jnp.concatenate([first, second], axis=-1).reshape(bt, d)


def attn_c_block_forward(params, x, x_token, side_position_embeddings, *, t_frames):
    n, bt, d = x.shape
    b = bt // t_frames
    num_heads = max(1, d // 64)                          # nn.MultiheadAttention(dim, dim // 64)
    assert d % num_heads == 0

    rows = n * bt
    x_rows = x.reshape(rows, d)                          # (p, b, t)-ordered rows (free)

    # 1) BN1 stats (Pallas partial sums + tiny JAX finish)
    mean1, rstd1 = _finish_stats(bn_partial_stats(x_rows), rows, EPS_BN)

    # frame-boundary masks for the temporal depthwise conv (rows, 1)
    t_idx = jnp.arange(rows, dtype=jnp.int32) % t_frames
    mask_prev = (t_idx != 0).astype(jnp.float32).reshape(rows, 1)
    mask_next = (t_idx != t_frames - 1).astype(jnp.float32).reshape(rows, 1)

    # 2) fused BN1 + pw1 + temporal dw + pw2 + residual
    x1 = conv_branch(x_rows, mask_prev, mask_next, mean1, rstd1, params,
                     t_frames=t_frames).reshape(n, bt, d)

    # 3) token shift + its positional row (tiny JAX); patch pos rows go in-kernel
    tok = (shift_token(x_token, b, t_frames)
           + side_position_embeddings[0]).reshape(bt, 1, d)
    pos_patch = side_position_embeddings[1:]             # (n, d)

    # 4) fused LN1 + MHA + out-proj + residual (+ BN2 partial stats)
    x2, part2 = fused_attention(x1, tok, pos_patch, params, num_heads=num_heads)
    mean2, rstd2 = _finish_stats(part2, rows, EPS_BN)

    # 5) fused BN2 + CMlp + residual (rows already in (n, bt, d) order)
    out = fused_bn_mlp(x2.reshape(rows, d), mean2, rstd2, params)
    return out.reshape(n, bt, d)


# --------------------------------------------------------------------------
# Parameter init (mirrors AttnCBlock.__init__ init scheme)
# --------------------------------------------------------------------------

def init_params(key, *, dim, side_dim):
    ks = jax.random.split(key, 8)
    side_attn_std = dim ** -0.5
    side_fc_std = (2 * dim) ** -0.5
    side_proj_std = dim ** -0.5 * (2 * 12) ** -0.5
    hidden = 4 * dim

    def nrm(k, shape, std):
        return std * jax.random.normal(k, shape, dtype=jnp.float32)

    zeros = lambda s: jnp.zeros(s, jnp.float32)
    ones = lambda s: jnp.ones(s, jnp.float32)
    bf = lambda a: a.astype(jnp.bfloat16)                # matmul weights feed the MXU in bf16

    return dict(
        bn1_g=ones((dim,)), bn1_b=zeros((dim,)),
        bn2_g=ones((dim,)), bn2_b=zeros((dim,)),
        ln1_g=ones((dim,)), ln1_b=zeros((dim,)),
        pw1_w=bf(nrm(ks[0], (dim, side_dim), 0.02)), pw1_b=zeros((side_dim,)),
        dw_w=nrm(ks[1], (3, side_dim), side_attn_std), dw_b=zeros((side_dim,)),
        pw2_w=bf(nrm(ks[2], (side_dim, dim), 0.02)), pw2_b=zeros((dim,)),
        attn_in_w=bf(nrm(ks[3], (dim, 3 * dim), side_attn_std)), attn_in_b=zeros((3 * dim,)),
        attn_out_w=bf(nrm(ks[4], (dim, dim), side_proj_std)), attn_out_b=zeros((dim,)),
        fc1_w=bf(nrm(ks[5], (dim, hidden), side_fc_std)), fc1_b=zeros((hidden,)),
        fc2_w=bf(nrm(ks[6], (hidden, dim), side_proj_std)), fc2_b=zeros((dim,)),
    )


# --------------------------------------------------------------------------

if __name__ == "__main__":
    DIM = 64          # attention: DIM // 64 = 1 head, head_dim 64
    SIDE_DIM = 32     # conv-branch bottleneck width
    T = 4             # frames
    H = W = 4         # spatial grid -> n = 16 patches
    B = 2             # videos -> bt = B*T = 8
    n = H * W
    bt = B * T

    key = jax.random.PRNGKey(0)
    kp, kx, kt, ke = jax.random.split(key, 4)
    params = init_params(kp, dim=DIM, side_dim=SIDE_DIM)

    x = jax.random.normal(kx, (n, bt, DIM), dtype=jnp.float32)
    x_token = jax.random.normal(kt, (1, bt, DIM), dtype=jnp.float32)
    pos_emb = 0.01 * jax.random.normal(ke, (n + 1, DIM), dtype=jnp.float32)

    fwd = jax.jit(functools.partial(attn_c_block_forward, t_frames=T))
    out = fwd(params, x, x_token, pos_emb)
    jax.block_until_ready(out)
    assert out.shape == (n, bt, DIM) and out.dtype == jnp.float32
    assert bool(jnp.all(jnp.isfinite(out)))
    print("KERNEL_OK")
</pallas_src>

<mosaic_0001>
module attributes {stable_mosaic.version = 11 : i64} {
  func.func @_bn_partial_kernel(%arg0: i32, %arg1: memref<128x64xf32, #tpu.memory_space<vmem>>, %arg2: memref<1x8x64xf32, #tpu.memory_space<vmem>>) attributes {dimension_semantics = [#tpu.dimension_semantics<parallel>], iteration_bounds = array<i64: 1>, scalar_prefetch = 0 : i64, scratch_operands = 0 : i64, tpu.core_type = #tpu.core_type<tc>, window_params = [{transform_indices = @transform_0, window_bounds = array<i64: 128, 64>}, {transform_indices = @transform_1, window_bounds = array<i64: 1, 8, 64>}]} {
    %c0 = arith.constant 0 : index
    %c0_0 = arith.constant 0 : index
    %0 = vector.load %arg1[%c0, %c0_0] : memref<128x64xf32, #tpu.memory_space<vmem>>, vector<128x64xf32>
    %cst = arith.constant dense<0.000000e+00> : vector<64xf32>
    %1 = vector.multi_reduction <add>, %0, %cst [0] : vector<128x64xf32> to vector<64xf32>
    %2 = vector.shape_cast %1 : vector<64xf32> to vector<1x64xf32>
    %3 = arith.mulf %0, %0 : vector<128x64xf32>
    %cst_1 = arith.constant dense<0.000000e+00> : vector<64xf32>
    %4 = vector.multi_reduction <add>, %3, %cst_1 [0] : vector<128x64xf32> to vector<64xf32>
    %5 = vector.shape_cast %4 : vector<64xf32> to vector<1x64xf32>
    %cst_2 = arith.constant 0.000000e+00 : f32
    %6 = vector.broadcast %cst_2 : f32 to vector<6x64xf32>
    %7 = tpu.concatenate %2, %5, %6 in 0 : vector<1x64xf32>, vector<1x64xf32>, vector<6x64xf32> -> vector<8x64xf32>
    %8 = vector.shape_cast %7 : vector<8x64xf32> to vector<1x8x64xf32>
    %c0_3 = arith.constant 0 : index
    %c0_4 = arith.constant 0 : index
    %c0_5 = arith.constant 0 : index
    %9 = vector.load %arg2[%c0_3, %c0_4, %c0_5] : memref<1x8x64xf32, #tpu.memory_space<vmem>>, vector<1x8x64xf32>
    tpu.vector_store %arg2[%c0_3, %c0_4, %c0_5], %8 {strides = array<i32>} : memref<1x8x64xf32, #tpu.memory_space<vmem>>, vector<1x8x64xf32>,
    return
  }
  func.func @transform_0(%arg0: i32) -> (i32, i32) {
    %c0_i32 = arith.constant 0 : i32
    %c0_i32_0 = arith.constant 0 : i32
    return %arg0, %c0_i32 : i32, i32
  }
  func.func @transform_1(%arg0: i32) -> (i32, i32, i32) {
    %c0_i32 = arith.constant 0 : i32
    %c0_i32_0 = arith.constant 0 : i32
    %c0_i32_1 = arith.constant 0 : i32
    return %arg0, %c0_i32, %c0_i32_0 : i32, i32, i32
  }
}

module attributes {stable_mosaic.version = 11 : i64} {
  func.func @_conv_branch_kernel(%arg0: i32, %arg1: memref<128x64xf32, #tpu.memory_space<vmem>>, %arg2: memref<128x1xf32, #tpu.memory_space<vmem>>, %arg3: memref<128x1xf32, #tpu.memory_space<vmem>>, %arg4: memref<1x64xf32, #tpu.memory_space<vmem>>, %arg5: memref<1x64xf32, #tpu.memory_space<vmem>>, %arg6: memref<1x64xf32, #tpu.memory_space<vmem>>, %arg7: memref<1x64xf32, #tpu.memory_space<vmem>>, %arg8: memref<64x32xbf16, #tpu.memory_space<vmem>>, %arg9: memref<1x32xf32, #tpu.memory_space<vmem>>, %arg10: memref<3x32xf32, #tpu.memory_space<vmem>>, %arg11: memref<1x32xf32, #tpu.memory_space<vmem>>, %arg12: memref<32x64xbf16, #tpu.memory_space<vmem>>, %arg13: memref<1x64xf32, #tpu.memory_space<vmem>>, %arg14: memref<128x64xf32, #tpu.memory_space<vmem>>) attributes {dimension_semantics = [#tpu.dimension_semantics<parallel>], iteration_bounds = array<i64: 1>, scalar_prefetch = 0 : i64, scratch_operands = 0 : i64, tpu.core_type = #tpu.core_type<tc>, window_params = [{transform_indices = @transform_0, window_bounds = array<i64: 128, 64>}, {transform_indices = @transform_1, window_bounds = array<i64: 128, 1>}, {transform_indices = @transform_2, window_bounds = array<i64: 128, 1>}, {pipeline_mode = #tpu.pipeline_mode<synchronous>, transform_indices = @transform_3, window_bounds = array<i64: 1, 64>}, {pipeline_mode = #tpu.pipeline_mode<synchronous>, transform_indices = @transform_4, window_bounds = array<i64: 1, 64>}, {pipeline_mode = #tpu.pipeline_mode<synchronous>, transform_indices = @transform_5, window_bounds = array<i64: 1, 64>}, {pipeline_mode = #tpu.pipeline_mode<synchronous>, transform_indices = @transform_6, window_bounds = array<i64: 1, 64>}, {pipeline_mode = #tpu.pipeline_mode<synchronous>, transform_indices = @transform_7, window_bounds = array<i64: 64, 32>}, {pipeline_mode = #tpu.pipeline_mode<synchronous>, transform_indices = @transform_8, window_bounds = array<i64: 1, 32>}, {pipeline_mode = #tpu.pipeline_mode<synchronous>, transform_indices = @transform_9, window_bounds = array<i64: 3, 32>}, {pipeline_mode = #tpu.pipeline_mode<synchronous>, transform_indices = @transform_10, window_bounds = array<i64: 1, 32>}, {pipeline_mode = #tpu.pipeline_mode<synchronous>, transform_indices = @transform_11, window_bounds = array<i64: 32, 64>}, {pipeline_mode = #tpu.pipeline_mode<synchronous>, transform_indices = @transform_12, window_bounds = array<i64: 1, 64>}, {transform_indices = @transform_13, window_bounds = array<i64: 128, 64>}]} {
    %c0 = arith.constant 0 : index
    %c0_0 = arith.constant 0 : index
    %0 = vector.load %arg1[%c0, %c0_0] : memref<128x64xf32, #tpu.memory_space<vmem>>, vector<128x64xf32>
    %c0_1 = arith.constant 0 : index
    %c0_2 = arith.constant 0 : index
    %1 = vector.load %arg4[%c0_1, %c0_2] : memref<1x64xf32, #tpu.memory_space<vmem>>, vector<1x64xf32>
    %2 = vector.broadcast %1 : vector<1x64xf32> to vector<128x64xf32>
    %3 = arith.subf %0, %2 : vector<128x64xf32>
    %c0_3 = arith.constant 0 : index
    %c0_4 = arith.constant 0 : index
    %4 = vector.load %arg5[%c0_3, %c0_4] : memref<1x64xf32, #tpu.memory_space<vmem>>, vector<1x64xf32>
    %5 = vector.broadcast %4 : vector<1x64xf32> to vector<128x64xf32>
    %6 = arith.mulf %3, %5 : vector<128x64xf32>
    %c0_5 = arith.constant 0 : index
    %c0_6 = arith.constant 0 : index
    %7 = vector.load %arg6[%c0_5, %c0_6] : memref<1x64xf32, #tpu.memory_space<vmem>>, vector<1x64xf32>
    %8 = vector.broadcast %7 : vector<1x64xf32> to vector<128x64xf32>
    %9 = arith.mulf %6, %8 : vector<128x64xf32>
    %c0_7 = arith.constant 0 : index
    %c0_8 = arith.constant 0 : index
    %10 = vector.load %arg7[%c0_7, %c0_8] : memref<1x64xf32, #tpu.memory_space<vmem>>, vector<1x64xf32>
    %11 = vector.broadcast %10 : vector<1x64xf32> to vector<128x64xf32>
    %12 = arith.addf %9, %11 : vector<128x64xf32>
    %13 = arith.truncf %12 : vector<128x64xf32> to vector<128x64xbf16>
    %c0_9 = arith.constant 0 : index
    %c0_10 = arith.constant 0 : index
    %14 = vector.load %arg8[%c0_9, %c0_10] : memref<64x32xbf16, #tpu.memory_space<vmem>>, vector<64x32xbf16>
    %cst = arith.constant dense<0.000000e+00> : vector<128x32xf32>
    %15 = tpu.matmul %13, %14, %cst {dimension_numbers = #tpu.dot_dimension_numbers<[1], [0], [0], [1], [0, 0, 1, 1], [], []>} : vector<128x64xbf16>, vector<64x32xbf16>, vector<128x32xf32> -> vector<128x32xf32>
    %c0_11 = arith.constant 0 : index
    %c0_12 = arith.constant 0 : index
    %16 = vector.load %arg9[%c0_11, %c0_12] : memref<1x32xf32, #tpu.memory_space<vmem>>, vector<1x32xf32>
    %17 = vector.broadcast %16 : vector<1x32xf32> to vector<128x32xf32>
    %18 = arith.addf %15, %17 : vector<128x32xf32>
    %cst_13 = arith.constant 0.000000e+00 : f32
    %19 = vector.broadcast %cst_13 : f32 to vector<1x32xf32>
    %20 = vector.extract_strided_slice %18 {offsets = [0, 0], sizes = [127, 32], strides = [1, 1]} : vector<128x32xf32> to vector<127x32xf32>
    %21 = tpu.concatenate %19, %20 in 0 : vector<1x32xf32>, vector<127x32xf32> -> vector<128x32xf32>
    %c0_14 = arith.constant 0 : index
    %c0_15 = arith.constant 0 : index
    %22 = vector.load %arg2[%c0_14, %c0_15] : memref<128x1xf32, #tpu.memory_space<vmem>>, vector<128x1xf32>
    %23 = vector.broadcast %22 : vector<128x1xf32> to vector<128x32xf32>
    %24 = arith.mulf %21, %23 : vector<128x32xf32>
    %25 = vector.extract_strided_slice %18 {offsets = [1, 0], sizes = [127, 32], strides = [1, 1]} : vector<128x32xf32> to vector<127x32xf32>
    %26 = tpu.concatenate %25, %19 in 0 : vector<127x32xf32>, vector<1x32xf32> -> vector<128x32xf32>
    %c0_16 = arith.constant 0 : index
    %c0_17 = arith.constant 0 : index
    %27 = vector.load %arg3[%c0_16, %c0_17] : memref<128x1xf32, #tpu.memory_space<vmem>>, vector<128x1xf32>
    %28 = vector.broadcast %27 : vector<128x1xf32> to vector<128x32xf32>
    %29 = arith.mulf %26, %28 : vector<128x32xf32>
    %c1 = arith.constant 1 : index
    %c0_18 = arith.constant 0 : index
    %30 = vector.load %arg10[%c1, %c0_18] : memref<3x32xf32, #tpu.memory_space<vmem>>, vector<1x32xf32>
    %31 = vector.broadcast %30 : vector<1x32xf32> to vector<128x32xf32>
    %32 = arith.mulf %18, %31 : vector<128x32xf32>
    %c0_19 = arith.constant 0 : index
    %c0_20 = arith.constant 0 : index
    %33 = vector.load %arg10[%c0_19, %c0_20] : memref<3x32xf32, #tpu.memory_space<vmem>>, vector<1x32xf32>
    %34 = vector.broadcast %33 : vector<1x32xf32> to vector<128x32xf32>
    %35 = arith.mulf %24, %34 : vector<128x32xf32>
    %36 = arith.addf %32, %35 : vector<128x32xf32>
    %c2 = arith.constant 2 : index
    %c0_21 = arith.constant 0 : index
    %37 = vector.load %arg10[%c2, %c0_21] : memref<3x32xf32, #tpu.memory_space<vmem>>, vector<1x32xf32>
    %38 = vector.broadcast %37 : vector<1x32xf32> to vector<128x32xf32>
    %39 = arith.mulf %29, %38 : vector<128x32xf32>
    %40 = arith.addf %36, %39 : vector<128x32xf32>
    %c0_22 = arith.constant 0 : index
    %c0_23 = arith.constant 0 : index
    %41 = vector.load %arg11[%c0_22, %c0_23] : memref<1x32xf32, #tpu.memory_space<vmem>>, vector<1x32xf32>
    %42 = vector.broadcast %41 : vector<1x32xf32> to vector<128x32xf32>
    %43 = arith.addf %40, %42 : vector<128x32xf32>
    %44 = arith.truncf %43 : vector<128x32xf32> to vector<128x32xbf16>
    %c0_24 = arith.constant 0 : index
    %c0_25 = arith.constant 0 : index
    %45 = vector.load %arg12[%c0_24, %c0_25] : memref<32x64xbf16, #tpu.memory_space<vmem>>, vector<32x64xbf16>
    %cst_26 = arith.constant dense<0.000000e+00> : vector<128x64xf32>
    %46 = tpu.matmul %44, %45, %cst_26 {dimension_numbers = #tpu.dot_dimension_numbers<[1], [0], [0], [1], [0, 0, 1, 1], [], []>} : vector<128x32xbf16>, vector<32x64xbf16>, vector<128x64xf32> -> vector<128x64xf32>
    %c0_27 = arith.constant 0 : index
    %c0_28 = arith.constant 0 : index
    %47 = vector.load %arg13[%c0_27, %c0_28] : memref<1x64xf32, #tpu.memory_space<vmem>>, vector<1x64xf32>
    %48 = vector.broadcast %47 : vector<1x64xf32> to vector<128x64xf32>
    %49 = arith.addf %46, %48 : vector<128x64xf32>
    %50 = arith.addf %0, %49 : vector<128x64xf32>
    %c0_29 = arith.constant 0 : index
    %c0_30 = arith.constant 0 : index
    %51 = vector.load %arg14[%c0_29, %c0_30] : memref<128x64xf32, #tpu.memory_space<vmem>>, vector<128x64xf32>
    tpu.vector_store %arg14[%c0_29, %c0_30], %50 {strides = array<i32>} : memref<128x64xf32, #tpu.memory_space<vmem>>, vector<128x64xf32>,
    return
  }
  func.func @transform_0(%arg0: i32) -> (i32, i32) {
    %c0_i32 = arith.constant 0 : i32
    %c0_i32_0 = arith.constant 0 : i32
    return %arg0, %c0_i32 : i32, i32
  }
  func.func @transform_1(%arg0: i32) -> (i32, i32) {
    %c0_i32 = arith.constant 0 : i32
    %c0_i32_0 = arith.constant 0 : i32
    return %arg0, %c0_i32 : i32, i32
  }
  func.func @transform_2(%arg0: i32) -> (i32, i32) {
    %c0_i32 = arith.constant 0 : i32
    %c0_i32_0 = arith.constant 0 : i32
    return %arg0, %c0_i32 : i32, i32
  }
  func.func @transform_3(%arg0: i32) -> (i32, i32) {
    %c0_i32 = arith.constant 0 : i32
    %c0_i32_0 = arith.constant 0 : i32
    %c0_i32_1 = arith.constant 0 : i32
    return %c0_i32, %c0_i32_0 : i32, i32
  }
  func.func @transform_4(%arg0: i32) -> (i32, i32) {
    %c0_i32 = arith.constant 0 : i32
    %c0_i32_0 = arith.constant 0 : i32
    %c0_i32_1 = arith.constant 0 : i32
    return %c0_i32, %c0_i32_0 : i32, i32
  }
  func.func @transform_5(%arg0: i32) -> (i32, i32) {
    %c0_i32 = arith.constant 0 : i32
    %c0_i32_0 = arith.constant 0 : i32
    %c0_i32_1 = arith.constant 0 : i32
    return %c0_i32, %c0_i32_0 : i32, i32
  }
  func.func @transform_6(%arg0: i32) -> (i32, i32) {
    %c0_i32 = arith.constant 0 : i32
    %c0_i32_0 = arith.constant 0 : i32
    %c0_i32_1 = arith.constant 0 : i32
    return %c0_i32, %c0_i32_0 : i32, i32
  }
  func.func @transform_7(%arg0: i32) -> (i32, i32) {
    %c0_i32 = arith.constant 0 : i32
    %c0_i32_0 = arith.constant 0 : i32
    %c0_i32_1 = arith.constant 0 : i32
    return %c0_i32, %c0_i32_0 : i32, i32
  }
  func.func @transform_8(%arg0: i32) -> (i32, i32) {
    %c0_i32 = arith.constant 0 : i32
    %c0_i32_0 = arith.constant 0 : i32
    %c0_i32_1 = arith.constant 0 : i32
    return %c0_i32, %c0_i32_0 : i32, i32
  }
  func.func @transform_9(%arg0: i32) -> (i32, i32) {
    %c0_i32 = arith.constant 0 : i32
    %c0_i32_0 = arith.constant 0 : i32
    %c0_i32_1 = arith.constant 0 : i32
    return %c0_i32, %c0_i32_0 : i32, i32
  }
  func.func @transform_10(%arg0: i32) -> (i32, i32) {
    %c0_i32 = arith.constant 0 : i32
    %c0_i32_0 = arith.constant 0 : i32
    %c0_i32_1 = arith.constant 0 : i32
    return %c0_i32, %c0_i32_0 : i32, i32
  }
  func.func @transform_11(%arg0: i32) -> (i32, i32) {
    %c0_i32 = arith.constant 0 : i32
    %c0_i32_0 = arith.constant 0 : i32
    %c0_i32_1 = arith.constant 0 : i32
    return %c0_i32, %c0_i32_0 : i32, i32
  }
  func.func @transform_12(%arg0: i32) -> (i32, i32) {
    %c0_i32 = arith.constant 0 : i32
    %c0_i32_0 = arith.constant 0 : i32
    %c0_i32_1 = arith.constant 0 : i32
    return %c0_i32, %c0_i32_0 : i32, i32
  }
  func.func @transform_13(%arg0: i32) -> (i32, i32) {
    %c0_i32 = arith.constant 0 : i32
    %c0_i32_0 = arith.constant 0 : i32
    return %arg0, %c0_i32 : i32, i32
  }
}

module attributes {stable_mosaic.version = 11 : i64} {
  func.func @_attn_kernel(%arg0: i32, %arg1: memref<16x8x64xf32, #tpu.memory_space<vmem>>, %arg2: memref<8x1x64xf32, #tpu.memory_space<vmem>>, %arg3: memref<16x64xf32, #tpu.memory_space<vmem>>, %arg4: memref<1x64xf32, #tpu.memory_space<vmem>>, %arg5: memref<1x64xf32, #tpu.memory_space<vmem>>, %arg6: memref<64x192xbf16, #tpu.memory_space<vmem>>, %arg7: memref<1x192xf32, #tpu.memory_space<vmem>>, %arg8: memref<64x64xbf16, #tpu.memory_space<vmem>>, %arg9: memref<1x64xf32, #tpu.memory_space<vmem>>, %arg10: memref<16x8x64xf32, #tpu.memory_space<vmem>>, %arg11: memref<1x8x64xf32, #tpu.memory_space<vmem>>) attributes {dimension_semantics = [#tpu.dimension_semantics<parallel>], iteration_bounds = array<i64: 1>, scalar_prefetch = 0 : i64, scratch_operands = 0 : i64, tpu.core_type = #tpu.core_type<tc>, window_params = [{transform_indices = @transform_0, window_bounds = array<i64: 16, 8, 64>}, {transform_indices = @transform_1, window_bounds = array<i64: 8, 1, 64>}, {pipeline_mode = #tpu.pipeline_mode<synchronous>, transform_indices = @transform_2, window_bounds = array<i64: 16, 64>}, {pipeline_mode = #tpu.pipeline_mode<synchronous>, transform_indices = @transform_3, window_bounds = array<i64: 1, 64>}, {pipeline_mode = #tpu.pipeline_mode<synchronous>, transform_indices = @transform_4, window_bounds = array<i64: 1, 64>}, {pipeline_mode = #tpu.pipeline_mode<synchronous>, transform_indices = @transform_5, window_bounds = array<i64: 64, 192>}, {pipeline_mode = #tpu.pipeline_mode<synchronous>, transform_indices = @transform_6, window_bounds = array<i64: 1, 192>}, {pipeline_mode = #tpu.pipeline_mode<synchronous>, transform_indices = @transform_7, window_bounds = array<i64: 64, 64>}, {pipeline_mode = #tpu.pipeline_mode<synchronous>, transform_indices = @transform_8, window_bounds = array<i64: 1, 64>}, {transform_indices = @transform_9, window_bounds = array<i64: 16, 8, 64>}, {transform_indices = @transform_10, window_bounds = array<i64: 1, 8, 64>}]} {
    %c0 = arith.constant 0 : index
    %c0_0 = arith.constant 0 : index
    %0 = vector.load %arg3[%c0, %c0_0] : memref<16x64xf32, #tpu.memory_space<vmem>>, vector<16x64xf32>
    %c0_1 = arith.constant 0 : index
    %c0_2 = arith.constant 0 : index
    %1 = vector.load %arg4[%c0_1, %c0_2] : memref<1x64xf32, #tpu.memory_space<vmem>>, vector<1x64xf32>
    %c0_3 = arith.constant 0 : index
    %c0_4 = arith.constant 0 : index
    %2 = vector.load %arg5[%c0_3, %c0_4] : memref<1x64xf32, #tpu.memory_space<vmem>>, vector<1x64xf32>
    %c0_5 = arith.constant 0 : index
    %c0_6 = arith.constant 0 : index
    %3 = vector.load %arg6[%c0_5, %c0_6] : memref<64x192xbf16, #tpu.memory_space<vmem>>, vector<64x192xbf16>
    %c0_7 = arith.constant 0 : index
    %c0_8 = arith.constant 0 : index
    %4 = vector.load %arg7[%c0_7, %c0_8] : memref<1x192xf32, #tpu.memory_space<vmem>>, vector<1x192xf32>
    %c0_9 = arith.constant 0 : index
    %c0_10 = arith.constant 0 : index
    %5 = vector.load %arg9[%c0_9, %c0_10] : memref<1x64xf32, #tpu.memory_space<vmem>>, vector<1x64xf32>
    %c0_11 = arith.constant 0 : index
    %c0_12 = arith.constant 0 : index
    %6 = vector.load %arg8[%c0_11, %c0_12] : memref<64x64xbf16, #tpu.memory_space<vmem>>, vector<64x64xbf16>
    %cst = arith.constant 0.000000e+00 : f32
    %7 = vector.broadcast %cst : f32 to vector<1x64xf32>
    %cst_13 = arith.constant 0.000000e+00 : f32
    %8 = vector.broadcast %cst_13 : f32 to vector<1x64xf32>
    %c0_14 = arith.constant 0 : index
    %c0_15 = arith.constant 0 : index
    %c0_16 = arith.constant 0 : index
    %9 = vector.load %arg1[%c0_14, %c0_15, %c0_16] : memref<16x8x64xf32, #tpu.memory_space<vmem>>, vector<16x1x64xf32>
    %10 = vector.shape_cast %9 : vector<16x1x64xf32> to vector<16x64xf32>
    %c0_17 = arith.constant 0 : index
    %c0_18 = arith.constant 0 : index
    %c0_19 = arith.constant 0 : index
    %11 = vector.load %arg2[%c0_17, %c0_18, %c0_19] : memref<8x1x64xf32, #tpu.memory_space<vmem>>, vector<1x1x64xf32>
    %12 = vector.shape_cast %11 : vector<1x1x64xf32> to vector<1x64xf32>
    %13 = arith.addf %10, %0 : vector<16x64xf32>
    %14 = tpu.concatenate %13, %12 in 0 : vector<16x64xf32>, vector<1x64xf32> -> vector<17x64xf32>
    %cst_20 = arith.constant dense<0.000000e+00> : vector<17xf32>
    %15 = vector.multi_reduction <add>, %14, %cst_20 [1] : vector<17x64xf32> to vector<17xf32>
    %16 = vector.shape_cast %15 : vector<17xf32> to vector<17x1xf32>
    %cst_21 = arith.constant 6.400000e+01 : f32
    %17 = vector.broadcast %cst_21 : f32 to vector<17x1xf32>
    %18 = arith.divf %16, %17 : vector<17x1xf32>
    %19 = vector.broadcast %18 : vector<17x1xf32> to vector<17x64xf32>
    %20 = arith.subf %14, %19 : vector<17x64xf32>
    %21 = arith.mulf %20, %20 : vector<17x64xf32>
    %cst_22 = arith.constant dense<0.000000e+00> : vector<17xf32>
    %22 = vector.multi_reduction <add>, %21, %cst_22 [1] : vector<17x64xf32> to vector<17xf32>
    %23 = vector.shape_cast %22 : vector<17xf32> to vector<17x1xf32>
    %cst_23 = arith.constant 6.400000e+01 : f32
    %24 = vector.broadcast %cst_23 : f32 to vector<17x1xf32>
    %25 = arith.divf %23, %24 : vector<17x1xf32>
    %26 = vector.broadcast %18 : vector<17x1xf32> to vector<17x64xf32>
    %27 = arith.subf %14, %26 : vector<17x64xf32>
    %cst_24 = arith.constant 9.99999974E-6 : f32
    %28 = vector.broadcast %cst_24 : f32 to vector<17x1xf32>
    %29 = arith.addf %25, %28 : vector<17x1xf32>
    %30 = math.rsqrt %29 : vector<17x1xf32>
    %31 = vector.broadcast %30 : vector<17x1xf32> to vector<17x64xf32>
    %32 = arith.mulf %27, %31 : vector<17x64xf32>
    %33 = vector.broadcast %1 : vector<1x64xf32> to vector<17x64xf32>
    %34 = arith.mulf %32, %33 : vector<17x64xf32>
    %35 = vector.broadcast %2 : vector<1x64xf32> to vector<17x64xf32>
    %36 = arith.addf %34, %35 : vector<17x64xf32>
    %37 = arith.truncf %36 : vector<17x64xf32> to vector<17x64xbf16>
    %cst_25 = arith.constant dense<0.000000e+00> : vector<17x192xf32>
    %38 = tpu.matmul %37, %3, %cst_25 {dimension_numbers = #tpu.dot_dimension_numbers<[1], [0], [0], [1], [0, 0, 1, 1], [], []>} : vector<17x64xbf16>, vector<64x192xbf16>, vector<17x192xf32> -> vector<17x192xf32>
    %39 = vector.broadcast %4 : vector<1x192xf32> to vector<17x192xf32>
    %40 = arith.addf %38, %39 : vector<17x192xf32>
    %cst_26 = arith.constant 0.000000e+00 : f32
    %41 = vector.broadcast %cst_26 : f32 to vector<16x64xf32>
    %42 = vector.extract_strided_slice %40 {offsets = [0, 0], sizes = [16, 64], strides = [1, 1]} : vector<17x192xf32> to vector<16x64xf32>
    %cst_27 = arith.constant 1.250000e-01 : f32
    %43 = vector.broadcast %cst_27 : f32 to vector<16x64xf32>
    %44 = arith.mulf %42, %43 : vector<16x64xf32>
    %45 = vector.extract_strided_slice %40 {offsets = [0, 64], sizes = [17, 64], strides = [1, 1]} : vector<17x192xf32> to vector<17x64xf32>
    %46 = vector.extract_strided_slice %40 {offsets = [0, 128], sizes = [17, 64], strides = [1, 1]} : vector<17x192xf32> to vector<17x64xf32>
    %47 = arith.truncf %44 : vector<16x64xf32> to vector<16x64xbf16>
    %48 = arith.truncf %45 : vector<17x64xf32> to vector<17x64xbf16>
    %cst_28 = arith.constant dense<0.000000e+00> : vector<16x17xf32>
    %49 = tpu.matmul %47, %48, %cst_28 {dimension_numbers = #tpu.dot_dimension_numbers<[1], [1], [0], [0], [0, 0, 1, 0], [], []>} : vector<16x64xbf16>, vector<17x64xbf16>, vector<16x17xf32> -> vector<16x17xf32>
    %cst_29 = arith.constant dense<0xFF800000> : vector<16xf32>
    %50 = vector.multi_reduction <maximumf>, %49, %cst_29 [1] : vector<16x17xf32> to vector<16xf32>
    %51 = vector.shape_cast %50 : vector<16xf32> to vector<16x1xf32>
    %52 = vector.broadcast %51 : vector<16x1xf32> to vector<16x17xf32>
    %53 = arith.subf %49, %52 : vector<16x17xf32>
    %54 = math.exp %53 : vector<16x17xf32>
    %cst_30 = arith.constant dense<0.000000e+00> : vector<16xf32>
    %55 = vector.multi_reduction <add>, %54, %cst_30 [1] : vector<16x17xf32> to vector<16xf32>
    %56 = vector.shape_cast %55 : vector<16xf32> to vector<16x1xf32>
    %57 = arith.truncf %54 : vector<16x17xf32> to vector<16x17xbf16>
    %58 = arith.truncf %46 : vector<17x64xf32> to vector<17x64xbf16>
    %cst_31 = arith.constant dense<0.000000e+00> : vector<16x64xf32>
    %59 = tpu.matmul %57, %58, %cst_31 {dimension_numbers = #tpu.dot_dimension_numbers<[1], [0], [0], [1], [0, 0, 1, 1], [], []>} : vector<16x17xbf16>, vector<17x64xbf16>, vector<16x64xf32> -> vector<16x64xf32>
    %60 = vector.broadcast %56 : vector<16x1xf32> to vector<16x64xf32>
    %61 = arith.divf %59, %60 : vector<16x64xf32>
    %62 = arith.truncf %61 : vector<16x64xf32> to vector<16x64xbf16>
    %cst_32 = arith.constant dense<0.000000e+00> : vector<16x64xf32>
    %63 = tpu.matmul %62, %6, %cst_32 {dimension_numbers = #tpu.dot_dimension_numbers<[1], [0], [0], [1], [0, 0, 1, 1], [], []>} : vector<16x64xbf16>, vector<64x64xbf16>, vector<16x64xf32> -> vector<16x64xf32>
    %64 = arith.addf %41, %63 : vector<16x64xf32>
    %65 = arith.addf %10, %64 : vector<16x64xf32>
    %66 = vector.broadcast %5 : vector<1x64xf32> to vector<16x64xf32>
    %67 = arith.addf %65, %66 : vector<16x64xf32>
    %c0_33 = arith.constant 0 : index
    %c0_34 = arith.constant 0 : index
    %c0_35 = arith.constant 0 : index
    %68 = vector.load %arg10[%c0_33, %c0_34, %c0_35] : memref<16x8x64xf32, #tpu.memory_space<vmem>>, vector<16x1x64xf32>
    %69 = vector.shape_cast %68 : vector<16x1x64xf32> to vector<16x64xf32>
    %70 = vector.shape_cast %67 : vector<16x64xf32> to vector<16x1x64xf32>
    tpu.vector_store %arg10[%c0_33, %c0_34, %c0_35], %70 {strides = array<i32>} : memref<16x8x64xf32, #tpu.memory_space<vmem>>, vector<16x1x64xf32>,
    %cst_36 = arith.constant dense<0.000000e+00> : vector<64xf32>
    %71 = vector.multi_reduction <add>, %67, %cst_36 [0] : vector<16x64xf32> to vector<64xf32>
    %72 = vector.shape_cast %71 : vector<64xf32> to vector<1x64xf32>
    %73 = arith.addf %7, %72 : vector<1x64xf32>
    %74 = arith.mulf %67, %67 : vector<16x64xf32>
    %cst_37 = arith.constant dense<0.000000e+00> : vector<64xf32>
    %75 = vector.multi_reduction <add>, %74, %cst_37 [0] : vector<16x64xf32> to vector<64xf32>
    %76 = vector.shape_cast %75 : vector<64xf32> to vector<1x64xf32>
    %77 = arith.addf %8, %76 : vector<1x64xf32>
    %c0_38 = arith.constant 0 : index
    %c1 = arith.constant 1 : index
    %c0_39 = arith.constant 0 : index
    %78 = vector.load %arg1[%c0_38, %c1, %c0_39] : memref<16x8x64xf32, #tpu.memory_space<vmem>>, vector<16x1x64xf32>
    %79 = vector.shape_cast %78 : vector<16x1x64xf32> to vector<16x64xf32>
    %c1_40 = arith.constant 1 : index
    %c0_41 = arith.constant 0 : index
    %c0_42 = arith.constant 0 : index
    %80 = vector.load %arg2[%c1_40, %c0_41, %c0_42] : memref<8x1x64xf32, #tpu.memory_space<vmem>>, vector<1x1x64xf32>
    %81 = vector.shape_cast %80 : vector<1x1x64xf32> to vector<1x64xf32>
    %82 = arith.addf %79, %0 : vector<16x64xf32>
    %83 = tpu.concatenate %82, %81 in 0 : vector<16x64xf32>, vector<1x64xf32> -> vector<17x64xf32>
    %cst_43 = arith.constant dense<0.000000e+00> : vector<17xf32>
    %84 = vector.multi_reduction <add>, %83, %cst_43 [1] : vector<17x64xf32> to vector<17xf32>
    %85 = vector.shape_cast %84 : vector<17xf32> to vector<17x1xf32>
    %cst_44 = arith.constant 6.400000e+01 : f32
    %86 = vector.broadcast %cst_44 : f32 to vector<17x1xf32>
    %87 = arith.divf %85, %86 : vector<17x1xf32>
    %88 = vector.broadcast %87 : vector<17x1xf32> to vector<17x64xf32>
    %89 = arith.subf %83, %88 : vector<17x64xf32>
    %90 = arith.mulf %89, %89 : vector<17x64xf32>
    %cst_45 = arith.constant dense<0.000000e+00> : vector<17xf32>
    %91 = vector.multi_reduction <add>, %90, %cst_45 [1] : vector<17x64xf32> to vector<17xf32>
    %92 = vector.shape_cast %91 : vector<17xf32> to vector<17x1xf32>
    %cst_46 = arith.constant 6.400000e+01 : f32
    %93 = vector.broadcast %cst_46 : f32 to vector<17x1xf32>
    %94 = arith.divf %92, %93 : vector<17x1xf32>
    %95 = vector.broadcast %87 : vector<17x1xf32> to vector<17x64xf32>
    %96 = arith.subf %83, %95 : vector<17x64xf32>
    %cst_47 = arith.constant 9.99999974E-6 : f32
    %97 = vector.broadcast %cst_47 : f32 to vector<17x1xf32>
    %98 = arith.addf %94, %97 : vector<17x1xf32>
    %99 = math.rsqrt %98 : vector<17x1xf32>
    %100 = vector.broadcast %99 : vector<17x1xf32> to vector<17x64xf32>
    %101 = arith.mulf %96, %100 : vector<17x64xf32>
    %102 = vector.broadcast %1 : vector<1x64xf32> to vector<17x64xf32>
    %103 = arith.mulf %101, %102 : vector<17x64xf32>
    %104 = vector.broadcast %2 : vector<1x64xf32> to vector<17x64xf32>
    %105 = arith.addf %103, %104 : vector<17x64xf32>
    %106 = arith.truncf %105 : vector<17x64xf32> to vector<17x64xbf16>
    %cst_48 = arith.constant dense<0.000000e+00> : vector<17x192xf32>
    %107 = tpu.matmul %106, %3, %cst_48 {dimension_numbers = #tpu.dot_dimension_numbers<[1], [0], [0], [1], [0, 0, 1, 1], [], []>} : vector<17x64xbf16>, vector<64x192xbf16>, vector<17x192xf32> -> vector<17x192xf32>
    %108 = vector.broadcast %4 : vector<1x192xf32> to vector<17x192xf32>
    %109 = arith.addf %107, %108 : vector<17x192xf32>
    %cst_49 = arith.constant 0.000000e+00 : f32
    %110 = vector.broadcast %cst_49 : f32 to vector<16x64xf32>
    %111 = vector.extract_strided_slice %109 {offsets = [0, 0], sizes = [16, 64], strides = [1, 1]} : vector<17x192xf32> to vector<16x64xf32>
    %cst_50 = arith.constant 1.250000e-01 : f32
    %112 = vector.broadcast %cst_50 : f32 to vector<16x64xf32>
    %113 = arith.mulf %111, %112 : vector<16x64xf32>
    %114 = vector.extract_strided_slice %109 {offsets = [0, 64], sizes = [17, 64], strides = [1, 1]} : vector<17x192xf32> to vector<17x64xf32>
    %115 = vector.extract_strided_slice %109 {offsets = [0, 128], sizes = [17, 64], strides = [1, 1]} : vector<17x192xf32> to vector<17x64xf32>
    %116 = arith.truncf %113 : vector<16x64xf32> to vector<16x64xbf16>
    %117 = arith.truncf %114 : vector<17x64xf32> to vector<17x64xbf16>
    %cst_51 = arith.constant dense<0.000000e+00> : vector<16x17xf32>
    %118 = tpu.matmul %116, %117, %cst_51 {dimension_numbers = #tpu.dot_dimension_numbers<[1], [1], [0], [0], [0, 0, 1, 0], [], []>} : vector<16x64xbf16>, vector<17x64xbf16>, vector<16x17xf32> -> vector<16x17xf32>
    %cst_52 = arith.constant dense<0xFF800000> : vector<16xf32>
    %119 = vector.multi_reduction <maximumf>, %118, %cst_52 [1] : vector<16x17xf32> to vector<16xf32>
    %120 = vector.shape_cast %119 : vector<16xf32> to vector<16x1xf32>
    %121 = vector.broadcast %120 : vector<16x1xf32> to vector<16x17xf32>
    %122 = arith.subf %118, %121 : vector<16x17xf32>
    %123 = math.exp %122 : vector<16x17xf32>
    %cst_53 = arith.constant dense<0.000000e+00> : vector<16xf32>
    %124 = vector.multi_reduction <add>, %123, %cst_53 [1] : vector<16x17xf32> to vector<16xf32>
    %125 = vector.shape_cast %124 : vector<16xf32> to vector<16x1xf32>
    %126 = arith.truncf %123 : vector<16x17xf32> to vector<16x17xbf16>
    %127 = arith.truncf %115 : vector<17x64xf32> to vector<17x64xbf16>
    %cst_54 = arith.constant dense<0.000000e+00> : vector<16x64xf32>
    %128 = tpu.matmul %126, %127, %cst_54 {dimension_numbers = #tpu.dot_dimension_numbers<[1], [0], [0], [1], [0, 0, 1, 1], [], []>} : vector<16x17xbf16>, vector<17x64xbf16>, vector<16x64xf32> -> vector<16x64xf32>
    %129 = vector.broadcast %125 : vector<16x1xf32> to vector<16x64xf32>
    %130 = arith.divf %128, %129 : vector<16x64xf32>
    %131 = arith.truncf %130 : vector<16x64xf32> to vector<16x64xbf16>
    %cst_55 = arith.constant dense<0.000000e+00> : vector<16x64xf32>
    %132 = tpu.matmul %131, %6, %cst_55 {dimension_numbers = #tpu.dot_dimension_numbers<[1], [0], [0], [1], [0, 0, 1, 1], [], []>} : vector<16x64xbf16>, vector<64x64xbf16>, vector<16x64xf32> -> vector<16x64xf32>
    %133 = arith.addf %110, %132 : vector<16x64xf32>
    %134 = arith.addf %79, %133 : vector<16x64xf32>
    %135 = vector.broadcast %5 : vector<1x64xf32> to vector<16x64xf32>
    %136 = arith.addf %134, %135 : vector<16x64xf32>
    %c0_56 = arith.constant 0 : index
    %c1_57 = arith.constant 1 : index
    %c0_58 = arith.constant 0 : index
    %137 = vector.load %arg10[%c0_56, %c1_57, %c0_58] : memref<16x8x64xf32, #tpu.memory_space<vmem>>, vector<16x1x64xf32>
    %138 = vector.shape_cast %137 : vector<16x1x64xf32> to vector<16x64xf32>
    %139 = vector.shape_cast %136 : vector<16x64xf32> to vector<16x1x64xf32>
    tpu.vector_store %arg10[%c0_56, %c1_57, %c0_58], %139 {strides = array<i32>} : memref<16x8x64xf32, #tpu.memory_space<vmem>>, vector<16x1x64xf32>,
    %cst_59 = arith.constant dense<0.000000e+00> : vector<64xf32>
    %140 = vector.multi_reduction <add>, %136, %cst_59 [0] : vector<16x64xf32> to vector<64xf32>
    %141 = vector.shape_cast %140 : vector<64xf32> to vector<1x64xf32>
    %142 = arith.addf %73, %141 : vector<1x64xf32>
    %143 = arith.mulf %136, %136 : vector<16x64xf32>
    %cst_60 = arith.constant dense<0.000000e+00> : vector<64xf32>
    %144 = vector.multi_reduction <add>, %143, %cst_60 [0] : vector<16x64xf32> to vector<64xf32>
    %145 = vector.shape_cast %144 : vector<64xf32> to vector<1x64xf32>
    %146 = arith.addf %77, %145 : vector<1x64xf32>
    %c0_61 = arith.constant 0 : index
    %c2 = arith.constant 2 : index
    %c0_62 = arith.constant 0 : index
    %147 = vector.load %arg1[%c0_61, %c2, %c0_62] : memref<16x8x64xf32, #tpu.memory_space<vmem>>, vector<16x1x64xf32>
    %148 = vector.shape_cast %147 : vector<16x1x64xf32> to vector<16x64xf32>
    %c2_63 = arith.constant 2 : index
    %c0_64 = arith.constant 0 : index
    %c0_65 = arith.constant 0 : index
    %149 = vector.load %arg2[%c2_63, %c0_64, %c0_65] : memref<8x1x64xf32, #tpu.memory_space<vmem>>, vector<1x1x64xf32>
    %150 = vector.shape_cast %149 : vector<1x1x64xf32> to vector<1x64xf32>
    %151 = arith.addf %148, %0 : vector<16x64xf32>
    %152 = tpu.concatenate %151, %150 in 0 : vector<16x64xf32>, vector<1x64xf32> -> vector<17x64xf32>
    %cst_66 = arith.constant dense<0.000000e+00> : vector<17xf32>
    %153 = vector.multi_reduction <add>, %152, %cst_66 [1] : vector<17x64xf32> to vector<17xf32>
    %154 = vector.shape_cast %153 : vector<17xf32> to vector<17x1xf32>
    %cst_67 = arith.constant 6.400000e+01 : f32
    %155 = vector.broadcast %cst_67 : f32 to vector<17x1xf32>
    %156 = arith.divf %154, %155 : vector<17x1xf32>
    %157 = vector.broadcast %156 : vector<17x1xf32> to vector<17x64xf32>
    %158 = arith.subf %152, %157 : vector<17x64xf32>
    %159 = arith.mulf %158, %158 : vector<17x64xf32>
    %cst_68 = arith.constant dense<0.000000e+00> : vector<17xf32>
    %160 = vector.multi_reduction <add>, %159, %cst_68 [1] : vector<17x64xf32> to vector<17xf32>
    %161 = vector.shape_cast %160 : vector<17xf32> to vector<17x1xf32>
    %cst_69 = arith.constant 6.400000e+01 : f32
    %162 = vector.broadcast %cst_69 : f32 to vector<17x1xf32>
    %163 = arith.divf %161, %162 : vector<17x1xf32>
    %164 = vector.broadcast %156 : vector<17x1xf32> to vector<17x64xf32>
    %165 = arith.subf %152, %164 : vector<17x64xf32>
    %cst_70 = arith.constant 9.99999974E-6 : f32
    %166 = vector.broadcast %cst_70 : f32 to vector<17x1xf32>
    %167 = arith.addf %163, %166 : vector<17x1xf32>
    %168 = math.rsqrt %167 : vector<17x1xf32>
    %169 = vector.broadcast %168 : vector<17x1xf32> to vector<17x64xf32>
    %170 = arith.mulf %165, %169 : vector<17x64xf32>
    %171 = vector.broadcast %1 : vector<1x64xf32> to vector<17x64xf32>
    %172 = arith.mulf %170, %171 : vector<17x64xf32>
    %173 = vector.broadcast %2 : vector<1x64xf32> to vector<17x64xf32>
    %174 = arith.addf %172, %173 : vector<17x64xf32>
    %175 = arith.truncf %174 : vector<17x64xf32> to vector<17x64xbf16>
    %cst_71 = arith.constant dense<0.000000e+00> : vector<17x192xf32>
    %176 = tpu.matmul %175, %3, %cst_71 {dimension_numbers = #tpu.dot_dimension_numbers<[1], [0], [0], [1], [0, 0, 1, 1], [], []>} : vector<17x64xbf16>, vector<64x192xbf16>, vector<17x192xf32> -> vector<17x192xf32>
    %177 = vector.broadcast %4 : vector<1x192xf32> to vector<17x192xf32>
    %178 = arith.addf %176, %177 : vector<17x192xf32>
    %cst_72 = arith.constant 0.000000e+00 : f32
    %179 = vector.broadcast %cst_72 : f32 to vector<16x64xf32>
    %180 = vector.extract_strided_slice %178 {offsets = [0, 0], sizes = [16, 64], strides = [1, 1]} : vector<17x192xf32> to vector<16x64xf32>
    %cst_73 = arith.constant 1.250000e-01 : f32
    %181 = vector.broadcast %cst_73 : f32 to vector<16x64xf32>
    %182 = arith.mulf %180, %181 : vector<16x64xf32>
    %183 = vector.extract_strided_slice %178 {offsets = [0, 64], sizes = [17, 64], strides = [1, 1]} : vector<17x192xf32> to vector<17x64xf32>
    %184 = vector.extract_strided_slice %178 {offsets = [0, 128], sizes = [17, 64], strides = [1, 1]} : vector<17x192xf32> to vector<17x64xf32>
    %185 = arith.truncf %182 : vector<16x64xf32> to vector<16x64xbf16>
    %186 = arith.truncf %183 : vector<17x64xf32> to vector<17x64xbf16>
    %cst_74 = arith.constant dense<0.000000e+00> : vector<16x17xf32>
    %187 = tpu.matmul %185, %186, %cst_74 {dimension_numbers = #tpu.dot_dimension_numbers<[1], [1], [0], [0], [0, 0, 1, 0], [], []>} : vector<16x64xbf16>, vector<17x64xbf16>, vector<16x17xf32> -> vector<16x17xf32>
    %cst_75 = arith.constant dense<0xFF800000> : vector<16xf32>
    %188 = vector.multi_reduction <maximumf>, %187, %cst_75 [1] : vector<16x17xf32> to vector<16xf32>
    %189 = vector.shape_cast %188 : vector<16xf32> to vector<16x1xf32>
    %190 = vector.broadcast %189 : vector<16x1xf32> to vector<16x17xf32>
    %191 = arith.subf %187, %190 : vector<16x17xf32>
    %192 = math.exp %191 : vector<16x17xf32>
    %cst_76 = arith.constant dense<0.000000e+00> : vector<16xf32>
    %193 = vector.multi_reduction <add>, %192, %cst_76 [1] : vector<16x17xf32> to vector<16xf32>
    %194 = vector.shape_cast %193 : vector<16xf32> to vector<16x1xf32>
    %195 = arith.truncf %192 : vector<16x17xf32> to vector<16x17xbf16>
    %196 = arith.truncf %184 : vector<17x64xf32> to vector<17x64xbf16>
    %cst_77 = arith.constant dense<0.000000e+00> : vector<16x64xf32>
    %197 = tpu.matmul %195, %196, %cst_77 {dimension_numbers = #tpu.dot_dimension_numbers<[1], [0], [0], [1], [0, 0, 1, 1], [], []>} : vector<16x17xbf16>, vector<17x64xbf16>, vector<16x64xf32> -> vector<16x64xf32>
    %198 = vector.broadcast %194 : vector<16x1xf32> to vector<16x64xf32>
    %199 = arith.divf %197, %198 : vector<16x64xf32>
    %200 = arith.truncf %199 : vector<16x64xf32> to vector<16x64xbf16>
    %cst_78 = arith.constant dense<0.000000e+00> : vector<16x64xf32>
    %201 = tpu.matmul %200, %6, %cst_78 {dimension_numbers = #tpu.dot_dimension_numbers<[1], [0], [0], [1], [0, 0, 1, 1], [], []>} : vector<16x64xbf16>, vector<64x64xbf16>, vector<16x64xf32> -> vector<16x64xf32>
    %202 = arith.addf %179, %201 : vector<16x64xf32>
    %203 = arith.addf %148, %202 : vector<16x64xf32>
    %204 = vector.broadcast %5 : vector<1x64xf32> to vector<16x64xf32>
    %205 = arith.addf %203, %204 : vector<16x64xf32>
    %c0_79 = arith.constant 0 : index
    %c2_80 = arith.constant 2 : index
    %c0_81 = arith.constant 0 : index
    %206 = vector.load %arg10[%c0_79, %c2_80, %c0_81] : memref<16x8x64xf32, #tpu.memory_space<vmem>>, vector<16x1x64xf32>
    %207 = vector.shape_cast %206 : vector<16x1x64xf32> to vector<16x64xf32>
    %208 = vector.shape_cast %205 : vector<16x64xf32> to vector<16x1x64xf32>
    tpu.vector_store %arg10[%c0_79, %c2_80, %c0_81], %208 {strides = array<i32>} : memref<16x8x64xf32, #tpu.memory_space<vmem>>, vector<16x1x64xf32>,
    %cst_82 = arith.constant dense<0.000000e+00> : vector<64xf32>
    %209 = vector.multi_reduction <add>, %205, %cst_82 [0] : vector<16x64xf32> to vector<64xf32>
    %210 = vector.shape_cast %209 : vector<64xf32> to vector<1x64xf32>
    %211 = arith.addf %142, %210 : vector<1x64xf32>
    %212 = arith.mulf %205, %205 : vector<16x64xf32>
    %cst_83 = arith.constant dense<0.000000e+00> : vector<64xf32>
    %213 = vector.multi_reduction <add>, %212, %cst_83 [0] : vector<16x64xf32> to vector<64xf32>
    %214 = vector.shape_cast %213 : vector<64xf32> to vector<1x64xf32>
    %215 = arith.addf %146, %214 : vector<1x64xf32>
    %c0_84 = arith.constant 0 : index
    %c3 = arith.constant 3 : index
    %c0_85 = arith.constant 0 : index
    %216 = vector.load %arg1[%c0_84, %c3, %c0_85] : memref<16x8x64xf32, #tpu.memory_space<vmem>>, vector<16x1x64xf32>
    %217 = vector.shape_cast %216 : vector<16x1x64xf32> to vector<16x64xf32>
    %c3_86 = arith.constant 3 : index
    %c0_87 = arith.constant 0 : index
    %c0_88 = arith.constant 0 : index
    %218 = vector.load %arg2[%c3_86, %c0_87, %c0_88] : memref<8x1x64xf32, #tpu.memory_space<vmem>>, vector<1x1x64xf32>
    %219 = vector.shape_cast %218 : vector<1x1x64xf32> to vector<1x64xf32>
    %220 = arith.addf %217, %0 : vector<16x64xf32>
    %221 = tpu.concatenate %220, %219 in 0 : vector<16x64xf32>, vector<1x64xf32> -> vector<17x64xf32>
    %cst_89 = arith.constant dense<0.000000e+00> : vector<17xf32>
    %222 = vector.multi_reduction <add>, %221, %cst_89 [1] : vector<17x64xf32> to vector<17xf32>
    %223 = vector.shape_cast %222 : vector<17xf32> to vector<17x1xf32>
    %cst_90 = arith.constant 6.400000e+01 : f32
    %224 = vector.broadcast %cst_90 : f32 to vector<17x1xf32>
    %225 = arith.divf %223, %224 : vector<17x1xf32>
    %226 = vector.broadcast %225 : vector<17x1xf32> to vector<17x64xf32>
    %227 = arith.subf %221, %226 : vector<17x64xf32>
    %228 = arith.mulf %227, %227 : vector<17x64xf32>
    %cst_91 = arith.constant dense<0.000000e+00> : vector<17xf32>
    %229 = vector.multi_reduction <add>, %228, %cst_91 [1] : vector<17x64xf32> to vector<17xf32>
    %230 = vector.shape_cast %229 : vector<17xf32> to vector<17x1xf32>
    %cst_92 = arith.constant 6.400000e+01 : f32
    %231 = vector.broadcast %cst_92 : f32 to vector<17x1xf32>
    %232 = arith.divf %230, %231 : vector<17x1xf32>
    %233 = vector.broadcast %225 : vector<17x1xf32> to vector<17x64xf32>
    %234 = arith.subf %221, %233 : vector<17x64xf32>
    %cst_93 = arith.constant 9.99999974E-6 : f32
    %235 = vector.broadcast %cst_93 : f32 to vector<17x1xf32>
    %236 = arith.addf %232, %235 : vector<17x1xf32>
    %237 = math.rsqrt %236 : vector<17x1xf32>
    %238 = vector.broadcast %237 : vector<17x1xf32> to vector<17x64xf32>
    %239 = arith.mulf %234, %238 : vector<17x64xf32>
    %240 = vector.broadcast %1 : vector<1x64xf32> to vector<17x64xf32>
    %241 = arith.mulf %239, %240 : vector<17x64xf32>
    %242 = vector.broadcast %2 : vector<1x64xf32> to vector<17x64xf32>
    %243 = arith.addf %241, %242 : vector<17x64xf32>
    %244 = arith.truncf %243 : vector<17x64xf32> to vector<17x64xbf16>
    %cst_94 = arith.constant dense<0.000000e+00> : vector<17x192xf32>
    %245 = tpu.matmul %244, %3, %cst_94 {dimension_numbers = #tpu.dot_dimension_numbers<[1], [0], [0], [1], [0, 0, 1, 1], [], []>} : vector<17x64xbf16>, vector<64x192xbf16>, vector<17x192xf32> -> vector<17x192xf32>
    %246 = vector.broadcast %4 : vector<1x192xf32> to vector<17x192xf32>
    %247 = arith.addf %245, %246 : vector<17x192xf32>
    %cst_95 = arith.constant 0.000000e+00 : f32
    %248 = vector.broadcast %cst_95 : f32 to vector<16x64xf32>
    %249 = vector.extract_strided_slice %247 {offsets = [0, 0], sizes = [16, 64], strides = [1, 1]} : vector<17x192xf32> to vector<16x64xf32>
    %cst_96 = arith.constant 1.250000e-01 : f32
    %250 = vector.broadcast %cst_96 : f32 to vector<16x64xf32>
    %251 = arith.mulf %249, %250 : vector<16x64xf32>
    %252 = vector.extract_strided_slice %247 {offsets = [0, 64], sizes = [17, 64], strides = [1, 1]} : vector<17x192xf32> to vector<17x64xf32>
    %253 = vector.extract_strided_slice %247 {offsets = [0, 128], sizes = [17, 64], strides = [1, 1]} : vector<17x192xf32> to vector<17x64xf32>
    %254 = arith.truncf %251 : vector<16x64xf32> to vector<16x64xbf16>
    %255 = arith.truncf %252 : vector<17x64xf32> to vector<17x64xbf16>
    %cst_97 = arith.constant dense<0.000000e+00> : vector<16x17xf32>
    %256 = tpu.matmul %254, %255, %cst_97 {dimension_numbers = #tpu.dot_dimension_numbers<[1], [1], [0], [0], [0, 0, 1, 0], [], []>} : vector<16x64xbf16>, vector<17x64xbf16>, vector<16x17xf32> -> vector<16x17xf32>
    %cst_98 = arith.constant dense<0xFF800000> : vector<16xf32>
    %257 = vector.multi_reduction <maximumf>, %256, %cst_98 [1] : vector<16x17xf32> to vector<16xf32>
    %258 = vector.shape_cast %257 : vector<16xf32> to vector<16x1xf32>
    %259 = vector.broadcast %258 : vector<16x1xf32> to vector<16x17xf32>
    %260 = arith.subf %256, %259 : vector<16x17xf32>
    %261 = math.exp %260 : vector<16x17xf32>
    %cst_99 = arith.constant dense<0.000000e+00> : vector<16xf32>
    %262 = vector.multi_reduction <add>, %261, %cst_99 [1] : vector<16x17xf32> to vector<16xf32>
    %263 = vector.shape_cast %262 : vector<16xf32> to vector<16x1xf32>
    %264 = arith.truncf %261 : vector<16x17xf32> to vector<16x17xbf16>
    %265 = arith.truncf %253 : vector<17x64xf32> to vector<17x64xbf16>
    %cst_100 = arith.constant dense<0.000000e+00> : vector<16x64xf32>
    %266 = tpu.matmul %264, %265, %cst_100 {dimension_numbers = #tpu.dot_dimension_numbers<[1], [0], [0], [1], [0, 0, 1, 1], [], []>} : vector<16x17xbf16>, vector<17x64xbf16>, vector<16x64xf32> -> vector<16x64xf32>
    %267 = vector.broadcast %263 : vector<16x1xf32> to vector<16x64xf32>
    %268 = arith.divf %266, %267 : vector<16x64xf32>
    %269 = arith.truncf %268 : vector<16x64xf32> to vector<16x64xbf16>
    %cst_101 = arith.constant dense<0.000000e+00> : vector<16x64xf32>
    %270 = tpu.matmul %269, %6, %cst_101 {dimension_numbers = #tpu.dot_dimension_numbers<[1], [0], [0], [1], [0, 0, 1, 1], [], []>} : vector<16x64xbf16>, vector<64x64xbf16>, vector<16x64xf32> -> vector<16x64xf32>
    %271 = arith.addf %248, %270 : vector<16x64xf32>
    %272 = arith.addf %217, %271 : vector<16x64xf32>
    %273 = vector.broadcast %5 : vector<1x64xf32> to vector<16x64xf32>
    %274 = arith.addf %272, %273 : vector<16x64xf32>
    %c0_102 = arith.constant 0 : index
    %c3_103 = arith.constant 3 : index
    %c0_104 = arith.constant 0 : index
    %275 = vector.load %arg10[%c0_102, %c3_103, %c0_104] : memref<16x8x64xf32, #tpu.memory_space<vmem>>, vector<16x1x64xf32>
    %276 = vector.shape_cast %275 : vector<16x1x64xf32> to vector<16x64xf32>
    %277 = vector.shape_cast %274 : vector<16x64xf32> to vector<16x1x64xf32>
    tpu.vector_store %arg10[%c0_102, %c3_103, %c0_104], %277 {strides = array<i32>} : memref<16x8x64xf32, #tpu.memory_space<vmem>>, vector<16x1x64xf32>,
    %cst_105 = arith.constant dense<0.000000e+00> : vector<64xf32>
    %278 = vector.multi_reduction <add>, %274, %cst_105 [0] : vector<16x64xf32> to vector<64xf32>
    %279 = vector.shape_cast %278 : vector<64xf32> to vector<1x64xf32>
    %280 = arith.addf %211, %279 : vector<1x64xf32>
    %281 = arith.mulf %274, %274 : vector<16x64xf32>
    %cst_106 = arith.constant dense<0.000000e+00> : vector<64xf32>
    %282 = vector.multi_reduction <add>, %281, %cst_106 [0] : vector<16x64xf32> to vector<64xf32>
    %283 = vector.shape_cast %282 : vector<64xf32> to vector<1x64xf32>
    %284 = arith.addf %215, %283 : vector<1x64xf32>
    %c0_107 = arith.constant 0 : index
    %c4 = arith.constant 4 : index
    %c0_108 = arith.constant 0 : index
    %285 = vector.load %arg1[%c0_107, %c4, %c0_108] : memref<16x8x64xf32, #tpu.memory_space<vmem>>, vector<16x1x64xf32>
    %286 = vector.shape_cast %285 : vector<16x1x64xf32> to vector<16x64xf32>
    %c4_109 = arith.constant 4 : index
    %c0_110 = arith.constant 0 : index
    %c0_111 = arith.constant 0 : index
    %287 = vector.load %arg2[%c4_109, %c0_110, %c0_111] : memref<8x1x64xf32, #tpu.memory_space<vmem>>, vector<1x1x64xf32>
    %288 = vector.shape_cast %287 : vector<1x1x64xf32> to vector<1x64xf32>
    %289 = arith.addf %286, %0 : vector<16x64xf32>
    %290 = tpu.concatenate %289, %288 in 0 : vector<16x64xf32>, vector<1x64xf32> -> vector<17x64xf32>
    %cst_112 = arith.constant dense<0.000000e+00> : vector<17xf32>
    %291 = vector.multi_reduction <add>, %290, %cst_112 [1] : vector<17x64xf32> to vector<17xf32>
    %292 = vector.shape_cast %291 : vector<17xf32> to vector<17x1xf32>
    %cst_113 = arith.constant 6.400000e+01 : f32
    %293 = vector.broadcast %cst_113 : f32 to vector<17x1xf32>
    %294 = arith.divf %292, %293 : vector<17x1xf32>
    %295 = vector.broadcast %294 : vector<17x1xf32> to vector<17x64xf32>
    %296 = arith.subf %290, %295 : vector<17x64xf32>
    %297 = arith.mulf %296, %296 : vector<17x64xf32>
    %cst_114 = arith.constant dense<0.000000e+00> : vector<17xf32>
    %298 = vector.multi_reduction <add>, %297, %cst_114 [1] : vector<17x64xf32> to vector<17xf32>
    %299 = vector.shape_cast %298 : vector<17xf32> to vector<17x1xf32>
    %cst_115 = arith.constant 6.400000e+01 : f32
    %300 = vector.broadcast %cst_115 : f32 to vector<17x1xf32>
    %301 = arith.divf %299, %300 : vector<17x1xf32>
    %302 = vector.broadcast %294 : vector<17x1xf32> to vector<17x64xf32>
    %303 = arith.subf %290, %302 : vector<17x64xf32>
    %cst_116 = arith.constant 9.99999974E-6 : f32
    %304 = vector.broadcast %cst_116 : f32 to vector<17x1xf32>
    %305 = arith.addf %301, %304 : vector<17x1xf32>
    %306 = math.rsqrt %305 : vector<17x1xf32>
    %307 = vector.broadcast %306 : vector<17x1xf32> to vector<17x64xf32>
    %308 = arith.mulf %303, %307 : vector<17x64xf32>
    %309 = vector.broadcast %1 : vector<1x64xf32> to vector<17x64xf32>
    %310 = arith.mulf %308, %309 : vector<17x64xf32>
    %311 = vector.broadcast %2 : vector<1x64xf32> to vector<17x64xf32>
    %312 = arith.addf %310, %311 : vector<17x64xf32>
    %313 = arith.truncf %312 : vector<17x64xf32> to vector<17x64xbf16>
    %cst_117 = arith.constant dense<0.000000e+00> : vector<17x192xf32>
    %314 = tpu.matmul %313, %3, %cst_117 {dimension_numbers = #tpu.dot_dimension_numbers<[1], [0], [0], [1], [0, 0, 1, 1], [], []>} : vector<17x64xbf16>, vector<64x192xbf16>, vector<17x192xf32> -> vector<17x192xf32>
    %315 = vector.broadcast %4 : vector<1x192xf32> to vector<17x192xf32>
    %316 = arith.addf %314, %315 : vector<17x192xf32>
    %cst_118 = arith.constant 0.000000e+00 : f32
    %317 = vector.broadcast %cst_118 : f32 to vector<16x64xf32>
    %318 = vector.extract_strided_slice %316 {offsets = [0, 0], sizes = [16, 64], strides = [1, 1]} : vector<17x192xf32> to vector<16x64xf32>
    %cst_119 = arith.constant 1.250000e-01 : f32
    %319 = vector.broadcast %cst_119 : f32 to vector<16x64xf32>
    %320 = arith.mulf %318, %319 : vector<16x64xf32>
    %321 = vector.extract_strided_slice %316 {offsets = [0, 64], sizes = [17, 64], strides = [1, 1]} : vector<17x192xf32> to vector<17x64xf32>
    %322 = vector.extract_strided_slice %316 {offsets = [0, 128], sizes = [17, 64], strides = [1, 1]} : vector<17x192xf32> to vector<17x64xf32>
    %323 = arith.truncf %320 : vector<16x64xf32> to vector<16x64xbf16>
    %324 = arith.truncf %321 : vector<17x64xf32> to vector<17x64xbf16>
    %cst_120 = arith.constant dense<0.000000e+00> : vector<16x17xf32>
    %325 = tpu.matmul %323, %324, %cst_120 {dimension_numbers = #tpu.dot_dimension_numbers<[1], [1], [0], [0], [0, 0, 1, 0], [], []>} : vector<16x64xbf16>, vector<17x64xbf16>, vector<16x17xf32> -> vector<16x17xf32>
    %cst_121 = arith.constant dense<0xFF800000> : vector<16xf32>
    %326 = vector.multi_reduction <maximumf>, %325, %cst_121 [1] : vector<16x17xf32> to vector<16xf32>
    %327 = vector.shape_cast %326 : vector<16xf32> to vector<16x1xf32>
    %328 = vector.broadcast %327 : vector<16x1xf32> to vector<16x17xf32>
    %329 = arith.subf %325, %328 : vector<16x17xf32>
    %330 = math.exp %329 : vector<16x17xf32>
    %cst_122 = arith.constant dense<0.000000e+00> : vector<16xf32>
    %331 = vector.multi_reduction <add>, %330, %cst_122 [1] : vector<16x17xf32> to vector<16xf32>
    %332 = vector.shape_cast %331 : vector<16xf32> to vector<16x1xf32>
    %333 = arith.truncf %330 : vector<16x17xf32> to vector<16x17xbf16>
    %334 = arith.truncf %322 : vector<17x64xf32> to vector<17x64xbf16>
    %cst_123 = arith.constant dense<0.000000e+00> : vector<16x64xf32>
    %335 = tpu.matmul %333, %334, %cst_123 {dimension_numbers = #tpu.dot_dimension_numbers<[1], [0], [0], [1], [0, 0, 1, 1], [], []>} : vector<16x17xbf16>, vector<17x64xbf16>, vector<16x64xf32> -> vector<16x64xf32>
    %336 = vector.broadcast %332 : vector<16x1xf32> to vector<16x64xf32>
    %337 = arith.divf %335, %336 : vector<16x64xf32>
    %338 = arith.truncf %337 : vector<16x64xf32> to vector<16x64xbf16>
    %cst_124 = arith.constant dense<0.000000e+00> : vector<16x64xf32>
    %339 = tpu.matmul %338, %6, %cst_124 {dimension_numbers = #tpu.dot_dimension_numbers<[1], [0], [0], [1], [0, 0, 1, 1], [], []>} : vector<16x64xbf16>, vector<64x64xbf16>, vector<16x64xf32> -> vector<16x64xf32>
    %340 = arith.addf %317, %339 : vector<16x64xf32>
    %341 = arith.addf %286, %340 : vector<16x64xf32>
    %342 = vector.broadcast %5 : vector<1x64xf32> to vector<16x64xf32>
    %343 = arith.addf %341, %342 : vector<16x64xf32>
    %c0_125 = arith.constant 0 : index
    %c4_126 = arith.constant 4 : index
    %c0_127 = arith.constant 0 : index
    %344 = vector.load %arg10[%c0_125, %c4_126, %c0_127] : memref<16x8x64xf32, #tpu.memory_space<vmem>>, vector<16x1x64xf32>
    %345 = vector.shape_cast %344 : vector<16x1x64xf32> to vector<16x64xf32>
    %346 = vector.shape_cast %343 : vector<16x64xf32> to vector<16x1x64xf32>
    tpu.vector_store %arg10[%c0_125, %c4_126, %c0_127], %346 {strides = array<i32>} : memref<16x8x64xf32, #tpu.memory_space<vmem>>, vector<16x1x64xf32>,
    %cst_128 = arith.constant dense<0.000000e+00> : vector<64xf32>
    %347 = vector.multi_reduction <add>, %343, %cst_128 [0] : vector<16x64xf32> to vector<64xf32>
    %348 = vector.shape_cast %347 : vector<64xf32> to vector<1x64xf32>
    %349 = arith.addf %280, %348 : vector<1x64xf32>
    %350 = arith.mulf %343, %343 : vector<16x64xf32>
    %cst_129 = arith.constant dense<0.000000e+00> : vector<64xf32>
    %351 = vector.multi_reduction <add>, %350, %cst_129 [0] : vector<16x64xf32> to vector<64xf32>
    %352 = vector.shape_cast %351 : vector<64xf32> to vector<1x64xf32>
    %353 = arith.addf %284, %352 : vector<1x64xf32>
    %c0_130 = arith.constant 0 : index
    %c5 = arith.constant 5 : index
    %c0_131 = arith.constant 0 : index
    %354 = vector.load %arg1[%c0_130, %c5, %c0_131] : memref<16x8x64xf32, #tpu.memory_space<vmem>>, vector<16x1x64xf32>
    %355 = vector.shape_cast %354 : vector<16x1x64xf32> to vector<16x64xf32>
    %c5_132 = arith.constant 5 : index
    %c0_133 = arith.constant 0 : index
    %c0_134 = arith.constant 0 : index
    %356 = vector.load %arg2[%c5_132, %c0_133, %c0_134] : memref<8x1x64xf32, #tpu.memory_space<vmem>>, vector<1x1x64xf32>
    %357 = vector.shape_cast %356 : vector<1x1x64xf32> to vector<1x64xf32>
    %358 = arith.addf %355, %0 : vector<16x64xf32>
    %359 = tpu.concatenate %358, %357 in 0 : vector<16x64xf32>, vector<1x64xf32> -> vector<17x64xf32>
    %cst_135 = arith.constant dense<0.000000e+00> : vector<17xf32>
    %360 = vector.multi_reduction <add>, %359, %cst_135 [1] : vector<17x64xf32> to vector<17xf32>
    %361 = vector.shape_cast %360 : vector<17xf32> to vector<17x1xf32>
    %cst_136 = arith.constant 6.400000e+01 : f32
    %362 = vector.broadcast %cst_136 : f32 to vector<17x1xf32>
    %363 = arith.divf %361, %362 : vector<17x1xf32>
    %364 = vector.broadcast %363 : vector<17x1xf32> to vector<17x64xf32>
    %365 = arith.subf %359, %364 : vector<17x64xf32>
    %366 = arith.mulf %365, %365 : vector<17x64xf32>
    %cst_137 = arith.constant dense<0.000000e+00> : vector<17xf32>
    %367 = vector.multi_reduction <add>, %366, %cst_137 [1] : vector<17x64xf32> to vector<17xf32>
    %368 = vector.shape_cast %367 : vector<17xf32> to vector<17x1xf32>
    %cst_138 = arith.constant 6.400000e+01 : f32
    %369 = vector.broadcast %cst_138 : f32 to vector<17x1xf32>
    %370 = arith.divf %368, %369 : vector<17x1xf32>
    %371 = vector.broadcast %363 : vector<17x1xf32> to vector<17x64xf32>
    %372 = arith.subf %359, %371 : vector<17x64xf32>
    %cst_139 = arith.constant 9.99999974E-6 : f32
    %373 = vector.broadcast %cst_139 : f32 to vector<17x1xf32>
    %374 = arith.addf %370, %373 : vector<17x1xf32>
    %375 = math.rsqrt %374 : vector<17x1xf32>
    %376 = vector.broadcast %375 : vector<17x1xf32> to vector<17x64xf32>
    %377 = arith.mulf %372, %376 : vector<17x64xf32>
    %378 = vector.broadcast %1 : vector<1x64xf32> to vector<17x64xf32>
    %379 = arith.mulf %377, %378 : vector<17x64xf32>
    %380 = vector.broadcast %2 : vector<1x64xf32> to vector<17x64xf32>
    %381 = arith.addf %379, %380 : vector<17x64xf32>
    %382 = arith.truncf %381 : vector<17x64xf32> to vector<17x64xbf16>
    %cst_140 = arith.constant dense<0.000000e+00> : vector<17x192xf32>
    %383 = tpu.matmul %382, %3, %cst_140 {dimension_numbers = #tpu.dot_dimension_numbers<[1], [0], [0], [1], [0, 0, 1, 1], [], []>} : vector<17x64xbf16>, vector<64x192xbf16>, vector<17x192xf32> -> vector<17x192xf32>
    %384 = vector.broadcast %4 : vector<1x192xf32> to vector<17x192xf32>
    %385 = arith.addf %383, %384 : vector<17x192xf32>
    %cst_141 = arith.constant 0.000000e+00 : f32
    %386 = vector.broadcast %cst_141 : f32 to vector<16x64xf32>
    %387 = vector.extract_strided_slice %385 {offsets = [0, 0], sizes = [16, 64], strides = [1, 1]} : vector<17x192xf32> to vector<16x64xf32>
    %cst_142 = arith.constant 1.250000e-01 : f32
    %388 = vector.broadcast %cst_142 : f32 to vector<16x64xf32>
    %389 = arith.mulf %387, %388 : vector<16x64xf32>
    %390 = vector.extract_strided_slice %385 {offsets = [0, 64], sizes = [17, 64], strides = [1, 1]} : vector<17x192xf32> to vector<17x64xf32>
    %391 = vector.extract_strided_slice %385 {offsets = [0, 128], sizes = [17, 64], strides = [1, 1]} : vector<17x192xf32> to vector<17x64xf32>
    %392 = arith.truncf %389 : vector<16x64xf32> to vector<16x64xbf16>
    %393 = arith.truncf %390 : vector<17x64xf32> to vector<17x64xbf16>
    %cst_143 = arith.constant dense<0.000000e+00> : vector<16x17xf32>
    %394 = tpu.matmul %392, %393, %cst_143 {dimension_numbers = #tpu.dot_dimension_numbers<[1], [1], [0], [0], [0, 0, 1, 0], [], []>} : vector<16x64xbf16>, vector<17x64xbf16>, vector<16x17xf32> -> vector<16x17xf32>
    %cst_144 = arith.constant dense<0xFF800000> : vector<16xf32>
    %395 = vector.multi_reduction <maximumf>, %394, %cst_144 [1] : vector<16x17xf32> to vector<16xf32>
    %396 = vector.shape_cast %395 : vector<16xf32> to vector<16x1xf32>
    %397 = vector.broadcast %396 : vector<16x1xf32> to vector<16x17xf32>
    %398 = arith.subf %394, %397 : vector<16x17xf32>
    %399 = math.exp %398 : vector<16x17xf32>
    %cst_145 = arith.constant dense<0.000000e+00> : vector<16xf32>
    %400 = vector.multi_reduction <add>, %399, %cst_145 [1] : vector<16x17xf32> to vector<16xf32>
    %401 = vector.shape_cast %400 : vector<16xf32> to vector<16x1xf32>
    %402 = arith.truncf %399 : vector<16x17xf32> to vector<16x17xbf16>
    %403 = arith.truncf %391 : vector<17x64xf32> to vector<17x64xbf16>
    %cst_146 = arith.constant dense<0.000000e+00> : vector<16x64xf32>
    %404 = tpu.matmul %402, %403, %cst_146 {dimension_numbers = #tpu.dot_dimension_numbers<[1], [0], [0], [1], [0, 0, 1, 1], [], []>} : vector<16x17xbf16>, vector<17x64xbf16>, vector<16x64xf32> -> vector<16x64xf32>
    %405 = vector.broadcast %401 : vector<16x1xf32> to vector<16x64xf32>
    %406 = arith.divf %404, %405 : vector<16x64xf32>
    %407 = arith.truncf %406 : vector<16x64xf32> to vector<16x64xbf16>
    %cst_147 = arith.constant dense<0.000000e+00> : vector<16x64xf32>
    %408 = tpu.matmul %407, %6, %cst_147 {dimension_numbers = #tpu.dot_dimension_numbers<[1], [0], [0], [1], [0, 0, 1, 1], [], []>} : vector<16x64xbf16>, vector<64x64xbf16>, vector<16x64xf32> -> vector<16x64xf32>
    %409 = arith.addf %386, %408 : vector<16x64xf32>
    %410 = arith.addf %355, %409 : vector<16x64xf32>
    %411 = vector.broadcast %5 : vector<1x64xf32> to vector<16x64xf32>
    %412 = arith.addf %410, %411 : vector<16x64xf32>
    %c0_148 = arith.constant 0 : index
    %c5_149 = arith.constant 5 : index
    %c0_150 = arith.constant 0 : index
    %413 = vector.load %arg10[%c0_148, %c5_149, %c0_150] : memref<16x8x64xf32, #tpu.memory_space<vmem>>, vector<16x1x64xf32>
    %414 = vector.shape_cast %413 : vector<16x1x64xf32> to vector<16x64xf32>
    %415 = vector.shape_cast %412 : vector<16x64xf32> to vector<16x1x64xf32>
    tpu.vector_store %arg10[%c0_148, %c5_149, %c0_150], %415 {strides = array<i32>} : memref<16x8x64xf32, #tpu.memory_space<vmem>>, vector<16x1x64xf32>,
    %cst_151 = arith.constant dense<0.000000e+00> : vector<64xf32>
    %416 = vector.multi_reduction <add>, %412, %cst_151 [0] : vector<16x64xf32> to vector<64xf32>
    %417 = vector.shape_cast %416 : vector<64xf32> to vector<1x64xf32>
    %418 = arith.addf %349, %417 : vector<1x64xf32>
    %419 = arith.mulf %412, %412 : vector<16x64xf32>
    %cst_152 = arith.constant dense<0.000000e+00> : vector<64xf32>
    %420 = vector.multi_reduction <add>, %419, %cst_152 [0] : vector<16x64xf32> to vector<64xf32>
    %421 = vector.shape_cast %420 : vector<64xf32> to vector<1x64xf32>
    %422 = arith.addf %353, %421 : vector<1x64xf32>
    %c0_153 = arith.constant 0 : index
    %c6 = arith.constant 6 : index
    %c0_154 = arith.constant 0 : index
    %423 = vector.load %arg1[%c0_153, %c6, %c0_154] : memref<16x8x64xf32, #tpu.memory_space<vmem>>, vector<16x1x64xf32>
    %424 = vector.shape_cast %423 : vector<16x1x64xf32> to vector<16x64xf32>
    %c6_155 = arith.constant 6 : index
    %c0_156 = arith.constant 0 : index
    %c0_157 = arith.constant 0 : index
    %425 = vector.load %arg2[%c6_155, %c0_156, %c0_157] : memref<8x1x64xf32, #tpu.memory_space<vmem>>, vector<1x1x64xf32>
    %426 = vector.shape_cast %425 : vector<1x1x64xf32> to vector<1x64xf32>
    %427 = arith.addf %424, %0 : vector<16x64xf32>
    %428 = tpu.concatenate %427, %426 in 0 : vector<16x64xf32>, vector<1x64xf32> -> vector<17x64xf32>
    %cst_158 = arith.constant dense<0.000000e+00> : vector<17xf32>
    %429 = vector.multi_reduction <add>, %428, %cst_158 [1] : vector<17x64xf32> to vector<17xf32>
    %430 = vector.shape_cast %429 : vector<17xf32> to vector<17x1xf32>
    %cst_159 = arith.constant 6.400000e+01 : f32
    %431 = vector.broadcast %cst_159 : f32 to vector<17x1xf32>
    %432 = arith.divf %430, %431 : vector<17x1xf32>
    %433 = vector.broadcast %432 : vector<17x1xf32> to vector<17x64xf32>
    %434 = arith.subf %428, %433 : vector<17x64xf32>
    %435 = arith.mulf %434, %434 : vector<17x64xf32>
    %cst_160 = arith.constant dense<0.000000e+00> : vector<17xf32>
    %436 = vector.multi_reduction <add>, %435, %cst_160 [1] : vector<17x64xf32> to vector<17xf32>
    %437 = vector.shape_cast %436 : vector<17xf32> to vector<17x1xf32>
    %cst_161 = arith.constant 6.400000e+01 : f32
    %438 = vector.broadcast %cst_161 : f32 to vector<17x1xf32>
    %439 = arith.divf %437, %438 : vector<17x1xf32>
    %440 = vector.broadcast %432 : vector<17x1xf32> to vector<17x64xf32>
    %441 = arith.subf %428, %440 : vector<17x64xf32>
    %cst_162 = arith.constant 9.99999974E-6 : f32
    %442 = vector.broadcast %cst_162 : f32 to vector<17x1xf32>
    %443 = arith.addf %439, %442 : vector<17x1xf32>
    %444 = math.rsqrt %443 : vector<17x1xf32>
    %445 = vector.broadcast %444 : vector<17x1xf32> to vector<17x64xf32>
    %446 = arith.mulf %441, %445 : vector<17x64xf32>
    %447 = vector.broadcast %1 : vector<1x64xf32> to vector<17x64xf32>
    %448 = arith.mulf %446, %447 : vector<17x64xf32>
    %449 = vector.broadcast %2 : vector<1x64xf32> to vector<17x64xf32>
    %450 = arith.addf %448, %449 : vector<17x64xf32>
    %451 = arith.truncf %450 : vector<17x64xf32> to vector<17x64xbf16>
    %cst_163 = arith.constant dense<0.000000e+00> : vector<17x192xf32>
    %452 = tpu.matmul %451, %3, %cst_163 {dimension_numbers = #tpu.dot_dimension_numbers<[1], [0], [0], [1], [0, 0, 1, 1], [], []>} : vector<17x64xbf16>, vector<64x192xbf16>, vector<17x192xf32> -> vector<17x192xf32>
    %453 = vector.broadcast %4 : vector<1x192xf32> to vector<17x192xf32>
    %454 = arith.addf %452, %453 : vector<17x192xf32>
    %cst_164 = arith.constant 0.000000e+00 : f32
    %455 = vector.broadcast %cst_164 : f32 to vector<16x64xf32>
    %456 = vector.extract_strided_slice %454 {offsets = [0, 0], sizes = [16, 64], strides = [1, 1]} : vector<17x192xf32> to vector<16x64xf32>
    %cst_165 = arith.constant 1.250000e-01 : f32
    %457 = vector.broadcast %cst_165 : f32 to vector<16x64xf32>
    %458 = arith.mulf %456, %457 : vector<16x64xf32>
    %459 = vector.extract_strided_slice %454 {offsets = [0, 64], sizes = [17, 64], strides = [1, 1]} : vector<17x192xf32> to vector<17x64xf32>
    %460 = vector.extract_strided_slice %454 {offsets = [0, 128], sizes = [17, 64], strides = [1, 1]} : vector<17x192xf32> to vector<17x64xf32>
    %461 = arith.truncf %458 : vector<16x64xf32> to vector<16x64xbf16>
    %462 = arith.truncf %459 : vector<17x64xf32> to vector<17x64xbf16>
    %cst_166 = arith.constant dense<0.000000e+00> : vector<16x17xf32>
    %463 = tpu.matmul %461, %462, %cst_166 {dimension_numbers = #tpu.dot_dimension_numbers<[1], [1], [0], [0], [0, 0, 1, 0], [], []>} : vector<16x64xbf16>, vector<17x64xbf16>, vector<16x17xf32> -> vector<16x17xf32>
    %cst_167 = arith.constant dense<0xFF800000> : vector<16xf32>
    %464 = vector.multi_reduction <maximumf>, %463, %cst_167 [1] : vector<16x17xf32> to vector<16xf32>
    %465 = vector.shape_cast %464 : vector<16xf32> to vector<16x1xf32>
    %466 = vector.broadcast %465 : vector<16x1xf32> to vector<16x17xf32>
    %467 = arith.subf %463, %466 : vector<16x17xf32>
    %468 = math.exp %467 : vector<16x17xf32>
    %cst_168 = arith.constant dense<0.000000e+00> : vector<16xf32>
    %469 = vector.multi_reduction <add>, %468, %cst_168 [1] : vector<16x17xf32> to vector<16xf32>
    %470 = vector.shape_cast %469 : vector<16xf32> to vector<16x1xf32>
    %471 = arith.truncf %468 : vector<16x17xf32> to vector<16x17xbf16>
    %472 = arith.truncf %460 : vector<17x64xf32> to vector<17x64xbf16>
    %cst_169 = arith.constant dense<0.000000e+00> : vector<16x64xf32>
    %473 = tpu.matmul %471, %472, %cst_169 {dimension_numbers = #tpu.dot_dimension_numbers<[1], [0], [0], [1], [0, 0, 1, 1], [], []>} : vector<16x17xbf16>, vector<17x64xbf16>, vector<16x64xf32> -> vector<16x64xf32>
    %474 = vector.broadcast %470 : vector<16x1xf32> to vector<16x64xf32>
    %475 = arith.divf %473, %474 : vector<16x64xf32>
    %476 = arith.truncf %475 : vector<16x64xf32> to vector<16x64xbf16>
    %cst_170 = arith.constant dense<0.000000e+00> : vector<16x64xf32>
    %477 = tpu.matmul %476, %6, %cst_170 {dimension_numbers = #tpu.dot_dimension_numbers<[1], [0], [0], [1], [0, 0, 1, 1], [], []>} : vector<16x64xbf16>, vector<64x64xbf16>, vector<16x64xf32> -> vector<16x64xf32>
    %478 = arith.addf %455, %477 : vector<16x64xf32>
    %479 = arith.addf %424, %478 : vector<16x64xf32>
    %480 = vector.broadcast %5 : vector<1x64xf32> to vector<16x64xf32>
    %481 = arith.addf %479, %480 : vector<16x64xf32>
    %c0_171 = arith.constant 0 : index
    %c6_172 = arith.constant 6 : index
    %c0_173 = arith.constant 0 : index
    %482 = vector.load %arg10[%c0_171, %c6_172, %c0_173] : memref<16x8x64xf32, #tpu.memory_space<vmem>>, vector<16x1x64xf32>
    %483 = vector.shape_cast %482 : vector<16x1x64xf32> to vector<16x64xf32>
    %484 = vector.shape_cast %481 : vector<16x64xf32> to vector<16x1x64xf32>
    tpu.vector_store %arg10[%c0_171, %c6_172, %c0_173], %484 {strides = array<i32>} : memref<16x8x64xf32, #tpu.memory_space<vmem>>, vector<16x1x64xf32>,
    %cst_174 = arith.constant dense<0.000000e+00> : vector<64xf32>
    %485 = vector.multi_reduction <add>, %481, %cst_174 [0] : vector<16x64xf32> to vector<64xf32>
    %486 = vector.shape_cast %485 : vector<64xf32> to vector<1x64xf32>
    %487 = arith.addf %418, %486 : vector<1x64xf32>
    %488 = arith.mulf %481, %481 : vector<16x64xf32>
    %cst_175 = arith.constant dense<0.000000e+00> : vector<64xf32>
    %489 = vector.multi_reduction <add>, %488, %cst_175 [0] : vector<16x64xf32> to vector<64xf32>
    %490 = vector.shape_cast %489 : vector<64xf32> to vector<1x64xf32>
    %491 = arith.addf %422, %490 : vector<1x64xf32>
    %c0_176 = arith.constant 0 : index
    %c7 = arith.constant 7 : index
    %c0_177 = arith.constant 0 : index
    %492 = vector.load %arg1[%c0_176, %c7, %c0_177] : memref<16x8x64xf32, #tpu.memory_space<vmem>>, vector<16x1x64xf32>
    %493 = vector.shape_cast %492 : vector<16x1x64xf32> to vector<16x64xf32>
    %c7_178 = arith.constant 7 : index
    %c0_179 = arith.constant 0 : index
    %c0_180 = arith.constant 0 : index
    %494 = vector.load %arg2[%c7_178, %c0_179, %c0_180] : memref<8x1x64xf32, #tpu.memory_space<vmem>>, vector<1x1x64xf32>
    %495 = vector.shape_cast %494 : vector<1x1x64xf32> to vector<1x64xf32>
    %496 = arith.addf %493, %0 : vector<16x64xf32>
    %497 = tpu.concatenate %496, %495 in 0 : vector<16x64xf32>, vector<1x64xf32> -> vector<17x64xf32>
    %cst_181 = arith.constant dense<0.000000e+00> : vector<17xf32>
    %498 = vector.multi_reduction <add>, %497, %cst_181 [1] : vector<17x64xf32> to vector<17xf32>
    %499 = vector.shape_cast %498 : vector<17xf32> to vector<17x1xf32>
    %cst_182 = arith.constant 6.400000e+01 : f32
    %500 = vector.broadcast %cst_182 : f32 to vector<17x1xf32>
    %501 = arith.divf %499, %500 : vector<17x1xf32>
    %502 = vector.broadcast %501 : vector<17x1xf32> to vector<17x64xf32>
    %503 = arith.subf %497, %502 : vector<17x64xf32>
    %504 = arith.mulf %503, %503 : vector<17x64xf32>
    %cst_183 = arith.constant dense<0.000000e+00> : vector<17xf32>
    %505 = vector.multi_reduction <add>, %504, %cst_183 [1] : vector<17x64xf32> to vector<17xf32>
    %506 = vector.shape_cast %505 : vector<17xf32> to vector<17x1xf32>
    %cst_184 = arith.constant 6.400000e+01 : f32
    %507 = vector.broadcast %cst_184 : f32 to vector<17x1xf32>
    %508 = arith.divf %506, %507 : vector<17x1xf32>
    %509 = vector.broadcast %501 : vector<17x1xf32> to vector<17x64xf32>
    %510 = arith.subf %497, %509 : vector<17x64xf32>
    %cst_185 = arith.constant 9.99999974E-6 : f32
    %511 = vector.broadcast %cst_185 : f32 to vector<17x1xf32>
    %512 = arith.addf %508, %511 : vector<17x1xf32>
    %513 = math.rsqrt %512 : vector<17x1xf32>
    %514 = vector.broadcast %513 : vector<17x1xf32> to vector<17x64xf32>
    %515 = arith.mulf %510, %514 : vector<17x64xf32>
    %516 = vector.broadcast %1 : vector<1x64xf32> to vector<17x64xf32>
    %517 = arith.mulf %515, %516 : vector<17x64xf32>
    %518 = vector.broadcast %2 : vector<1x64xf32> to vector<17x64xf32>
    %519 = arith.addf %517, %518 : vector<17x64xf32>
    %520 = arith.truncf %519 : vector<17x64xf32> to vector<17x64xbf16>
    %cst_186 = arith.constant dense<0.000000e+00> : vector<17x192xf32>
    %521 = tpu.matmul %520, %3, %cst_186 {dimension_numbers = #tpu.dot_dimension_numbers<[1], [0], [0], [1], [0, 0, 1, 1], [], []>} : vector<17x64xbf16>, vector<64x192xbf16>, vector<17x192xf32> -> vector<17x192xf32>
    %522 = vector.broadcast %4 : vector<1x192xf32> to vector<17x192xf32>
    %523 = arith.addf %521, %522 : vector<17x192xf32>
    %cst_187 = arith.constant 0.000000e+00 : f32
    %524 = vector.broadcast %cst_187 : f32 to vector<16x64xf32>
    %525 = vector.extract_strided_slice %523 {offsets = [0, 0], sizes = [16, 64], strides = [1, 1]} : vector<17x192xf32> to vector<16x64xf32>
    %cst_188 = arith.constant 1.250000e-01 : f32
    %526 = vector.broadcast %cst_188 : f32 to vector<16x64xf32>
    %527 = arith.mulf %525, %526 : vector<16x64xf32>
    %528 = vector.extract_strided_slice %523 {offsets = [0, 64], sizes = [17, 64], strides = [1, 1]} : vector<17x192xf32> to vector<17x64xf32>
    %529 = vector.extract_strided_slice %523 {offsets = [0, 128], sizes = [17, 64], strides = [1, 1]} : vector<17x192xf32> to vector<17x64xf32>
    %530 = arith.truncf %527 : vector<16x64xf32> to vector<16x64xbf16>
    %531 = arith.truncf %528 : vector<17x64xf32> to vector<17x64xbf16>
    %cst_189 = arith.constant dense<0.000000e+00> : vector<16x17xf32>
    %532 = tpu.matmul %530, %531, %cst_189 {dimension_numbers = #tpu.dot_dimension_numbers<[1], [1], [0], [0], [0, 0, 1, 0], [], []>} : vector<16x64xbf16>, vector<17x64xbf16>, vector<16x17xf32> -> vector<16x17xf32>
    %cst_190 = arith.constant dense<0xFF800000> : vector<16xf32>
    %533 = vector.multi_reduction <maximumf>, %532, %cst_190 [1] : vector<16x17xf32> to vector<16xf32>
    %534 = vector.shape_cast %533 : vector<16xf32> to vector<16x1xf32>
    %535 = vector.broadcast %534 : vector<16x1xf32> to vector<16x17xf32>
    %536 = arith.subf %532, %535 : vector<16x17xf32>
    %537 = math.exp %536 : vector<16x17xf32>
    %cst_191 = arith.constant dense<0.000000e+00> : vector<16xf32>
    %538 = vector.multi_reduction <add>, %537, %cst_191 [1] : vector<16x17xf32> to vector<16xf32>
    %539 = vector.shape_cast %538 : vector<16xf32> to vector<16x1xf32>
    %540 = arith.truncf %537 : vector<16x17xf32> to vector<16x17xbf16>
    %541 = arith.truncf %529 : vector<17x64xf32> to vector<17x64xbf16>
    %cst_192 = arith.constant dense<0.000000e+00> : vector<16x64xf32>
    %542 = tpu.matmul %540, %541, %cst_192 {dimension_numbers = #tpu.dot_dimension_numbers<[1], [0], [0], [1], [0, 0, 1, 1], [], []>} : vector<16x17xbf16>, vector<17x64xbf16>, vector<16x64xf32> -> vector<16x64xf32>
    %543 = vector.broadcast %539 : vector<16x1xf32> to vector<16x64xf32>
    %544 = arith.divf %542, %543 : vector<16x64xf32>
    %545 = arith.truncf %544 : vector<16x64xf32> to vector<16x64xbf16>
    %cst_193 = arith.constant dense<0.000000e+00> : vector<16x64xf32>
    %546 = tpu.matmul %545, %6, %cst_193 {dimension_numbers = #tpu.dot_dimension_numbers<[1], [0], [0], [1], [0, 0, 1, 1], [], []>} : vector<16x64xbf16>, vector<64x64xbf16>, vector<16x64xf32> -> vector<16x64xf32>
    %547 = arith.addf %524, %546 : vector<16x64xf32>
    %548 = arith.addf %493, %547 : vector<16x64xf32>
    %549 = vector.broadcast %5 : vector<1x64xf32> to vector<16x64xf32>
    %550 = arith.addf %548, %549 : vector<16x64xf32>
    %c0_194 = arith.constant 0 : index
    %c7_195 = arith.constant 7 : index
    %c0_196 = arith.constant 0 : index
    %551 = vector.load %arg10[%c0_194, %c7_195, %c0_196] : memref<16x8x64xf32, #tpu.memory_space<vmem>>, vector<16x1x64xf32>
    %552 = vector.shape_cast %551 : vector<16x1x64xf32> to vector<16x64xf32>
    %553 = vector.shape_cast %550 : vector<16x64xf32> to vector<16x1x64xf32>
    tpu.vector_store %arg10[%c0_194, %c7_195, %c0_196], %553 {strides = array<i32>} : memref<16x8x64xf32, #tpu.memory_space<vmem>>, vector<16x1x64xf32>,
    %cst_197 = arith.constant dense<0.000000e+00> : vector<64xf32>
    %554 = vector.multi_reduction <add>, %550, %cst_197 [0] : vector<16x64xf32> to vector<64xf32>
    %555 = vector.shape_cast %554 : vector<64xf32> to vector<1x64xf32>
    %556 = arith.addf %487, %555 : vector<1x64xf32>
    %557 = arith.mulf %550, %550 : vector<16x64xf32>
    %cst_198 = arith.constant dense<0.000000e+00> : vector<64xf32>
    %558 = vector.multi_reduction <add>, %557, %cst_198 [0] : vector<16x64xf32> to vector<64xf32>
    %559 = vector.shape_cast %558 : vector<64xf32> to vector<1x64xf32>
    %560 = arith.addf %491, %559 : vector<1x64xf32>
    %cst_199 = arith.constant 0.000000e+00 : f32
    %561 = vector.broadcast %cst_199 : f32 to vector<6x64xf32>
    %562 = tpu.concatenate %556, %560, %561 in 0 : vector<1x64xf32>, vector<1x64xf32>, vector<6x64xf32> -> vector<8x64xf32>
    %563 = vector.shape_cast %562 : vector<8x64xf32> to vector<1x8x64xf32>
    %c0_200 = arith.constant 0 : index
    %c0_201 = arith.constant 0 : index
    %c0_202 = arith.constant 0 : index
    %564 = vector.load %arg11[%c0_200, %c0_201, %c0_202] : memref<1x8x64xf32, #tpu.memory_space<vmem>>, vector<1x8x64xf32>
    tpu.vector_store %arg11[%c0_200, %c0_201, %c0_202], %563 {strides = array<i32>} : memref<1x8x64xf32, #tpu.memory_space<vmem>>, vector<1x8x64xf32>,
    return
  }
  func.func @transform_0(%arg0: i32) -> (i32, i32, i32) {
    %c0_i32 = arith.constant 0 : i32
    %c0_i32_0 = arith.constant 0 : i32
    %c0_i32_1 = arith.constant 0 : i32
    return %c0_i32, %arg0, %c0_i32_0 : i32, i32, i32
  }
  func.func @transform_1(%arg0: i32) -> (i32, i32, i32) {
    %c0_i32 = arith.constant 0 : i32
    %c0_i32_0 = arith.constant 0 : i32
    %c0_i32_1 = arith.constant 0 : i32
    return %arg0, %c0_i32, %c0_i32_0 : i32, i32, i32
  }
  func.func @transform_2(%arg0: i32) -> (i32, i32) {
    %c0_i32 = arith.constant 0 : i32
    %c0_i32_0 = arith.constant 0 : i32
    %c0_i32_1 = arith.constant 0 : i32
    return %c0_i32, %c0_i32_0 : i32, i32
  }
  func.func @transform_3(%arg0: i32) -> (i32, i32) {
    %c0_i32 = arith.constant 0 : i32
    %c0_i32_0 = arith.constant 0 : i32
    %c0_i32_1 = arith.constant 0 : i32
    return %c0_i32, %c0_i32_0 : i32, i32
  }
  func.func @transform_4(%arg0: i32) -> (i32, i32) {
    %c0_i32 = arith.constant 0 : i32
    %c0_i32_0 = arith.constant 0 : i32
    %c0_i32_1 = arith.constant 0 : i32
    return %c0_i32, %c0_i32_0 : i32, i32
  }
  func.func @transform_5(%arg0: i32) -> (i32, i32) {
    %c0_i32 = arith.constant 0 : i32
    %c0_i32_0 = arith.constant 0 : i32
    %c0_i32_1 = arith.constant 0 : i32
    return %c0_i32, %c0_i32_0 : i32, i32
  }
  func.func @transform_6(%arg0: i32) -> (i32, i32) {
    %c0_i32 = arith.constant 0 : i32
    %c0_i32_0 = arith.constant 0 : i32
    %c0_i32_1 = arith.constant 0 : i32
    return %c0_i32, %c0_i32_0 : i32, i32
  }
  func.func @transform_7(%arg0: i32) -> (i32, i32) {
    %c0_i32 = arith.constant 0 : i32
    %c0_i32_0 = arith.constant 0 : i32
    %c0_i32_1 = arith.constant 0 : i32
    return %c0_i32, %c0_i32_0 : i32, i32
  }
  func.func @transform_8(%arg0: i32) -> (i32, i32) {
    %c0_i32 = arith.constant 0 : i32
    %c0_i32_0 = arith.constant 0 : i32
    %c0_i32_1 = arith.constant 0 : i32
    return %c0_i32, %c0_i32_0 : i32, i32
  }
  func.func @transform_9(%arg0: i32) -> (i32, i32, i32) {
    %c0_i32 = arith.constant 0 : i32
    %c0_i32_0 = arith.constant 0 : i32
    %c0_i32_1 = arith.constant 0 : i32
    return %c0_i32, %arg0, %c0_i32_0 : i32, i32, i32
  }
  func.func @transform_10(%arg0: i32) -> (i32, i32, i32) {
    %c0_i32 = arith.constant 0 : i32
    %c0_i32_0 = arith.constant 0 : i32
    %c0_i32_1 = arith.constant 0 : i32
    return %arg0, %c0_i32, %c0_i32_0 : i32, i32, i32
  }
}

module attributes {stable_mosaic.version = 11 : i64} {
  func.func @_bn_mlp_kernel(%arg0: i32, %arg1: memref<128x64xf32, #tpu.memory_space<vmem>>, %arg2: memref<1x64xf32, #tpu.memory_space<vmem>>, %arg3: memref<1x64xf32, #tpu.memory_space<vmem>>, %arg4: memref<1x64xf32, #tpu.memory_space<vmem>>, %arg5: memref<1x64xf32, #tpu.memory_space<vmem>>, %arg6: memref<64x256xbf16, #tpu.memory_space<vmem>>, %arg7: memref<1x256xf32, #tpu.memory_space<vmem>>, %arg8: memref<256x64xbf16, #tpu.memory_space<vmem>>, %arg9: memref<1x64xf32, #tpu.memory_space<vmem>>, %arg10: memref<128x64xf32, #tpu.memory_space<vmem>>) attributes {dimension_semantics = [#tpu.dimension_semantics<parallel>], iteration_bounds = array<i64: 1>, scalar_prefetch = 0 : i64, scratch_operands = 0 : i64, tpu.core_type = #tpu.core_type<tc>, window_params = [{transform_indices = @transform_0, window_bounds = array<i64: 128, 64>}, {pipeline_mode = #tpu.pipeline_mode<synchronous>, transform_indices = @transform_1, window_bounds = array<i64: 1, 64>}, {pipeline_mode = #tpu.pipeline_mode<synchronous>, transform_indices = @transform_2, window_bounds = array<i64: 1, 64>}, {pipeline_mode = #tpu.pipeline_mode<synchronous>, transform_indices = @transform_3, window_bounds = array<i64: 1, 64>}, {pipeline_mode = #tpu.pipeline_mode<synchronous>, transform_indices = @transform_4, window_bounds = array<i64: 1, 64>}, {pipeline_mode = #tpu.pipeline_mode<synchronous>, transform_indices = @transform_5, window_bounds = array<i64: 64, 256>}, {pipeline_mode = #tpu.pipeline_mode<synchronous>, transform_indices = @transform_6, window_bounds = array<i64: 1, 256>}, {pipeline_mode = #tpu.pipeline_mode<synchronous>, transform_indices = @transform_7, window_bounds = array<i64: 256, 64>}, {pipeline_mode = #tpu.pipeline_mode<synchronous>, transform_indices = @transform_8, window_bounds = array<i64: 1, 64>}, {transform_indices = @transform_9, window_bounds = array<i64: 128, 64>}]} {
    %c0 = arith.constant 0 : index
    %c0_0 = arith.constant 0 : index
    %0 = vector.load %arg1[%c0, %c0_0] : memref<128x64xf32, #tpu.memory_space<vmem>>, vector<128x64xf32>
    %c0_1 = arith.constant 0 : index
    %c0_2 = arith.constant 0 : index
    %1 = vector.load %arg2[%c0_1, %c0_2] : memref<1x64xf32, #tpu.memory_space<vmem>>, vector<1x64xf32>
    %2 = vector.broadcast %1 : vector<1x64xf32> to vector<128x64xf32>
    %3 = arith.subf %0, %2 : vector<128x64xf32>
    %c0_3 = arith.constant 0 : index
    %c0_4 = arith.constant 0 : index
    %4 = vector.load %arg3[%c0_3, %c0_4] : memref<1x64xf32, #tpu.memory_space<vmem>>, vector<1x64xf32>
    %5 = vector.broadcast %4 : vector<1x64xf32> to vector<128x64xf32>
    %6 = arith.mulf %3, %5 : vector<128x64xf32>
    %c0_5 = arith.constant 0 : index
    %c0_6 = arith.constant 0 : index
    %7 = vector.load %arg4[%c0_5, %c0_6] : memref<1x64xf32, #tpu.memory_space<vmem>>, vector<1x64xf32>
    %8 = vector.broadcast %7 : vector<1x64xf32> to vector<128x64xf32>
    %9 = arith.mulf %6, %8 : vector<128x64xf32>
    %c0_7 = arith.constant 0 : index
    %c0_8 = arith.constant 0 : index
    %10 = vector.load %arg5[%c0_7, %c0_8] : memref<1x64xf32, #tpu.memory_space<vmem>>, vector<1x64xf32>
    %11 = vector.broadcast %10 : vector<1x64xf32> to vector<128x64xf32>
    %12 = arith.addf %9, %11 : vector<128x64xf32>
    %13 = arith.truncf %12 : vector<128x64xf32> to vector<128x64xbf16>
    %c0_9 = arith.constant 0 : index
    %c0_10 = arith.constant 0 : index
    %14 = vector.load %arg6[%c0_9, %c0_10] : memref<64x256xbf16, #tpu.memory_space<vmem>>, vector<64x256xbf16>
    %cst = arith.constant dense<0.000000e+00> : vector<128x256xf32>
    %15 = tpu.matmul %13, %14, %cst {dimension_numbers = #tpu.dot_dimension_numbers<[1], [0], [0], [1], [0, 0, 1, 1], [], []>} : vector<128x64xbf16>, vector<64x256xbf16>, vector<128x256xf32> -> vector<128x256xf32>
    %c0_11 = arith.constant 0 : index
    %c0_12 = arith.constant 0 : index
    %16 = vector.load %arg7[%c0_11, %c0_12] : memref<1x256xf32, #tpu.memory_space<vmem>>, vector<1x256xf32>
    %17 = vector.broadcast %16 : vector<1x256xf32> to vector<128x256xf32>
    %18 = arith.addf %15, %17 : vector<128x256xf32>
    %cst_13 = arith.constant 5.000000e-01 : f32
    %19 = vector.broadcast %cst_13 : f32 to vector<128x256xf32>
    %20 = arith.mulf %19, %18 : vector<128x256xf32>
    %cst_14 = arith.constant 0.707106769 : f32
    %21 = vector.broadcast %cst_14 : f32 to vector<128x256xf32>
    %22 = arith.mulf %18, %21 : vector<128x256xf32>
    %23 = math.erf %22 : vector<128x256xf32>
    %cst_15 = arith.constant 1.000000e+00 : f32
    %24 = vector.broadcast %cst_15 : f32 to vector<128x256xf32>
    %25 = arith.addf %24, %23 : vector<128x256xf32>
    %26 = arith.mulf %20, %25 : vector<128x256xf32>
    %27 = arith.truncf %26 : vector<128x256xf32> to vector<128x256xbf16>
    %c0_16 = arith.constant 0 : index
    %c0_17 = arith.constant 0 : index
    %28 = vector.load %arg8[%c0_16, %c0_17] : memref<256x64xbf16, #tpu.memory_space<vmem>>, vector<256x64xbf16>
    %cst_18 = arith.constant dense<0.000000e+00> : vector<128x64xf32>
    %29 = tpu.matmul %27, %28, %cst_18 {dimension_numbers = #tpu.dot_dimension_numbers<[1], [0], [0], [1], [0, 0, 1, 1], [], []>} : vector<128x256xbf16>, vector<256x64xbf16>, vector<128x64xf32> -> vector<128x64xf32>
    %c0_19 = arith.constant 0 : index
    %c0_20 = arith.constant 0 : index
    %30 = vector.load %arg9[%c0_19, %c0_20] : memref<1x64xf32, #tpu.memory_space<vmem>>, vector<1x64xf32>
    %31 = vector.broadcast %30 : vector<1x64xf32> to vector<128x64xf32>
    %32 = arith.addf %29, %31 : vector<128x64xf32>
    %33 = arith.addf %0, %32 : vector<128x64xf32>
    %c0_21 = arith.constant 0 : index
    %c0_22 = arith.constant 0 : index
    %34 = vector.load %arg10[%c0_21, %c0_22] : memref<128x64xf32, #tpu.memory_space<vmem>>, vector<128x64xf32>
    tpu.vector_store %arg10[%c0_21, %c0_22], %33 {strides = array<i32>} : memref<128x64xf32, #tpu.memory_space<vmem>>, vector<128x64xf32>,
    return
  }
  func.func @transform_0(%arg0: i32) -> (i32, i32) {
    %c0_i32 = arith.constant 0 : i32
    %c0_i32_0 = arith.constant 0 : i32
    return %arg0, %c0_i32 : i32, i32
  }
  func.func @transform_1(%arg0: i32) -> (i32, i32) {
    %c0_i32 = arith.constant 0 : i32
    %c0_i32_0 = arith.constant 0 : i32
    %c0_i32_1 = arith.constant 0 : i32
    return %c0_i32, %c0_i32_0 : i32, i32
  }
  func.func @transform_2(%arg0: i32) -> (i32, i32) {
    %c0_i32 = arith.constant 0 : i32
    %c0_i32_0 = arith.constant 0 : i32
    %c0_i32_1 = arith.constant 0 : i32
    return %c0_i32, %c0_i32_0 : i32, i32
  }
  func.func @transform_3(%arg0: i32) -> (i32, i32) {
    %c0_i32 = arith.constant 0 : i32
    %c0_i32_0 = arith.constant 0 : i32
    %c0_i32_1 = arith.constant 0 : i32
    return %c0_i32, %c0_i32_0 : i32, i32
  }
  func.func @transform_4(%arg0: i32) -> (i32, i32) {
    %c0_i32 = arith.constant 0 : i32
    %c0_i32_0 = arith.constant 0 : i32
    %c0_i32_1 = arith.constant 0 : i32
    return %c0_i32, %c0_i32_0 : i32, i32
  }
  func.func @transform_5(%arg0: i32) -> (i32, i32) {
    %c0_i32 = arith.constant 0 : i32
    %c0_i32_0 = arith.constant 0 : i32
    %c0_i32_1 = arith.constant 0 : i32
    return %c0_i32, %c0_i32_0 : i32, i32
  }
  func.func @transform_6(%arg0: i32) -> (i32, i32) {
    %c0_i32 = arith.constant 0 : i32
    %c0_i32_0 = arith.constant 0 : i32
    %c0_i32_1 = arith.constant 0 : i32
    return %c0_i32, %c0_i32_0 : i32, i32
  }
  func.func @transform_7(%arg0: i32) -> (i32, i32) {
    %c0_i32 = arith.constant 0 : i32
    %c0_i32_0 = arith.constant 0 : i32
    %c0_i32_1 = arith.constant 0 : i32
    return %c0_i32, %c0_i32_0 : i32, i32
  }
  func.func @transform_8(%arg0: i32) -> (i32, i32) {
    %c0_i32 = arith.constant 0 : i32
    %c0_i32_0 = arith.constant 0 : i32
    %c0_i32_1 = arith.constant 0 : i32
    return %c0_i32, %c0_i32_0 : i32, i32
  }
  func.func @transform_9(%arg0: i32) -> (i32, i32) {
    %c0_i32 = arith.constant 0 : i32
    %c0_i32_0 = arith.constant 0 : i32
    return %arg0, %c0_i32 : i32, i32
  }
}

</mosaic_0001>

<llo_original>
// kernel: attn_c_block_forward.4
$region0: #{attn_c_block_forward.4}
  #allocation0 [shape = 'u32[]', space=smem, size = 0x4, offset = 0x4, fixed_abs, tag = 'smem constant byte address 0x4 - core index']
  #allocation1 [shape = 'u32[144,128]{1,0:T(1,128)}', space=vmem, size = 0x12000, scoped, tag = 'internal scratch']
  %s0 = inlined_call_operand.hbm [shape: f32[128,64], index: 0, kind: input, shape index: {}]
  %s1 = inlined_call_operand.vmem [shape: f32[1,8,64], index: 1, kind: output, shape index: {}]
  %s2 = sld [smem:[#allocation0]]
  $region18: #{attn_c_block_forward.4} parent=0
    _
  %s4 = ssub.s32 1, %s2
  %s5 = scalar_select 0, %s4, %s2
  $region1: #{attn_c_block_forward.4} parent=0
    #allocation2 [shape = 'u8[65536]{0}', space=vmem, size = 0x10000, scoped, tag = 'input window, operand 0, single buffered']
    #allocation3 [shape = 's32[1]{0}', space=sflag, size = 0x4, scoped, tag = 'scoped memory for attn_c_block_forward.4']
    %6 = vsyncpa [#allocation3], 0
    // Predicated region
    $region2: #{attn_c_block_forward.4} parent=1 // pred_check
      _
    $region3: #{attn_c_block_forward.4} parent=1 // pred_check_branch
      %8 = sbr.rel (0) target = $region5
    $region4: #{attn_c_block_forward.4} parent=1 // pred_region
      %s10 = ssub.s32 2048, 2048
      %11 = vsyncadd [#allocation3], %s10
      %s12 = sshll.u32 [#allocation2], 4
      %s13 = int_to_ptr.vmem [resolvable:$true] %s12
      %18 = dma.hbm_to_vmem [thread:$0]  %s0, 2048, %s13, [#allocation3], 128, 128, 8
    $region5: #{attn_c_block_forward.4} parent=1 // pred_fallthru
      _
    // Predicated region
    $region6: #{attn_c_block_forward.4} parent=1 // pred_check
      _
    $region7: #{attn_c_block_forward.4} parent=1 // pred_check_branch
      %20 = sbr.rel (0) target = $region9
    $region8: #{attn_c_block_forward.4} parent=1 // pred_region
      %21 = dma.done [#allocation3], 2048
    $region9: #{attn_c_block_forward.4} parent=1 // pred_fallthru
      _
    %v22 = vld [vmem:[#allocation2] sm:$0xff]
    %v23 = vld [vmem:[#allocation2 + $0x8] sm:$0xff]
    %v24 = vld [vmem:[#allocation2 + $0x10] sm:$0xff]
    %v25 = vld [vmem:[#allocation2 + $0x18] sm:$0xff]
    %v26 = vld [vmem:[#allocation2 + $0x20] sm:$0xff]
    %v27 = vld [vmem:[#allocation2 + $0x28] sm:$0xff]
    %v28 = vld [vmem:[#allocation2 + $0x30] sm:$0xff]
    %v29 = vld [vmem:[#allocation2 + $0x38] sm:$0xff]
    %v30 = vld [vmem:[#allocation2 + $0x40] sm:$0xff]
    %v31 = vld [vmem:[#allocation2 + $0x48] sm:$0xff]
    %v32 = vld [vmem:[#allocation2 + $0x50] sm:$0xff]
    %v33 = vld [vmem:[#allocation2 + $0x58] sm:$0xff]
    %v34 = vld [vmem:[#allocation2 + $0x60] sm:$0xff]
    %v35 = vld [vmem:[#allocation2 + $0x68] sm:$0xff]
    %v36 = vld [vmem:[#allocation2 + $0x70] sm:$0xff]
    %v37 = vld [vmem:[#allocation2 + $0x78] sm:$0xff]
    %vm38 = vcmask 523264
    %v39 = vsel %vm38, %v22, 0.0
    %v40 = vsel %vm38, %v23, 0.0
    %v41 = vadd.f32 %v39, %v40
    %v42 = vsel %vm38, %v24, 0.0
    %v43 = vadd.f32 %v41, %v42
    %v44 = vsel %vm38, %v25, 0.0
    %v45 = vadd.f32 %v43, %v44
    %v46 = vsel %vm38, %v26, 0.0
    %v47 = vadd.f32 %v45, %v46
    %v48 = vsel %vm38, %v27, 0.0
    %v49 = vadd.f32 %v47, %v48
    %v50 = vsel %vm38, %v28, 0.0
    %v51 = vadd.f32 %v49, %v50
    %v52 = vsel %vm38, %v29, 0.0
    %v53 = vadd.f32 %v51, %v52
    %v54 = vsel %vm38, %v30, 0.0
    %v55 = vadd.f32 %v53, %v54
    %v56 = vsel %vm38, %v31, 0.0
    %v57 = vadd.f32 %v55, %v56
    %v58 = vsel %vm38, %v32, 0.0
    %v59 = vadd.f32 %v57, %v58
    %v60 = vsel %vm38, %v33, 0.0
    %v61 = vadd.f32 %v59, %v60
    %v62 = vsel %vm38, %v34, 0.0
    %v63 = vadd.f32 %v61, %v62
    %v64 = vsel %vm38, %v35, 0.0
    %v65 = vadd.f32 %v63, %v64
    %v66 = vsel %vm38, %v36, 0.0
    %v67 = vadd.f32 %v65, %v66
    %v68 = vsel %vm38, %v37, 0.0
    %v69 = vadd.f32 %v67, %v68
    %v70 = vrot.slane %v69, 4
    %v71 = vadd.f32 %v69, %v70
    %v72 = vrot.slane %v71, 2
    %v73 = vadd.f32 %v71, %v72
    %v74 = vrot.slane %v73, 1
    %v75 = vadd.f32 %v73, %v74
    %v76 = vmul.f32 %v22, %v22
    %v77 = vmul.f32 %v23, %v23
    %v78 = vmul.f32 %v24, %v24
    %v79 = vmul.f32 %v25, %v25
    %v80 = vmul.f32 %v26, %v26
    %v81 = vmul.f32 %v27, %v27
    %v82 = vmul.f32 %v28, %v28
    %v83 = vmul.f32 %v29, %v29
    %v84 = vmul.f32 %v30, %v30
    %v85 = vmul.f32 %v31, %v31
    %v86 = vmul.f32 %v32, %v32
    %v87 = vmul.f32 %v33, %v33
    %v88 = vmul.f32 %v34, %v34
    %v89 = vmul.f32 %v35, %v35
    %v90 = vmul.f32 %v36, %v36
    %v91 = vmul.f32 %v37, %v37
    %v92 = vsel %vm38, %v76, 0.0
    %v93 = vsel %vm38, %v77, 0.0
    %v94 = vadd.f32 %v92, %v93
    %v95 = vsel %vm38, %v78, 0.0
    %v96 = vadd.f32 %v94, %v95
    %v97 = vsel %vm38, %v79, 0.0
    %v98 = vadd.f32 %v96, %v97
    %v99 = vsel %vm38, %v80, 0.0
    %v100 = vadd.f32 %v98, %v99
    %v101 = vsel %vm38, %v81, 0.0
    %v102 = vadd.f32 %v100, %v101
    %v103 = vsel %vm38, %v82, 0.0
    %v104 = vadd.f32 %v102, %v103
    %v105 = vsel %vm38, %v83, 0.0
    %v106 = vadd.f32 %v104, %v105
    %v107 = vsel %vm38, %v84, 0.0
    %v108 = vadd.f32 %v106, %v107
    %v109 = vsel %vm38, %v85, 0.0
    %v110 = vadd.f32 %v108, %v109
    %v111 = vsel %vm38, %v86, 0.0
    %v112 = vadd.f32 %v110, %v111
    %v113 = vsel %vm38, %v87, 0.0
    %v114 = vadd.f32 %v112, %v113
    %v115 = vsel %vm38, %v88, 0.0
    %v116 = vadd.f32 %v114, %v115
    %v117 = vsel %vm38, %v89, 0.0
    %v118 = vadd.f32 %v116, %v117
    %v119 = vsel %vm38, %v90, 0.0
    %v120 = vadd.f32 %v118, %v119
    %v121 = vsel %vm38, %v91, 0.0
    %v122 = vadd.f32 %v120, %v121
    %v123 = vrot.slane %v122, 4
    %v124 = vadd.f32 %v122, %v123
    %v125 = vrot.slane %v124, 2
    %v126 = vadd.f32 %v124, %v125
    %v127 = vrot.slane %v126, 1
    %v128 = vadd.f32 %v126, %v127
    %vm129 = vcmask 1040384
    %v130 = vsel %vm129, %v75, %v128
    %vm131 = vcmask 1041408
    %v132 = vsel %vm131, %v130, 0.0
    %133 = vst.msk [vmem:[%s1] sm:$0xff] %vm38, %v132
    // Predicated region
    $region10: #{attn_c_block_forward.4} parent=1 // pred_check
      _
    $region11: #{attn_c_block_forward.4} parent=1 // pred_check_branch
      %135 = sbr.rel (0) target = $region13
    $region12: #{attn_c_block_forward.4} parent=1 // pred_region
      _
    $region13: #{attn_c_block_forward.4} parent=1 // pred_fallthru
      _
    // Predicated region
    $region14: #{attn_c_block_forward.4} parent=1 // pred_check
      _
    $region15: #{attn_c_block_forward.4} parent=1 // pred_check_branch
      %137 = sbr.rel (0) target = $region17
    $region16: #{attn_c_block_forward.4} parent=1 // pred_region
      _
    $region17: #{attn_c_block_forward.4} parent=1 // pred_fallthru
      _
    %138 = vsyncpa [#allocation3], 1

// kernel: attn_c_block_forward.5
$region0: #{attn_c_block_forward.5}
  #allocation0 [shape = 'u32[]', space=smem, size = 0x4, offset = 0x4, fixed_abs, tag = 'smem constant byte address 0x4 - core index']
  #allocation1 [shape = 'u32[144,128]{1,0:T(1,128)}', space=vmem, size = 0x12000, scoped, tag = 'internal scratch']
  %s0 = inlined_call_operand.vmem [shape: f32[128,64], index: 0, kind: input, shape index: {}]
  %s1 = inlined_call_operand.vmem [shape: f32[128,1], index: 1, kind: input, shape index: {}]
  %s2 = inlined_call_operand.vmem [shape: f32[128,1], index: 2, kind: input, shape index: {}]
  %s3 = inlined_call_operand.vmem [shape: f32[1,64], index: 3, kind: input, shape index: {}]
  %s4 = inlined_call_operand.vmem [shape: f32[1,64], index: 4, kind: input, shape index: {}]
  %s5 = inlined_call_operand.vmem [shape: f32[1,64], index: 5, kind: input, shape index: {}]
  %s6 = inlined_call_operand.vmem [shape: f32[1,64], index: 6, kind: input, shape index: {}]
  %s7 = inlined_call_operand.vmem [shape: bf16[64,32], index: 7, kind: input, shape index: {}]
  %s8 = inlined_call_operand.vmem [shape: f32[1,32], index: 8, kind: input, shape index: {}]
  %s9 = inlined_call_operand.vmem [shape: f32[3,32], index: 9, kind: input, shape index: {}]
  %s10 = inlined_call_operand.vmem [shape: f32[1,32], index: 10, kind: input, shape index: {}]
  %s11 = inlined_call_operand.vmem [shape: bf16[32,64], index: 11, kind: input, shape index: {}]
  %s12 = inlined_call_operand.vmem [shape: f32[1,64], index: 12, kind: input, shape index: {}]
  %s13 = inlined_call_operand.vmem [shape: f32[128,64], index: 13, kind: output, shape index: {}]
  %s14 = sld [smem:[#allocation0]]
  $region62: #{attn_c_block_forward.5} parent=0
    _
  %s16 = ssub.s32 1, %s14
  %s17 = scalar_select 0, %s16, %s14
  // Predicated region
  $region2: #{attn_c_block_forward.5} parent=0 // pred_check
    _
  $region3: #{attn_c_block_forward.5} parent=0 // pred_check_branch
    %19 = sbr.rel (0) target = $region5
  $region4: #{attn_c_block_forward.5} parent=0 // pred_region
    _
  $region5: #{attn_c_block_forward.5} parent=0 // pred_fallthru
    _
  // Predicated region
  $region6: #{attn_c_block_forward.5} parent=0 // pred_check
    _
  $region7: #{attn_c_block_forward.5} parent=0 // pred_check_branch
    %21 = sbr.rel (0) target = $region9
  $region8: #{attn_c_block_forward.5} parent=0 // pred_region
    _
  $region9: #{attn_c_block_forward.5} parent=0 // pred_fallthru
    _
  // Predicated region
  $region10: #{attn_c_block_forward.5} parent=0 // pred_check
    _
  $region11: #{attn_c_block_forward.5} parent=0 // pred_check_branch
    %23 = sbr.rel (0) target = $region13
  $region12: #{attn_c_block_forward.5} parent=0 // pred_region
    _
  $region13: #{attn_c_block_forward.5} parent=0 // pred_fallthru
    _
  // Predicated region
  $region14: #{attn_c_block_forward.5} parent=0 // pred_check
    _
  $region15: #{attn_c_block_forward.5} parent=0 // pred_check_branch
    %25 = sbr.rel (0) target = $region17
  $region16: #{attn_c_block_forward.5} parent=0 // pred_region
    _
  $region17: #{attn_c_block_forward.5} parent=0 // pred_fallthru
    _
  // Predicated region
  $region18: #{attn_c_block_forward.5} parent=0 // pred_check
    _
  $region19: #{attn_c_block_forward.5} parent=0 // pred_check_branch
    %27 = sbr.rel (0) target = $region21
  $region20: #{attn_c_block_forward.5} parent=0 // pred_region
    _
  $region21: #{attn_c_block_forward.5} parent=0 // pred_fallthru
    _
  // Predicated region
  $region22: #{attn_c_block_forward.5} parent=0 // pred_check
    _
  $region23: #{attn_c_block_forward.5} parent=0 // pred_check_branch
    %29 = sbr.rel (0) target = $region25
  $region24: #{attn_c_block_forward.5} parent=0 // pred_region
    _
  $region25: #{attn_c_block_forward.5} parent=0 // pred_fallthru
    _
  // Predicated region
  $region26: #{attn_c_block_forward.5} parent=0 // pred_check
    _
  $region27: #{attn_c_block_forward.5} parent=0 // pred_check_branch
    %31 = sbr.rel (0) target = $region29
  $region28: #{attn_c_block_forward.5} parent=0 // pred_region
    _
  $region29: #{attn_c_block_forward.5} parent=0 // pred_fallthru
    _
  // Predicated region
  $region30: #{attn_c_block_forward.5} parent=0 // pred_check
    _
  $region31: #{attn_c_block_forward.5} parent=0 // pred_check_branch
    %33 = sbr.rel (0) target = $region33
  $region32: #{attn_c_block_forward.5} parent=0 // pred_region
    _
  $region33: #{attn_c_block_forward.5} parent=0 // pred_fallthru
    _
  // Predicated region
  $region34: #{attn_c_block_forward.5} parent=0 // pred_check
    _
  $region35: #{attn_c_block_forward.5} parent=0 // pred_check_branch
    %35 = sbr.rel (0) target = $region37
  $region36: #{attn_c_block_forward.5} parent=0 // pred_region
    _
  $region37: #{attn_c_block_forward.5} parent=0 // pred_fallthru
    _
  // Predicated region
  $region38: #{attn_c_block_forward.5} parent=0 // pred_check
    _
  $region39: #{attn_c_block_forward.5} parent=0 // pred_check_branch
    %37 = sbr.rel (0) target = $region41
  $region40: #{attn_c_block_forward.5} parent=0 // pred_region
    _
  $region41: #{attn_c_block_forward.5} parent=0 // pred_fallthru
    _
  // Predicated region
  $region42: #{attn_c_block_forward.5} parent=0 // pred_check
    _
  $region43: #{attn_c_block_forward.5} parent=0 // pred_check_branch
    %39 = sbr.rel (0) target = $region45
  $region44: #{attn_c_block_forward.5} parent=0 // pred_region
    _
  $region45: #{attn_c_block_forward.5} parent=0 // pred_fallthru
    _
  // Predicated region
  $region46: #{attn_c_block_forward.5} parent=0 // pred_check
    _
  $region47: #{attn_c_block_forward.5} parent=0 // pred_check_branch
    %41 = sbr.rel (0) target = $region49
  $region48: #{attn_c_block_forward.5} parent=0 // pred_region
    _
  $region49: #{attn_c_block_forward.5} parent=0 // pred_fallthru
    _
  // Predicated region
  $region50: #{attn_c_block_forward.5} parent=0 // pred_check
    _
  $region51: #{attn_c_block_forward.5} parent=0 // pred_check_branch
    %43 = sbr.rel (0) target = $region53
  $region52: #{attn_c_block_forward.5} parent=0 // pred_region
    _
  $region53: #{attn_c_block_forward.5} parent=0 // pred_fallthru
    _
  %v45 = vld [vmem:[%s0] sm:$0xff]
  %v46 = vld [vmem:[%s0 + $0x8] sm:$0xff]
  %v47 = vld [vmem:[%s0 + $0x10] sm:$0xff]
  %v48 = vld [vmem:[%s0 + $0x18] sm:$0xff]
  %v49 = vld [vmem:[%s0 + $0x20] sm:$0xff]
  %v50 = vld [vmem:[%s0 + $0x28] sm:$0xff]
  %v51 = vld [vmem:[%s0 + $0x30] sm:$0xff]
  %v52 = vld [vmem:[%s0 + $0x38] sm:$0xff]
  %v53 = vld [vmem:[%s0 + $0x40] sm:$0xff]
  %v54 = vld [vmem:[%s0 + $0x48] sm:$0xff]
  %v55 = vld [vmem:[%s0 + $0x50] sm:$0xff]
  %v56 = vld [vmem:[%s0 + $0x58] sm:$0xff]
  %v57 = vld [vmem:[%s0 + $0x60] sm:$0xff]
  %v58 = vld [vmem:[%s0 + $0x68] sm:$0xff]
  %v59 = vld [vmem:[%s0 + $0x70] sm:$0xff]
  %v60 = vld [vmem:[%s0 + $0x78] sm:$0xff]
  %v61 = vld [vmem:[%s3] sm:$0x1]
  %v63 = vlaneseq
  %v64 = vshrl.u32 %v63, 7
  %v65 = vsub.s32 0, %v64
  %v66 = vrot.slane %v61, %v65
  %v68 = vsub.f32 %v45, %v66
  %v69 = vsub.f32 %v46, %v66
  %v70 = vsub.f32 %v47, %v66
  %v71 = vsub.f32 %v48, %v66
  %v72 = vsub.f32 %v49, %v66
  %v73 = vsub.f32 %v50, %v66
  %v74 = vsub.f32 %v51, %v66
  %v75 = vsub.f32 %v52, %v66
  %v76 = vsub.f32 %v53, %v66
  %v77 = vsub.f32 %v54, %v66
  %v78 = vsub.f32 %v55, %v66
  %v79 = vsub.f32 %v56, %v66
  %v80 = vsub.f32 %v57, %v66
  %v81 = vsub.f32 %v58, %v66
  %v82 = vsub.f32 %v59, %v66
  %v83 = vsub.f32 %v60, %v66
  %v84 = vld [vmem:[%s4] sm:$0x1]
  %v86 = vlaneseq
  %v87 = vshrl.u32 %v86, 7
  %v88 = vsub.s32 0, %v87
  %v89 = vrot.slane %v84, %v88
  %v91 = vmul.f32 %v68, %v89
  %v92 = vmul.f32 %v69, %v89
  %v93 = vmul.f32 %v70, %v89
  %v94 = vmul.f32 %v71, %v89
  %v95 = vmul.f32 %v72, %v89
  %v96 = vmul.f32 %v73, %v89
  %v97 = vmul.f32 %v74, %v89
  %v98 = vmul.f32 %v75, %v89
  %v99 = vmul.f32 %v76, %v89
  %v100 = vmul.f32 %v77, %v89
  %v101 = vmul.f32 %v78, %v89
  %v102 = vmul.f32 %v79, %v89
  %v103 = vmul.f32 %v80, %v89
  %v104 = vmul.f32 %v81, %v89
  %v105 = vmul.f32 %v82, %v89
  %v106 = vmul.f32 %v83, %v89
  %v107 = vld [vmem:[%s5] sm:$0x1]
  %v109 = vlaneseq
  %v110 = vshrl.u32 %v109, 7
  %v111 = vsub.s32 0, %v110
  %v112 = vrot.slane %v107, %v111
  %v114 = vmul.f32 %v91, %v112
  %v115 = vmul.f32 %v92, %v112
  %v116 = vmul.f32 %v93, %v112
  %v117 = vmul.f32 %v94, %v112
  %v118 = vmul.f32 %v95, %v112
  %v119 = vmul.f32 %v96, %v112
  %v120 = vmul.f32 %v97, %v112
  %v121 = vmul.f32 %v98, %v112
  %v122 = vmul.f32 %v99, %v112
  %v123 = vmul.f32 %v100, %v112
  %v124 = vmul.f32 %v101, %v112
  %v125 = vmul.f32 %v102, %v112
  %v126 = vmul.f32 %v103, %v112
  %v127 = vmul.f32 %v104, %v112
  %v128 = vmul.f32 %v105, %v112
  %v129 = vmul.f32 %v106, %v112
  %v130 = vld [vmem:[%s6] sm:$0x1]
  %v132 = vlaneseq
  %v133 = vshrl.u32 %v132, 7
  %v134 = vsub.s32 0, %v133
  %v135 = vrot.slane %v130, %v134
  %v137 = vadd.f32 %v114, %v135
  %v138 = vadd.f32 %v115, %v135
  %v139 = vadd.f32 %v116, %v135
  %v140 = vadd.f32 %v117, %v135
  %v141 = vadd.f32 %v118, %v135
  %v142 = vadd.f32 %v119, %v135
  %v143 = vadd.f32 %v120, %v135
  %v144 = vadd.f32 %v121, %v135
  %v145 = vadd.f32 %v122, %v135
  %v146 = vadd.f32 %v123, %v135
  %v147 = vadd.f32 %v124, %v135
  %v148 = vadd.f32 %v125, %v135
  %v149 = vadd.f32 %v126, %v135
  %v150 = vadd.f32 %v127, %v135
  %v151 = vadd.f32 %v128, %v135
  %v152 = vadd.f32 %v129, %v135
  %v153 = vpack.c.bf16 %v138, %v137
  %v154 = vpack.c.bf16 %v140, %v139
  %v155 = vpack.c.bf16 %v142, %v141
  %v156 = vpack.c.bf16 %v144, %v143
  %v157 = vpack.c.bf16 %v146, %v145
  %v158 = vpack.c.bf16 %v148, %v147
  %v159 = vpack.c.bf16 %v150, %v149
  %v160 = vpack.c.bf16 %v152, %v151
  %v161 = vld [vmem:[%s7] sm:$0xf]
  %v162 = vld [vmem:[%s7 + $0x4] sm:$0xf]
  %v163 = vld [vmem:[%s7 + $0x8] sm:$0xf]
  %v164 = vld [vmem:[%s7 + $0xc] sm:$0xf]
  %v165 = vld [vmem:[%s7 + $0x10] sm:$0xf]
  %v166 = vld [vmem:[%s7 + $0x14] sm:$0xf]
  %v167 = vld [vmem:[%s7 + $0x18] sm:$0xf]
  %v168 = vld [vmem:[%s7 + $0x1c] sm:$0xf]
  %v169 = vld [vmem:[%s8] sm:$0x1]
  %v171 = vlaneseq
  %v172 = vshrl.u32 %v171, 7
  %v173 = vsub.s32 0, %v172
  %v174 = vrot.slane %v169, %v173
  %v184 = vunpack.c.l.b16 %v161
  %v185 = vunpack.c.l.b16 %v162
  %v186 = vunpack.c.l.b16 %v163
  %v187 = vunpack.c.l.b16 %v164
  %v188 = vunpack.c.l.b16 %v165
  %v189 = vunpack.c.l.b16 %v166
  %v190 = vunpack.c.l.b16 %v167
  %v191 = vunpack.c.l.b16 %v168
  %v192 = vpack.c.b16 %v185, %v184
  %v193 = vpack.c.b16 %v187, %v186
  %v194 = vpack.c.b16 %v189, %v188
  %v195 = vpack.c.b16 %v191, %v190
  %vm200 = vcmask 523264
  %v202 = vsel %vm200, %v153, 0
  %v205 = vsel %vm200, %v154, 0
  %v208 = vsel %vm200, %v155, 0
  %v211 = vsel %vm200, %v156, 0
  %v214 = vsel %vm200, %v157, 0
  %v217 = vsel %vm200, %v158, 0
  %v220 = vsel %vm200, %v159, 0
  %v223 = vsel %vm200, %v160, 0
  %225 = vmatprep.subr.bf16.mxu0 0
  %226 = vmatpush1.bf16.msra.mxu0 %v192
  %227 = vmatprep.subr.bf16.mxu0 0
  %228 = vmatpush1.bf16.msra.mxu0 %v193
  %229 = vmatprep.subr.bf16.mxu0 0
  %230 = vmatpush1.bf16.msra.mxu0 %v194
  %231 = vmatprep.subr.bf16.mxu0 0
  %232 = vmatpush1.bf16.msra.mxu0 %v195
  %233 = vmatprep.subr.bf16.mxu0 0
  %234 = vmatpush1.bf16.msra.mxu0 0
  %235 = vmatprep.subr.bf16.mxu0 0
  %236 = vmatpush1.bf16.msra.mxu0 0
  %237 = vmatprep.subr.bf16.mxu0 0
  %238 = vmatpush1.bf16.msra.mxu0 0
  %239 = vmatprep.subr.bf16.mxu0 0
  %240 = vmatpush1.bf16.msra.mxu0 0
  %241 = vmatprep.subr.bf16.mxu0 0
  %242 = vmatpush1.bf16.msra.mxu0 0
  %243 = vmatprep.subr.bf16.mxu0 0
  %244 = vmatpush1.bf16.msra.mxu0 0
  %245 = vmatprep.subr.bf16.mxu0 0
  %246 = vmatpush1.bf16.msra.mxu0 0
  %247 = vmatprep.subr.bf16.mxu0 0
  %248 = vmatpush1.bf16.msra.mxu0 0
  %249 = vmatprep.subr.bf16.mxu0 0
  %250 = vmatpush1.bf16.msra.mxu0 0
  %251 = vmatprep.subr.bf16.mxu0 0
  %252 = vmatpush1.bf16.msra.mxu0 0
  %253 = vmatprep.subr.bf16.mxu0 0
  %254 = vmatpush1.bf16.msra.mxu0 0
  %255 = vmatprep.subr.bf16.mxu0 0
  %256 = vmatpush1.bf16.msra.mxu0 0
  %257 = vmatprep.mubr.bf16.mxu0 0
  %258 = vmatmul.mubr.bf16.gmra.mrb[0].mxu0 %v202
  %v259 = vpop.f32.mrb[0].mxu0
  %v260 = vadd.f32 %v174, %v259
  %v261 = vpop.f32.mrb[0].mxu0
  %v262 = vpop.f32.mrb[0].mxu0
  %v263 = vadd.f32 %v174, %v262
  %v264 = vpop.f32.mrb[0].mxu0
  %265 = vmatprep.mubr.bf16.mxu0 0
  %266 = vmatmul.mubr.bf16.gmra.mrb[0].mxu0 %v205
  %v267 = vpop.f32.mrb[0].mxu0
  %v268 = vadd.f32 %v174, %v267
  %v269 = vpop.f32.mrb[0].mxu0
  %v270 = vpop.f32.mrb[0].mxu0
  %v271 = vadd.f32 %v174, %v270
  %v272 = vpop.f32.mrb[0].mxu0
  %273 = vmatprep.mubr.bf16.mxu0 0
  %274 = vmatmul.mubr.bf16.gmra.mrb[0].mxu0 %v208
  %v275 = vpop.f32.mrb[0].mxu0
  %v276 = vadd.f32 %v174, %v275
  %v277 = vpop.f32.mrb[0].mxu0
  %v278 = vpop.f32.mrb[0].mxu0
  %v279 = vadd.f32 %v174, %v278
  %v280 = vpop.f32.mrb[0].mxu0
  %281 = vmatprep.mubr.bf16.mxu0 0
  %282 = vmatmul.mubr.bf16.gmra.mrb[0].mxu0 %v211
  %v283 = vpop.f32.mrb[0].mxu0
  %v284 = vadd.f32 %v174, %v283
  %v285 = vpop.f32.mrb[0].mxu0
  %v286 = vpop.f32.mrb[0].mxu0
  %v287 = vadd.f32 %v174, %v286
  %v288 = vpop.f32.mrb[0].mxu0
  %289 = vmatprep.mubr.bf16.mxu0 0
  %290 = vmatmul.mubr.bf16.gmra.mrb[0].mxu0 %v214
  %v291 = vpop.f32.mrb[0].mxu0
  %v292 = vadd.f32 %v174, %v291
  %v293 = vpop.f32.mrb[0].mxu0
  %v294 = vpop.f32.mrb[0].mxu0
  %v295 = vadd.f32 %v174, %v294
  %v296 = vpop.f32.mrb[0].mxu0
  %297 = vmatprep.mubr.bf16.mxu0 0
  %298 = vmatmul.mubr.bf16.gmra.mrb[0].mxu0 %v217
  %v299 = vpop.f32.mrb[0].mxu0
  %v300 = vadd.f32 %v174, %v299
  %v301 = vpop.f32.mrb[0].mxu0
  %v302 = vpop.f32.mrb[0].mxu0
  %v303 = vadd.f32 %v174, %v302
  %v304 = vpop.f32.mrb[0].mxu0
  %305 = vmatprep.mubr.bf16.mxu0 0
  %306 = vmatmul.mubr.bf16.gmra.mrb[0].mxu0 %v220
  %v307 = vpop.f32.mrb[0].mxu0
  %v308 = vadd.f32 %v174, %v307
  %v309 = vpop.f32.mrb[0].mxu0
  %v310 = vpop.f32.mrb[0].mxu0
  %v311 = vadd.f32 %v174, %v310
  %v312 = vpop.f32.mrb[0].mxu0
  %313 = vmatprep.mubr.bf16.mxu0 0
  %314 = vmatmul.mubr.bf16.gmra.mrb[0].mxu0 %v223
  %v315 = vpop.f32.mrb[0].mxu0
  %v316 = vadd.f32 %v174, %v315
  %v317 = vpop.f32.mrb[0].mxu0
  %v318 = vpop.f32.mrb[0].mxu0
  %v319 = vadd.f32 %v174, %v318
  %v320 = vpop.f32.mrb[0].mxu0
  %321 = vdwg.mxu0
  %vm338 = vcmask 1040384
  %v339 = vrot.slane %v260, 7
  %v340 = vrot.slane %v263, 7
  %v341 = vsel %vm338, %v339, %v340
  %v342 = vrot.slane %v268, 7
  %v343 = vsel %vm338, %v340, %v342
  %v344 = vrot.slane %v271, 7
  %v345 = vsel %vm338, %v342, %v344
  %v346 = vrot.slane %v276, 7
  %v347 = vsel %vm338, %v344, %v346
  %v348 = vrot.slane %v279, 7
  %v349 = vsel %vm338, %v346, %v348
  %v350 = vrot.slane %v284, 7
  %v351 = vsel %vm338, %v348, %v350
  %v352 = vrot.slane %v287, 7
  %v353 = vsel %vm338, %v350, %v352
  %v354 = vrot.slane %v292, 7
  %v355 = vsel %vm338, %v352, %v354
  %v356 = vrot.slane %v295, 7
  %v357 = vsel %vm338, %v354, %v356
  %v358 = vrot.slane %v300, 7
  %v359 = vsel %vm338, %v356, %v358
  %v360 = vrot.slane %v303, 7
  %v361 = vsel %vm338, %v358, %v360
  %v362 = vrot.slane %v308, 7
  %v363 = vsel %vm338, %v360, %v362
  %v364 = vrot.slane %v311, 7
  %v365 = vsel %vm338, %v362, %v364
  %v366 = vrot.slane %v316, 7
  %v367 = vsel %vm338, %v364, %v366
  %v368 = vrot.slane %v319, 7
  %v369 = vsel %vm338, %v366, %v368
  %v386 = vsel %vm338, 0.0, %v339
  %v387 = vld [vmem:[%s1] sm:$0xff]
  %v388 = vld [vmem:[%s1 + $0x8] sm:$0xff]
  %v389 = vld [vmem:[%s1 + $0x10] sm:$0xff]
  %v390 = vld [vmem:[%s1 + $0x18] sm:$0xff]
  %v391 = vld [vmem:[%s1 + $0x20] sm:$0xff]
  %v392 = vld [vmem:[%s1 + $0x28] sm:$0xff]
  %v393 = vld [vmem:[%s1 + $0x30] sm:$0xff]
  %v394 = vld [vmem:[%s1 + $0x38] sm:$0xff]
  %v395 = vld [vmem:[%s1 + $0x40] sm:$0xff]
  %v396 = vld [vmem:[%s1 + $0x48] sm:$0xff]
  %v397 = vld [vmem:[%s1 + $0x50] sm:$0xff]
  %v398 = vld [vmem:[%s1 + $0x58] sm:$0xff]
  %v399 = vld [vmem:[%s1 + $0x60] sm:$0xff]
  %v400 = vld [vmem:[%s1 + $0x68] sm:$0xff]
  %v401 = vld [vmem:[%s1 + $0x70] sm:$0xff]
  %v402 = vld [vmem:[%s1 + $0x78] sm:$0xff]
  %404 = vset.pattern.permute.xlu0 0
  %405 = vperm.xlu0 %404, %v387
  %v406 = vpop.permute.xlu0 %405
  %409 = vset.pattern.permute.xlu0 0
  %410 = vperm.xlu0 %409, %v388
  %v411 = vpop.permute.xlu0 %410
  %414 = vset.pattern.permute.xlu0 0
  %415 = vperm.xlu0 %414, %v389
  %v416 = vpop.permute.xlu0 %415
  %419 = vset.pattern.permute.xlu0 0
  %420 = vperm.xlu0 %419, %v390
  %v421 = vpop.permute.xlu0 %420
  %424 = vset.pattern.permute.xlu0 0
  %425 = vperm.xlu0 %424, %v391
  %v426 = vpop.permute.xlu0 %425
  %429 = vset.pattern.permute.xlu0 0
  %430 = vperm.xlu0 %429, %v392
  %v431 = vpop.permute.xlu0 %430
  %434 = vset.pattern.permute.xlu0 0
  %435 = vperm.xlu0 %434, %v393
  %v436 = vpop.permute.xlu0 %435
  %439 = vset.pattern.permute.xlu0 0
  %440 = vperm.xlu0 %439, %v394
  %v441 = vpop.permute.xlu0 %440
  %444 = vset.pattern.permute.xlu0 0
  %445 = vperm.xlu0 %444, %v395
  %v446 = vpop.permute.xlu0 %445
  %449 = vset.pattern.permute.xlu0 0
  %450 = vperm.xlu0 %449, %v396
  %v451 = vpop.permute.xlu0 %450
  %454 = vset.pattern.permute.xlu0 0
  %455 = vperm.xlu0 %454, %v397
  %v456 = vpop.permute.xlu0 %455
  %459 = vset.pattern.permute.xlu0 0
  %460 = vperm.xlu0 %459, %v398
  %v461 = vpop.permute.xlu0 %460
  %464 = vset.pattern.permute.xlu0 0
  %465 = vperm.xlu0 %464, %v399
  %v466 = vpop.permute.xlu0 %465
  %469 = vset.pattern.permute.xlu0 0
  %470 = vperm.xlu0 %469, %v400
  %v471 = vpop.permute.xlu0 %470
  %474 = vset.pattern.permute.xlu0 0
  %475 = vperm.xlu0 %474, %v401
  %v476 = vpop.permute.xlu0 %475
  %479 = vset.pattern.permute.xlu0 0
  %480 = vperm.xlu0 %479, %v402
  %v481 = vpop.permute.xlu0 %480
  %v483 = vmul.f32 %v386, %v406
  %v484 = vmul.f32 %v341, %v411
  %v485 = vmul.f32 %v343, %v416
  %v486 = vmul.f32 %v345, %v421
  %v487 = vmul.f32 %v347, %v426
  %v488 = vmul.f32 %v349, %v431
  %v489 = vmul.f32 %v351, %v436
  %v490 = vmul.f32 %v353, %v441
  %v491 = vmul.f32 %v355, %v446
  %v492 = vmul.f32 %v357, %v451
  %v493 = vmul.f32 %v359, %v456
  %v494 = vmul.f32 %v361, %v461
  %v495 = vmul.f32 %v363, %v466
  %v496 = vmul.f32 %v365, %v471
  %v497 = vmul.f32 %v367, %v476
  %v498 = vmul.f32 %v369, %v481
  %vm499 = vcmask 1046528
  %v500 = vrot.slane %v260, 1
  %v501 = vrot.slane %v263, 1
  %v502 = vsel %vm499, %v500, %v501
  %v503 = vrot.slane %v268, 1
  %v504 = vsel %vm499, %v501, %v503
  %v505 = vrot.slane %v271, 1
  %v506 = vsel %vm499, %v503, %v505
  %v507 = vrot.slane %v276, 1
  %v508 = vsel %vm499, %v505, %v507
  %v509 = vrot.slane %v279, 1
  %v510 = vsel %vm499, %v507, %v509
  %v511 = vrot.slane %v284, 1
  %v512 = vsel %vm499, %v509, %v511
  %v513 = vrot.slane %v287, 1
  %v514 = vsel %vm499, %v511, %v513
  %v515 = vrot.slane %v292, 1
  %v516 = vsel %vm499, %v513, %v515
  %v517 = vrot.slane %v295, 1
  %v518 = vsel %vm499, %v515, %v517
  %v519 = vrot.slane %v300, 1
  %v520 = vsel %vm499, %v517, %v519
  %v521 = vrot.slane %v303, 1
  %v522 = vsel %vm499, %v519, %v521
  %v523 = vrot.slane %v308, 1
  %v524 = vsel %vm499, %v521, %v523
  %v525 = vrot.slane %v311, 1
  %v526 = vsel %vm499, %v523, %v525
  %v527 = vrot.slane %v316, 1
  %v528 = vsel %vm499, %v525, %v527
  %v529 = vrot.slane %v319, 1
  %v530 = vsel %vm499, %v527, %v529
  %v547 = vsel %vm499, %v529, 0.0
  %v548 = vld [vmem:[%s2] sm:$0xff]
  %v549 = vld [vmem:[%s2 + $0x8] sm:$0xff]
  %v550 = vld [vmem:[%s2 + $0x10] sm:$0xff]
  %v551 = vld [vmem:[%s2 + $0x18] sm:$0xff]
  %v552 = vld [vmem:[%s2 + $0x20] sm:$0xff]
  %v553 = vld [vmem:[%s2 + $0x28] sm:$0xff]
  %v554 = vld [vmem:[%s2 + $0x30] sm:$0xff]
  %v555 = vld [vmem:[%s2 + $0x38] sm:$0xff]
  %v556 = vld [vmem:[%s2 + $0x40] sm:$0xff]
  %v557 = vld [vmem:[%s2 + $0x48] sm:$0xff]
  %v558 = vld [vmem:[%s2 + $0x50] sm:$0xff]
  %v559 = vld [vmem:[%s2 + $0x58] sm:$0xff]
  %v560 = vld [vmem:[%s2 + $0x60] sm:$0xff]
  %v561 = vld [vmem:[%s2 + $0x68] sm:$0xff]
  %v562 = vld [vmem:[%s2 + $0x70] sm:$0xff]
  %v563 = vld [vmem:[%s2 + $0x78] sm:$0xff]
  %565 = vset.pattern.permute.xlu0 0
  %566 = vperm.xlu0 %565, %v548
  %v567 = vpop.permute.xlu0 %566
  %570 = vset.pattern.permute.xlu0 0
  %571 = vperm.xlu0 %570, %v549
  %v572 = vpop.permute.xlu0 %571
  %575 = vset.pattern.permute.xlu0 0
  %576 = vperm.xlu0 %575, %v550
  %v577 = vpop.permute.xlu0 %576
  %580 = vset.pattern.permute.xlu0 0
  %581 = vperm.xlu0 %580, %v551
  %v582 = vpop.permute.xlu0 %581
  %585 = vset.pattern.permute.xlu0 0
  %586 = vperm.xlu0 %585, %v552
  %v587 = vpop.permute.xlu0 %586
  %590 = vset.pattern.permute.xlu0 0
  %591 = vperm.xlu0 %590, %v553
  %v592 = vpop.permute.xlu0 %591
  %595 = vset.pattern.permute.xlu0 0
  %596 = vperm.xlu0 %595, %v554
  %v597 = vpop.permute.xlu0 %596
  %600 = vset.pattern.permute.xlu0 0
  %601 = vperm.xlu0 %600, %v555
  %v602 = vpop.permute.xlu0 %601
  %605 = vset.pattern.permute.xlu0 0
  %606 = vperm.xlu0 %605, %v556
  %v607 = vpop.permute.xlu0 %606
  %610 = vset.pattern.permute.xlu0 0
  %611 = vperm.xlu0 %610, %v557
  %v612 = vpop.permute.xlu0 %611
  %615 = vset.pattern.permute.xlu0 0
  %616 = vperm.xlu0 %615, %v558
  %v617 = vpop.permute.xlu0 %616
  %620 = vset.pattern.permute.xlu0 0
  %621 = vperm.xlu0 %620, %v559
  %v622 = vpop.permute.xlu0 %621
  %625 = vset.pattern.permute.xlu0 0
  %626 = vperm.xlu0 %625, %v560
  %v627 = vpop.permute.xlu0 %626
  %630 = vset.pattern.permute.xlu0 0
  %631 = vperm.xlu0 %630, %v561
  %v632 = vpop.permute.xlu0 %631
  %635 = vset.pattern.permute.xlu0 0
  %636 = vperm.xlu0 %635, %v562
  %v637 = vpop.permute.xlu0 %636
  %640 = vset.pattern.permute.xlu0 0
  %641 = vperm.xlu0 %640, %v563
  %v642 = vpop.permute.xlu0 %641
  %v644 = vmul.f32 %v502, %v567
  %v645 = vmul.f32 %v504, %v572
  %v646 = vmul.f32 %v506, %v577
  %v647 = vmul.f32 %v508, %v582
  %v648 = vmul.f32 %v510, %v587
  %v649 = vmul.f32 %v512, %v592
  %v650 = vmul.f32 %v514, %v597
  %v651 = vmul.f32 %v516, %v602
  %v652 = vmul.f32 %v518, %v607
  %v653 = vmul.f32 %v520, %v612
  %v654 = vmul.f32 %v522, %v617
  %v655 = vmul.f32 %v524, %v622
  %v656 = vmul.f32 %v526, %v627
  %v657 = vmul.f32 %v528, %v632
  %v658 = vmul.f32 %v530, %v637
  %v659 = vmul.f32 %v547, %v642
  %v660 = vld [vmem:[%s9 + $0x1] sm:$0x1]
  %v661 = vlaneseq
  %v662 = vshrl.u32 %v661, 7
  %v663 = vsub.s32 0, %v662
  %v664 = vrot.slane %v660, %v663
  %v665 = vmul.f32 %v260, %v664
  %v666 = vmul.f32 %v263, %v664
  %v667 = vmul.f32 %v268, %v664
  %v668 = vmul.f32 %v271, %v664
  %v669 = vmul.f32 %v276, %v664
  %v670 = vmul.f32 %v279, %v664
  %v671 = vmul.f32 %v284, %v664
  %v672 = vmul.f32 %v287, %v664
  %v673 = vmul.f32 %v292, %v664
  %v674 = vmul.f32 %v295, %v664
  %v675 = vmul.f32 %v300, %v664
  %v676 = vmul.f32 %v303, %v664
  %v677 = vmul.f32 %v308, %v664
  %v678 = vmul.f32 %v311, %v664
  %v679 = vmul.f32 %v316, %v664
  %v680 = vmul.f32 %v319, %v664
  %v681 = vld [vmem:[%s9] sm:$0x1]
  %v682 = vlaneseq
  %v683 = vshrl.u32 %v682, 7
  %v684 = vsub.s32 0, %v683
  %v685 = vrot.slane %v681, %v684
  %v686 = vmul.f32 %v483, %v685
  %v687 = vmul.f32 %v484, %v685
  %v688 = vmul.f32 %v485, %v685
  %v689 = vmul.f32 %v486, %v685
  %v690 = vmul.f32 %v487, %v685
  %v691 = vmul.f32 %v488, %v685
  %v692 = vmul.f32 %v489, %v685
  %v693 = vmul.f32 %v490, %v685
  %v694 = vmul.f32 %v491, %v685
  %v695 = vmul.f32 %v492, %v685
  %v696 = vmul.f32 %v493, %v685
  %v697 = vmul.f32 %v494, %v685
  %v698 = vmul.f32 %v495, %v685
  %v699 = vmul.f32 %v496, %v685
  %v700 = vmul.f32 %v497, %v685
  %v701 = vmul.f32 %v498, %v685
  %v702 = vadd.f32 %v665, %v686
  %v703 = vadd.f32 %v666, %v687
  %v704 = vadd.f32 %v667, %v688
  %v705 = vadd.f32 %v668, %v689
  %v706 = vadd.f32 %v669, %v690
  %v707 = vadd.f32 %v670, %v691
  %v708 = vadd.f32 %v671, %v692
  %v709 = vadd.f32 %v672, %v693
  %v710 = vadd.f32 %v673, %v694
  %v711 = vadd.f32 %v674, %v695
  %v712 = vadd.f32 %v675, %v696
  %v713 = vadd.f32 %v676, %v697
  %v714 = vadd.f32 %v677, %v698
  %v715 = vadd.f32 %v678, %v699
  %v716 = vadd.f32 %v679, %v700
  %v717 = vadd.f32 %v680, %v701
  %v718 = vld [vmem:[%s9 + $0x2] sm:$0x1]
  %v719 = vlaneseq
  %v720 = vshrl.u32 %v719, 7
  %v721 = vsub.s32 0, %v720
  %v722 = vrot.slane %v718, %v721
  %v723 = vmul.f32 %v644, %v722
  %v724 = vmul.f32 %v645, %v722
  %v725 = vmul.f32 %v646, %v722
  %v726 = vmul.f32 %v647, %v722
  %v727 = vmul.f32 %v648, %v722
  %v728 = vmul.f32 %v649, %v722
  %v729 = vmul.f32 %v650, %v722
  %v730 = vmul.f32 %v651, %v722
  %v731 = vmul.f32 %v652, %v722
  %v732 = vmul.f32 %v653, %v722
  %v733 = vmul.f32 %v654, %v722
  %v734 = vmul.f32 %v655, %v722
  %v735 = vmul.f32 %v656, %v722
  %v736 = vmul.f32 %v657, %v722
  %v737 = vmul.f32 %v658, %v722
  %v738 = vmul.f32 %v659, %v722
  %v739 = vadd.f32 %v702, %v723
  %v740 = vadd.f32 %v703, %v724
  %v741 = vadd.f32 %v704, %v725
  %v742 = vadd.f32 %v705, %v726
  %v743 = vadd.f32 %v706, %v727
  %v744 = vadd.f32 %v707, %v728
  %v745 = vadd.f32 %v708, %v729
  %v746 = vadd.f32 %v709, %v730
  %v747 = vadd.f32 %v710, %v731
  %v748 = vadd.f32 %v711, %v732
  %v749 = vadd.f32 %v712, %v733
  %v750 = vadd.f32 %v713, %v734
  %v751 = vadd.f32 %v714, %v735
  %v752 = vadd.f32 %v715, %v736
  %v753 = vadd.f32 %v716, %v737
  %v754 = vadd.f32 %v717, %v738
  %v755 = vld [vmem:[%s10] sm:$0x1]
  %v757 = vlaneseq
  %v758 = vshrl.u32 %v757, 7
  %v759 = vsub.s32 0, %v758
  %v760 = vrot.slane %v755, %v759
  %v762 = vadd.f32 %v739, %v760
  %v763 = vadd.f32 %v740, %v760
  %v764 = vadd.f32 %v741, %v760
  %v765 = vadd.f32 %v742, %v760
  %v766 = vadd.f32 %v743, %v760
  %v767 = vadd.f32 %v744, %v760
  %v768 = vadd.f32 %v745, %v760
  %v769 = vadd.f32 %v746, %v760
  %v770 = vadd.f32 %v747, %v760
  %v771 = vadd.f32 %v748, %v760
  %v772 = vadd.f32 %v749, %v760
  %v773 = vadd.f32 %v750, %v760
  %v774 = vadd.f32 %v751, %v760
  %v775 = vadd.f32 %v752, %v760
  %v776 = vadd.f32 %v753, %v760
  %v777 = vadd.f32 %v754, %v760
  %v778 = vpack.c.bf16 %v763, %v762
  %v779 = vpack.c.bf16 %v765, %v764
  %v780 = vpack.c.bf16 %v767, %v766
  %v781 = vpack.c.bf16 %v769, %v768
  %v782 = vpack.c.bf16 %v771, %v770
  %v783 = vpack.c.bf16 %v773, %v772
  %v784 = vpack.c.bf16 %v775, %v774
  %v785 = vpack.c.bf16 %v777, %v776
  %v786 = vld [vmem:[%s11] sm:$0xf]
  %v787 = vld [vmem:[%s11 + $0x4] sm:$0xf]
  %v788 = vld [vmem:[%s11 + $0x8] sm:$0xf]
  %v789 = vld [vmem:[%s11 + $0xc] sm:$0xf]
  %v790 = vld [vmem:[%s12] sm:$0x1]
  %v792 = vlaneseq
  %v793 = vshrl.u32 %v792, 7
  %v794 = vsub.s32 0, %v793
  %v795 = vrot.slane %v790, %v794
  %v801 = vunpack.c.l.b16 %v786
  %v802 = vunpack.c.l.b16 %v787
  %v803 = vunpack.c.l.b16 %v788
  %v804 = vunpack.c.l.b16 %v789
  %v805 = vpack.c.b16 %v802, %v801
  %v806 = vpack.c.b16 %v804, %v803
  %vm809 = vcmask 261120
  %v811 = vsel %vm809, %v778, 0
  %v814 = vsel %vm809, %v779, 0
  %v817 = vsel %vm809, %v780, 0
  %v820 = vsel %vm809, %v781, 0
  %v823 = vsel %vm809, %v782, 0
  %v826 = vsel %vm809, %v783, 0
  %v829 = vsel %vm809, %v784, 0
  %v832 = vsel %vm809, %v785, 0
  %834 = vmatprep.subr.bf16.mxu0 0
  %835 = vmatpush1.bf16.msra.mxu0 %v805
  %836 = vmatprep.subr.bf16.mxu0 0
  %837 = vmatpush1.bf16.msra.mxu0 %v806
  %838 = vmatprep.subr.bf16.mxu0 0
  %839 = vmatpush1.bf16.msra.mxu0 0
  %840 = vmatprep.subr.bf16.mxu0 0
  %841 = vmatpush1.bf16.msra.mxu0 0
  %842 = vmatprep.subr.bf16.mxu0 0
  %843 = vmatpush1.bf16.msra.mxu0 0
  %844 = vmatprep.subr.bf16.mxu0 0
  %845 = vmatpush1.bf16.msra.mxu0 0
  %846 = vmatprep.subr.bf16.mxu0 0
  %847 = vmatpush1.bf16.msra.mxu0 0
  %848 = vmatprep.subr.bf16.mxu0 0
  %849 = vmatpush1.bf16.msra.mxu0 0
  %850 = vmatprep.subr.bf16.mxu0 0
  %851 = vmatpush1.bf16.msra.mxu0 0
  %852 = vmatprep.subr.bf16.mxu0 0
  %853 = vmatpush1.bf16.msra.mxu0 0
  %854 = vmatprep.subr.bf16.mxu0 0
  %855 = vmatpush1.bf16.msra.mxu0 0
  %856 = vmatprep.subr.bf16.mxu0 0
  %857 = vmatpush1.bf16.msra.mxu0 0
  %858 = vmatprep.subr.bf16.mxu0 0
  %859 = vmatpush1.bf16.msra.mxu0 0
  %860 = vmatprep.subr.bf16.mxu0 0
  %861 = vmatpush1.bf16.msra.mxu0 0
  %862 = vmatprep.subr.bf16.mxu0 0
  %863 = vmatpush1.bf16.msra.mxu0 0
  %864 = vmatprep.subr.bf16.mxu0 0
  %865 = vmatpush1.bf16.msra.mxu0 0
  %866 = vmatprep.mubr.bf16.mxu0 0
  %867 = vmatmul.mubr.bf16.gmra.mrb[0].mxu0 %v811
  %v868 = vpop.f32.mrb[0].mxu0
  %v869 = vadd.f32 %v795, %v868
  %v870 = vpop.f32.mrb[0].mxu0
  %v871 = vpop.f32.mrb[0].mxu0
  %v872 = vadd.f32 %v795, %v871
  %v873 = vpop.f32.mrb[0].mxu0
  %874 = vmatprep.mubr.bf16.mxu0 0
  %875 = vmatmul.mubr.bf16.gmra.mrb[0].mxu0 %v814
  %v876 = vpop.f32.mrb[0].mxu0
  %v877 = vadd.f32 %v795, %v876
  %v878 = vpop.f32.mrb[0].mxu0
  %v879 = vpop.f32.mrb[0].mxu0
  %v880 = vadd.f32 %v795, %v879
  %v881 = vpop.f32.mrb[0].mxu0
  %882 = vmatprep.mubr.bf16.mxu0 0
  %883 = vmatmul.mubr.bf16.gmra.mrb[0].mxu0 %v817
  %v884 = vpop.f32.mrb[0].mxu0
  %v885 = vadd.f32 %v795, %v884
  %v886 = vpop.f32.mrb[0].mxu0
  %v887 = vpop.f32.mrb[0].mxu0
  %v888 = vadd.f32 %v795, %v887
  %v889 = vpop.f32.mrb[0].mxu0
  %890 = vmatprep.mubr.bf16.mxu0 0
  %891 = vmatmul.mubr.bf16.gmra.mrb[0].mxu0 %v820
  %v892 = vpop.f32.mrb[0].mxu0
  %v893 = vadd.f32 %v795, %v892
  %v894 = vpop.f32.mrb[0].mxu0
  %v895 = vpop.f32.mrb[0].mxu0
  %v896 = vadd.f32 %v795, %v895
  %v897 = vpop.f32.mrb[0].mxu0
  %898 = vmatprep.mubr.bf16.mxu0 0
  %899 = vmatmul.mubr.bf16.gmra.mrb[0].mxu0 %v823
  %v900 = vpop.f32.mrb[0].mxu0
  %v901 = vadd.f32 %v795, %v900
  %v902 = vpop.f32.mrb[0].mxu0
  %v903 = vpop.f32.mrb[0].mxu0
  %v904 = vadd.f32 %v795, %v903
  %v905 = vpop.f32.mrb[0].mxu0
  %906 = vmatprep.mubr.bf16.mxu0 0
  %907 = vmatmul.mubr.bf16.gmra.mrb[0].mxu0 %v826
  %v908 = vpop.f32.mrb[0].mxu0
  %v909 = vadd.f32 %v795, %v908
  %v910 = vpop.f32.mrb[0].mxu0
  %v911 = vpop.f32.mrb[0].mxu0
  %v912 = vadd.f32 %v795, %v911
  %v913 = vpop.f32.mrb[0].mxu0
  %914 = vmatprep.mubr.bf16.mxu0 0
  %915 = vmatmul.mubr.bf16.gmra.mrb[0].mxu0 %v829
  %v916 = vpop.f32.mrb[0].mxu0
  %v917 = vadd.f32 %v795, %v916
  %v918 = vpop.f32.mrb[0].mxu0
  %v919 = vpop.f32.mrb[0].mxu0
  %v920 = vadd.f32 %v795, %v919
  %v921 = vpop.f32.mrb[0].mxu0
  %922 = vmatprep.mubr.bf16.mxu0 0
  %923 = vmatmul.mubr.bf16.gmra.mrb[0].mxu0 %v832
  %v924 = vpop.f32.mrb[0].mxu0
  %v925 = vadd.f32 %v795, %v924
  %v926 = vpop.f32.mrb[0].mxu0
  %v927 = vpop.f32.mrb[0].mxu0
  %v928 = vadd.f32 %v795, %v927
  %v929 = vpop.f32.mrb[0].mxu0
  %930 = vdwg.mxu0
  %v931 = vadd.f32 %v45, %v869
  %v932 = vadd.f32 %v46, %v872
  %v933 = vadd.f32 %v47, %v877
  %v934 = vadd.f32 %v48, %v880
  %v935 = vadd.f32 %v49, %v885
  %v936 = vadd.f32 %v50, %v888
  %v937 = vadd.f32 %v51, %v893
  %v938 = vadd.f32 %v52, %v896
  %v939 = vadd.f32 %v53, %v901
  %v940 = vadd.f32 %v54, %v904
  %v941 = vadd.f32 %v55, %v909
  %v942 = vadd.f32 %v56, %v912
  %v943 = vadd.f32 %v57, %v917
  %v944 = vadd.f32 %v58, %v920
  %v945 = vadd.f32 %v59, %v925
  %v946 = vadd.f32 %v60, %v928
  %947 = vst.msk [vmem:[%s13] sm:$0xff] %vm200, %v931
  %948 = vst.msk [vmem:[%s13 + $0x8] sm:$0xff] %vm200, %v932
  %949 = vst.msk [vmem:[%s13 + $0x10] sm:$0xff] %vm200, %v933
  %950 = vst.msk [vmem:[%s13 + $0x18] sm:$0xff] %vm200, %v934
  %951 = vst.msk [vmem:[%s13 + $0x20] sm:$0xff] %vm200, %v935
  %952 = vst.msk [vmem:[%s13 + $0x28] sm:$0xff] %vm200, %v936
  %953 = vst.msk [vmem:[%s13 + $0x30] sm:$0xff] %vm200, %v937
  %954 = vst.msk [vmem:[%s13 + $0x38] sm:$0xff] %vm200, %v938
  %955 = vst.msk [vmem:[%s13 + $0x40] sm:$0xff] %vm200, %v939
  %956 = vst.msk [vmem:[%s13 + $0x48] sm:$0xff] %vm200, %v940
  %957 = vst.msk [vmem:[%s13 + $0x50] sm:$0xff] %vm200, %v941
  %958 = vst.msk [vmem:[%s13 + $0x58] sm:$0xff] %vm200, %v942
  %959 = vst.msk [vmem:[%s13 + $0x60] sm:$0xff] %vm200, %v943
  %960 = vst.msk [vmem:[%s13 + $0x68] sm:$0xff] %vm200, %v944
  %961 = vst.msk [vmem:[%s13 + $0x70] sm:$0xff] %vm200, %v945
  %962 = vst.msk [vmem:[%s13 + $0x78] sm:$0xff] %vm200, %v946
  // Predicated region
  $region54: #{attn_c_block_forward.5} parent=0 // pred_check
    _
  $region55: #{attn_c_block_forward.5} parent=0 // pred_check_branch
    %964 = sbr.rel (0) target = $region57
  $region56: #{attn_c_block_forward.5} parent=0 // pred_region
    _
  $region57: #{attn_c_block_forward.5} parent=0 // pred_fallthru
    _
  // Predicated region
  $region58: #{attn_c_block_forward.5} parent=0 // pred_check
    _
  $region59: #{attn_c_block_forward.5} parent=0 // pred_check_branch
    %966 = sbr.rel (0) target = $region61
  $region60: #{attn_c_block_forward.5} parent=0 // pred_region
    _
  $region61: #{attn_c_block_forward.5} parent=0 // pred_fallthru
    _

// kernel: attn_c_block_forward.7
$region0: #{attn_c_block_forward.7}
  #allocation0 [shape = 'u32[]', space=smem, size = 0x4, offset = 0x4, fixed_abs, tag = 'smem constant byte address 0x4 - core index']
  #allocation1 [shape = 'u32[144,128]{1,0:T(1,128)}', space=vmem, size = 0x12000, scoped, tag = 'internal scratch']
  %s0 = inlined_call_operand.vmem [shape: f32[128,64], index: 0, kind: input, shape index: {}]
  %s1 = inlined_call_operand.vmem [shape: f32[1,64], index: 1, kind: input, shape index: {}]
  %s2 = inlined_call_operand.vmem [shape: f32[1,64], index: 2, kind: input, shape index: {}]
  %s3 = inlined_call_operand.vmem [shape: f32[1,64], index: 3, kind: input, shape index: {}]
  %s4 = inlined_call_operand.vmem [shape: f32[1,64], index: 4, kind: input, shape index: {}]
  %s5 = inlined_call_operand.vmem [shape: bf16[64,256], index: 5, kind: input, shape index: {}]
  %s6 = inlined_call_operand.vmem [shape: f32[1,256], index: 6, kind: input, shape index: {}]
  %s7 = inlined_call_operand.vmem [shape: bf16[256,64], index: 7, kind: input, shape index: {}]
  %s8 = inlined_call_operand.vmem [shape: f32[1,64], index: 8, kind: input, shape index: {}]
  %s9 = inlined_call_operand.hbm [shape: f32[128,64], index: 9, kind: output, shape index: {}]
  %s10 = sld [smem:[#allocation0]]
  $region46: #{attn_c_block_forward.7} parent=0
    _
  %s12 = ssub.s32 1, %s10
  %s13 = scalar_select 0, %s12, %s10
  $region1: #{attn_c_block_forward.7} parent=0
    #allocation2 [shape = 'u8[65536]{0}', space=vmem, size = 0x10000, scoped, tag = 'output window, operand 0, single buffered']
    #allocation3 [shape = 's32[1]{0}', space=sflag, size = 0x4, scoped, tag = 'scoped memory for attn_c_block_forward.7']
    %14 = vsyncpa [#allocation3], 0
    // Predicated region
    $region2: #{attn_c_block_forward.7} parent=1 // pred_check
      _
    $region3: #{attn_c_block_forward.7} parent=1 // pred_check_branch
      %16 = sbr.rel (0) target = $region5
    $region4: #{attn_c_block_forward.7} parent=1 // pred_region
      _
    $region5: #{attn_c_block_forward.7} parent=1 // pred_fallthru
      _
    // Predicated region
    $region6: #{attn_c_block_forward.7} parent=1 // pred_check
      _
    $region7: #{attn_c_block_forward.7} parent=1 // pred_check_branch
      %18 = sbr.rel (0) target = $region9
    $region8: #{attn_c_block_forward.7} parent=1 // pred_region
      _
    $region9: #{attn_c_block_forward.7} parent=1 // pred_fallthru
      _
    // Predicated region
    $region10: #{attn_c_block_forward.7} parent=1 // pred_check
      _
    $region11: #{attn_c_block_forward.7} parent=1 // pred_check_branch
      %20 = sbr.rel (0) target = $region13
    $region12: #{attn_c_block_forward.7} parent=1 // pred_region
      _
    $region13: #{attn_c_block_forward.7} parent=1 // pred_fallthru
      _
    // Predicated region
    $region14: #{attn_c_block_forward.7} parent=1 // pred_check
      _
    $region15: #{attn_c_block_forward.7} parent=1 // pred_check_branch
      %22 = sbr.rel (0) target = $region17
    $region16: #{attn_c_block_forward.7} parent=1 // pred_region
      _
    $region17: #{attn_c_block_forward.7} parent=1 // pred_fallthru
      _
    // Predicated region
    $region18: #{attn_c_block_forward.7} parent=1 // pred_check
      _
    $region19: #{attn_c_block_forward.7} parent=1 // pred_check_branch
      %24 = sbr.rel (0) target = $region21
    $region20: #{attn_c_block_forward.7} parent=1 // pred_region
      _
    $region21: #{attn_c_block_forward.7} parent=1 // pred_fallthru
      _
    // Predicated region
    $region22: #{attn_c_block_forward.7} parent=1 // pred_check
      _
    $region23: #{attn_c_block_forward.7} parent=1 // pred_check_branch
      %26 = sbr.rel (0) target = $region25
    $region24: #{attn_c_block_forward.7} parent=1 // pred_region
      _
    $region25: #{attn_c_block_forward.7} parent=1 // pred_fallthru
      _
    // Predicated region
    $region26: #{attn_c_block_forward.7} parent=1 // pred_check
      _
    $region27: #{attn_c_block_forward.7} parent=1 // pred_check_branch
      %28 = sbr.rel (0) target = $region29
    $region28: #{attn_c_block_forward.7} parent=1 // pred_region
      _
    $region29: #{attn_c_block_forward.7} parent=1 // pred_fallthru
      _
    // Predicated region
    $region30: #{attn_c_block_forward.7} parent=1 // pred_check
      _
    $region31: #{attn_c_block_forward.7} parent=1 // pred_check_branch
      %30 = sbr.rel (0) target = $region33
    $region32: #{attn_c_block_forward.7} parent=1 // pred_region
      _
    $region33: #{attn_c_block_forward.7} parent=1 // pred_fallthru
      _
    // Predicated region
    $region34: #{attn_c_block_forward.7} parent=1 // pred_check
      _
    $region35: #{attn_c_block_forward.7} parent=1 // pred_check_branch
      %32 = sbr.rel (0) target = $region37
    $region36: #{attn_c_block_forward.7} parent=1 // pred_region
      _
    $region37: #{attn_c_block_forward.7} parent=1 // pred_fallthru
      _
    %v34 = vld [vmem:[%s0] sm:$0xff]
    %v35 = vld [vmem:[%s0 + $0x8] sm:$0xff]
    %v36 = vld [vmem:[%s0 + $0x10] sm:$0xff]
    %v37 = vld [vmem:[%s0 + $0x18] sm:$0xff]
    %v38 = vld [vmem:[%s0 + $0x20] sm:$0xff]
    %v39 = vld [vmem:[%s0 + $0x28] sm:$0xff]
    %v40 = vld [vmem:[%s0 + $0x30] sm:$0xff]
    %v41 = vld [vmem:[%s0 + $0x38] sm:$0xff]
    %v42 = vld [vmem:[%s0 + $0x40] sm:$0xff]
    %v43 = vld [vmem:[%s0 + $0x48] sm:$0xff]
    %v44 = vld [vmem:[%s0 + $0x50] sm:$0xff]
    %v45 = vld [vmem:[%s0 + $0x58] sm:$0xff]
    %v46 = vld [vmem:[%s0 + $0x60] sm:$0xff]
    %v47 = vld [vmem:[%s0 + $0x68] sm:$0xff]
    %v48 = vld [vmem:[%s0 + $0x70] sm:$0xff]
    %v49 = vld [vmem:[%s0 + $0x78] sm:$0xff]
    %v50 = vld [vmem:[%s1] sm:$0x1]
    %v52 = vlaneseq
    %v53 = vshrl.u32 %v52, 7
    %v54 = vsub.s32 0, %v53
    %v55 = vrot.slane %v50, %v54
    %v57 = vsub.f32 %v34, %v55
    %v58 = vsub.f32 %v35, %v55
    %v59 = vsub.f32 %v36, %v55
    %v60 = vsub.f32 %v37, %v55
    %v61 = vsub.f32 %v38, %v55
    %v62 = vsub.f32 %v39, %v55
    %v63 = vsub.f32 %v40, %v55
    %v64 = vsub.f32 %v41, %v55
    %v65 = vsub.f32 %v42, %v55
    %v66 = vsub.f32 %v43, %v55
    %v67 = vsub.f32 %v44, %v55
    %v68 = vsub.f32 %v45, %v55
    %v69 = vsub.f32 %v46, %v55
    %v70 = vsub.f32 %v47, %v55
    %v71 = vsub.f32 %v48, %v55
    %v72 = vsub.f32 %v49, %v55
    %v73 = vld [vmem:[%s2] sm:$0x1]
    %v75 = vlaneseq
    %v76 = vshrl.u32 %v75, 7
    %v77 = vsub.s32 0, %v76
    %v78 = vrot.slane %v73, %v77
    %v80 = vmul.f32 %v57, %v78
    %v81 = vmul.f32 %v58, %v78
    %v82 = vmul.f32 %v59, %v78
    %v83 = vmul.f32 %v60, %v78
    %v84 = vmul.f32 %v61, %v78
    %v85 = vmul.f32 %v62, %v78
    %v86 = vmul.f32 %v63, %v78
    %v87 = vmul.f32 %v64, %v78
    %v88 = vmul.f32 %v65, %v78
    %v89 = vmul.f32 %v66, %v78
    %v90 = vmul.f32 %v67, %v78
    %v91 = vmul.f32 %v68, %v78
    %v92 = vmul.f32 %v69, %v78
    %v93 = vmul.f32 %v70, %v78
    %v94 = vmul.f32 %v71, %v78
    %v95 = vmul.f32 %v72, %v78
    %v96 = vld [vmem:[%s3] sm:$0x1]
    %v98 = vlaneseq
    %v99 = vshrl.u32 %v98, 7
    %v100 = vsub.s32 0, %v99
    %v101 = vrot.slane %v96, %v100
    %v103 = vmul.f32 %v80, %v101
    %v104 = vmul.f32 %v81, %v101
    %v105 = vmul.f32 %v82, %v101
    %v106 = vmul.f32 %v83, %v101
    %v107 = vmul.f32 %v84, %v101
    %v108 = vmul.f32 %v85, %v101
    %v109 = vmul.f32 %v86, %v101
    %v110 = vmul.f32 %v87, %v101
    %v111 = vmul.f32 %v88, %v101
    %v112 = vmul.f32 %v89, %v101
    %v113 = vmul.f32 %v90, %v101
    %v114 = vmul.f32 %v91, %v101
    %v115 = vmul.f32 %v92, %v101
    %v116 = vmul.f32 %v93, %v101
    %v117 = vmul.f32 %v94, %v101
    %v118 = vmul.f32 %v95, %v101
    %v119 = vld [vmem:[%s4] sm:$0x1]
    %v121 = vlaneseq
    %v122 = vshrl.u32 %v121, 7
    %v123 = vsub.s32 0, %v122
    %v124 = vrot.slane %v119, %v123
    %v126 = vadd.f32 %v103, %v124
    %v127 = vadd.f32 %v104, %v124
    %v128 = vadd.f32 %v105, %v124
    %v129 = vadd.f32 %v106, %v124
    %v130 = vadd.f32 %v107, %v124
    %v131 = vadd.f32 %v108, %v124
    %v132 = vadd.f32 %v109, %v124
    %v133 = vadd.f32 %v110, %v124
    %v134 = vadd.f32 %v111, %v124
    %v135 = vadd.f32 %v112, %v124
    %v136 = vadd.f32 %v113, %v124
    %v137 = vadd.f32 %v114, %v124
    %v138 = vadd.f32 %v115, %v124
    %v139 = vadd.f32 %v116, %v124
    %v140 = vadd.f32 %v117, %v124
    %v141 = vadd.f32 %v118, %v124
    %v142 = vpack.c.bf16 %v127, %v126
    %v143 = vpack.c.bf16 %v129, %v128
    %v144 = vpack.c.bf16 %v131, %v130
    %v145 = vpack.c.bf16 %v133, %v132
    %v146 = vpack.c.bf16 %v135, %v134
    %v147 = vpack.c.bf16 %v137, %v136
    %v148 = vpack.c.bf16 %v139, %v138
    %v149 = vpack.c.bf16 %v141, %v140
    %v150 = vld [vmem:[%s5] sm:$0xff]
    %v151 = vld [vmem:[%s5 + $0x8] sm:$0xff]
    %v152 = vld [vmem:[%s5 + $0x10] sm:$0xff]
    %v153 = vld [vmem:[%s5 + $0x18] sm:$0xff]
    %v154 = vld [vmem:[%s5 + $0x20] sm:$0xff]
    %v155 = vld [vmem:[%s5 + $0x28] sm:$0xff]
    %v156 = vld [vmem:[%s5 + $0x30] sm:$0xff]
    %v157 = vld [vmem:[%s5 + $0x38] sm:$0xff]
    %v158 = vld [vmem:[%s6] sm:$0x3]
    %v160 = vlaneseq
    %v161 = vshrl.u32 %v160, 7
    %v162 = vsub.s32 0, %v161
    %v163 = vrot.slane %v158, %v162
    %v164 = vlaneseq
    %v165 = vshrl.u32 %v164, 7
    %v166 = vsub.s32 1, %v165
    %v167 = vrot.slane %v158, %v166
    %v178 = vunpack.c.l.b16 %v150
    %v179 = vunpack.c.h.b16 %v150
    %v180 = vunpack.c.l.b16 %v151
    %v181 = vunpack.c.h.b16 %v151
    %v182 = vunpack.c.l.b16 %v152
    %v183 = vunpack.c.h.b16 %v152
    %v184 = vunpack.c.l.b16 %v153
    %v185 = vunpack.c.h.b16 %v153
    %v186 = vunpack.c.l.b16 %v154
    %v187 = vunpack.c.h.b16 %v154
    %v188 = vunpack.c.l.b16 %v155
    %v189 = vunpack.c.h.b16 %v155
    %v190 = vunpack.c.l.b16 %v156
    %v191 = vunpack.c.h.b16 %v156
    %v192 = vunpack.c.l.b16 %v157
    %v193 = vunpack.c.h.b16 %v157
    %v194 = vpack.c.b16 %v180, %v178
    %v195 = vpack.c.b16 %v181, %v179
    %v196 = vpack.c.b16 %v184, %v182
    %v197 = vpack.c.b16 %v185, %v183
    %v198 = vpack.c.b16 %v188, %v186
    %v199 = vpack.c.b16 %v189, %v187
    %v200 = vpack.c.b16 %v192, %v190
    %v201 = vpack.c.b16 %v193, %v191
    %vm210 = vcmask 523264
    %v212 = vsel %vm210, %v142, 0
    %v215 = vsel %vm210, %v143, 0
    %v218 = vsel %vm210, %v144, 0
    %v221 = vsel %vm210, %v145, 0
    %v224 = vsel %vm210, %v146, 0
    %v227 = vsel %vm210, %v147, 0
    %v230 = vsel %vm210, %v148, 0
    %v233 = vsel %vm210, %v149, 0
    %235 = vmatprep.subr.bf16.mxu0 %v195
    %236 = vmatpush1.bf16.msra.mxu0 %v194
    %237 = vmatprep.subr.bf16.mxu0 %v197
    %238 = vmatpush1.bf16.msra.mxu0 %v196
    %239 = vmatprep.subr.bf16.mxu0 %v199
    %240 = vmatpush1.bf16.msra.mxu0 %v198
    %241 = vmatprep.subr.bf16.mxu0 %v201
    %242 = vmatpush1.bf16.msra.mxu0 %v200
    %243 = vmatprep.subr.bf16.mxu0 0
    %244 = vmatpush1.bf16.msra.mxu0 0
    %245 = vmatprep.subr.bf16.mxu0 0
    %246 = vmatpush1.bf16.msra.mxu0 0
    %247 = vmatprep.subr.bf16.mxu0 0
    %248 = vmatpush1.bf16.msra.mxu0 0
    %249 = vmatprep.subr.bf16.mxu0 0
    %250 = vmatpush1.bf16.msra.mxu0 0
    %251 = vmatprep.subr.bf16.mxu0 0
    %252 = vmatpush1.bf16.msra.mxu0 0
    %253 = vmatprep.subr.bf16.mxu0 0
    %254 = vmatpush1.bf16.msra.mxu0 0
    %255 = vmatprep.subr.bf16.mxu0 0
    %256 = vmatpush1.bf16.msra.mxu0 0
    %257 = vmatprep.subr.bf16.mxu0 0
    %258 = vmatpush1.bf16.msra.mxu0 0
    %259 = vmatprep.subr.bf16.mxu0 0
    %260 = vmatpush1.bf16.msra.mxu0 0
    %261 = vmatprep.subr.bf16.mxu0 0
    %262 = vmatpush1.bf16.msra.mxu0 0
    %263 = vmatprep.subr.bf16.mxu0 0
    %264 = vmatpush1.bf16.msra.mxu0 0
    %265 = vmatprep.subr.bf16.mxu0 0
    %266 = vmatpush1.bf16.msra.mxu0 0
    %267 = vmatprep.mubr.bf16.mxu0 0
    %268 = vmatmul.mubr.bf16.gmra.mrb[0].mxu0 %v212
    %v269 = vpop.f32.mrb[0].mxu0
    %v270 = vadd.f32 %v163, %v269
    %v271 = vpop.f32.mrb[0].mxu0
    %v272 = vadd.f32 %v167, %v271
    %v273 = vpop.f32.mrb[0].mxu0
    %v274 = vadd.f32 %v163, %v273
    %v275 = vpop.f32.mrb[0].mxu0
    %v276 = vadd.f32 %v167, %v275
    %277 = vmatprep.mubr.bf16.mxu0 0
    %278 = vmatmul.mubr.bf16.gmra.mrb[0].mxu0 %v215
    %v279 = vpop.f32.mrb[0].mxu0
    %v280 = vadd.f32 %v163, %v279
    %v281 = vpop.f32.mrb[0].mxu0
    %v282 = vadd.f32 %v167, %v281
    %v283 = vpop.f32.mrb[0].mxu0
    %v284 = vadd.f32 %v163, %v283
    %v285 = vpop.f32.mrb[0].mxu0
    %v286 = vadd.f32 %v167, %v285
    %287 = vmatprep.mubr.bf16.mxu0 0
    %288 = vmatmul.mubr.bf16.gmra.mrb[0].mxu0 %v218
    %v289 = vpop.f32.mrb[0].mxu0
    %v290 = vadd.f32 %v163, %v289
    %v291 = vpop.f32.mrb[0].mxu0
    %v292 = vadd.f32 %v167, %v291
    %v293 = vpop.f32.mrb[0].mxu0
    %v294 = vadd.f32 %v163, %v293
    %v295 = vpop.f32.mrb[0].mxu0
    %v296 = vadd.f32 %v167, %v295
    %297 = vmatprep.mubr.bf16.mxu0 0
    %298 = vmatmul.mubr.bf16.gmra.mrb[0].mxu0 %v221
    %v299 = vpop.f32.mrb[0].mxu0
    %v300 = vadd.f32 %v163, %v299
    %v301 = vpop.f32.mrb[0].mxu0
    %v302 = vadd.f32 %v167, %v301
    %v303 = vpop.f32.mrb[0].mxu0
    %v304 = vadd.f32 %v163, %v303
    %v305 = vpop.f32.mrb[0].mxu0
    %v306 = vadd.f32 %v167, %v305
    %307 = vmatprep.mubr.bf16.mxu0 0
    %308 = vmatmul.mubr.bf16.gmra.mrb[0].mxu0 %v224
    %v309 = vpop.f32.mrb[0].mxu0
    %v310 = vadd.f32 %v163, %v309
    %v311 = vpop.f32.mrb[0].mxu0
    %v312 = vadd.f32 %v167, %v311
    %v313 = vpop.f32.mrb[0].mxu0
    %v314 = vadd.f32 %v163, %v313
    %v315 = vpop.f32.mrb[0].mxu0
    %v316 = vadd.f32 %v167, %v315
    %317 = vmatprep.mubr.bf16.mxu0 0
    %318 = vmatmul.mubr.bf16.gmra.mrb[0].mxu0 %v227
    %v319 = vpop.f32.mrb[0].mxu0
    %v320 = vadd.f32 %v163, %v319
    %v321 = vpop.f32.mrb[0].mxu0
    %v322 = vadd.f32 %v167, %v321
    %v323 = vpop.f32.mrb[0].mxu0
    %v324 = vadd.f32 %v163, %v323
    %v325 = vpop.f32.mrb[0].mxu0
    %v326 = vadd.f32 %v167, %v325
    %327 = vmatprep.mubr.bf16.mxu0 0
    %328 = vmatmul.mubr.bf16.gmra.mrb[0].mxu0 %v230
    %v329 = vpop.f32.mrb[0].mxu0
    %v330 = vadd.f32 %v163, %v329
    %v331 = vpop.f32.mrb[0].mxu0
    %v332 = vadd.f32 %v167, %v331
    %v333 = vpop.f32.mrb[0].mxu0
    %v334 = vadd.f32 %v163, %v333
    %v335 = vpop.f32.mrb[0].mxu0
    %v336 = vadd.f32 %v167, %v335
    %337 = vmatprep.mubr.bf16.mxu0 0
    %338 = vmatmul.mubr.bf16.gmra.mrb[0].mxu0 %v233
    %v339 = vpop.f32.mrb[0].mxu0
    %v340 = vadd.f32 %v163, %v339
    %v341 = vpop.f32.mrb[0].mxu0
    %v342 = vadd.f32 %v167, %v341
    %v343 = vpop.f32.mrb[0].mxu0
    %v344 = vadd.f32 %v163, %v343
    %v345 = vpop.f32.mrb[0].mxu0
    %v346 = vadd.f32 %v167, %v345
    %347 = vdwg.mxu0
    %v348 = vmul.f32 %v270, 0.5
    %v349 = vmul.f32 %v272, 0.5
    %v350 = vmul.f32 %v274, 0.5
    %v351 = vmul.f32 %v276, 0.5
    %v352 = vmul.f32 %v280, 0.5
    %v353 = vmul.f32 %v282, 0.5
    %v354 = vmul.f32 %v284, 0.5
    %v355 = vmul.f32 %v286, 0.5
    %v356 = vmul.f32 %v290, 0.5
    %v357 = vmul.f32 %v292, 0.5
    %v358 = vmul.f32 %v294, 0.5
    %v359 = vmul.f32 %v296, 0.5
    %v360 = vmul.f32 %v300, 0.5
    %v361 = vmul.f32 %v302, 0.5
    %v362 = vmul.f32 %v304, 0.5
    %v363 = vmul.f32 %v306, 0.5
    %v364 = vmul.f32 %v310, 0.5
    %v365 = vmul.f32 %v312, 0.5
    %v366 = vmul.f32 %v314, 0.5
    %v367 = vmul.f32 %v316, 0.5
    %v368 = vmul.f32 %v320, 0.5
    %v369 = vmul.f32 %v322, 0.5
    %v370 = vmul.f32 %v324, 0.5
    %v371 = vmul.f32 %v326, 0.5
    %v372 = vmul.f32 %v330, 0.5
    %v373 = vmul.f32 %v332, 0.5
    %v374 = vmul.f32 %v334, 0.5
    %v375 = vmul.f32 %v336, 0.5
    %v376 = vmul.f32 %v340, 0.5
    %v377 = vmul.f32 %v342, 0.5
    %v378 = vmul.f32 %v344, 0.5
    %v379 = vmul.f32 %v346, 0.5
    %v380 = vmul.f32 %v270, 0.70710677
    %v381 = vmul.f32 %v272, 0.70710677
    %v382 = vmul.f32 %v274, 0.70710677
    %v383 = vmul.f32 %v276, 0.70710677
    %v384 = vmul.f32 %v280, 0.70710677
    %v385 = vmul.f32 %v282, 0.70710677
    %v386 = vmul.f32 %v284, 0.70710677
    %v387 = vmul.f32 %v286, 0.70710677
    %v388 = vmul.f32 %v290, 0.70710677
    %v389 = vmul.f32 %v292, 0.70710677
    %v390 = vmul.f32 %v294, 0.70710677
    %v391 = vmul.f32 %v296, 0.70710677
    %v392 = vmul.f32 %v300, 0.70710677
    %v393 = vmul.f32 %v302, 0.70710677
    %v394 = vmul.f32 %v304, 0.70710677
    %v395 = vmul.f32 %v306, 0.70710677
    %v396 = vmul.f32 %v310, 0.70710677
    %v397 = vmul.f32 %v312, 0.70710677
    %v398 = vmul.f32 %v314, 0.70710677
    %v399 = vmul.f32 %v316, 0.70710677
    %v400 = vmul.f32 %v320, 0.70710677
    %v401 = vmul.f32 %v322, 0.70710677
    %v402 = vmul.f32 %v324, 0.70710677
    %v403 = vmul.f32 %v326, 0.70710677
    %v404 = vmul.f32 %v330, 0.70710677
    %v405 = vmul.f32 %v332, 0.70710677
    %v406 = vmul.f32 %v334, 0.70710677
    %v407 = vmul.f32 %v336, 0.70710677
    %v408 = vmul.f32 %v340, 0.70710677
    %v409 = vmul.f32 %v342, 0.70710677
    %v410 = vmul.f32 %v344, 0.70710677
    %v411 = vmul.f32 %v346, 0.70710677
    %v412 = verf.f32.pop %v380
    %v413 = verf.f32.pop %v381
    %v414 = verf.f32.pop %v382
    %v415 = verf.f32.pop %v383
    %v416 = verf.f32.pop %v384
    %v417 = verf.f32.pop %v385
    %v418 = verf.f32.pop %v386
    %v419 = verf.f32.pop %v387
    %v420 = verf.f32.pop %v388
    %v421 = verf.f32.pop %v389
    %v422 = verf.f32.pop %v390
    %v423 = verf.f32.pop %v391
    %v424 = verf.f32.pop %v392
    %v425 = verf.f32.pop %v393
    %v426 = verf.f32.pop %v394
    %v427 = verf.f32.pop %v395
    %v428 = verf.f32.pop %v396
    %v429 = verf.f32.pop %v397
    %v430 = verf.f32.pop %v398
    %v431 = verf.f32.pop %v399
    %v432 = verf.f32.pop %v400
    %v433 = verf.f32.pop %v401
    %v434 = verf.f32.pop %v402
    %v435 = verf.f32.pop %v403
    %v436 = verf.f32.pop %v404
    %v437 = verf.f32.pop %v405
    %v438 = verf.f32.pop %v406
    %v439 = verf.f32.pop %v407
    %v440 = verf.f32.pop %v408
    %v441 = verf.f32.pop %v409
    %v442 = verf.f32.pop %v410
    %v443 = verf.f32.pop %v411
    %v444 = vadd.f32 %v412, 1.0
    %v445 = vadd.f32 %v413, 1.0
    %v446 = vadd.f32 %v414, 1.0
    %v447 = vadd.f32 %v415, 1.0
    %v448 = vadd.f32 %v416, 1.0
    %v449 = vadd.f32 %v417, 1.0
    %v450 = vadd.f32 %v418, 1.0
    %v451 = vadd.f32 %v419, 1.0
    %v452 = vadd.f32 %v420, 1.0
    %v453 = vadd.f32 %v421, 1.0
    %v454 = vadd.f32 %v422, 1.0
    %v455 = vadd.f32 %v423, 1.0
    %v456 = vadd.f32 %v424, 1.0
    %v457 = vadd.f32 %v425, 1.0
    %v458 = vadd.f32 %v426, 1.0
    %v459 = vadd.f32 %v427, 1.0
    %v460 = vadd.f32 %v428, 1.0
    %v461 = vadd.f32 %v429, 1.0
    %v462 = vadd.f32 %v430, 1.0
    %v463 = vadd.f32 %v431, 1.0
    %v464 = vadd.f32 %v432, 1.0
    %v465 = vadd.f32 %v433, 1.0
    %v466 = vadd.f32 %v434, 1.0
    %v467 = vadd.f32 %v435, 1.0
    %v468 = vadd.f32 %v436, 1.0
    %v469 = vadd.f32 %v437, 1.0
    %v470 = vadd.f32 %v438, 1.0
    %v471 = vadd.f32 %v439, 1.0
    %v472 = vadd.f32 %v440, 1.0
    %v473 = vadd.f32 %v441, 1.0
    %v474 = vadd.f32 %v442, 1.0
    %v475 = vadd.f32 %v443, 1.0
    %v476 = vmul.f32 %v348, %v444
    %v477 = vmul.f32 %v349, %v445
    %v478 = vmul.f32 %v350, %v446
    %v479 = vmul.f32 %v351, %v447
    %v480 = vmul.f32 %v352, %v448
    %v481 = vmul.f32 %v353, %v449
    %v482 = vmul.f32 %v354, %v450
    %v483 = vmul.f32 %v355, %v451
    %v484 = vmul.f32 %v356, %v452
    %v485 = vmul.f32 %v357, %v453
    %v486 = vmul.f32 %v358, %v454
    %v487 = vmul.f32 %v359, %v455
    %v488 = vmul.f32 %v360, %v456
    %v489 = vmul.f32 %v361, %v457
    %v490 = vmul.f32 %v362, %v458
    %v491 = vmul.f32 %v363, %v459
    %v492 = vmul.f32 %v364, %v460
    %v493 = vmul.f32 %v365, %v461
    %v494 = vmul.f32 %v366, %v462
    %v495 = vmul.f32 %v367, %v463
    %v496 = vmul.f32 %v368, %v464
    %v497 = vmul.f32 %v369, %v465
    %v498 = vmul.f32 %v370, %v466
    %v499 = vmul.f32 %v371, %v467
    %v500 = vmul.f32 %v372, %v468
    %v501 = vmul.f32 %v373, %v469
    %v502 = vmul.f32 %v374, %v470
    %v503 = vmul.f32 %v375, %v471
    %v504 = vmul.f32 %v376, %v472
    %v505 = vmul.f32 %v377, %v473
    %v506 = vmul.f32 %v378, %v474
    %v507 = vmul.f32 %v379, %v475
    %v508 = vpack.c.bf16 %v478, %v476
    %v509 = vpack.c.bf16 %v479, %v477
    %v510 = vpack.c.bf16 %v482, %v480
    %v511 = vpack.c.bf16 %v483, %v481
    %v512 = vpack.c.bf16 %v486, %v484
    %v513 = vpack.c.bf16 %v487, %v485
    %v514 = vpack.c.bf16 %v490, %v488
    %v515 = vpack.c.bf16 %v491, %v489
    %v516 = vpack.c.bf16 %v494, %v492
    %v517 = vpack.c.bf16 %v495, %v493
    %v518 = vpack.c.bf16 %v498, %v496
    %v519 = vpack.c.bf16 %v499, %v497
    %v520 = vpack.c.bf16 %v502, %v500
    %v521 = vpack.c.bf16 %v503, %v501
    %v522 = vpack.c.bf16 %v506, %v504
    %v523 = vpack.c.bf16 %v507, %v505
    %v524 = vld [vmem:[%s7] sm:$0xf]
    %v525 = vld [vmem:[%s7 + $0x4] sm:$0xf]
    %v526 = vld [vmem:[%s7 + $0x8] sm:$0xf]
    %v527 = vld [vmem:[%s7 + $0xc] sm:$0xf]
    %v528 = vld [vmem:[%s7 + $0x10] sm:$0xf]
    %v529 = vld [vmem:[%s7 + $0x14] sm:$0xf]
    %v530 = vld [vmem:[%s7 + $0x18] sm:$0xf]
    %v531 = vld [vmem:[%s7 + $0x1c] sm:$0xf]
    %v532 = vld [vmem:[%s7 + $0x20] sm:$0xf]
    %v533 = vld [vmem:[%s7 + $0x24] sm:$0xf]
    %v534 = vld [vmem:[%s7 + $0x28] sm:$0xf]
    %v535 = vld [vmem:[%s7 + $0x2c] sm:$0xf]
    %v536 = vld [vmem:[%s7 + $0x30] sm:$0xf]
    %v537 = vld [vmem:[%s7 + $0x34] sm:$0xf]
    %v538 = vld [vmem:[%s7 + $0x38] sm:$0xf]
    %v539 = vld [vmem:[%s7 + $0x3c] sm:$0xf]
    %v540 = vld [vmem:[%s7 + $0x40] sm:$0xf]
    %v541 = vld [vmem:[%s7 + $0x44] sm:$0xf]
    %v542 = vld [vmem:[%s7 + $0x48] sm:$0xf]
    %v543 = vld [vmem:[%s7 + $0x4c] sm:$0xf]
    %v544 = vld [vmem:[%s7 + $0x50] sm:$0xf]
    %v545 = vld [vmem:[%s7 + $0x54] sm:$0xf]
    %v546 = vld [vmem:[%s7 + $0x58] sm:$0xf]
    %v547 = vld [vmem:[%s7 + $0x5c] sm:$0xf]
    %v548 = vld [vmem:[%s7 + $0x60] sm:$0xf]
    %v549 = vld [vmem:[%s7 + $0x64] sm:$0xf]
    %v550 = vld [vmem:[%s7 + $0x68] sm:$0xf]
    %v551 = vld [vmem:[%s7 + $0x6c] sm:$0xf]
    %v552 = vld [vmem:[%s7 + $0x70] sm:$0xf]
    %v553 = vld [vmem:[%s7 + $0x74] sm:$0xf]
    %v554 = vld [vmem:[%s7 + $0x78] sm:$0xf]
    %v555 = vld [vmem:[%s7 + $0x7c] sm:$0xf]
    %v556 = vld [vmem:[%s8] sm:$0x1]
    %v558 = vlaneseq
    %v559 = vshrl.u32 %v558, 7
    %v560 = vsub.s32 0, %v559
    %v561 = vrot.slane %v556, %v560
    %v595 = vunpack.c.l.b16 %v524
    %v596 = vunpack.c.l.b16 %v525
    %v597 = vunpack.c.l.b16 %v526
    %v598 = vunpack.c.l.b16 %v527
    %v599 = vunpack.c.l.b16 %v528
    %v600 = vunpack.c.l.b16 %v529
    %v601 = vunpack.c.l.b16 %v530
    %v602 = vunpack.c.l.b16 %v531
    %v603 = vunpack.c.l.b16 %v532
    %v604 = vunpack.c.l.b16 %v533
    %v605 = vunpack.c.l.b16 %v534
    %v606 = vunpack.c.l.b16 %v535
    %v607 = vunpack.c.l.b16 %v536
    %v608 = vunpack.c.l.b16 %v537
    %v609 = vunpack.c.l.b16 %v538
    %v610 = vunpack.c.l.b16 %v539
    %v611 = vunpack.c.l.b16 %v540
    %v612 = vunpack.c.l.b16 %v541
    %v613 = vunpack.c.l.b16 %v542
    %v614 = vunpack.c.l.b16 %v543
    %v615 = vunpack.c.l.b16 %v544
    %v616 = vunpack.c.l.b16 %v545
    %v617 = vunpack.c.l.b16 %v546
    %v618 = vunpack.c.l.b16 %v547
    %v619 = vunpack.c.l.b16 %v548
    %v620 = vunpack.c.l.b16 %v549
    %v621 = vunpack.c.l.b16 %v550
    %v622 = vunpack.c.l.b16 %v551
    %v623 = vunpack.c.l.b16 %v552
    %v624 = vunpack.c.l.b16 %v553
    %v625 = vunpack.c.l.b16 %v554
    %v626 = vunpack.c.l.b16 %v555
    %v627 = vpack.c.b16 %v596, %v595
    %v628 = vpack.c.b16 %v598, %v597
    %v629 = vpack.c.b16 %v600, %v599
    %v630 = vpack.c.b16 %v602, %v601
    %v631 = vpack.c.b16 %v604, %v603
    %v632 = vpack.c.b16 %v606, %v605
    %v633 = vpack.c.b16 %v608, %v607
    %v634 = vpack.c.b16 %v610, %v609
    %v635 = vpack.c.b16 %v612, %v611
    %v636 = vpack.c.b16 %v614, %v613
    %v637 = vpack.c.b16 %v616, %v615
    %v638 = vpack.c.b16 %v618, %v617
    %v639 = vpack.c.b16 %v620, %v619
    %v640 = vpack.c.b16 %v622, %v621
    %v641 = vpack.c.b16 %v624, %v623
    %v642 = vpack.c.b16 %v626, %v625
    %659 = vmatprep.subr.bf16.mxu0 0
    %660 = vmatpush1.bf16.msra.mxu0 %v627
    %661 = vmatprep.subr.bf16.mxu0 0
    %662 = vmatpush1.bf16.msra.mxu0 %v628
    %663 = vmatprep.subr.bf16.mxu0 0
    %664 = vmatpush1.bf16.msra.mxu0 %v629
    %665 = vmatprep.subr.bf16.mxu0 0
    %666 = vmatpush1.bf16.msra.mxu0 %v630
    %667 = vmatprep.subr.bf16.mxu0 0
    %668 = vmatpush1.bf16.msra.mxu0 %v631
    %669 = vmatprep.subr.bf16.mxu0 0
    %670 = vmatpush1.bf16.msra.mxu0 %v632
    %671 = vmatprep.subr.bf16.mxu0 0
    %672 = vmatpush1.bf16.msra.mxu0 %v633
    %673 = vmatprep.subr.bf16.mxu0 0
    %674 = vmatpush1.bf16.msra.mxu0 %v634
    %675 = vmatprep.subr.bf16.mxu0 0
    %676 = vmatpush1.bf16.msra.mxu0 %v635
    %677 = vmatprep.subr.bf16.mxu0 0
    %678 = vmatpush1.bf16.msra.mxu0 %v636
    %679 = vmatprep.subr.bf16.mxu0 0
    %680 = vmatpush1.bf16.msra.mxu0 %v637
    %681 = vmatprep.subr.bf16.mxu0 0
    %682 = vmatpush1.bf16.msra.mxu0 %v638
    %683 = vmatprep.subr.bf16.mxu0 0
    %684 = vmatpush1.bf16.msra.mxu0 %v639
    %685 = vmatprep.subr.bf16.mxu0 0
    %686 = vmatpush1.bf16.msra.mxu0 %v640
    %687 = vmatprep.subr.bf16.mxu0 0
    %688 = vmatpush1.bf16.msra.mxu0 %v641
    %689 = vmatprep.subr.bf16.mxu0 0
    %690 = vmatpush1.bf16.msra.mxu0 %v642
    %691 = vmatprep.mubr.bf16.mxu0 %v509
    %692 = vmatmul.mubr.bf16.gmra.mrb[0].mxu0 %v508
    %v693 = vpop.f32.mrb[0].mxu0
    %v694 = vadd.f32 %v561, %v693
    %v695 = vpop.f32.mrb[0].mxu0
    %v696 = vpop.f32.mrb[0].mxu0
    %v697 = vadd.f32 %v561, %v696
    %v698 = vpop.f32.mrb[0].mxu0
    %699 = vmatprep.mubr.bf16.mxu0 %v511
    %700 = vmatmul.mubr.bf16.gmra.mrb[0].mxu0 %v510
    %v701 = vpop.f32.mrb[0].mxu0
    %v702 = vadd.f32 %v561, %v701
    %v703 = vpop.f32.mrb[0].mxu0
    %v704 = vpop.f32.mrb[0].mxu0
    %v705 = vadd.f32 %v561, %v704
    %v706 = vpop.f32.mrb[0].mxu0
    %707 = vmatprep.mubr.bf16.mxu0 %v513
    %708 = vmatmul.mubr.bf16.gmra.mrb[0].mxu0 %v512
    %v709 = vpop.f32.mrb[0].mxu0
    %v710 = vadd.f32 %v561, %v709
    %v711 = vpop.f32.mrb[0].mxu0
    %v712 = vpop.f32.mrb[0].mxu0
    %v713 = vadd.f32 %v561, %v712
    %v714 = vpop.f32.mrb[0].mxu0
    %715 = vmatprep.mubr.bf16.mxu0 %v515
    %716 = vmatmul.mubr.bf16.gmra.mrb[0].mxu0 %v514
    %v717 = vpop.f32.mrb[0].mxu0
    %v718 = vadd.f32 %v561, %v717
    %v719 = vpop.f32.mrb[0].mxu0
    %v720 = vpop.f32.mrb[0].mxu0
    %v721 = vadd.f32 %v561, %v720
    %v722 = vpop.f32.mrb[0].mxu0
    %723 = vmatprep.mubr.bf16.mxu0 %v517
    %724 = vmatmul.mubr.bf16.gmra.mrb[0].mxu0 %v516
    %v725 = vpop.f32.mrb[0].mxu0
    %v726 = vadd.f32 %v561, %v725
    %v727 = vpop.f32.mrb[0].mxu0
    %v728 = vpop.f32.mrb[0].mxu0
    %v729 = vadd.f32 %v561, %v728
    %v730 = vpop.f32.mrb[0].mxu0
    %731 = vmatprep.mubr.bf16.mxu0 %v519
    %732 = vmatmul.mubr.bf16.gmra.mrb[0].mxu0 %v518
    %v733 = vpop.f32.mrb[0].mxu0
    %v734 = vadd.f32 %v561, %v733
    %v735 = vpop.f32.mrb[0].mxu0
    %v736 = vpop.f32.mrb[0].mxu0
    %v737 = vadd.f32 %v561, %v736
    %v738 = vpop.f32.mrb[0].mxu0
    %739 = vmatprep.mubr.bf16.mxu0 %v521
    %740 = vmatmul.mubr.bf16.gmra.mrb[0].mxu0 %v520
    %v741 = vpop.f32.mrb[0].mxu0
    %v742 = vadd.f32 %v561, %v741
    %v743 = vpop.f32.mrb[0].mxu0
    %v744 = vpop.f32.mrb[0].mxu0
    %v745 = vadd.f32 %v561, %v744
    %v746 = vpop.f32.mrb[0].mxu0
    %747 = vmatprep.mubr.bf16.mxu0 %v523
    %748 = vmatmul.mubr.bf16.gmra.mrb[0].mxu0 %v522
    %v749 = vpop.f32.mrb[0].mxu0
    %v750 = vadd.f32 %v561, %v749
    %v751 = vpop.f32.mrb[0].mxu0
    %v752 = vpop.f32.mrb[0].mxu0
    %v753 = vadd.f32 %v561, %v752
    %v754 = vpop.f32.mrb[0].mxu0
    %755 = vdwg.mxu0
    %v756 = vadd.f32 %v34, %v694
    %v757 = vadd.f32 %v35, %v697
    %v758 = vadd.f32 %v36, %v702
    %v759 = vadd.f32 %v37, %v705
    %v760 = vadd.f32 %v38, %v710
    %v761 = vadd.f32 %v39, %v713
    %v762 = vadd.f32 %v40, %v718
    %v763 = vadd.f32 %v41, %v721
    %v764 = vadd.f32 %v42, %v726
    %v765 = vadd.f32 %v43, %v729
    %v766 = vadd.f32 %v44, %v734
    %v767 = vadd.f32 %v45, %v737
    %v768 = vadd.f32 %v46, %v742
    %v769 = vadd.f32 %v47, %v745
    %v770 = vadd.f32 %v48, %v750
    %v771 = vadd.f32 %v49, %v753
    %772 = vst.msk [vmem:[#allocation2] sm:$0xff] %vm210, %v756
    %773 = vst.msk [vmem:[#allocation2 + $0x8] sm:$0xff] %vm210, %v757
    %774 = vst.msk [vmem:[#allocation2 + $0x10] sm:$0xff] %vm210, %v758
    %775 = vst.msk [vmem:[#allocation2 + $0x18] sm:$0xff] %vm210, %v759
    %776 = vst.msk [vmem:[#allocation2 + $0x20] sm:$0xff] %vm210, %v760
    %777 = vst.msk [vmem:[#allocation2 + $0x28] sm:$0xff] %vm210, %v761
    %778 = vst.msk [vmem:[#allocation2 + $0x30] sm:$0xff] %vm210, %v762
    %779 = vst.msk [vmem:[#allocation2 + $0x38] sm:$0xff] %vm210, %v763
    %780 = vst.msk [vmem:[#allocation2 + $0x40] sm:$0xff] %vm210, %v764
    %781 = vst.msk [vmem:[#allocation2 + $0x48] sm:$0xff] %vm210, %v765
    %782 = vst.msk [vmem:[#allocation2 + $0x50] sm:$0xff] %vm210, %v766
    %783 = vst.msk [vmem:[#allocation2 + $0x58] sm:$0xff] %vm210, %v767
    %784 = vst.msk [vmem:[#allocation2 + $0x60] sm:$0xff] %vm210, %v768
    %785 = vst.msk [vmem:[#allocation2 + $0x68] sm:$0xff] %vm210, %v769
    %786 = vst.msk [vmem:[#allocation2 + $0x70] sm:$0xff] %vm210, %v770
    %787 = vst.msk [vmem:[#allocation2 + $0x78] sm:$0xff] %vm210, %v771
    // Predicated region
    $region38: #{attn_c_block_forward.7} parent=1 // pred_check
      _
    $region39: #{attn_c_block_forward.7} parent=1 // pred_check_branch
      %789 = sbr.rel (0) target = $region41
    $region40: #{attn_c_block_forward.7} parent=1 // pred_region
      %s791 = ssub.s32 2048, 2048
      %792 = vsyncadd [#allocation3], %s791
      %s793 = sshll.u32 [#allocation2], 4
      %s794 = int_to_ptr.vmem [resolvable:$true] %s793
      %799 = dma.vmem_to_hbm [thread:$0]  %s794, 2048, %s9, [#allocation3], 128, 128, 8
    $region41: #{attn_c_block_forward.7} parent=1 // pred_fallthru
      _
    // Predicated region
    $region42: #{attn_c_block_forward.7} parent=1 // pred_check
      _
    $region43: #{attn_c_block_forward.7} parent=1 // pred_check_branch
      %801 = sbr.rel (0) target = $region45
    $region44: #{attn_c_block_forward.7} parent=1 // pred_region
      %802 = dma.done [#allocation3], 2048
    $region45: #{attn_c_block_forward.7} parent=1 // pred_fallthru
      _
    %803 = vsyncpa [#allocation3], 1

// kernel: attn_c_block_forward.6
$region0: #{attn_c_block_forward.6}
  #allocation0 [shape = 'u32[]', space=smem, size = 0x4, offset = 0x4, fixed_abs, tag = 'smem constant byte address 0x4 - core index']
  #allocation1 [shape = 'u32[144,128]{1,0:T(1,128)}', space=vmem, size = 0x12000, scoped, tag = 'internal scratch']
  %s0 = inlined_call_operand.vmem [shape: f32[16,8,64], index: 0, kind: input, shape index: {}]
  %s1 = inlined_call_operand.vmem [shape: f32[8,1,64], index: 1, kind: input, shape index: {}]
  %s2 = inlined_call_operand.vmem [shape: f32[16,64], index: 2, kind: input, shape index: {}]
  %s3 = inlined_call_operand.vmem [shape: f32[1,64], index: 3, kind: input, shape index: {}]
  %s4 = inlined_call_operand.vmem [shape: f32[1,64], index: 4, kind: input, shape index: {}]
  %s5 = inlined_call_operand.vmem [shape: bf16[64,192], index: 5, kind: input, shape index: {}]
  %s6 = inlined_call_operand.vmem [shape: f32[1,192], index: 6, kind: input, shape index: {}]
  %s7 = inlined_call_operand.vmem [shape: bf16[64,64], index: 7, kind: input, shape index: {}]
  %s8 = inlined_call_operand.vmem [shape: f32[1,64], index: 8, kind: input, shape index: {}]
  %s9 = inlined_call_operand.vmem [shape: f32[16,8,64], index: 9, kind: output, shape index: {0}]
  %s10 = inlined_call_operand.vmem [shape: f32[1,8,64], index: 10, kind: output, shape index: {1}]
  %11 = xla_tuple %s9, %s10
  %s12 = sld [smem:[#allocation0]]
  $region54: #{attn_c_block_forward.6} parent=0
    _
  %s14 = ssub.s32 1, %s12
  %s15 = scalar_select 0, %s14, %s12
  // Predicated region
  $region2: #{attn_c_block_forward.6} parent=0 // pred_check
    _
  $region3: #{attn_c_block_forward.6} parent=0 // pred_check_branch
    %17 = sbr.rel (0) target = $region5
  $region4: #{attn_c_block_forward.6} parent=0 // pred_region
    _
  $region5: #{attn_c_block_forward.6} parent=0 // pred_fallthru
    _
  // Predicated region
  $region6: #{attn_c_block_forward.6} parent=0 // pred_check
    _
  $region7: #{attn_c_block_forward.6} parent=0 // pred_check_branch
    %19 = sbr.rel (0) target = $region9
  $region8: #{attn_c_block_forward.6} parent=0 // pred_region
    _
  $region9: #{attn_c_block_forward.6} parent=0 // pred_fallthru
    _
  // Predicated region
  $region10: #{attn_c_block_forward.6} parent=0 // pred_check
    _
  $region11: #{attn_c_block_forward.6} parent=0 // pred_check_branch
    %21 = sbr.rel (0) target = $region13
  $region12: #{attn_c_block_forward.6} parent=0 // pred_region
    _
  $region13: #{attn_c_block_forward.6} parent=0 // pred_fallthru
    _
  // Predicated region
  $region14: #{attn_c_block_forward.6} parent=0 // pred_check
    _
  $region15: #{attn_c_block_forward.6} parent=0 // pred_check_branch
    %23 = sbr.rel (0) target = $region17
  $region16: #{attn_c_block_forward.6} parent=0 // pred_region
    _
  $region17: #{attn_c_block_forward.6} parent=0 // pred_fallthru
    _
  // Predicated region
  $region18: #{attn_c_block_forward.6} parent=0 // pred_check
    _
  $region19: #{attn_c_block_forward.6} parent=0 // pred_check_branch
    %25 = sbr.rel (0) target = $region21
  $region20: #{attn_c_block_forward.6} parent=0 // pred_region
    _
  $region21: #{attn_c_block_forward.6} parent=0 // pred_fallthru
    _
  // Predicated region
  $region22: #{attn_c_block_forward.6} parent=0 // pred_check
    _
  $region23: #{attn_c_block_forward.6} parent=0 // pred_check_branch
    %27 = sbr.rel (0) target = $region25
  $region24: #{attn_c_block_forward.6} parent=0 // pred_region
    _
  $region25: #{attn_c_block_forward.6} parent=0 // pred_fallthru
    _
  // Predicated region
  $region26: #{attn_c_block_forward.6} parent=0 // pred_check
    _
  $region27: #{attn_c_block_forward.6} parent=0 // pred_check_branch
    %29 = sbr.rel (0) target = $region29
  $region28: #{attn_c_block_forward.6} parent=0 // pred_region
    _
  $region29: #{attn_c_block_forward.6} parent=0 // pred_fallthru
    _
  // Predicated region
  $region30: #{attn_c_block_forward.6} parent=0 // pred_check
    _
  $region31: #{attn_c_block_forward.6} parent=0 // pred_check_branch
    %31 = sbr.rel (0) target = $region33
  $region32: #{attn_c_block_forward.6} parent=0 // pred_region
    _
  $region33: #{attn_c_block_forward.6} parent=0 // pred_fallthru
    _
  // Predicated region
  $region34: #{attn_c_block_forward.6} parent=0 // pred_check
    _
  $region35: #{attn_c_block_forward.6} parent=0 // pred_check_branch
    %33 = sbr.rel (0) target = $region37
  $region36: #{attn_c_block_forward.6} parent=0 // pred_region
    _
  $region37: #{attn_c_block_forward.6} parent=0 // pred_fallthru
    _
  %v35 = vld [vmem:[%s2] sm:$0xff]
  %v36 = vld [vmem:[%s2 + $0x8] sm:$0xff]
  %v37 = vld [vmem:[%s3] sm:$0x1]
  %v38 = vld [vmem:[%s4] sm:$0x1]
  %v39 = vld [vmem:[%s5] sm:$0xff]
  %v40 = vld [vmem:[%s5 + $0x8] sm:$0xff]
  %v41 = vld [vmem:[%s5 + $0x10] sm:$0xff]
  %v42 = vld [vmem:[%s5 + $0x18] sm:$0xff]
  %v43 = vld [vmem:[%s5 + $0x20] sm:$0xff]
  %v44 = vld [vmem:[%s5 + $0x28] sm:$0xff]
  %v45 = vld [vmem:[%s5 + $0x30] sm:$0xff]
  %v46 = vld [vmem:[%s5 + $0x38] sm:$0xff]
  %v47 = vld [vmem:[%s6] sm:$0x3]
  %v48 = vld [vmem:[%s8] sm:$0x1]
  %v49 = vld [vmem:[%s7] sm:$0xf]
  %v50 = vld [vmem:[%s7 + $0x4] sm:$0xf]
  %v51 = vld [vmem:[%s7 + $0x8] sm:$0xf]
  %v52 = vld [vmem:[%s7 + $0xc] sm:$0xf]
  %v53 = vld [vmem:[%s7 + $0x10] sm:$0xf]
  %v54 = vld [vmem:[%s7 + $0x14] sm:$0xf]
  %v55 = vld [vmem:[%s7 + $0x18] sm:$0xf]
  %v56 = vld [vmem:[%s7 + $0x1c] sm:$0xf]
  %v57 = vld [vmem:[%s0] sm:$0x1]
  %v58 = vld [vmem:[%s0 + $0x8] sm:$0x1]
  %v59 = vld [vmem:[%s0 + $0x10] sm:$0x1]
  %v60 = vld [vmem:[%s0 + $0x18] sm:$0x1]
  %v61 = vld [vmem:[%s0 + $0x20] sm:$0x1]
  %v62 = vld [vmem:[%s0 + $0x28] sm:$0x1]
  %v63 = vld [vmem:[%s0 + $0x30] sm:$0x1]
  %v64 = vld [vmem:[%s0 + $0x38] sm:$0x1]
  %v65 = vld [vmem:[%s0 + $0x40] sm:$0x1]
  %v66 = vld [vmem:[%s0 + $0x48] sm:$0x1]
  %v67 = vld [vmem:[%s0 + $0x50] sm:$0x1]
  %v68 = vld [vmem:[%s0 + $0x58] sm:$0x1]
  %v69 = vld [vmem:[%s0 + $0x60] sm:$0x1]
  %v70 = vld [vmem:[%s0 + $0x68] sm:$0x1]
  %v71 = vld [vmem:[%s0 + $0x70] sm:$0x1]
  %v72 = vld [vmem:[%s0 + $0x78] sm:$0x1]
  %v73 = vld [vmem:[%s1] sm:$0x1]
  %v76 = vrot.slane %v35, 1
  %v77 = vrot.slane %v35, 2
  %v78 = vrot.slane %v35, 3
  %v79 = vrot.slane %v35, 4
  %v80 = vrot.slane %v35, 5
  %v81 = vrot.slane %v35, 6
  %v82 = vrot.slane %v35, 7
  %v83 = vrot.slane %v36, 1
  %v84 = vrot.slane %v36, 2
  %v85 = vrot.slane %v36, 3
  %v86 = vrot.slane %v36, 4
  %v87 = vrot.slane %v36, 5
  %v88 = vrot.slane %v36, 6
  %v89 = vrot.slane %v36, 7
  %v106 = vadd.f32 %v57, %v35
  %v107 = vadd.f32 %v58, %v76
  %v108 = vadd.f32 %v59, %v77
  %v109 = vadd.f32 %v60, %v78
  %v110 = vadd.f32 %v61, %v79
  %v111 = vadd.f32 %v62, %v80
  %v112 = vadd.f32 %v63, %v81
  %v113 = vadd.f32 %v64, %v82
  %v114 = vadd.f32 %v65, %v36
  %v115 = vadd.f32 %v66, %v83
  %v116 = vadd.f32 %v67, %v84
  %v117 = vadd.f32 %v68, %v85
  %v118 = vadd.f32 %v69, %v86
  %v119 = vadd.f32 %v70, %v87
  %v120 = vadd.f32 %v71, %v88
  %v121 = vadd.f32 %v72, %v89
  %v138 = vrot.slane %v107, 7
  %vm139 = vcmask 1041409
  %v140 = vsel %vm139, %v138, %v106
  %v141 = vrot.slane %v108, 6
  %vm142 = vcmask 1042434
  %v143 = vsel %vm142, %v141, %v140
  %v144 = vrot.slane %v109, 5
  %vm145 = vcmask 1043459
  %v146 = vsel %vm145, %v144, %v143
  %v147 = vrot.slane %v110, 4
  %vm148 = vcmask 1044484
  %v149 = vsel %vm148, %v147, %v146
  %v150 = vrot.slane %v111, 3
  %vm151 = vcmask 1045509
  %v152 = vsel %vm151, %v150, %v149
  %v153 = vrot.slane %v112, 2
  %vm154 = vcmask 1046534
  %v155 = vsel %vm154, %v153, %v152
  %v156 = vrot.slane %v113, 1
  %vm157 = vcmask 1047559
  %v158 = vsel %vm157, %v156, %v155
  %v159 = vrot.slane %v115, 7
  %v160 = vsel %vm139, %v159, %v114
  %v161 = vrot.slane %v116, 6
  %v162 = vsel %vm142, %v161, %v160
  %v163 = vrot.slane %v117, 5
  %v164 = vsel %vm145, %v163, %v162
  %v165 = vrot.slane %v118, 4
  %v166 = vsel %vm148, %v165, %v164
  %v167 = vrot.slane %v119, 3
  %v168 = vsel %vm151, %v167, %v166
  %v169 = vrot.slane %v120, 2
  %v170 = vsel %vm154, %v169, %v168
  %v171 = vrot.slane %v121, 1
  %v172 = vsel %vm157, %v171, %v170
  %vm175 = vcmask 523264
  %v176 = vsel %vm175, %v158, 0.0
  %177 = vadd.xlane.f32.xlu0 %v176
  %v178 = vpop.xlane.xlu0 %177
  %v179 = vsel %vm175, %v172, 0.0
  %180 = vadd.xlane.f32.xlu0 %v179
  %v181 = vpop.xlane.xlu0 %180
  %vm182 = vcmask 516096
  %v183 = vsel %vm182, %v73, 0.0
  %184 = vadd.xlane.f32.xlu0 %v183
  %v185 = vpop.xlane.xlu0 %184
  %v186 = vrcp.pop 64.0
  %v187 = vmul.f32 %v178, %v186
  %v188 = vmul.f32 %v181, %v186
  %v189 = vmul.f32 %v185, %v186
  %v190 = vsub.f32 %v158, %v187
  %v191 = vsub.f32 %v172, %v188
  %v192 = vsub.f32 %v73, %v189
  %v193 = vmul.f32 %v190, %v190
  %v194 = vmul.f32 %v191, %v191
  %v195 = vmul.f32 %v192, %v192
  %v196 = vsel %vm175, %v193, 0.0
  %197 = vadd.xlane.f32.xlu0 %v196
  %v198 = vpop.xlane.xlu0 %197
  %v199 = vsel %vm175, %v194, 0.0
  %200 = vadd.xlane.f32.xlu0 %v199
  %v201 = vpop.xlane.xlu0 %200
  %v202 = vsel %vm182, %v195, 0.0
  %203 = vadd.xlane.f32.xlu0 %v202
  %v204 = vpop.xlane.xlu0 %203
  %v205 = vmul.f32 %v198, %v186
  %v206 = vmul.f32 %v201, %v186
  %v207 = vmul.f32 %v204, %v186
  %v208 = vadd.f32 %v205, 1e-05
  %v209 = vadd.f32 %v206, 1e-05
  %v210 = vadd.f32 %v207, 1e-05
  %v211 = vrsqrt.pop %v208
  %v212 = vrsqrt.pop %v209
  %v213 = vrsqrt.pop %v210
  %v214 = vmul.f32 %v190, %v211
  %v215 = vmul.f32 %v191, %v212
  %v216 = vmul.f32 %v192, %v213
  %v218 = vlaneseq
  %v219 = vshrl.u32 %v218, 7
  %v220 = vsub.s32 0, %v219
  %v221 = vrot.slane %v37, %v220
  %v223 = vmul.f32 %v214, %v221
  %v224 = vmul.f32 %v215, %v221
  %v225 = vmul.f32 %v216, %v221
  %v227 = vlaneseq
  %v228 = vshrl.u32 %v227, 7
  %v229 = vsub.s32 0, %v228
  %v230 = vrot.slane %v38, %v229
  %v232 = vadd.f32 %v223, %v230
  %v233 = vadd.f32 %v224, %v230
  %v234 = vadd.f32 %v225, %v230
  %v235 = vpack.c.bf16 %v233, %v232
  %v236 = vpack.c.bf16 %v234, %v234
  %v238 = vlaneseq
  %v239 = vshrl.u32 %v238, 7
  %v240 = vsub.s32 0, %v239
  %v241 = vrot.slane %v47, %v240
  %v242 = vlaneseq
  %v243 = vshrl.u32 %v242, 7
  %v244 = vsub.s32 1, %v243
  %v245 = vrot.slane %v47, %v244
  %v256 = vunpack.c.l.b16 %v39
  %v257 = vunpack.c.h.b16 %v39
  %v258 = vunpack.c.l.b16 %v40
  %v259 = vunpack.c.h.b16 %v40
  %v260 = vunpack.c.l.b16 %v41
  %v261 = vunpack.c.h.b16 %v41
  %v262 = vunpack.c.l.b16 %v42
  %v263 = vunpack.c.h.b16 %v42
  %v264 = vunpack.c.l.b16 %v43
  %v265 = vunpack.c.h.b16 %v43
  %v266 = vunpack.c.l.b16 %v44
  %v267 = vunpack.c.h.b16 %v44
  %v268 = vunpack.c.l.b16 %v45
  %v269 = vunpack.c.h.b16 %v45
  %v270 = vunpack.c.l.b16 %v46
  %v271 = vunpack.c.h.b16 %v46
  %v272 = vpack.c.b16 %v258, %v256
  %v273 = vpack.c.b16 %v259, %v257
  %v274 = vpack.c.b16 %v262, %v260
  %v275 = vpack.c.b16 %v263, %v261
  %v276 = vpack.c.b16 %v266, %v264
  %v277 = vpack.c.b16 %v267, %v265
  %v278 = vpack.c.b16 %v270, %v268
  %v279 = vpack.c.b16 %v271, %v269
  %v289 = vsel %vm175, %v235, 0
  %v292 = vsel %vm175, %v236, 0
  %294 = vmatprep.subr.bf16.mxu0 %v273
  %295 = vmatpush1.bf16.msra.mxu0 %v272
  %296 = vmatprep.subr.bf16.mxu0 %v275
  %297 = vmatpush1.bf16.msra.mxu0 %v274
  %298 = vmatprep.subr.bf16.mxu0 %v277
  %299 = vmatpush1.bf16.msra.mxu0 %v276
  %300 = vmatprep.subr.bf16.mxu0 %v279
  %301 = vmatpush1.bf16.msra.mxu0 %v278
  %302 = vmatprep.subr.bf16.mxu0 0
  %303 = vmatpush1.bf16.msra.mxu0 0
  %304 = vmatprep.subr.bf16.mxu0 0
  %305 = vmatpush1.bf16.msra.mxu0 0
  %306 = vmatprep.subr.bf16.mxu0 0
  %307 = vmatpush1.bf16.msra.mxu0 0
  %308 = vmatprep.subr.bf16.mxu0 0
  %309 = vmatpush1.bf16.msra.mxu0 0
  %310 = vmatprep.subr.bf16.mxu0 0
  %311 = vmatpush1.bf16.msra.mxu0 0
  %312 = vmatprep.subr.bf16.mxu0 0
  %313 = vmatpush1.bf16.msra.mxu0 0
  %314 = vmatprep.subr.bf16.mxu0 0
  %315 = vmatpush1.bf16.msra.mxu0 0
  %316 = vmatprep.subr.bf16.mxu0 0
  %317 = vmatpush1.bf16.msra.mxu0 0
  %318 = vmatprep.subr.bf16.mxu0 0
  %319 = vmatpush1.bf16.msra.mxu0 0
  %320 = vmatprep.subr.bf16.mxu0 0
  %321 = vmatpush1.bf16.msra.mxu0 0
  %322 = vmatprep.subr.bf16.mxu0 0
  %323 = vmatpush1.bf16.msra.mxu0 0
  %324 = vmatprep.subr.bf16.mxu0 0
  %325 = vmatpush1.bf16.msra.mxu0 0
  %326 = vmatprep.mubr.bf16.mxu0 0
  %327 = vmatmul.mubr.bf16.gmra.mrb[0].mxu0 %v289
  %v328 = vpop.f32.mrb[0].mxu0
  %v329 = vadd.f32 %v241, %v328
  %v330 = vpop.f32.mrb[0].mxu0
  %v331 = vadd.f32 %v245, %v330
  %v332 = vpop.f32.mrb[0].mxu0
  %v333 = vadd.f32 %v241, %v332
  %v334 = vpop.f32.mrb[0].mxu0
  %v335 = vadd.f32 %v245, %v334
  %336 = vmatprep.mubr.bf16.mxu0 0
  %337 = vmatmul.mubr.bf16.gmra.mrb[0].mxu0 %v292
  %v338 = vpop.f32.mrb[0].mxu0
  %v339 = vadd.f32 %v241, %v338
  %v340 = vpop.f32.mrb[0].mxu0
  %v341 = vadd.f32 %v245, %v340
  %v342 = vpop.f32.mrb[0].mxu0
  %v343 = vpop.f32.mrb[0].mxu0
  %344 = vdwg.mxu0
  %v345 = vmul.f32 %v329, 0.125
  %v346 = vmul.f32 %v333, 0.125
  %v347 = vpack.c.bf16 %v346, %v345
  %v348 = vpack.c.bf16 %v333, %v329
  %v349 = vpack.c.bf16 %v339, %v339
  %352 = vrot.lane.b32.xlu0 %v348, 64
  %v353 = vpop.permute.xlu0 %352
  %354 = vrot.lane.b32.xlu0 %v349, 64
  %v355 = vpop.permute.xlu0 %354
  %v357 = vsel %vm175, %v347, 0
  %v360 = vsel %vm175, %v353, 0
  %v363 = vsel %vm175, %v355, 0
  %365 = vmatprep.subr.bf16.mxu0 0
  %366 = vmatpush1.bf16.xpose.msra.mxu0 %v360
  %367 = vmatprep.subr.bf16.mxu0 0
  %368 = vmatpush1.bf16.xpose.msra.mxu0 %v363
  %369 = vmatprep.subr.bf16.mxu0 0
  %370 = vmatpush1.bf16.xpose.msra.mxu0 0
  %371 = vmatprep.subr.bf16.mxu0 0
  %372 = vmatpush1.bf16.xpose.msra.mxu0 0
  %373 = vmatprep.subr.bf16.mxu0 0
  %374 = vmatpush1.bf16.xpose.msra.mxu0 0
  %375 = vmatprep.subr.bf16.mxu0 0
  %376 = vmatpush1.bf16.xpose.msra.mxu0 0
  %377 = vmatprep.subr.bf16.mxu0 0
  %378 = vmatpush1.bf16.xpose.msra.mxu0 0
  %379 = vmatprep.subr.bf16.mxu0 0
  %380 = vmatpush1.bf16.xpose.msra.mxu0 0
  %381 = vmatprep.subr.bf16.mxu0 0
  %382 = vmatpush1.bf16.xpose.msra.mxu0 0
  %383 = vmatprep.subr.bf16.mxu0 0
  %384 = vmatpush1.bf16.xpose.msra.mxu0 0
  %385 = vmatprep.subr.bf16.mxu0 0
  %386 = vmatpush1.bf16.xpose.msra.mxu0 0
  %387 = vmatprep.subr.bf16.mxu0 0
  %388 = vmatpush1.bf16.xpose.msra.mxu0 0
  %389 = vmatprep.subr.bf16.mxu0 0
  %390 = vmatpush1.bf16.xpose.msra.mxu0 0
  %391 = vmatprep.subr.bf16.mxu0 0
  %392 = vmatpush1.bf16.xpose.msra.mxu0 0
  %393 = vmatprep.subr.bf16.mxu0 0
  %394 = vmatpush1.bf16.xpose.msra.mxu0 0
  %395 = vmatprep.subr.bf16.mxu0 0
  %396 = vmatpush1.bf16.xpose.msra.mxu0 0
  %397 = vmatprep.mubr.bf16.mxu0 0
  %398 = vmatmul.mubr.bf16.gmra.mrb[0].mxu0 %v357
  %v399 = vpop.f32.mrb[0].mxu0
  %v400 = vadd.f32 0.0, %v399
  %v401 = vpop.f32.mrb[0].mxu0
  %v402 = vpop.f32.mrb[0].mxu0
  %v403 = vadd.f32 0.0, %v402
  %v404 = vpop.f32.mrb[0].mxu0
  %405 = vdwg.mxu0
  %vm406 = vcmask 138240
  %v407 = vsel %vm406, %v400, -inf
  %408 = vmax.xlane.f32.xlu0 %v407
  %v409 = vpop.xlane.xlu0 %408
  %v410 = vsel %vm406, %v403, -inf
  %411 = vmax.xlane.f32.xlu0 %v410
  %v412 = vpop.xlane.xlu0 %411
  %v413 = vsub.f32 %v400, %v409
  %v414 = vsub.f32 %v403, %v412
  %v415 = vmul.f32 %v413, 1.442695
  %v416 = vpow.pop %v415
  %v417 = vmul.f32 %v414, 1.442695
  %v418 = vpow.pop %v417
  %v419 = vsel %vm406, %v416, 0.0
  %420 = vadd.xlane.f32.xlu0 %v419
  %v421 = vpop.xlane.xlu0 %420
  %v422 = vsel %vm406, %v418, 0.0
  %423 = vadd.xlane.f32.xlu0 %v422
  %v424 = vpop.xlane.xlu0 %423
  %v425 = vpack.c.bf16 %v418, %v416
  %v426 = vpack.c.bf16 %v335, %v331
  %v427 = vpack.c.bf16 %v341, %v341
  %v429 = vsel %vm406, %v425, 0
  %vm431 = vcmask 1040384
  %v432 = vsel 0, 4294967295, 65535
  %v433 = vsel %vm431, %v432, 0
  %v435 = vand.u32 %v427, %v433
  %437 = vmatprep.subr.bf16.mxu0 0
  %438 = vmatpush1.bf16.msra.mxu0 %v426
  %439 = vmatprep.subr.bf16.mxu0 0
  %440 = vmatpush1.bf16.msra.mxu0 %v435
  %441 = vmatprep.subr.bf16.mxu0 0
  %442 = vmatpush1.bf16.msra.mxu0 0
  %443 = vmatprep.subr.bf16.mxu0 0
  %444 = vmatpush1.bf16.msra.mxu0 0
  %445 = vmatprep.subr.bf16.mxu0 0
  %446 = vmatpush1.bf16.msra.mxu0 0
  %447 = vmatprep.subr.bf16.mxu0 0
  %448 = vmatpush1.bf16.msra.mxu0 0
  %449 = vmatprep.subr.bf16.mxu0 0
  %450 = vmatpush1.bf16.msra.mxu0 0
  %451 = vmatprep.subr.bf16.mxu0 0
  %452 = vmatpush1.bf16.msra.mxu0 0
  %453 = vmatprep.subr.bf16.mxu0 0
  %454 = vmatpush1.bf16.msra.mxu0 0
  %455 = vmatprep.subr.bf16.mxu0 0
  %456 = vmatpush1.bf16.msra.mxu0 0
  %457 = vmatprep.subr.bf16.mxu0 0
  %458 = vmatpush1.bf16.msra.mxu0 0
  %459 = vmatprep.subr.bf16.mxu0 0
  %460 = vmatpush1.bf16.msra.mxu0 0
  %461 = vmatprep.subr.bf16.mxu0 0
  %462 = vmatpush1.bf16.msra.mxu0 0
  %463 = vmatprep.subr.bf16.mxu0 0
  %464 = vmatpush1.bf16.msra.mxu0 0
  %465 = vmatprep.subr.bf16.mxu0 0
  %466 = vmatpush1.bf16.msra.mxu0 0
  %467 = vmatprep.subr.bf16.mxu0 0
  %468 = vmatpush1.bf16.msra.mxu0 0
  %469 = vmatprep.mubr.bf16.mxu0 0
  %470 = vmatmul.mubr.bf16.gmra.mrb[0].mxu0 %v429
  %v471 = vpop.f32.mrb[0].mxu0
  %v472 = vadd.f32 0.0, %v471
  %v473 = vpop.f32.mrb[0].mxu0
  %v474 = vpop.f32.mrb[0].mxu0
  %v475 = vadd.f32 0.0, %v474
  %v476 = vpop.f32.mrb[0].mxu0
  %477 = vdwg.mxu0
  %v478 = vrcp.pop %v421
  %v479 = vmul.f32 %v472, %v478
  %v480 = vrcp.pop %v424
  %v481 = vmul.f32 %v475, %v480
  %v482 = vpack.c.bf16 %v481, %v479
  %v491 = vunpack.c.l.b16 %v49
  %v492 = vunpack.c.l.b16 %v50
  %v493 = vunpack.c.l.b16 %v51
  %v494 = vunpack.c.l.b16 %v52
  %v495 = vunpack.c.l.b16 %v53
  %v496 = vunpack.c.l.b16 %v54
  %v497 = vunpack.c.l.b16 %v55
  %v498 = vunpack.c.l.b16 %v56
  %v499 = vpack.c.b16 %v492, %v491
  %v500 = vpack.c.b16 %v494, %v493
  %v501 = vpack.c.b16 %v496, %v495
  %v502 = vpack.c.b16 %v498, %v497
  %v508 = vsel %vm175, %v482, 0
  %510 = vmatprep.subr.bf16.mxu0 0
  %511 = vmatpush1.bf16.msra.mxu0 %v499
  %512 = vmatprep.subr.bf16.mxu0 0
  %513 = vmatpush1.bf16.msra.mxu0 %v500
  %514 = vmatprep.subr.bf16.mxu0 0
  %515 = vmatpush1.bf16.msra.mxu0 %v501
  %516 = vmatprep.subr.bf16.mxu0 0
  %517 = vmatpush1.bf16.msra.mxu0 %v502
  %518 = vmatprep.subr.bf16.mxu0 0
  %519 = vmatpush1.bf16.msra.mxu0 0
  %520 = vmatprep.subr.bf16.mxu0 0
  %521 = vmatpush1.bf16.msra.mxu0 0
  %522 = vmatprep.subr.bf16.mxu0 0
  %523 = vmatpush1.bf16.msra.mxu0 0
  %524 = vmatprep.subr.bf16.mxu0 0
  %525 = vmatpush1.bf16.msra.mxu0 0
  %526 = vmatprep.subr.bf16.mxu0 0
  %527 = vmatpush1.bf16.msra.mxu0 0
  %528 = vmatprep.subr.bf16.mxu0 0
  %529 = vmatpush1.bf16.msra.mxu0 0
  %530 = vmatprep.subr.bf16.mxu0 0
  %531 = vmatpush1.bf16.msra.mxu0 0
  %532 = vmatprep.subr.bf16.mxu0 0
  %533 = vmatpush1.bf16.msra.mxu0 0
  %534 = vmatprep.subr.bf16.mxu0 0
  %535 = vmatpush1.bf16.msra.mxu0 0
  %536 = vmatprep.subr.bf16.mxu0 0
  %537 = vmatpush1.bf16.msra.mxu0 0
  %538 = vmatprep.subr.bf16.mxu0 0
  %539 = vmatpush1.bf16.msra.mxu0 0
  %540 = vmatprep.subr.bf16.mxu0 0
  %541 = vmatpush1.bf16.msra.mxu0 0
  %542 = vmatprep.mubr.bf16.mxu0 0
  %543 = vmatmul.mubr.bf16.gmra.mrb[0].mxu0 %v508
  %v544 = vpop.f32.mrb[0].mxu0
  %v545 = vadd.f32 0.0, %v544
  %v546 = vpop.f32.mrb[0].mxu0
  %v547 = vpop.f32.mrb[0].mxu0
  %v548 = vadd.f32 0.0, %v547
  %v549 = vpop.f32.mrb[0].mxu0
  %550 = vdwg.mxu0
  %v553 = vrot.slane %v545, 1
  %v554 = vrot.slane %v545, 2
  %v555 = vrot.slane %v545, 3
  %v556 = vrot.slane %v545, 4
  %v557 = vrot.slane %v545, 5
  %v558 = vrot.slane %v545, 6
  %v559 = vrot.slane %v545, 7
  %v560 = vrot.slane %v548, 1
  %v561 = vrot.slane %v548, 2
  %v562 = vrot.slane %v548, 3
  %v563 = vrot.slane %v548, 4
  %v564 = vrot.slane %v548, 5
  %v565 = vrot.slane %v548, 6
  %v566 = vrot.slane %v548, 7
  %v583 = vadd.f32 %v57, %v545
  %v584 = vadd.f32 %v58, %v553
  %v585 = vadd.f32 %v59, %v554
  %v586 = vadd.f32 %v60, %v555
  %v587 = vadd.f32 %v61, %v556
  %v588 = vadd.f32 %v62, %v557
  %v589 = vadd.f32 %v63, %v558
  %v590 = vadd.f32 %v64, %v559
  %v591 = vadd.f32 %v65, %v548
  %v592 = vadd.f32 %v66, %v560
  %v593 = vadd.f32 %v67, %v561
  %v594 = vadd.f32 %v68, %v562
  %v595 = vadd.f32 %v69, %v563
  %v596 = vadd.f32 %v70, %v564
  %v597 = vadd.f32 %v71, %v565
  %v598 = vadd.f32 %v72, %v566
  %v600 = vlaneseq
  %v601 = vshrl.u32 %v600, 7
  %v602 = vsub.s32 0, %v601
  %v603 = vrot.slane %v48, %v602
  %v605 = vadd.f32 %v583, %v603
  %v606 = vadd.f32 %v584, %v603
  %v607 = vadd.f32 %v585, %v603
  %v608 = vadd.f32 %v586, %v603
  %v609 = vadd.f32 %v587, %v603
  %v610 = vadd.f32 %v588, %v603
  %v611 = vadd.f32 %v589, %v603
  %v612 = vadd.f32 %v590, %v603
  %v613 = vadd.f32 %v591, %v603
  %v614 = vadd.f32 %v592, %v603
  %v615 = vadd.f32 %v593, %v603
  %v616 = vadd.f32 %v594, %v603
  %v617 = vadd.f32 %v595, %v603
  %v618 = vadd.f32 %v596, %v603
  %v619 = vadd.f32 %v597, %v603
  %v620 = vadd.f32 %v598, %v603
  %621 = vst.msk [vmem:[%s9] sm:$0x1] %vm182, %v605
  %622 = vst.msk [vmem:[%s9 + $0x8] sm:$0x1] %vm182, %v606
  %623 = vst.msk [vmem:[%s9 + $0x10] sm:$0x1] %vm182, %v607
  %624 = vst.msk [vmem:[%s9 + $0x18] sm:$0x1] %vm182, %v608
  %625 = vst.msk [vmem:[%s9 + $0x20] sm:$0x1] %vm182, %v609
  %626 = vst.msk [vmem:[%s9 + $0x28] sm:$0x1] %vm182, %v610
  %627 = vst.msk [vmem:[%s9 + $0x30] sm:$0x1] %vm182, %v611
  %628 = vst.msk [vmem:[%s9 + $0x38] sm:$0x1] %vm182, %v612
  %629 = vst.msk [vmem:[%s9 + $0x40] sm:$0x1] %vm182, %v613
  %630 = vst.msk [vmem:[%s9 + $0x48] sm:$0x1] %vm182, %v614
  %631 = vst.msk [vmem:[%s9 + $0x50] sm:$0x1] %vm182, %v615
  %632 = vst.msk [vmem:[%s9 + $0x58] sm:$0x1] %vm182, %v616
  %633 = vst.msk [vmem:[%s9 + $0x60] sm:$0x1] %vm182, %v617
  %634 = vst.msk [vmem:[%s9 + $0x68] sm:$0x1] %vm182, %v618
  %635 = vst.msk [vmem:[%s9 + $0x70] sm:$0x1] %vm182, %v619
  %636 = vst.msk [vmem:[%s9 + $0x78] sm:$0x1] %vm182, %v620
  %v653 = vrot.slane %v606, 7
  %v654 = vsel %vm139, %v653, %v605
  %v655 = vrot.slane %v607, 6
  %v656 = vsel %vm142, %v655, %v654
  %v657 = vrot.slane %v608, 5
  %v658 = vsel %vm145, %v657, %v656
  %v659 = vrot.slane %v609, 4
  %v660 = vsel %vm148, %v659, %v658
  %v661 = vrot.slane %v610, 3
  %v662 = vsel %vm151, %v661, %v660
  %v663 = vrot.slane %v611, 2
  %v664 = vsel %vm154, %v663, %v662
  %v665 = vrot.slane %v612, 1
  %v666 = vsel %vm157, %v665, %v664
  %v667 = vrot.slane %v614, 7
  %v668 = vsel %vm139, %v667, %v613
  %v669 = vrot.slane %v615, 6
  %v670 = vsel %vm142, %v669, %v668
  %v671 = vrot.slane %v616, 5
  %v672 = vsel %vm145, %v671, %v670
  %v673 = vrot.slane %v617, 4
  %v674 = vsel %vm148, %v673, %v672
  %v675 = vrot.slane %v618, 3
  %v676 = vsel %vm151, %v675, %v674
  %v677 = vrot.slane %v619, 2
  %v678 = vsel %vm154, %v677, %v676
  %v679 = vrot.slane %v620, 1
  %v680 = vsel %vm157, %v679, %v678
  %v683 = vsel %vm175, %v666, 0.0
  %v684 = vsel %vm175, %v680, 0.0
  %v685 = vadd.f32 %v683, %v684
  %v686 = vrot.slane %v685, 4
  %v687 = vadd.f32 %v685, %v686
  %v688 = vrot.slane %v687, 2
  %v689 = vadd.f32 %v687, %v688
  %v690 = vrot.slane %v689, 1
  %v691 = vadd.f32 %v689, %v690
  %v692 = vadd.f32 %v691, 0.0
  %v693 = vmul.f32 %v605, %v605
  %v694 = vmul.f32 %v606, %v606
  %v695 = vmul.f32 %v607, %v607
  %v696 = vmul.f32 %v608, %v608
  %v697 = vmul.f32 %v609, %v609
  %v698 = vmul.f32 %v610, %v610
  %v699 = vmul.f32 %v611, %v611
  %v700 = vmul.f32 %v612, %v612
  %v701 = vmul.f32 %v613, %v613
  %v702 = vmul.f32 %v614, %v614
  %v703 = vmul.f32 %v615, %v615
  %v704 = vmul.f32 %v616, %v616
  %v705 = vmul.f32 %v617, %v617
  %v706 = vmul.f32 %v618, %v618
  %v707 = vmul.f32 %v619, %v619
  %v708 = vmul.f32 %v620, %v620
  %v725 = vrot.slane %v694, 7
  %v726 = vsel %vm139, %v725, %v693
  %v727 = vrot.slane %v695, 6
  %v728 = vsel %vm142, %v727, %v726
  %v729 = vrot.slane %v696, 5
  %v730 = vsel %vm145, %v729, %v728
  %v731 = vrot.slane %v697, 4
  %v732 = vsel %vm148, %v731, %v730
  %v733 = vrot.slane %v698, 3
  %v734 = vsel %vm151, %v733, %v732
  %v735 = vrot.slane %v699, 2
  %v736 = vsel %vm154, %v735, %v734
  %v737 = vrot.slane %v700, 1
  %v738 = vsel %vm157, %v737, %v736
  %v739 = vrot.slane %v702, 7
  %v740 = vsel %vm139, %v739, %v701
  %v741 = vrot.slane %v703, 6
  %v742 = vsel %vm142, %v741, %v740
  %v743 = vrot.slane %v704, 5
  %v744 = vsel %vm145, %v743, %v742
  %v745 = vrot.slane %v705, 4
  %v746 = vsel %vm148, %v745, %v744
  %v747 = vrot.slane %v706, 3
  %v748 = vsel %vm151, %v747, %v746
  %v749 = vrot.slane %v707, 2
  %v750 = vsel %vm154, %v749, %v748
  %v751 = vrot.slane %v708, 1
  %v752 = vsel %vm157, %v751, %v750
  %v755 = vsel %vm175, %v738, 0.0
  %v756 = vsel %vm175, %v752, 0.0
  %v757 = vadd.f32 %v755, %v756
  %v758 = vrot.slane %v757, 4
  %v759 = vadd.f32 %v757, %v758
  %v760 = vrot.slane %v759, 2
  %v761 = vadd.f32 %v759, %v760
  %v762 = vrot.slane %v761, 1
  %v763 = vadd.f32 %v761, %v762
  %v764 = vadd.f32 %v763, 0.0
  %v765 = vld [vmem:[%s0 + $0x1] sm:$0x1]
  %v766 = vld [vmem:[%s0 + $0x9] sm:$0x1]
  %v767 = vld [vmem:[%s0 + $0x11] sm:$0x1]
  %v768 = vld [vmem:[%s0 + $0x19] sm:$0x1]
  %v769 = vld [vmem:[%s0 + $0x21] sm:$0x1]
  %v770 = vld [vmem:[%s0 + $0x29] sm:$0x1]
  %v771 = vld [vmem:[%s0 + $0x31] sm:$0x1]
  %v772 = vld [vmem:[%s0 + $0x39] sm:$0x1]
  %v773 = vld [vmem:[%s0 + $0x41] sm:$0x1]
  %v774 = vld [vmem:[%s0 + $0x49] sm:$0x1]
  %v775 = vld [vmem:[%s0 + $0x51] sm:$0x1]
  %v776 = vld [vmem:[%s0 + $0x59] sm:$0x1]
  %v777 = vld [vmem:[%s0 + $0x61] sm:$0x1]
  %v778 = vld [vmem:[%s0 + $0x69] sm:$0x1]
  %v779 = vld [vmem:[%s0 + $0x71] sm:$0x1]
  %v780 = vld [vmem:[%s0 + $0x79] sm:$0x1]
  %s781 = scalar_lea.vmem %s1, 1
  %v782 = vld [vmem:[%s781] sm:$0x1]
  %v783 = vadd.f32 %v765, %v35
  %v784 = vadd.f32 %v766, %v76
  %v785 = vadd.f32 %v767, %v77
  %v786 = vadd.f32 %v768, %v78
  %v787 = vadd.f32 %v769, %v79
  %v788 = vadd.f32 %v770, %v80
  %v789 = vadd.f32 %v771, %v81
  %v790 = vadd.f32 %v772, %v82
  %v791 = vadd.f32 %v773, %v36
  %v792 = vadd.f32 %v774, %v83
  %v793 = vadd.f32 %v775, %v84
  %v794 = vadd.f32 %v776, %v85
  %v795 = vadd.f32 %v777, %v86
  %v796 = vadd.f32 %v778, %v87
  %v797 = vadd.f32 %v779, %v88
  %v798 = vadd.f32 %v780, %v89
  %v815 = vrot.slane %v784, 7
  %v816 = vsel %vm139, %v815, %v783
  %v817 = vrot.slane %v785, 6
  %v818 = vsel %vm142, %v817, %v816
  %v819 = vrot.slane %v786, 5
  %v820 = vsel %vm145, %v819, %v818
  %v821 = vrot.slane %v787, 4
  %v822 = vsel %vm148, %v821, %v820
  %v823 = vrot.slane %v788, 3
  %v824 = vsel %vm151, %v823, %v822
  %v825 = vrot.slane %v789, 2
  %v826 = vsel %vm154, %v825, %v824
  %v827 = vrot.slane %v790, 1
  %v828 = vsel %vm157, %v827, %v826
  %v829 = vrot.slane %v792, 7
  %v830 = vsel %vm139, %v829, %v791
  %v831 = vrot.slane %v793, 6
  %v832 = vsel %vm142, %v831, %v830
  %v833 = vrot.slane %v794, 5
  %v834 = vsel %vm145, %v833, %v832
  %v835 = vrot.slane %v795, 4
  %v836 = vsel %vm148, %v835, %v834
  %v837 = vrot.slane %v796, 3
  %v838 = vsel %vm151, %v837, %v836
  %v839 = vrot.slane %v797, 2
  %v840 = vsel %vm154, %v839, %v838
  %v841 = vrot.slane %v798, 1
  %v842 = vsel %vm157, %v841, %v840
  %v845 = vsel %vm175, %v828, 0.0
  %846 = vadd.xlane.f32.xlu0 %v845
  %v847 = vpop.xlane.xlu0 %846
  %v848 = vsel %vm175, %v842, 0.0
  %849 = vadd.xlane.f32.xlu0 %v848
  %v850 = vpop.xlane.xlu0 %849
  %v851 = vsel %vm182, %v782, 0.0
  %852 = vadd.xlane.f32.xlu0 %v851
  %v853 = vpop.xlane.xlu0 %852
  %v854 = vmul.f32 %v847, %v186
  %v855 = vmul.f32 %v850, %v186
  %v856 = vmul.f32 %v853, %v186
  %v857 = vsub.f32 %v828, %v854
  %v858 = vsub.f32 %v842, %v855
  %v859 = vsub.f32 %v782, %v856
  %v860 = vmul.f32 %v857, %v857
  %v861 = vmul.f32 %v858, %v858
  %v862 = vmul.f32 %v859, %v859
  %v863 = vsel %vm175, %v860, 0.0
  %864 = vadd.xlane.f32.xlu0 %v863
  %v865 = vpop.xlane.xlu0 %864
  %v866 = vsel %vm175, %v861, 0.0
  %867 = vadd.xlane.f32.xlu0 %v866
  %v868 = vpop.xlane.xlu0 %867
  %v869 = vsel %vm182, %v862, 0.0
  %870 = vadd.xlane.f32.xlu0 %v869
  %v871 = vpop.xlane.xlu0 %870
  %v872 = vmul.f32 %v865, %v186
  %v873 = vmul.f32 %v868, %v186
  %v874 = vmul.f32 %v871, %v186
  %v875 = vadd.f32 %v872, 1e-05
  %v876 = vadd.f32 %v873, 1e-05
  %v877 = vadd.f32 %v874, 1e-05
  %v878 = vrsqrt.pop %v875
  %v879 = vrsqrt.pop %v876
  %v880 = vrsqrt.pop %v877
  %v881 = vmul.f32 %v857, %v878
  %v882 = vmul.f32 %v858, %v879
  %v883 = vmul.f32 %v859, %v880
  %v884 = vmul.f32 %v881, %v221
  %v885 = vmul.f32 %v882, %v221
  %v886 = vmul.f32 %v883, %v221
  %v887 = vadd.f32 %v884, %v230
  %v888 = vadd.f32 %v885, %v230
  %v889 = vadd.f32 %v886, %v230
  %v890 = vpack.c.bf16 %v888, %v887
  %v891 = vpack.c.bf16 %v889, %v889
  %v893 = vsel %vm175, %v890, 0
  %v896 = vsel %vm175, %v891, 0
  %898 = vmatprep.subr.bf16.mxu0 %v273
  %899 = vmatpush1.bf16.msra.mxu0 %v272
  %900 = vmatprep.subr.bf16.mxu0 %v275
  %901 = vmatpush1.bf16.msra.mxu0 %v274
  %902 = vmatprep.subr.bf16.mxu0 %v277
  %903 = vmatpush1.bf16.msra.mxu0 %v276
  %904 = vmatprep.subr.bf16.mxu0 %v279
  %905 = vmatpush1.bf16.msra.mxu0 %v278
  %906 = vmatprep.subr.bf16.mxu0 0
  %907 = vmatpush1.bf16.msra.mxu0 0
  %908 = vmatprep.subr.bf16.mxu0 0
  %909 = vmatpush1.bf16.msra.mxu0 0
  %910 = vmatprep.subr.bf16.mxu0 0
  %911 = vmatpush1.bf16.msra.mxu0 0
  %912 = vmatprep.subr.bf16.mxu0 0
  %913 = vmatpush1.bf16.msra.mxu0 0
  %914 = vmatprep.subr.bf16.mxu0 0
  %915 = vmatpush1.bf16.msra.mxu0 0
  %916 = vmatprep.subr.bf16.mxu0 0
  %917 = vmatpush1.bf16.msra.mxu0 0
  %918 = vmatprep.subr.bf16.mxu0 0
  %919 = vmatpush1.bf16.msra.mxu0 0
  %920 = vmatprep.subr.bf16.mxu0 0
  %921 = vmatpush1.bf16.msra.mxu0 0
  %922 = vmatprep.subr.bf16.mxu0 0
  %923 = vmatpush1.bf16.msra.mxu0 0
  %924 = vmatprep.subr.bf16.mxu0 0
  %925 = vmatpush1.bf16.msra.mxu0 0
  %926 = vmatprep.subr.bf16.mxu0 0
  %927 = vmatpush1.bf16.msra.mxu0 0
  %928 = vmatprep.subr.bf16.mxu0 0
  %929 = vmatpush1.bf16.msra.mxu0 0
  %930 = vmatprep.mubr.bf16.mxu0 0
  %931 = vmatmul.mubr.bf16.gmra.mrb[0].mxu0 %v893
  %v932 = vpop.f32.mrb[0].mxu0
  %v933 = vadd.f32 %v241, %v932
  %v934 = vpop.f32.mrb[0].mxu0
  %v935 = vadd.f32 %v245, %v934
  %v936 = vpop.f32.mrb[0].mxu0
  %v937 = vadd.f32 %v241, %v936
  %v938 = vpop.f32.mrb[0].mxu0
  %v939 = vadd.f32 %v245, %v938
  %940 = vmatprep.mubr.bf16.mxu0 0
  %941 = vmatmul.mubr.bf16.gmra.mrb[0].mxu0 %v896
  %v942 = vpop.f32.mrb[0].mxu0
  %v943 = vadd.f32 %v241, %v942
  %v944 = vpop.f32.mrb[0].mxu0
  %v945 = vadd.f32 %v245, %v944
  %v946 = vpop.f32.mrb[0].mxu0
  %v947 = vpop.f32.mrb[0].mxu0
  %948 = vdwg.mxu0
  %v949 = vmul.f32 %v933, 0.125
  %v950 = vmul.f32 %v937, 0.125
  %v951 = vpack.c.bf16 %v950, %v949
  %v952 = vpack.c.bf16 %v937, %v933
  %v953 = vpack.c.bf16 %v943, %v943
  %956 = vrot.lane.b32.xlu0 %v952, 64
  %v957 = vpop.permute.xlu0 %956
  %958 = vrot.lane.b32.xlu0 %v953, 64
  %v959 = vpop.permute.xlu0 %958
  %v961 = vsel %vm175, %v951, 0
  %v964 = vsel %vm175, %v957, 0
  %v967 = vsel %vm175, %v959, 0
  %969 = vmatprep.subr.bf16.mxu0 0
  %970 = vmatpush1.bf16.xpose.msra.mxu0 %v964
  %971 = vmatprep.subr.bf16.mxu0 0
  %972 = vmatpush1.bf16.xpose.msra.mxu0 %v967
  %973 = vmatprep.subr.bf16.mxu0 0
  %974 = vmatpush1.bf16.xpose.msra.mxu0 0
  %975 = vmatprep.subr.bf16.mxu0 0
  %976 = vmatpush1.bf16.xpose.msra.mxu0 0
  %977 = vmatprep.subr.bf16.mxu0 0
  %978 = vmatpush1.bf16.xpose.msra.mxu0 0
  %979 = vmatprep.subr.bf16.mxu0 0
  %980 = vmatpush1.bf16.xpose.msra.mxu0 0
  %981 = vmatprep.subr.bf16.mxu0 0
  %982 = vmatpush1.bf16.xpose.msra.mxu0 0
  %983 = vmatprep.subr.bf16.mxu0 0
  %984 = vmatpush1.bf16.xpose.msra.mxu0 0
  %985 = vmatprep.subr.bf16.mxu0 0
  %986 = vmatpush1.bf16.xpose.msra.mxu0 0
  %987 = vmatprep.subr.bf16.mxu0 0
  %988 = vmatpush1.bf16.xpose.msra.mxu0 0
  %989 = vmatprep.subr.bf16.mxu0 0
  %990 = vmatpush1.bf16.xpose.msra.mxu0 0
  %991 = vmatprep.subr.bf16.mxu0 0
  %992 = vmatpush1.bf16.xpose.msra.mxu0 0
  %993 = vmatprep.subr.bf16.mxu0 0
  %994 = vmatpush1.bf16.xpose.msra.mxu0 0
  %995 = vmatprep.subr.bf16.mxu0 0
  %996 = vmatpush1.bf16.xpose.msra.mxu0 0
  %997 = vmatprep.subr.bf16.mxu0 0
  %998 = vmatpush1.bf16.xpose.msra.mxu0 0
  %999 = vmatprep.subr.bf16.mxu0 0
  %1000 = vmatpush1.bf16.xpose.msra.mxu0 0
  %1001 = vmatprep.mubr.bf16.mxu0 0
  %1002 = vmatmul.mubr.bf16.gmra.mrb[0].mxu0 %v961
  %v1003 = vpop.f32.mrb[0].mxu0
  %v1004 = vadd.f32 0.0, %v1003
  %v1005 = vpop.f32.mrb[0].mxu0
  %v1006 = vpop.f32.mrb[0].mxu0
  %v1007 = vadd.f32 0.0, %v1006
  %v1008 = vpop.f32.mrb[0].mxu0
  %1009 = vdwg.mxu0
  %v1010 = vsel %vm406, %v1004, -inf
  %1011 = vmax.xlane.f32.xlu0 %v1010
  %v1012 = vpop.xlane.xlu0 %1011
  %v1013 = vsel %vm406, %v1007, -inf
  %1014 = vmax.xlane.f32.xlu0 %v1013
  %v1015 = vpop.xlane.xlu0 %1014
  %v1016 = vsub.f32 %v1004, %v1012
  %v1017 = vsub.f32 %v1007, %v1015
  %v1018 = vmul.f32 %v1016, 1.442695
  %v1019 = vpow.pop %v1018
  %v1020 = vmul.f32 %v1017, 1.442695
  %v1021 = vpow.pop %v1020
  %v1022 = vsel %vm406, %v1019, 0.0
  %1023 = vadd.xlane.f32.xlu0 %v1022
  %v1024 = vpop.xlane.xlu0 %1023
  %v1025 = vsel %vm406, %v1021, 0.0
  %1026 = vadd.xlane.f32.xlu0 %v1025
  %v1027 = vpop.xlane.xlu0 %1026
  %v1028 = vpack.c.bf16 %v1021, %v1019
  %v1029 = vpack.c.bf16 %v939, %v935
  %v1030 = vpack.c.bf16 %v945, %v945
  %v1032 = vsel %vm406, %v1028, 0
  %v1035 = vand.u32 %v1030, %v433
  %1037 = vmatprep.subr.bf16.mxu0 0
  %1038 = vmatpush1.bf16.msra.mxu0 %v1029
  %1039 = vmatprep.subr.bf16.mxu0 0
  %1040 = vmatpush1.bf16.msra.mxu0 %v1035
  %1041 = vmatprep.subr.bf16.mxu0 0
  %1042 = vmatpush1.bf16.msra.mxu0 0
  %1043 = vmatprep.subr.bf16.mxu0 0
  %1044 = vmatpush1.bf16.msra.mxu0 0
  %1045 = vmatprep.subr.bf16.mxu0 0
  %1046 = vmatpush1.bf16.msra.mxu0 0
  %1047 = vmatprep.subr.bf16.mxu0 0
  %1048 = vmatpush1.bf16.msra.mxu0 0
  %1049 = vmatprep.subr.bf16.mxu0 0
  %1050 = vmatpush1.bf16.msra.mxu0 0
  %1051 = vmatprep.subr.bf16.mxu0 0
  %1052 = vmatpush1.bf16.msra.mxu0 0
  %1053 = vmatprep.subr.bf16.mxu0 0
  %1054 = vmatpush1.bf16.msra.mxu0 0
  %1055 = vmatprep.subr.bf16.mxu0 0
  %1056 = vmatpush1.bf16.msra.mxu0 0
  %1057 = vmatprep.subr.bf16.mxu0 0
  %1058 = vmatpush1.bf16.msra.mxu0 0
  %1059 = vmatprep.subr.bf16.mxu0 0
  %1060 = vmatpush1.bf16.msra.mxu0 0
  %1061 = vmatprep.subr.bf16.mxu0 0
  %1062 = vmatpush1.bf16.msra.mxu0 0
  %1063 = vmatprep.subr.bf16.mxu0 0
  %1064 = vmatpush1.bf16.msra.mxu0 0
  %1065 = vmatprep.subr.bf16.mxu0 0
  %1066 = vmatpush1.bf16.msra.mxu0 0
  %1067 = vmatprep.subr.bf16.mxu0 0
  %1068 = vmatpush1.bf16.msra.mxu0 0
  %1069 = vmatprep.mubr.bf16.mxu0 0
  %1070 = vmatmul.mubr.bf16.gmra.mrb[0].mxu0 %v1032
  %v1071 = vpop.f32.mrb[0].mxu0
  %v1072 = vadd.f32 0.0, %v1071
  %v1073 = vpop.f32.mrb[0].mxu0
  %v1074 = vpop.f32.mrb[0].mxu0
  %v1075 = vadd.f32 0.0, %v1074
  %v1076 = vpop.f32.mrb[0].mxu0
  %1077 = vdwg.mxu0
  %v1078 = vrcp.pop %v1024
  %v1079 = vmul.f32 %v1072, %v1078
  %v1080 = vrcp.pop %v1027
  %v1081 = vmul.f32 %v1075, %v1080
  %v1082 = vpack.c.bf16 %v1081, %v1079
  %v1084 = vsel %vm175, %v1082, 0
  %1086 = vmatprep.subr.bf16.mxu0 0
  %1087 = vmatpush1.bf16.msra.mxu0 %v499
  %1088 = vmatprep.subr.bf16.mxu0 0
  %1089 = vmatpush1.bf16.msra.mxu0 %v500
  %1090 = vmatprep.subr.bf16.mxu0 0
  %1091 = vmatpush1.bf16.msra.mxu0 %v501
  %1092 = vmatprep.subr.bf16.mxu0 0
  %1093 = vmatpush1.bf16.msra.mxu0 %v502
  %1094 = vmatprep.subr.bf16.mxu0 0
  %1095 = vmatpush1.bf16.msra.mxu0 0
  %1096 = vmatprep.subr.bf16.mxu0 0
  %1097 = vmatpush1.bf16.msra.mxu0 0
  %1098 = vmatprep.subr.bf16.mxu0 0
  %1099 = vmatpush1.bf16.msra.mxu0 0
  %1100 = vmatprep.subr.bf16.mxu0 0
  %1101 = vmatpush1.bf16.msra.mxu0 0
  %1102 = vmatprep.subr.bf16.mxu0 0
  %1103 = vmatpush1.bf16.msra.mxu0 0
  %1104 = vmatprep.subr.bf16.mxu0 0
  %1105 = vmatpush1.bf16.msra.mxu0 0
  %1106 = vmatprep.subr.bf16.mxu0 0
  %1107 = vmatpush1.bf16.msra.mxu0 0
  %1108 = vmatprep.subr.bf16.mxu0 0
  %1109 = vmatpush1.bf16.msra.mxu0 0
  %1110 = vmatprep.subr.bf16.mxu0 0
  %1111 = vmatpush1.bf16.msra.mxu0 0
  %1112 = vmatprep.subr.bf16.mxu0 0
  %1113 = vmatpush1.bf16.msra.mxu0 0
  %1114 = vmatprep.subr.bf16.mxu0 0
  %1115 = vmatpush1.bf16.msra.mxu0 0
  %1116 = vmatprep.subr.bf16.mxu0 0
  %1117 = vmatpush1.bf16.msra.mxu0 0
  %1118 = vmatprep.mubr.bf16.mxu0 0
  %1119 = vmatmul.mubr.bf16.gmra.mrb[0].mxu0 %v1084
  %v1120 = vpop.f32.mrb[0].mxu0
  %v1121 = vadd.f32 0.0, %v1120
  %v1122 = vpop.f32.mrb[0].mxu0
  %v1123 = vpop.f32.mrb[0].mxu0
  %v1124 = vadd.f32 0.0, %v1123
  %v1125 = vpop.f32.mrb[0].mxu0
  %1126 = vdwg.mxu0
  %v1129 = vrot.slane %v1121, 1
  %v1130 = vrot.slane %v1121, 2
  %v1131 = vrot.slane %v1121, 3
  %v1132 = vrot.slane %v1121, 4
  %v1133 = vrot.slane %v1121, 5
  %v1134 = vrot.slane %v1121, 6
  %v1135 = vrot.slane %v1121, 7
  %v1136 = vrot.slane %v1124, 1
  %v1137 = vrot.slane %v1124, 2
  %v1138 = vrot.slane %v1124, 3
  %v1139 = vrot.slane %v1124, 4
  %v1140 = vrot.slane %v1124, 5
  %v1141 = vrot.slane %v1124, 6
  %v1142 = vrot.slane %v1124, 7
  %v1159 = vadd.f32 %v765, %v1121
  %v1160 = vadd.f32 %v766, %v1129
  %v1161 = vadd.f32 %v767, %v1130
  %v1162 = vadd.f32 %v768, %v1131
  %v1163 = vadd.f32 %v769, %v1132
  %v1164 = vadd.f32 %v770, %v1133
  %v1165 = vadd.f32 %v771, %v1134
  %v1166 = vadd.f32 %v772, %v1135
  %v1167 = vadd.f32 %v773, %v1124
  %v1168 = vadd.f32 %v774, %v1136
  %v1169 = vadd.f32 %v775, %v1137
  %v1170 = vadd.f32 %v776, %v1138
  %v1171 = vadd.f32 %v777, %v1139
  %v1172 = vadd.f32 %v778, %v1140
  %v1173 = vadd.f32 %v779, %v1141
  %v1174 = vadd.f32 %v780, %v1142
  %v1175 = vadd.f32 %v1159, %v603
  %v1176 = vadd.f32 %v1160, %v603
  %v1177 = vadd.f32 %v1161, %v603
  %v1178 = vadd.f32 %v1162, %v603
  %v1179 = vadd.f32 %v1163, %v603
  %v1180 = vadd.f32 %v1164, %v603
  %v1181 = vadd.f32 %v1165, %v603
  %v1182 = vadd.f32 %v1166, %v603
  %v1183 = vadd.f32 %v1167, %v603
  %v1184 = vadd.f32 %v1168, %v603
  %v1185 = vadd.f32 %v1169, %v603
  %v1186 = vadd.f32 %v1170, %v603
  %v1187 = vadd.f32 %v1171, %v603
  %v1188 = vadd.f32 %v1172, %v603
  %v1189 = vadd.f32 %v1173, %v603
  %v1190 = vadd.f32 %v1174, %v603
  %1191 = vst.msk [vmem:[%s9 + $0x1] sm:$0x1] %vm182, %v1175
  %1192 = vst.msk [vmem:[%s9 + $0x9] sm:$0x1] %vm182, %v1176
  %1193 = vst.msk [vmem:[%s9 + $0x11] sm:$0x1] %vm182, %v1177
  %1194 = vst.msk [vmem:[%s9 + $0x19] sm:$0x1] %vm182, %v1178
  %1195 = vst.msk [vmem:[%s9 + $0x21] sm:$0x1] %vm182, %v1179
  %1196 = vst.msk [vmem:[%s9 + $0x29] sm:$0x1] %vm182, %v1180
  %1197 = vst.msk [vmem:[%s9 + $0x31] sm:$0x1] %vm182, %v1181
  %1198 = vst.msk [vmem:[%s9 + $0x39] sm:$0x1] %vm182, %v1182
  %1199 = vst.msk [vmem:[%s9 + $0x41] sm:$0x1] %vm182, %v1183
  %1200 = vst.msk [vmem:[%s9 + $0x49] sm:$0x1] %vm182, %v1184
  %1201 = vst.msk [vmem:[%s9 + $0x51] sm:$0x1] %vm182, %v1185
  %1202 = vst.msk [vmem:[%s9 + $0x59] sm:$0x1] %vm182, %v1186
  %1203 = vst.msk [vmem:[%s9 + $0x61] sm:$0x1] %vm182, %v1187
  %1204 = vst.msk [vmem:[%s9 + $0x69] sm:$0x1] %vm182, %v1188
  %1205 = vst.msk [vmem:[%s9 + $0x71] sm:$0x1] %vm182, %v1189
  %1206 = vst.msk [vmem:[%s9 + $0x79] sm:$0x1] %vm182, %v1190
  %v1223 = vrot.slane %v1176, 7
  %v1224 = vsel %vm139, %v1223, %v1175
  %v1225 = vrot.slane %v1177, 6
  %v1226 = vsel %vm142, %v1225, %v1224
  %v1227 = vrot.slane %v1178, 5
  %v1228 = vsel %vm145, %v1227, %v1226
  %v1229 = vrot.slane %v1179, 4
  %v1230 = vsel %vm148, %v1229, %v1228
  %v1231 = vrot.slane %v1180, 3
  %v1232 = vsel %vm151, %v1231, %v1230
  %v1233 = vrot.slane %v1181, 2
  %v1234 = vsel %vm154, %v1233, %v1232
  %v1235 = vrot.slane %v1182, 1
  %v1236 = vsel %vm157, %v1235, %v1234
  %v1237 = vrot.slane %v1184, 7
  %v1238 = vsel %vm139, %v1237, %v1183
  %v1239 = vrot.slane %v1185, 6
  %v1240 = vsel %vm142, %v1239, %v1238
  %v1241 = vrot.slane %v1186, 5
  %v1242 = vsel %vm145, %v1241, %v1240
  %v1243 = vrot.slane %v1187, 4
  %v1244 = vsel %vm148, %v1243, %v1242
  %v1245 = vrot.slane %v1188, 3
  %v1246 = vsel %vm151, %v1245, %v1244
  %v1247 = vrot.slane %v1189, 2
  %v1248 = vsel %vm154, %v1247, %v1246
  %v1249 = vrot.slane %v1190, 1
  %v1250 = vsel %vm157, %v1249, %v1248
  %v1253 = vsel %vm175, %v1236, 0.0
  %v1254 = vsel %vm175, %v1250, 0.0
  %v1255 = vadd.f32 %v1253, %v1254
  %v1256 = vrot.slane %v1255, 4
  %v1257 = vadd.f32 %v1255, %v1256
  %v1258 = vrot.slane %v1257, 2
  %v1259 = vadd.f32 %v1257, %v1258
  %v1260 = vrot.slane %v1259, 1
  %v1261 = vadd.f32 %v1259, %v1260
  %v1262 = vadd.f32 %v692, %v1261
  %v1263 = vmul.f32 %v1175, %v1175
  %v1264 = vmul.f32 %v1176, %v1176
  %v1265 = vmul.f32 %v1177, %v1177
  %v1266 = vmul.f32 %v1178, %v1178
  %v1267 = vmul.f32 %v1179, %v1179
  %v1268 = vmul.f32 %v1180, %v1180
  %v1269 = vmul.f32 %v1181, %v1181
  %v1270 = vmul.f32 %v1182, %v1182
  %v1271 = vmul.f32 %v1183, %v1183
  %v1272 = vmul.f32 %v1184, %v1184
  %v1273 = vmul.f32 %v1185, %v1185
  %v1274 = vmul.f32 %v1186, %v1186
  %v1275 = vmul.f32 %v1187, %v1187
  %v1276 = vmul.f32 %v1188, %v1188
  %v1277 = vmul.f32 %v1189, %v1189
  %v1278 = vmul.f32 %v1190, %v1190
  %v1295 = vrot.slane %v1264, 7
  %v1296 = vsel %vm139, %v1295, %v1263
  %v1297 = vrot.slane %v1265, 6
  %v1298 = vsel %vm142, %v1297, %v1296
  %v1299 = vrot.slane %v1266, 5
  %v1300 = vsel %vm145, %v1299, %v1298
  %v1301 = vrot.slane %v1267, 4
  %v1302 = vsel %vm148, %v1301, %v1300
  %v1303 = vrot.slane %v1268, 3
  %v1304 = vsel %vm151, %v1303, %v1302
  %v1305 = vrot.slane %v1269, 2
  %v1306 = vsel %vm154, %v1305, %v1304
  %v1307 = vrot.slane %v1270, 1
  %v1308 = vsel %vm157, %v1307, %v1306
  %v1309 = vrot.slane %v1272, 7
  %v1310 = vsel %vm139, %v1309, %v1271
  %v1311 = vrot.slane %v1273, 6
  %v1312 = vsel %vm142, %v1311, %v1310
  %v1313 = vrot.slane %v1274, 5
  %v1314 = vsel %vm145, %v1313, %v1312
  %v1315 = vrot.slane %v1275, 4
  %v1316 = vsel %vm148, %v1315, %v1314
  %v1317 = vrot.slane %v1276, 3
  %v1318 = vsel %vm151, %v1317, %v1316
  %v1319 = vrot.slane %v1277, 2
  %v1320 = vsel %vm154, %v1319, %v1318
  %v1321 = vrot.slane %v1278, 1
  %v1322 = vsel %vm157, %v1321, %v1320
  %v1325 = vsel %vm175, %v1308, 0.0
  %v1326 = vsel %vm175, %v1322, 0.0
  %v1327 = vadd.f32 %v1325, %v1326
  %v1328 = vrot.slane %v1327, 4
  %v1329 = vadd.f32 %v1327, %v1328
  %v1330 = vrot.slane %v1329, 2
  %v1331 = vadd.f32 %v1329, %v1330
  %v1332 = vrot.slane %v1331, 1
  %v1333 = vadd.f32 %v1331, %v1332
  %v1334 = vadd.f32 %v764, %v1333
  %v1335 = vld [vmem:[%s0 + $0x2] sm:$0x1]
  %v1336 = vld [vmem:[%s0 + $0xa] sm:$0x1]
  %v1337 = vld [vmem:[%s0 + $0x12] sm:$0x1]
  %v1338 = vld [vmem:[%s0 + $0x1a] sm:$0x1]
  %v1339 = vld [vmem:[%s0 + $0x22] sm:$0x1]
  %v1340 = vld [vmem:[%s0 + $0x2a] sm:$0x1]
  %v1341 = vld [vmem:[%s0 + $0x32] sm:$0x1]
  %v1342 = vld [vmem:[%s0 + $0x3a] sm:$0x1]
  %v1343 = vld [vmem:[%s0 + $0x42] sm:$0x1]
  %v1344 = vld [vmem:[%s0 + $0x4a] sm:$0x1]
  %v1345 = vld [vmem:[%s0 + $0x52] sm:$0x1]
  %v1346 = vld [vmem:[%s0 + $0x5a] sm:$0x1]
  %v1347 = vld [vmem:[%s0 + $0x62] sm:$0x1]
  %v1348 = vld [vmem:[%s0 + $0x6a] sm:$0x1]
  %v1349 = vld [vmem:[%s0 + $0x72] sm:$0x1]
  %v1350 = vld [vmem:[%s0 + $0x7a] sm:$0x1]
  %s1351 = scalar_lea.vmem %s1, 2
  %v1352 = vld [vmem:[%s1351] sm:$0x1]
  %v1353 = vadd.f32 %v1335, %v35
  %v1354 = vadd.f32 %v1336, %v76
  %v1355 = vadd.f32 %v1337, %v77
  %v1356 = vadd.f32 %v1338, %v78
  %v1357 = vadd.f32 %v1339, %v79
  %v1358 = vadd.f32 %v1340, %v80
  %v1359 = vadd.f32 %v1341, %v81
  %v1360 = vadd.f32 %v1342, %v82
  %v1361 = vadd.f32 %v1343, %v36
  %v1362 = vadd.f32 %v1344, %v83
  %v1363 = vadd.f32 %v1345, %v84
  %v1364 = vadd.f32 %v1346, %v85
  %v1365 = vadd.f32 %v1347, %v86
  %v1366 = vadd.f32 %v1348, %v87
  %v1367 = vadd.f32 %v1349, %v88
  %v1368 = vadd.f32 %v1350, %v89
  %v1385 = vrot.slane %v1354, 7
  %v1386 = vsel %vm139, %v1385, %v1353
  %v1387 = vrot.slane %v1355, 6
  %v1388 = vsel %vm142, %v1387, %v1386
  %v1389 = vrot.slane %v1356, 5
  %v1390 = vsel %vm145, %v1389, %v1388
  %v1391 = vrot.slane %v1357, 4
  %v1392 = vsel %vm148, %v1391, %v1390
  %v1393 = vrot.slane %v1358, 3
  %v1394 = vsel %vm151, %v1393, %v1392
  %v1395 = vrot.slane %v1359, 2
  %v1396 = vsel %vm154, %v1395, %v1394
  %v1397 = vrot.slane %v1360, 1
  %v1398 = vsel %vm157, %v1397, %v1396
  %v1399 = vrot.slane %v1362, 7
  %v1400 = vsel %vm139, %v1399, %v1361
  %v1401 = vrot.slane %v1363, 6
  %v1402 = vsel %vm142, %v1401, %v1400
  %v1403 = vrot.slane %v1364, 5
  %v1404 = vsel %vm145, %v1403, %v1402
  %v1405 = vrot.slane %v1365, 4
  %v1406 = vsel %vm148, %v1405, %v1404
  %v1407 = vrot.slane %v1366, 3
  %v1408 = vsel %vm151, %v1407, %v1406
  %v1409 = vrot.slane %v1367, 2
  %v1410 = vsel %vm154, %v1409, %v1408
  %v1411 = vrot.slane %v1368, 1
  %v1412 = vsel %vm157, %v1411, %v1410
  %v1415 = vsel %vm175, %v1398, 0.0
  %1416 = vadd.xlane.f32.xlu0 %v1415
  %v1417 = vpop.xlane.xlu0 %1416
  %v1418 = vsel %vm175, %v1412, 0.0
  %1419 = vadd.xlane.f32.xlu0 %v1418
  %v1420 = vpop.xlane.xlu0 %1419
  %v1421 = vsel %vm182, %v1352, 0.0
  %1422 = vadd.xlane.f32.xlu0 %v1421
  %v1423 = vpop.xlane.xlu0 %1422
  %v1424 = vmul.f32 %v1417, %v186
  %v1425 = vmul.f32 %v1420, %v186
  %v1426 = vmul.f32 %v1423, %v186
  %v1427 = vsub.f32 %v1398, %v1424
  %v1428 = vsub.f32 %v1412, %v1425
  %v1429 = vsub.f32 %v1352, %v1426
  %v1430 = vmul.f32 %v1427, %v1427
  %v1431 = vmul.f32 %v1428, %v1428
  %v1432 = vmul.f32 %v1429, %v1429
  %v1433 = vsel %vm175, %v1430, 0.0
  %1434 = vadd.xlane.f32.xlu0 %v1433
  %v1435 = vpop.xlane.xlu0 %1434
  %v1436 = vsel %vm175, %v1431, 0.0
  %1437 = vadd.xlane.f32.xlu0 %v1436
  %v1438 = vpop.xlane.xlu0 %1437
  %v1439 = vsel %vm182, %v1432, 0.0
  %1440 = vadd.xlane.f32.xlu0 %v1439
  %v1441 = vpop.xlane.xlu0 %1440
  %v1442 = vmul.f32 %v1435, %v186
  %v1443 = vmul.f32 %v1438, %v186
  %v1444 = vmul.f32 %v1441, %v186
  %v1445 = vadd.f32 %v1442, 1e-05
  %v1446 = vadd.f32 %v1443, 1e-05
  %v1447 = vadd.f32 %v1444, 1e-05
  %v1448 = vrsqrt.pop %v1445
  %v1449 = vrsqrt.pop %v1446
  %v1450 = vrsqrt.pop %v1447
  %v1451 = vmul.f32 %v1427, %v1448
  %v1452 = vmul.f32 %v1428, %v1449
  %v1453 = vmul.f32 %v1429, %v1450
  %v1454 = vmul.f32 %v1451, %v221
  %v1455 = vmul.f32 %v1452, %v221
  %v1456 = vmul.f32 %v1453, %v221
  %v1457 = vadd.f32 %v1454, %v230
  %v1458 = vadd.f32 %v1455, %v230
  %v1459 = vadd.f32 %v1456, %v230
  %v1460 = vpack.c.bf16 %v1458, %v1457
  %v1461 = vpack.c.bf16 %v1459, %v1459
  %v1463 = vsel %vm175, %v1460, 0
  %v1466 = vsel %vm175, %v1461, 0
  %1468 = vmatprep.subr.bf16.mxu0 %v273
  %1469 = vmatpush1.bf16.msra.mxu0 %v272
  %1470 = vmatprep.subr.bf16.mxu0 %v275
  %1471 = vmatpush1.bf16.msra.mxu0 %v274
  %1472 = vmatprep.subr.bf16.mxu0 %v277
  %1473 = vmatpush1.bf16.msra.mxu0 %v276
  %1474 = vmatprep.subr.bf16.mxu0 %v279
  %1475 = vmatpush1.bf16.msra.mxu0 %v278
  %1476 = vmatprep.subr.bf16.mxu0 0
  %1477 = vmatpush1.bf16.msra.mxu0 0
  %1478 = vmatprep.subr.bf16.mxu0 0
  %1479 = vmatpush1.bf16.msra.mxu0 0
  %1480 = vmatprep.subr.bf16.mxu0 0
  %1481 = vmatpush1.bf16.msra.mxu0 0
  %1482 = vmatprep.subr.bf16.mxu0 0
  %1483 = vmatpush1.bf16.msra.mxu0 0
  %1484 = vmatprep.subr.bf16.mxu0 0
  %1485 = vmatpush1.bf16.msra.mxu0 0
  %1486 = vmatprep.subr.bf16.mxu0 0
  %1487 = vmatpush1.bf16.msra.mxu0 0
  %1488 = vmatprep.subr.bf16.mxu0 0
  %1489 = vmatpush1.bf16.msra.mxu0 0
  %1490 = vmatprep.subr.bf16.mxu0 0
  %1491 = vmatpush1.bf16.msra.mxu0 0
  %1492 = vmatprep.subr.bf16.mxu0 0
  %1493 = vmatpush1.bf16.msra.mxu0 0
  %1494 = vmatprep.subr.bf16.mxu0 0
  %1495 = vmatpush1.bf16.msra.mxu0 0
  %1496 = vmatprep.subr.bf16.mxu0 0
  %1497 = vmatpush1.bf16.msra.mxu0 0
  %1498 = vmatprep.subr.bf16.mxu0 0
  %1499 = vmatpush1.bf16.msra.mxu0 0
  %1500 = vmatprep.mubr.bf16.mxu0 0
  %1501 = vmatmul.mubr.bf16.gmra.mrb[0].mxu0 %v1463
  %v1502 = vpop.f32.mrb[0].mxu0
  %v1503 = vadd.f32 %v241, %v1502
  %v1504 = vpop.f32.mrb[0].mxu0
  %v1505 = vadd.f32 %v245, %v1504
  %v1506 = vpop.f32.mrb[0].mxu0
  %v1507 = vadd.f32 %v241, %v1506
  %v1508 = vpop.f32.mrb[0].mxu0
  %v1509 = vadd.f32 %v245, %v1508
  %1510 = vmatprep.mubr.bf16.mxu0 0
  %1511 = vmatmul.mubr.bf16.gmra.mrb[0].mxu0 %v1466
  %v1512 = vpop.f32.mrb[0].mxu0
  %v1513 = vadd.f32 %v241, %v1512
  %v1514 = vpop.f32.mrb[0].mxu0
  %v1515 = vadd.f32 %v245, %v1514
  %v1516 = vpop.f32.mrb[0].mxu0
  %v1517 = vpop.f32.mrb[0].mxu0
  %1518 = vdwg.mxu0
  %v1519 = vmul.f32 %v1503, 0.125
  %v1520 = vmul.f32 %v1507, 0.125
  %v1521 = vpack.c.bf16 %v1520, %v1519
  %v1522 = vpack.c.bf16 %v1507, %v1503
  %v1523 = vpack.c.bf16 %v1513, %v1513
  %1526 = vrot.lane.b32.xlu0 %v1522, 64
  %v1527 = vpop.permute.xlu0 %1526
  %1528 = vrot.lane.b32.xlu0 %v1523, 64
  %v1529 = vpop.permute.xlu0 %1528
  %v1531 = vsel %vm175, %v1521, 0
  %v1534 = vsel %vm175, %v1527, 0
  %v1537 = vsel %vm175, %v1529, 0
  %1539 = vmatprep.subr.bf16.mxu0 0
  %1540 = vmatpush1.bf16.xpose.msra.mxu0 %v1534
  %1541 = vmatprep.subr.bf16.mxu0 0
  %1542 = vmatpush1.bf16.xpose.msra.mxu0 %v1537
  %1543 = vmatprep.subr.bf16.mxu0 0
  %1544 = vmatpush1.bf16.xpose.msra.mxu0 0
  %1545 = vmatprep.subr.bf16.mxu0 0
  %1546 = vmatpush1.bf16.xpose.msra.mxu0 0
  %1547 = vmatprep.subr.bf16.mxu0 0
  %1548 = vmatpush1.bf16.xpose.msra.mxu0 0
  %1549 = vmatprep.subr.bf16.mxu0 0
  %1550 = vmatpush1.bf16.xpose.msra.mxu0 0
  %1551 = vmatprep.subr.bf16.mxu0 0
  %1552 = vmatpush1.bf16.xpose.msra.mxu0 0
  %1553 = vmatprep.subr.bf16.mxu0 0
  %1554 = vmatpush1.bf16.xpose.msra.mxu0 0
  %1555 = vmatprep.subr.bf16.mxu0 0
  %1556 = vmatpush1.bf16.xpose.msra.mxu0 0
  %1557 = vmatprep.subr.bf16.mxu0 0
  %1558 = vmatpush1.bf16.xpose.msra.mxu0 0
  %1559 = vmatprep.subr.bf16.mxu0 0
  %1560 = vmatpush1.bf16.xpose.msra.mxu0 0
  %1561 = vmatprep.subr.bf16.mxu0 0
  %1562 = vmatpush1.bf16.xpose.msra.mxu0 0
  %1563 = vmatprep.subr.bf16.mxu0 0
  %1564 = vmatpush1.bf16.xpose.msra.mxu0 0
  %1565 = vmatprep.subr.bf16.mxu0 0
  %1566 = vmatpush1.bf16.xpose.msra.mxu0 0
  %1567 = vmatprep.subr.bf16.mxu0 0
  %1568 = vmatpush1.bf16.xpose.msra.mxu0 0
  %1569 = vmatprep.subr.bf16.mxu0 0
  %1570 = vmatpush1.bf16.xpose.msra.mxu0 0
  %1571 = vmatprep.mubr.bf16.mxu0 0
  %1572 = vmatmul.mubr.bf16.gmra.mrb[0].mxu0 %v1531
  %v1573 = vpop.f32.mrb[0].mxu0
  %v1574 = vadd.f32 0.0, %v1573
  %v1575 = vpop.f32.mrb[0].mxu0
  %v1576 = vpop.f32.mrb[0].mxu0
  %v1577 = vadd.f32 0.0, %v1576
  %v1578 = vpop.f32.mrb[0].mxu0
  %1579 = vdwg.mxu0
  %v1580 = vsel %vm406, %v1574, -inf
  %1581 = vmax.xlane.f32.xlu0 %v1580
  %v1582 = vpop.xlane.xlu0 %1581
  %v1583 = vsel %vm406, %v1577, -inf
  %1584 = vmax.xlane.f32.xlu0 %v1583
  %v1585 = vpop.xlane.xlu0 %1584
  %v1586 = vsub.f32 %v1574, %v1582
  %v1587 = vsub.f32 %v1577, %v1585
  %v1588 = vmul.f32 %v1586, 1.442695
  %v1589 = vpow.pop %v1588
  %v1590 = vmul.f32 %v1587, 1.442695
  %v1591 = vpow.pop %v1590
  %v1592 = vsel %vm406, %v1589, 0.0
  %1593 = vadd.xlane.f32.xlu0 %v1592
  %v1594 = vpop.xlane.xlu0 %1593
  %v1595 = vsel %vm406, %v1591, 0.0
  %1596 = vadd.xlane.f32.xlu0 %v1595
  %v1597 = vpop.xlane.xlu0 %1596
  %v1598 = vpack.c.bf16 %v1591, %v1589
  %v1599 = vpack.c.bf16 %v1509, %v1505
  %v1600 = vpack.c.bf16 %v1515, %v1515
  %v1602 = vsel %vm406, %v1598, 0
  %v1605 = vand.u32 %v1600, %v433
  %1607 = vmatprep.subr.bf16.mxu0 0
  %1608 = vmatpush1.bf16.msra.mxu0 %v1599
  %1609 = vmatprep.subr.bf16.mxu0 0
  %1610 = vmatpush1.bf16.msra.mxu0 %v1605
  %1611 = vmatprep.subr.bf16.mxu0 0
  %1612 = vmatpush1.bf16.msra.mxu0 0
  %1613 = vmatprep.subr.bf16.mxu0 0
  %1614 = vmatpush1.bf16.msra.mxu0 0
  %1615 = vmatprep.subr.bf16.mxu0 0
  %1616 = vmatpush1.bf16.msra.mxu0 0
  %1617 = vmatprep.subr.bf16.mxu0 0
  %1618 = vmatpush1.bf16.msra.mxu0 0
  %1619 = vmatprep.subr.bf16.mxu0 0
  %1620 = vmatpush1.bf16.msra.mxu0 0
  %1621 = vmatprep.subr.bf16.mxu0 0
  %1622 = vmatpush1.bf16.msra.mxu0 0
  %1623 = vmatprep.subr.bf16.mxu0 0
  %1624 = vmatpush1.bf16.msra.mxu0 0
  %1625 = vmatprep.subr.bf16.mxu0 0
  %1626 = vmatpush1.bf16.msra.mxu0 0
  %1627 = vmatprep.subr.bf16.mxu0 0
  %1628 = vmatpush1.bf16.msra.mxu0 0
  %1629 = vmatprep.subr.bf16.mxu0 0
  %1630 = vmatpush1.bf16.msra.mxu0 0
  %1631 = vmatprep.subr.bf16.mxu0 0
  %1632 = vmatpush1.bf16.msra.mxu0 0
  %1633 = vmatprep.subr.bf16.mxu0 0
  %1634 = vmatpush1.bf16.msra.mxu0 0
  %1635 = vmatprep.subr.bf16.mxu0 0
  %1636 = vmatpush1.bf16.msra.mxu0 0
  %1637 = vmatprep.subr.bf16.mxu0 0
  %1638 = vmatpush1.bf16.msra.mxu0 0
  %1639 = vmatprep.mubr.bf16.mxu0 0
  %1640 = vmatmul.mubr.bf16.gmra.mrb[0].mxu0 %v1602
  %v1641 = vpop.f32.mrb[0].mxu0
  %v1642 = vadd.f32 0.0, %v1641
  %v1643 = vpop.f32.mrb[0].mxu0
  %v1644 = vpop.f32.mrb[0].mxu0
  %v1645 = vadd.f32 0.0, %v1644
  %v1646 = vpop.f32.mrb[0].mxu0
  %1647 = vdwg.mxu0
  %v1648 = vrcp.pop %v1594
  %v1649 = vmul.f32 %v1642, %v1648
  %v1650 = vrcp.pop %v1597
  %v1651 = vmul.f32 %v1645, %v1650
  %v1652 = vpack.c.bf16 %v1651, %v1649
  %v1654 = vsel %vm175, %v1652, 0
  %1656 = vmatprep.subr.bf16.mxu0 0
  %1657 = vmatpush1.bf16.msra.mxu0 %v499
  %1658 = vmatprep.subr.bf16.mxu0 0
  %1659 = vmatpush1.bf16.msra.mxu0 %v500
  %1660 = vmatprep.subr.bf16.mxu0 0
  %1661 = vmatpush1.bf16.msra.mxu0 %v501
  %1662 = vmatprep.subr.bf16.mxu0 0
  %1663 = vmatpush1.bf16.msra.mxu0 %v502
  %1664 = vmatprep.subr.bf16.mxu0 0
  %1665 = vmatpush1.bf16.msra.mxu0 0
  %1666 = vmatprep.subr.bf16.mxu0 0
  %1667 = vmatpush1.bf16.msra.mxu0 0
  %1668 = vmatprep.subr.bf16.mxu0 0
  %1669 = vmatpush1.bf16.msra.mxu0 0
  %1670 = vmatprep.subr.bf16.mxu0 0
  %1671 = vmatpush1.bf16.msra.mxu0 0
  %1672 = vmatprep.subr.bf16.mxu0 0
  %1673 = vmatpush1.bf16.msra.mxu0 0
  %1674 = vmatprep.subr.bf16.mxu0 0
  %1675 = vmatpush1.bf16.msra.mxu0 0
  %1676 = vmatprep.subr.bf16.mxu0 0
  %1677 = vmatpush1.bf16.msra.mxu0 0
  %1678 = vmatprep.subr.bf16.mxu0 0
  %1679 = vmatpush1.bf16.msra.mxu0 0
  %1680 = vmatprep.subr.bf16.mxu0 0
  %1681 = vmatpush1.bf16.msra.mxu0 0
  %1682 = vmatprep.subr.bf16.mxu0 0
  %1683 = vmatpush1.bf16.msra.mxu0 0
  %1684 = vmatprep.subr.bf16.mxu0 0
  %1685 = vmatpush1.bf16.msra.mxu0 0
  %1686 = vmatprep.subr.bf16.mxu0 0
  %1687 = vmatpush1.bf16.msra.mxu0 0
  %1688 = vmatprep.mubr.bf16.mxu0 0
  %1689 = vmatmul.mubr.bf16.gmra.mrb[0].mxu0 %v1654
  %v1690 = vpop.f32.mrb[0].mxu0
  %v1691 = vadd.f32 0.0, %v1690
  %v1692 = vpop.f32.mrb[0].mxu0
  %v1693 = vpop.f32.mrb[0].mxu0
  %v1694 = vadd.f32 0.0, %v1693
  %v1695 = vpop.f32.mrb[0].mxu0
  %1696 = vdwg.mxu0
  %v1699 = vrot.slane %v1691, 1
  %v1700 = vrot.slane %v1691, 2
  %v1701 = vrot.slane %v1691, 3
  %v1702 = vrot.slane %v1691, 4
  %v1703 = vrot.slane %v1691, 5
  %v1704 = vrot.slane %v1691, 6
  %v1705 = vrot.slane %v1691, 7
  %v1706 = vrot.slane %v1694, 1
  %v1707 = vrot.slane %v1694, 2
  %v1708 = vrot.slane %v1694, 3
  %v1709 = vrot.slane %v1694, 4
  %v1710 = vrot.slane %v1694, 5
  %v1711 = vrot.slane %v1694, 6
  %v1712 = vrot.slane %v1694, 7
  %v1729 = vadd.f32 %v1335, %v1691
  %v1730 = vadd.f32 %v1336, %v1699
  %v1731 = vadd.f32 %v1337, %v1700
  %v1732 = vadd.f32 %v1338, %v1701
  %v1733 = vadd.f32 %v1339, %v1702
  %v1734 = vadd.f32 %v1340, %v1703
  %v1735 = vadd.f32 %v1341, %v1704
  %v1736 = vadd.f32 %v1342, %v1705
  %v1737 = vadd.f32 %v1343, %v1694
  %v1738 = vadd.f32 %v1344, %v1706
  %v1739 = vadd.f32 %v1345, %v1707
  %v1740 = vadd.f32 %v1346, %v1708
  %v1741 = vadd.f32 %v1347, %v1709
  %v1742 = vadd.f32 %v1348, %v1710
  %v1743 = vadd.f32 %v1349, %v1711
  %v1744 = vadd.f32 %v1350, %v1712
  %v1745 = vadd.f32 %v1729, %v603
  %v1746 = vadd.f32 %v1730, %v603
  %v1747 = vadd.f32 %v1731, %v603
  %v1748 = vadd.f32 %v1732, %v603
  %v1749 = vadd.f32 %v1733, %v603
  %v1750 = vadd.f32 %v1734, %v603
  %v1751 = vadd.f32 %v1735, %v603
  %v1752 = vadd.f32 %v1736, %v603
  %v1753 = vadd.f32 %v1737, %v603
  %v1754 = vadd.f32 %v1738, %v603
  %v1755 = vadd.f32 %v1739, %v603
  %v1756 = vadd.f32 %v1740, %v603
  %v1757 = vadd.f32 %v1741, %v603
  %v1758 = vadd.f32 %v1742, %v603
  %v1759 = vadd.f32 %v1743, %v603
  %v1760 = vadd.f32 %v1744, %v603
  %1761 = vst.msk [vmem:[%s9 + $0x2] sm:$0x1] %vm182, %v1745
  %1762 = vst.msk [vmem:[%s9 + $0xa] sm:$0x1] %vm182, %v1746
  %1763 = vst.msk [vmem:[%s9 + $0x12] sm:$0x1] %vm182, %v1747
  %1764 = vst.msk [vmem:[%s9 + $0x1a] sm:$0x1] %vm182, %v1748
  %1765 = vst.msk [vmem:[%s9 + $0x22] sm:$0x1] %vm182, %v1749
  %1766 = vst.msk [vmem:[%s9 + $0x2a] sm:$0x1] %vm182, %v1750
  %1767 = vst.msk [vmem:[%s9 + $0x32] sm:$0x1] %vm182, %v1751
  %1768 = vst.msk [vmem:[%s9 + $0x3a] sm:$0x1] %vm182, %v1752
  %1769 = vst.msk [vmem:[%s9 + $0x42] sm:$0x1] %vm182, %v1753
  %1770 = vst.msk [vmem:[%s9 + $0x4a] sm:$0x1] %vm182, %v1754
  %1771 = vst.msk [vmem:[%s9 + $0x52] sm:$0x1] %vm182, %v1755
  %1772 = vst.msk [vmem:[%s9 + $0x5a] sm:$0x1] %vm182, %v1756
  %1773 = vst.msk [vmem:[%s9 + $0x62] sm:$0x1] %vm182, %v1757
  %1774 = vst.msk [vmem:[%s9 + $0x6a] sm:$0x1] %vm182, %v1758
  %1775 = vst.msk [vmem:[%s9 + $0x72] sm:$0x1] %vm182, %v1759
  %1776 = vst.msk [vmem:[%s9 + $0x7a] sm:$0x1] %vm182, %v1760
  %v1793 = vrot.slane %v1746, 7
  %v1794 = vsel %vm139, %v1793, %v1745
  %v1795 = vrot.slane %v1747, 6
  %v1796 = vsel %vm142, %v1795, %v1794
  %v1797 = vrot.slane %v1748, 5
  %v1798 = vsel %vm145, %v1797, %v1796
  %v1799 = vrot.slane %v1749, 4
  %v1800 = vsel %vm148, %v1799, %v1798
  %v1801 = vrot.slane %v1750, 3
  %v1802 = vsel %vm151, %v1801, %v1800
  %v1803 = vrot.slane %v1751, 2
  %v1804 = vsel %vm154, %v1803, %v1802
  %v1805 = vrot.slane %v1752, 1
  %v1806 = vsel %vm157, %v1805, %v1804
  %v1807 = vrot.slane %v1754, 7
  %v1808 = vsel %vm139, %v1807, %v1753
  %v1809 = vrot.slane %v1755, 6
  %v1810 = vsel %vm142, %v1809, %v1808
  %v1811 = vrot.slane %v1756, 5
  %v1812 = vsel %vm145, %v1811, %v1810
  %v1813 = vrot.slane %v1757, 4
  %v1814 = vsel %vm148, %v1813, %v1812
  %v1815 = vrot.slane %v1758, 3
  %v1816 = vsel %vm151, %v1815, %v1814
  %v1817 = vrot.slane %v1759, 2
  %v1818 = vsel %vm154, %v1817, %v1816
  %v1819 = vrot.slane %v1760, 1
  %v1820 = vsel %vm157, %v1819, %v1818
  %v1823 = vsel %vm175, %v1806, 0.0
  %v1824 = vsel %vm175, %v1820, 0.0
  %v1825 = vadd.f32 %v1823, %v1824
  %v1826 = vrot.slane %v1825, 4
  %v1827 = vadd.f32 %v1825, %v1826
  %v1828 = vrot.slane %v1827, 2
  %v1829 = vadd.f32 %v1827, %v1828
  %v1830 = vrot.slane %v1829, 1
  %v1831 = vadd.f32 %v1829, %v1830
  %v1832 = vadd.f32 %v1262, %v1831
  %v1833 = vmul.f32 %v1745, %v1745
  %v1834 = vmul.f32 %v1746, %v1746
  %v1835 = vmul.f32 %v1747, %v1747
  %v1836 = vmul.f32 %v1748, %v1748
  %v1837 = vmul.f32 %v1749, %v1749
  %v1838 = vmul.f32 %v1750, %v1750
  %v1839 = vmul.f32 %v1751, %v1751
  %v1840 = vmul.f32 %v1752, %v1752
  %v1841 = vmul.f32 %v1753, %v1753
  %v1842 = vmul.f32 %v1754, %v1754
  %v1843 = vmul.f32 %v1755, %v1755
  %v1844 = vmul.f32 %v1756, %v1756
  %v1845 = vmul.f32 %v1757, %v1757
  %v1846 = vmul.f32 %v1758, %v1758
  %v1847 = vmul.f32 %v1759, %v1759
  %v1848 = vmul.f32 %v1760, %v1760
  %v1865 = vrot.slane %v1834, 7
  %v1866 = vsel %vm139, %v1865, %v1833
  %v1867 = vrot.slane %v1835, 6
  %v1868 = vsel %vm142, %v1867, %v1866
  %v1869 = vrot.slane %v1836, 5
  %v1870 = vsel %vm145, %v1869, %v1868
  %v1871 = vrot.slane %v1837, 4
  %v1872 = vsel %vm148, %v1871, %v1870
  %v1873 = vrot.slane %v1838, 3
  %v1874 = vsel %vm151, %v1873, %v1872
  %v1875 = vrot.slane %v1839, 2
  %v1876 = vsel %vm154, %v1875, %v1874
  %v1877 = vrot.slane %v1840, 1
  %v1878 = vsel %vm157, %v1877, %v1876
  %v1879 = vrot.slane %v1842, 7
  %v1880 = vsel %vm139, %v1879, %v1841
  %v1881 = vrot.slane %v1843, 6
  %v1882 = vsel %vm142, %v1881, %v1880
  %v1883 = vrot.slane %v1844, 5
  %v1884 = vsel %vm145, %v1883, %v1882
  %v1885 = vrot.slane %v1845, 4
  %v1886 = vsel %vm148, %v1885, %v1884
  %v1887 = vrot.slane %v1846, 3
  %v1888 = vsel %vm151, %v1887, %v1886
  %v1889 = vrot.slane %v1847, 2
  %v1890 = vsel %vm154, %v1889, %v1888
  %v1891 = vrot.slane %v1848, 1
  %v1892 = vsel %vm157, %v1891, %v1890
  %v1895 = vsel %vm175, %v1878, 0.0
  %v1896 = vsel %vm175, %v1892, 0.0
  %v1897 = vadd.f32 %v1895, %v1896
  %v1898 = vrot.slane %v1897, 4
  %v1899 = vadd.f32 %v1897, %v1898
  %v1900 = vrot.slane %v1899, 2
  %v1901 = vadd.f32 %v1899, %v1900
  %v1902 = vrot.slane %v1901, 1
  %v1903 = vadd.f32 %v1901, %v1902
  %v1904 = vadd.f32 %v1334, %v1903
  %v1905 = vld [vmem:[%s0 + $0x3] sm:$0x1]
  %v1906 = vld [vmem:[%s0 + $0xb] sm:$0x1]
  %v1907 = vld [vmem:[%s0 + $0x13] sm:$0x1]
  %v1908 = vld [vmem:[%s0 + $0x1b] sm:$0x1]
  %v1909 = vld [vmem:[%s0 + $0x23] sm:$0x1]
  %v1910 = vld [vmem:[%s0 + $0x2b] sm:$0x1]
  %v1911 = vld [vmem:[%s0 + $0x33] sm:$0x1]
  %v1912 = vld [vmem:[%s0 + $0x3b] sm:$0x1]
  %v1913 = vld [vmem:[%s0 + $0x43] sm:$0x1]
  %v1914 = vld [vmem:[%s0 + $0x4b] sm:$0x1]
  %v1915 = vld [vmem:[%s0 + $0x53] sm:$0x1]
  %v1916 = vld [vmem:[%s0 + $0x5b] sm:$0x1]
  %v1917 = vld [vmem:[%s0 + $0x63] sm:$0x1]
  %v1918 = vld [vmem:[%s0 + $0x6b] sm:$0x1]
  %v1919 = vld [vmem:[%s0 + $0x73] sm:$0x1]
  %v1920 = vld [vmem:[%s0 + $0x7b] sm:$0x1]
  %s1921 = scalar_lea.vmem %s1, 3
  %v1922 = vld [vmem:[%s1921] sm:$0x1]
  %v1923 = vadd.f32 %v1905, %v35
  %v1924 = vadd.f32 %v1906, %v76
  %v1925 = vadd.f32 %v1907, %v77
  %v1926 = vadd.f32 %v1908, %v78
  %v1927 = vadd.f32 %v1909, %v79
  %v1928 = vadd.f32 %v1910, %v80
  %v1929 = vadd.f32 %v1911, %v81
  %v1930 = vadd.f32 %v1912, %v82
  %v1931 = vadd.f32 %v1913, %v36
  %v1932 = vadd.f32 %v1914, %v83
  %v1933 = vadd.f32 %v1915, %v84
  %v1934 = vadd.f32 %v1916, %v85
  %v1935 = vadd.f32 %v1917, %v86
  %v1936 = vadd.f32 %v1918, %v87
  %v1937 = vadd.f32 %v1919, %v88
  %v1938 = vadd.f32 %v1920, %v89
  %v1955 = vrot.slane %v1924, 7
  %v1956 = vsel %vm139, %v1955, %v1923
  %v1957 = vrot.slane %v1925, 6
  %v1958 = vsel %vm142, %v1957, %v1956
  %v1959 = vrot.slane %v1926, 5
  %v1960 = vsel %vm145, %v1959, %v1958
  %v1961 = vrot.slane %v1927, 4
  %v1962 = vsel %vm148, %v1961, %v1960
  %v1963 = vrot.slane %v1928, 3
  %v1964 = vsel %vm151, %v1963, %v1962
  %v1965 = vrot.slane %v1929, 2
  %v1966 = vsel %vm154, %v1965, %v1964
  %v1967 = vrot.slane %v1930, 1
  %v1968 = vsel %vm157, %v1967, %v1966
  %v1969 = vrot.slane %v1932, 7
  %v1970 = vsel %vm139, %v1969, %v1931
  %v1971 = vrot.slane %v1933, 6
  %v1972 = vsel %vm142, %v1971, %v1970
  %v1973 = vrot.slane %v1934, 5
  %v1974 = vsel %vm145, %v1973, %v1972
  %v1975 = vrot.slane %v1935, 4
  %v1976 = vsel %vm148, %v1975, %v1974
  %v1977 = vrot.slane %v1936, 3
  %v1978 = vsel %vm151, %v1977, %v1976
  %v1979 = vrot.slane %v1937, 2
  %v1980 = vsel %vm154, %v1979, %v1978
  %v1981 = vrot.slane %v1938, 1
  %v1982 = vsel %vm157, %v1981, %v1980
  %v1985 = vsel %vm175, %v1968, 0.0
  %1986 = vadd.xlane.f32.xlu0 %v1985
  %v1987 = vpop.xlane.xlu0 %1986
  %v1988 = vsel %vm175, %v1982, 0.0
  %1989 = vadd.xlane.f32.xlu0 %v1988
  %v1990 = vpop.xlane.xlu0 %1989
  %v1991 = vsel %vm182, %v1922, 0.0
  %1992 = vadd.xlane.f32.xlu0 %v1991
  %v1993 = vpop.xlane.xlu0 %1992
  %v1994 = vmul.f32 %v1987, %v186
  %v1995 = vmul.f32 %v1990, %v186
  %v1996 = vmul.f32 %v1993, %v186
  %v1997 = vsub.f32 %v1968, %v1994
  %v1998 = vsub.f32 %v1982, %v1995
  %v1999 = vsub.f32 %v1922, %v1996
  %v2000 = vmul.f32 %v1997, %v1997
  %v2001 = vmul.f32 %v1998, %v1998
  %v2002 = vmul.f32 %v1999, %v1999
  %v2003 = vsel %vm175, %v2000, 0.0
  %2004 = vadd.xlane.f32.xlu0 %v2003
  %v2005 = vpop.xlane.xlu0 %2004
  %v2006 = vsel %vm175, %v2001, 0.0
  %2007 = vadd.xlane.f32.xlu0 %v2006
  %v2008 = vpop.xlane.xlu0 %2007
  %v2009 = vsel %vm182, %v2002, 0.0
  %2010 = vadd.xlane.f32.xlu0 %v2009
  %v2011 = vpop.xlane.xlu0 %2010
  %v2012 = vmul.f32 %v2005, %v186
  %v2013 = vmul.f32 %v2008, %v186
  %v2014 = vmul.f32 %v2011, %v186
  %v2015 = vadd.f32 %v2012, 1e-05
  %v2016 = vadd.f32 %v2013, 1e-05
  %v2017 = vadd.f32 %v2014, 1e-05
  %v2018 = vrsqrt.pop %v2015
  %v2019 = vrsqrt.pop %v2016
  %v2020 = vrsqrt.pop %v2017
  %v2021 = vmul.f32 %v1997, %v2018
  %v2022 = vmul.f32 %v1998, %v2019
  %v2023 = vmul.f32 %v1999, %v2020
  %v2024 = vmul.f32 %v2021, %v221
  %v2025 = vmul.f32 %v2022, %v221
  %v2026 = vmul.f32 %v2023, %v221
  %v2027 = vadd.f32 %v2024, %v230
  %v2028 = vadd.f32 %v2025, %v230
  %v2029 = vadd.f32 %v2026, %v230
  %v2030 = vpack.c.bf16 %v2028, %v2027
  %v2031 = vpack.c.bf16 %v2029, %v2029
  %v2033 = vsel %vm175, %v2030, 0
  %v2036 = vsel %vm175, %v2031, 0
  %2038 = vmatprep.subr.bf16.mxu0 %v273
  %2039 = vmatpush1.bf16.msra.mxu0 %v272
  %2040 = vmatprep.subr.bf16.mxu0 %v275
  %2041 = vmatpush1.bf16.msra.mxu0 %v274
  %2042 = vmatprep.subr.bf16.mxu0 %v277
  %2043 = vmatpush1.bf16.msra.mxu0 %v276
  %2044 = vmatprep.subr.bf16.mxu0 %v279
  %2045 = vmatpush1.bf16.msra.mxu0 %v278
  %2046 = vmatprep.subr.bf16.mxu0 0
  %2047 = vmatpush1.bf16.msra.mxu0 0
  %2048 = vmatprep.subr.bf16.mxu0 0
  %2049 = vmatpush1.bf16.msra.mxu0 0
  %2050 = vmatprep.subr.bf16.mxu0 0
  %2051 = vmatpush1.bf16.msra.mxu0 0
  %2052 = vmatprep.subr.bf16.mxu0 0
  %2053 = vmatpush1.bf16.msra.mxu0 0
  %2054 = vmatprep.subr.bf16.mxu0 0
  %2055 = vmatpush1.bf16.msra.mxu0 0
  %2056 = vmatprep.subr.bf16.mxu0 0
  %2057 = vmatpush1.bf16.msra.mxu0 0
  %2058 = vmatprep.subr.bf16.mxu0 0
  %2059 = vmatpush1.bf16.msra.mxu0 0
  %2060 = vmatprep.subr.bf16.mxu0 0
  %2061 = vmatpush1.bf16.msra.mxu0 0
  %2062 = vmatprep.subr.bf16.mxu0 0
  %2063 = vmatpush1.bf16.msra.mxu0 0
  %2064 = vmatprep.subr.bf16.mxu0 0
  %2065 = vmatpush1.bf16.msra.mxu0 0
  %2066 = vmatprep.subr.bf16.mxu0 0
  %2067 = vmatpush1.bf16.msra.mxu0 0
  %2068 = vmatprep.subr.bf16.mxu0 0
  %2069 = vmatpush1.bf16.msra.mxu0 0
  %2070 = vmatprep.mubr.bf16.mxu0 0
  %2071 = vmatmul.mubr.bf16.gmra.mrb[0].mxu0 %v2033
  %v2072 = vpop.f32.mrb[0].mxu0
  %v2073 = vadd.f32 %v241, %v2072
  %v2074 = vpop.f32.mrb[0].mxu0
  %v2075 = vadd.f32 %v245, %v2074
  %v2076 = vpop.f32.mrb[0].mxu0
  %v2077 = vadd.f32 %v241, %v2076
  %v2078 = vpop.f32.mrb[0].mxu0
  %v2079 = vadd.f32 %v245, %v2078
  %2080 = vmatprep.mubr.bf16.mxu0 0
  %2081 = vmatmul.mubr.bf16.gmra.mrb[0].mxu0 %v2036
  %v2082 = vpop.f32.mrb[0].mxu0
  %v2083 = vadd.f32 %v241, %v2082
  %v2084 = vpop.f32.mrb[0].mxu0
  %v2085 = vadd.f32 %v245, %v2084
  %v2086 = vpop.f32.mrb[0].mxu0
  %v2087 = vpop.f32.mrb[0].mxu0
  %2088 = vdwg.mxu0
  %v2089 = vmul.f32 %v2073, 0.125
  %v2090 = vmul.f32 %v2077, 0.125
  %v2091 = vpack.c.bf16 %v2090, %v2089
  %v2092 = vpack.c.bf16 %v2077, %v2073
  %v2093 = vpack.c.bf16 %v2083, %v2083
  %2096 = vrot.lane.b32.xlu0 %v2092, 64
  %v2097 = vpop.permute.xlu0 %2096
  %2098 = vrot.lane.b32.xlu0 %v2093, 64
  %v2099 = vpop.permute.xlu0 %2098
  %v2101 = vsel %vm175, %v2091, 0
  %v2104 = vsel %vm175, %v2097, 0
  %v2107 = vsel %vm175, %v2099, 0
  %2109 = vmatprep.subr.bf16.mxu0 0
  %2110 = vmatpush1.bf16.xpose.msra.mxu0 %v2104
  %2111 = vmatprep.subr.bf16.mxu0 0
  %2112 = vmatpush1.bf16.xpose.msra.mxu0 %v2107
  %2113 = vmatprep.subr.bf16.mxu0 0
  %2114 = vmatpush1.bf16.xpose.msra.mxu0 0
  %2115 = vmatprep.subr.bf16.mxu0 0
  %2116 = vmatpush1.bf16.xpose.msra.mxu0 0
  %2117 = vmatprep.subr.bf16.mxu0 0
  %2118 = vmatpush1.bf16.xpose.msra.mxu0 0
  %2119 = vmatprep.subr.bf16.mxu0 0
  %2120 = vmatpush1.bf16.xpose.msra.mxu0 0
  %2121 = vmatprep.subr.bf16.mxu0 0
  %2122 = vmatpush1.bf16.xpose.msra.mxu0 0
  %2123 = vmatprep.subr.bf16.mxu0 0
  %2124 = vmatpush1.bf16.xpose.msra.mxu0 0
  %2125 = vmatprep.subr.bf16.mxu0 0
  %2126 = vmatpush1.bf16.xpose.msra.mxu0 0
  %2127 = vmatprep.subr.bf16.mxu0 0
  %2128 = vmatpush1.bf16.xpose.msra.mxu0 0
  %2129 = vmatprep.subr.bf16.mxu0 0
  %2130 = vmatpush1.bf16.xpose.msra.mxu0 0
  %2131 = vmatprep.subr.bf16.mxu0 0
  %2132 = vmatpush1.bf16.xpose.msra.mxu0 0
  %2133 = vmatprep.subr.bf16.mxu0 0
  %2134 = vmatpush1.bf16.xpose.msra.mxu0 0
  %2135 = vmatprep.subr.bf16.mxu0 0
  %2136 = vmatpush1.bf16.xpose.msra.mxu0 0
  %2137 = vmatprep.subr.bf16.mxu0 0
  %2138 = vmatpush1.bf16.xpose.msra.mxu0 0
  %2139 = vmatprep.subr.bf16.mxu0 0
  %2140 = vmatpush1.bf16.xpose.msra.mxu0 0
  %2141 = vmatprep.mubr.bf16.mxu0 0
  %2142 = vmatmul.mubr.bf16.gmra.mrb[0].mxu0 %v2101
  %v2143 = vpop.f32.mrb[0].mxu0
  %v2144 = vadd.f32 0.0, %v2143
  %v2145 = vpop.f32.mrb[0].mxu0
  %v2146 = vpop.f32.mrb[0].mxu0
  %v2147 = vadd.f32 0.0, %v2146
  %v2148 = vpop.f32.mrb[0].mxu0
  %2149 = vdwg.mxu0
  %v2150 = vsel %vm406, %v2144, -inf
  %2151 = vmax.xlane.f32.xlu0 %v2150
  %v2152 = vpop.xlane.xlu0 %2151
  %v2153 = vsel %vm406, %v2147, -inf
  %2154 = vmax.xlane.f32.xlu0 %v2153
  %v2155 = vpop.xlane.xlu0 %2154
  %v2156 = vsub.f32 %v2144, %v2152
  %v2157 = vsub.f32 %v2147, %v2155
  %v2158 = vmul.f32 %v2156, 1.442695
  %v2159 = vpow.pop %v2158
  %v2160 = vmul.f32 %v2157, 1.442695
  %v2161 = vpow.pop %v2160
  %v2162 = vsel %vm406, %v2159, 0.0
  %2163 = vadd.xlane.f32.xlu0 %v2162
  %v2164 = vpop.xlane.xlu0 %2163
  %v2165 = vsel %vm406, %v2161, 0.0
  %2166 = vadd.xlane.f32.xlu0 %v2165
  %v2167 = vpop.xlane.xlu0 %2166
  %v2168 = vpack.c.bf16 %v2161, %v2159
  %v2169 = vpack.c.bf16 %v2079, %v2075
  %v2170 = vpack.c.bf16 %v2085, %v2085
  %v2172 = vsel %vm406, %v2168, 0
  %v2175 = vand.u32 %v2170, %v433
  %2177 = vmatprep.subr.bf16.mxu0 0
  %2178 = vmatpush1.bf16.msra.mxu0 %v2169
  %2179 = vmatprep.subr.bf16.mxu0 0
  %2180 = vmatpush1.bf16.msra.mxu0 %v2175
  %2181 = vmatprep.subr.bf16.mxu0 0
  %2182 = vmatpush1.bf16.msra.mxu0 0
  %2183 = vmatprep.subr.bf16.mxu0 0
  %2184 = vmatpush1.bf16.msra.mxu0 0
  %2185 = vmatprep.subr.bf16.mxu0 0
  %2186 = vmatpush1.bf16.msra.mxu0 0
  %2187 = vmatprep.subr.bf16.mxu0 0
  %2188 = vmatpush1.bf16.msra.mxu0 0
  %2189 = vmatprep.subr.bf16.mxu0 0
  %2190 = vmatpush1.bf16.msra.mxu0 0
  %2191 = vmatprep.subr.bf16.mxu0 0
  %2192 = vmatpush1.bf16.msra.mxu0 0
  %2193 = vmatprep.subr.bf16.mxu0 0
  %2194 = vmatpush1.bf16.msra.mxu0 0
  %2195 = vmatprep.subr.bf16.mxu0 0
  %2196 = vmatpush1.bf16.msra.mxu0 0
  %2197 = vmatprep.subr.bf16.mxu0 0
  %2198 = vmatpush1.bf16.msra.mxu0 0
  %2199 = vmatprep.subr.bf16.mxu0 0
  %2200 = vmatpush1.bf16.msra.mxu0 0
  %2201 = vmatprep.subr.bf16.mxu0 0
  %2202 = vmatpush1.bf16.msra.mxu0 0
  %2203 = vmatprep.subr.bf16.mxu0 0
  %2204 = vmatpush1.bf16.msra.mxu0 0
  %2205 = vmatprep.subr.bf16.mxu0 0
  %2206 = vmatpush1.bf16.msra.mxu0 0
  %2207 = vmatprep.subr.bf16.mxu0 0
  %2208 = vmatpush1.bf16.msra.mxu0 0
  %2209 = vmatprep.mubr.bf16.mxu0 0
  %2210 = vmatmul.mubr.bf16.gmra.mrb[0].mxu0 %v2172
  %v2211 = vpop.f32.mrb[0].mxu0
  %v2212 = vadd.f32 0.0, %v2211
  %v2213 = vpop.f32.mrb[0].mxu0
  %v2214 = vpop.f32.mrb[0].mxu0
  %v2215 = vadd.f32 0.0, %v2214
  %v2216 = vpop.f32.mrb[0].mxu0
  %2217 = vdwg.mxu0
  %v2218 = vrcp.pop %v2164
  %v2219 = vmul.f32 %v2212, %v2218
  %v2220 = vrcp.pop %v2167
  %v2221 = vmul.f32 %v2215, %v2220
  %v2222 = vpack.c.bf16 %v2221, %v2219
  %v2224 = vsel %vm175, %v2222, 0
  %2226 = vmatprep.subr.bf16.mxu0 0
  %2227 = vmatpush1.bf16.msra.mxu0 %v499
  %2228 = vmatprep.subr.bf16.mxu0 0
  %2229 = vmatpush1.bf16.msra.mxu0 %v500
  %2230 = vmatprep.subr.bf16.mxu0 0
  %2231 = vmatpush1.bf16.msra.mxu0 %v501
  %2232 = vmatprep.subr.bf16.mxu0 0
  %2233 = vmatpush1.bf16.msra.mxu0 %v502
  %2234 = vmatprep.subr.bf16.mxu0 0
  %2235 = vmatpush1.bf16.msra.mxu0 0
  %2236 = vmatprep.subr.bf16.mxu0 0
  %2237 = vmatpush1.bf16.msra.mxu0 0
  %2238 = vmatprep.subr.bf16.mxu0 0
  %2239 = vmatpush1.bf16.msra.mxu0 0
  %2240 = vmatprep.subr.bf16.mxu0 0
  %2241 = vmatpush1.bf16.msra.mxu0 0
  %2242 = vmatprep.subr.bf16.mxu0 0
  %2243 = vmatpush1.bf16.msra.mxu0 0
  %2244 = vmatprep.subr.bf16.mxu0 0
  %2245 = vmatpush1.bf16.msra.mxu0 0
  %2246 = vmatprep.subr.bf16.mxu0 0
  %2247 = vmatpush1.bf16.msra.mxu0 0
  %2248 = vmatprep.subr.bf16.mxu0 0
  %2249 = vmatpush1.bf16.msra.mxu0 0
  %2250 = vmatprep.subr.bf16.mxu0 0
  %2251 = vmatpush1.bf16.msra.mxu0 0
  %2252 = vmatprep.subr.bf16.mxu0 0
  %2253 = vmatpush1.bf16.msra.mxu0 0
  %2254 = vmatprep.subr.bf16.mxu0 0
  %2255 = vmatpush1.bf16.msra.mxu0 0
  %2256 = vmatprep.subr.bf16.mxu0 0
  %2257 = vmatpush1.bf16.msra.mxu0 0
  %2258 = vmatprep.mubr.bf16.mxu0 0
  %2259 = vmatmul.mubr.bf16.gmra.mrb[0].mxu0 %v2224
  %v2260 = vpop.f32.mrb[0].mxu0
  %v2261 = vadd.f32 0.0, %v2260
  %v2262 = vpop.f32.mrb[0].mxu0
  %v2263 = vpop.f32.mrb[0].mxu0
  %v2264 = vadd.f32 0.0, %v2263
  %v2265 = vpop.f32.mrb[0].mxu0
  %2266 = vdwg.mxu0
  %v2269 = vrot.slane %v2261, 1
  %v2270 = vrot.slane %v2261, 2
  %v2271 = vrot.slane %v2261, 3
  %v2272 = vrot.slane %v2261, 4
  %v2273 = vrot.slane %v2261, 5
  %v2274 = vrot.slane %v2261, 6
  %v2275 = vrot.slane %v2261, 7
  %v2276 = vrot.slane %v2264, 1
  %v2277 = vrot.slane %v2264, 2
  %v2278 = vrot.slane %v2264, 3
  %v2279 = vrot.slane %v2264, 4
  %v2280 = vrot.slane %v2264, 5
  %v2281 = vrot.slane %v2264, 6
  %v2282 = vrot.slane %v2264, 7
  %v2299 = vadd.f32 %v1905, %v2261
  %v2300 = vadd.f32 %v1906, %v2269
  %v2301 = vadd.f32 %v1907, %v2270
  %v2302 = vadd.f32 %v1908, %v2271
  %v2303 = vadd.f32 %v1909, %v2272
  %v2304 = vadd.f32 %v1910, %v2273
  %v2305 = vadd.f32 %v1911, %v2274
  %v2306 = vadd.f32 %v1912, %v2275
  %v2307 = vadd.f32 %v1913, %v2264
  %v2308 = vadd.f32 %v1914, %v2276
  %v2309 = vadd.f32 %v1915, %v2277
  %v2310 = vadd.f32 %v1916, %v2278
  %v2311 = vadd.f32 %v1917, %v2279
  %v2312 = vadd.f32 %v1918, %v2280
  %v2313 = vadd.f32 %v1919, %v2281
  %v2314 = vadd.f32 %v1920, %v2282
  %v2315 = vadd.f32 %v2299, %v603
  %v2316 = vadd.f32 %v2300, %v603
  %v2317 = vadd.f32 %v2301, %v603
  %v2318 = vadd.f32 %v2302, %v603
  %v2319 = vadd.f32 %v2303, %v603
  %v2320 = vadd.f32 %v2304, %v603
  %v2321 = vadd.f32 %v2305, %v603
  %v2322 = vadd.f32 %v2306, %v603
  %v2323 = vadd.f32 %v2307, %v603
  %v2324 = vadd.f32 %v2308, %v603
  %v2325 = vadd.f32 %v2309, %v603
  %v2326 = vadd.f32 %v2310, %v603
  %v2327 = vadd.f32 %v2311, %v603
  %v2328 = vadd.f32 %v2312, %v603
  %v2329 = vadd.f32 %v2313, %v603
  %v2330 = vadd.f32 %v2314, %v603
  %2331 = vst.msk [vmem:[%s9 + $0x3] sm:$0x1] %vm182, %v2315
  %2332 = vst.msk [vmem:[%s9 + $0xb] sm:$0x1] %vm182, %v2316
  %2333 = vst.msk [vmem:[%s9 + $0x13] sm:$0x1] %vm182, %v2317
  %2334 = vst.msk [vmem:[%s9 + $0x1b] sm:$0x1] %vm182, %v2318
  %2335 = vst.msk [vmem:[%s9 + $0x23] sm:$0x1] %vm182, %v2319
  %2336 = vst.msk [vmem:[%s9 + $0x2b] sm:$0x1] %vm182, %v2320
  %2337 = vst.msk [vmem:[%s9 + $0x33] sm:$0x1] %vm182, %v2321
  %2338 = vst.msk [vmem:[%s9 + $0x3b] sm:$0x1] %vm182, %v2322
  %2339 = vst.msk [vmem:[%s9 + $0x43] sm:$0x1] %vm182, %v2323
  %2340 = vst.msk [vmem:[%s9 + $0x4b] sm:$0x1] %vm182, %v2324
  %2341 = vst.msk [vmem:[%s9 + $0x53] sm:$0x1] %vm182, %v2325
  %2342 = vst.msk [vmem:[%s9 + $0x5b] sm:$0x1] %vm182, %v2326
  %2343 = vst.msk [vmem:[%s9 + $0x63] sm:$0x1] %vm182, %v2327
  %2344 = vst.msk [vmem:[%s9 + $0x6b] sm:$0x1] %vm182, %v2328
  %2345 = vst.msk [vmem:[%s9 + $0x73] sm:$0x1] %vm182, %v2329
  %2346 = vst.msk [vmem:[%s9 + $0x7b] sm:$0x1] %vm182, %v2330
  %v2363 = vrot.slane %v2316, 7
  %v2364 = vsel %vm139, %v2363, %v2315
  %v2365 = vrot.slane %v2317, 6
  %v2366 = vsel %vm142, %v2365, %v2364
  %v2367 = vrot.slane %v2318, 5
  %v2368 = vsel %vm145, %v2367, %v2366
  %v2369 = vrot.slane %v2319, 4
  %v2370 = vsel %vm148, %v2369, %v2368
  %v2371 = vrot.slane %v2320, 3
  %v2372 = vsel %vm151, %v2371, %v2370
  %v2373 = vrot.slane %v2321, 2
  %v2374 = vsel %vm154, %v2373, %v2372
  %v2375 = vrot.slane %v2322, 1
  %v2376 = vsel %vm157, %v2375, %v2374
  %v2377 = vrot.slane %v2324, 7
  %v2378 = vsel %vm139, %v2377, %v2323
  %v2379 = vrot.slane %v2325, 6
  %v2380 = vsel %vm142, %v2379, %v2378
  %v2381 = vrot.slane %v2326, 5
  %v2382 = vsel %vm145, %v2381, %v2380
  %v2383 = vrot.slane %v2327, 4
  %v2384 = vsel %vm148, %v2383, %v2382
  %v2385 = vrot.slane %v2328, 3
  %v2386 = vsel %vm151, %v2385, %v2384
  %v2387 = vrot.slane %v2329, 2
  %v2388 = vsel %vm154, %v2387, %v2386
  %v2389 = vrot.slane %v2330, 1
  %v2390 = vsel %vm157, %v2389, %v2388
  %v2393 = vsel %vm175, %v2376, 0.0
  %v2394 = vsel %vm175, %v2390, 0.0
  %v2395 = vadd.f32 %v2393, %v2394
  %v2396 = vrot.slane %v2395, 4
  %v2397 = vadd.f32 %v2395, %v2396
  %v2398 = vrot.slane %v2397, 2
  %v2399 = vadd.f32 %v2397, %v2398
  %v2400 = vrot.slane %v2399, 1
  %v2401 = vadd.f32 %v2399, %v2400
  %v2402 = vadd.f32 %v1832, %v2401
  %v2403 = vmul.f32 %v2315, %v2315
  %v2404 = vmul.f32 %v2316, %v2316
  %v2405 = vmul.f32 %v2317, %v2317
  %v2406 = vmul.f32 %v2318, %v2318
  %v2407 = vmul.f32 %v2319, %v2319
  %v2408 = vmul.f32 %v2320, %v2320
  %v2409 = vmul.f32 %v2321, %v2321
  %v2410 = vmul.f32 %v2322, %v2322
  %v2411 = vmul.f32 %v2323, %v2323
  %v2412 = vmul.f32 %v2324, %v2324
  %v2413 = vmul.f32 %v2325, %v2325
  %v2414 = vmul.f32 %v2326, %v2326
  %v2415 = vmul.f32 %v2327, %v2327
  %v2416 = vmul.f32 %v2328, %v2328
  %v2417 = vmul.f32 %v2329, %v2329
  %v2418 = vmul.f32 %v2330, %v2330
  %v2435 = vrot.slane %v2404, 7
  %v2436 = vsel %vm139, %v2435, %v2403
  %v2437 = vrot.slane %v2405, 6
  %v2438 = vsel %vm142, %v2437, %v2436
  %v2439 = vrot.slane %v2406, 5
  %v2440 = vsel %vm145, %v2439, %v2438
  %v2441 = vrot.slane %v2407, 4
  %v2442 = vsel %vm148, %v2441, %v2440
  %v2443 = vrot.slane %v2408, 3
  %v2444 = vsel %vm151, %v2443, %v2442
  %v2445 = vrot.slane %v2409, 2
  %v2446 = vsel %vm154, %v2445, %v2444
  %v2447 = vrot.slane %v2410, 1
  %v2448 = vsel %vm157, %v2447, %v2446
  %v2449 = vrot.slane %v2412, 7
  %v2450 = vsel %vm139, %v2449, %v2411
  %v2451 = vrot.slane %v2413, 6
  %v2452 = vsel %vm142, %v2451, %v2450
  %v2453 = vrot.slane %v2414, 5
  %v2454 = vsel %vm145, %v2453, %v2452
  %v2455 = vrot.slane %v2415, 4
  %v2456 = vsel %vm148, %v2455, %v2454
  %v2457 = vrot.slane %v2416, 3
  %v2458 = vsel %vm151, %v2457, %v2456
  %v2459 = vrot.slane %v2417, 2
  %v2460 = vsel %vm154, %v2459, %v2458
  %v2461 = vrot.slane %v2418, 1
  %v2462 = vsel %vm157, %v2461, %v2460
  %v2465 = vsel %vm175, %v2448, 0.0
  %v2466 = vsel %vm175, %v2462, 0.0
  %v2467 = vadd.f32 %v2465, %v2466
  %v2468 = vrot.slane %v2467, 4
  %v2469 = vadd.f32 %v2467, %v2468
  %v2470 = vrot.slane %v2469, 2
  %v2471 = vadd.f32 %v2469, %v2470
  %v2472 = vrot.slane %v2471, 1
  %v2473 = vadd.f32 %v2471, %v2472
  %v2474 = vadd.f32 %v1904, %v2473
  %v2475 = vld [vmem:[%s0 + $0x4] sm:$0x1]
  %v2476 = vld [vmem:[%s0 + $0xc] sm:$0x1]
  %v2477 = vld [vmem:[%s0 + $0x14] sm:$0x1]
  %v2478 = vld [vmem:[%s0 + $0x1c] sm:$0x1]
  %v2479 = vld [vmem:[%s0 + $0x24] sm:$0x1]
  %v2480 = vld [vmem:[%s0 + $0x2c] sm:$0x1]
  %v2481 = vld [vmem:[%s0 + $0x34] sm:$0x1]
  %v2482 = vld [vmem:[%s0 + $0x3c] sm:$0x1]
  %v2483 = vld [vmem:[%s0 + $0x44] sm:$0x1]
  %v2484 = vld [vmem:[%s0 + $0x4c] sm:$0x1]
  %v2485 = vld [vmem:[%s0 + $0x54] sm:$0x1]
  %v2486 = vld [vmem:[%s0 + $0x5c] sm:$0x1]
  %v2487 = vld [vmem:[%s0 + $0x64] sm:$0x1]
  %v2488 = vld [vmem:[%s0 + $0x6c] sm:$0x1]
  %v2489 = vld [vmem:[%s0 + $0x74] sm:$0x1]
  %v2490 = vld [vmem:[%s0 + $0x7c] sm:$0x1]
  %s2491 = scalar_lea.vmem %s1, 4
  %v2492 = vld [vmem:[%s2491] sm:$0x1]
  %v2493 = vadd.f32 %v2475, %v35
  %v2494 = vadd.f32 %v2476, %v76
  %v2495 = vadd.f32 %v2477, %v77
  %v2496 = vadd.f32 %v2478, %v78
  %v2497 = vadd.f32 %v2479, %v79
  %v2498 = vadd.f32 %v2480, %v80
  %v2499 = vadd.f32 %v2481, %v81
  %v2500 = vadd.f32 %v2482, %v82
  %v2501 = vadd.f32 %v2483, %v36
  %v2502 = vadd.f32 %v2484, %v83
  %v2503 = vadd.f32 %v2485, %v84
  %v2504 = vadd.f32 %v2486, %v85
  %v2505 = vadd.f32 %v2487, %v86
  %v2506 = vadd.f32 %v2488, %v87
  %v2507 = vadd.f32 %v2489, %v88
  %v2508 = vadd.f32 %v2490, %v89
  %v2525 = vrot.slane %v2494, 7
  %v2526 = vsel %vm139, %v2525, %v2493
  %v2527 = vrot.slane %v2495, 6
  %v2528 = vsel %vm142, %v2527, %v2526
  %v2529 = vrot.slane %v2496, 5
  %v2530 = vsel %vm145, %v2529, %v2528
  %v2531 = vrot.slane %v2497, 4
  %v2532 = vsel %vm148, %v2531, %v2530
  %v2533 = vrot.slane %v2498, 3
  %v2534 = vsel %vm151, %v2533, %v2532
  %v2535 = vrot.slane %v2499, 2
  %v2536 = vsel %vm154, %v2535, %v2534
  %v2537 = vrot.slane %v2500, 1
  %v2538 = vsel %vm157, %v2537, %v2536
  %v2539 = vrot.slane %v2502, 7
  %v2540 = vsel %vm139, %v2539, %v2501
  %v2541 = vrot.slane %v2503, 6
  %v2542 = vsel %vm142, %v2541, %v2540
  %v2543 = vrot.slane %v2504, 5
  %v2544 = vsel %vm145, %v2543, %v2542
  %v2545 = vrot.slane %v2505, 4
  %v2546 = vsel %vm148, %v2545, %v2544
  %v2547 = vrot.slane %v2506, 3
  %v2548 = vsel %vm151, %v2547, %v2546
  %v2549 = vrot.slane %v2507, 2
  %v2550 = vsel %vm154, %v2549, %v2548
  %v2551 = vrot.slane %v2508, 1
  %v2552 = vsel %vm157, %v2551, %v2550
  %v2555 = vsel %vm175, %v2538, 0.0
  %2556 = vadd.xlane.f32.xlu0 %v2555
  %v2557 = vpop.xlane.xlu0 %2556
  %v2558 = vsel %vm175, %v2552, 0.0
  %2559 = vadd.xlane.f32.xlu0 %v2558
  %v2560 = vpop.xlane.xlu0 %2559
  %v2561 = vsel %vm182, %v2492, 0.0
  %2562 = vadd.xlane.f32.xlu0 %v2561
  %v2563 = vpop.xlane.xlu0 %2562
  %v2564 = vmul.f32 %v2557, %v186
  %v2565 = vmul.f32 %v2560, %v186
  %v2566 = vmul.f32 %v2563, %v186
  %v2567 = vsub.f32 %v2538, %v2564
  %v2568 = vsub.f32 %v2552, %v2565
  %v2569 = vsub.f32 %v2492, %v2566
  %v2570 = vmul.f32 %v2567, %v2567
  %v2571 = vmul.f32 %v2568, %v2568
  %v2572 = vmul.f32 %v2569, %v2569
  %v2573 = vsel %vm175, %v2570, 0.0
  %2574 = vadd.xlane.f32.xlu0 %v2573
  %v2575 = vpop.xlane.xlu0 %2574
  %v2576 = vsel %vm175, %v2571, 0.0
  %2577 = vadd.xlane.f32.xlu0 %v2576
  %v2578 = vpop.xlane.xlu0 %2577
  %v2579 = vsel %vm182, %v2572, 0.0
  %2580 = vadd.xlane.f32.xlu0 %v2579
  %v2581 = vpop.xlane.xlu0 %2580
  %v2582 = vmul.f32 %v2575, %v186
  %v2583 = vmul.f32 %v2578, %v186
  %v2584 = vmul.f32 %v2581, %v186
  %v2585 = vadd.f32 %v2582, 1e-05
  %v2586 = vadd.f32 %v2583, 1e-05
  %v2587 = vadd.f32 %v2584, 1e-05
  %v2588 = vrsqrt.pop %v2585
  %v2589 = vrsqrt.pop %v2586
  %v2590 = vrsqrt.pop %v2587
  %v2591 = vmul.f32 %v2567, %v2588
  %v2592 = vmul.f32 %v2568, %v2589
  %v2593 = vmul.f32 %v2569, %v2590
  %v2594 = vmul.f32 %v2591, %v221
  %v2595 = vmul.f32 %v2592, %v221
  %v2596 = vmul.f32 %v2593, %v221
  %v2597 = vadd.f32 %v2594, %v230
  %v2598 = vadd.f32 %v2595, %v230
  %v2599 = vadd.f32 %v2596, %v230
  %v2600 = vpack.c.bf16 %v2598, %v2597
  %v2601 = vpack.c.bf16 %v2599, %v2599
  %v2603 = vsel %vm175, %v2600, 0
  %v2606 = vsel %vm175, %v2601, 0
  %2608 = vmatprep.subr.bf16.mxu0 %v273
  %2609 = vmatpush1.bf16.msra.mxu0 %v272
  %2610 = vmatprep.subr.bf16.mxu0 %v275
  %2611 = vmatpush1.bf16.msra.mxu0 %v274
  %2612 = vmatprep.subr.bf16.mxu0 %v277
  %2613 = vmatpush1.bf16.msra.mxu0 %v276
  %2614 = vmatprep.subr.bf16.mxu0 %v279
  %2615 = vmatpush1.bf16.msra.mxu0 %v278
  %2616 = vmatprep.subr.bf16.mxu0 0
  %2617 = vmatpush1.bf16.msra.mxu0 0
  %2618 = vmatprep.subr.bf16.mxu0 0
  %2619 = vmatpush1.bf16.msra.mxu0 0
  %2620 = vmatprep.subr.bf16.mxu0 0
  %2621 = vmatpush1.bf16.msra.mxu0 0
  %2622 = vmatprep.subr.bf16.mxu0 0
  %2623 = vmatpush1.bf16.msra.mxu0 0
  %2624 = vmatprep.subr.bf16.mxu0 0
  %2625 = vmatpush1.bf16.msra.mxu0 0
  %2626 = vmatprep.subr.bf16.mxu0 0
  %2627 = vmatpush1.bf16.msra.mxu0 0
  %2628 = vmatprep.subr.bf16.mxu0 0
  %2629 = vmatpush1.bf16.msra.mxu0 0
  %2630 = vmatprep.subr.bf16.mxu0 0
  %2631 = vmatpush1.bf16.msra.mxu0 0
  %2632 = vmatprep.subr.bf16.mxu0 0
  %2633 = vmatpush1.bf16.msra.mxu0 0
  %2634 = vmatprep.subr.bf16.mxu0 0
  %2635 = vmatpush1.bf16.msra.mxu0 0
  %2636 = vmatprep.subr.bf16.mxu0 0
  %2637 = vmatpush1.bf16.msra.mxu0 0
  %2638 = vmatprep.subr.bf16.mxu0 0
  %2639 = vmatpush1.bf16.msra.mxu0 0
  %2640 = vmatprep.mubr.bf16.mxu0 0
  %2641 = vmatmul.mubr.bf16.gmra.mrb[0].mxu0 %v2603
  %v2642 = vpop.f32.mrb[0].mxu0
  %v2643 = vadd.f32 %v241, %v2642
  %v2644 = vpop.f32.mrb[0].mxu0
  %v2645 = vadd.f32 %v245, %v2644
  %v2646 = vpop.f32.mrb[0].mxu0
  %v2647 = vadd.f32 %v241, %v2646
  %v2648 = vpop.f32.mrb[0].mxu0
  %v2649 = vadd.f32 %v245, %v2648
  %2650 = vmatprep.mubr.bf16.mxu0 0
  %2651 = vmatmul.mubr.bf16.gmra.mrb[0].mxu0 %v2606
  %v2652 = vpop.f32.mrb[0].mxu0
  %v2653 = vadd.f32 %v241, %v2652
  %v2654 = vpop.f32.mrb[0].mxu0
  %v2655 = vadd.f32 %v245, %v2654
  %v2656 = vpop.f32.mrb[0].mxu0
  %v2657 = vpop.f32.mrb[0].mxu0
  %2658 = vdwg.mxu0
  %v2659 = vmul.f32 %v2643, 0.125
  %v2660 = vmul.f32 %v2647, 0.125
  %v2661 = vpack.c.bf16 %v2660, %v2659
  %v2662 = vpack.c.bf16 %v2647, %v2643
  %v2663 = vpack.c.bf16 %v2653, %v2653
  %2666 = vrot.lane.b32.xlu0 %v2662, 64
  %v2667 = vpop.permute.xlu0 %2666
  %2668 = vrot.lane.b32.xlu0 %v2663, 64
  %v2669 = vpop.permute.xlu0 %2668
  %v2671 = vsel %vm175, %v2661, 0
  %v2674 = vsel %vm175, %v2667, 0
  %v2677 = vsel %vm175, %v2669, 0
  %2679 = vmatprep.subr.bf16.mxu0 0
  %2680 = vmatpush1.bf16.xpose.msra.mxu0 %v2674
  %2681 = vmatprep.subr.bf16.mxu0 0
  %2682 = vmatpush1.bf16.xpose.msra.mxu0 %v2677
  %2683 = vmatprep.subr.bf16.mxu0 0
  %2684 = vmatpush1.bf16.xpose.msra.mxu0 0
  %2685 = vmatprep.subr.bf16.mxu0 0
  %2686 = vmatpush1.bf16.xpose.msra.mxu0 0
  %2687 = vmatprep.subr.bf16.mxu0 0
  %2688 = vmatpush1.bf16.xpose.msra.mxu0 0
  %2689 = vmatprep.subr.bf16.mxu0 0
  %2690 = vmatpush1.bf16.xpose.msra.mxu0 0
  %2691 = vmatprep.subr.bf16.mxu0 0
  %2692 = vmatpush1.bf16.xpose.msra.mxu0 0
  %2693 = vmatprep.subr.bf16.mxu0 0
  %2694 = vmatpush1.bf16.xpose.msra.mxu0 0
  %2695 = vmatprep.subr.bf16.mxu0 0
  %2696 = vmatpush1.bf16.xpose.msra.mxu0 0
  %2697 = vmatprep.subr.bf16.mxu0 0
  %2698 = vmatpush1.bf16.xpose.msra.mxu0 0
  %2699 = vmatprep.subr.bf16.mxu0 0
  %2700 = vmatpush1.bf16.xpose.msra.mxu0 0
  %2701 = vmatprep.subr.bf16.mxu0 0
  %2702 = vmatpush1.bf16.xpose.msra.mxu0 0
  %2703 = vmatprep.subr.bf16.mxu0 0
  %2704 = vmatpush1.bf16.xpose.msra.mxu0 0
  %2705 = vmatprep.subr.bf16.mxu0 0
  %2706 = vmatpush1.bf16.xpose.msra.mxu0 0
  %2707 = vmatprep.subr.bf16.mxu0 0
  %2708 = vmatpush1.bf16.xpose.msra.mxu0 0
  %2709 = vmatprep.subr.bf16.mxu0 0
  %2710 = vmatpush1.bf16.xpose.msra.mxu0 0
  %2711 = vmatprep.mubr.bf16.mxu0 0
  %2712 = vmatmul.mubr.bf16.gmra.mrb[0].mxu0 %v2671
  %v2713 = vpop.f32.mrb[0].mxu0
  %v2714 = vadd.f32 0.0, %v2713
  %v2715 = vpop.f32.mrb[0].mxu0
  %v2716 = vpop.f32.mrb[0].mxu0
  %v2717 = vadd.f32 0.0, %v2716
  %v2718 = vpop.f32.mrb[0].mxu0
  %2719 = vdwg.mxu0
  %v2720 = vsel %vm406, %v2714, -inf
  %2721 = vmax.xlane.f32.xlu0 %v2720
  %v2722 = vpop.xlane.xlu0 %2721
  %v2723 = vsel %vm406, %v2717, -inf
  %2724 = vmax.xlane.f32.xlu0 %v2723
  %v2725 = vpop.xlane.xlu0 %2724
  %v2726 = vsub.f32 %v2714, %v2722
  %v2727 = vsub.f32 %v2717, %v2725
  %v2728 = vmul.f32 %v2726, 1.442695
  %v2729 = vpow.pop %v2728
  %v2730 = vmul.f32 %v2727, 1.442695
  %v2731 = vpow.pop %v2730
  %v2732 = vsel %vm406, %v2729, 0.0
  %2733 = vadd.xlane.f32.xlu0 %v2732
  %v2734 = vpop.xlane.xlu0 %2733
  %v2735 = vsel %vm406, %v2731, 0.0
  %2736 = vadd.xlane.f32.xlu0 %v2735
  %v2737 = vpop.xlane.xlu0 %2736
  %v2738 = vpack.c.bf16 %v2731, %v2729
  %v2739 = vpack.c.bf16 %v2649, %v2645
  %v2740 = vpack.c.bf16 %v2655, %v2655
  %v2742 = vsel %vm406, %v2738, 0
  %v2745 = vand.u32 %v2740, %v433
  %2747 = vmatprep.subr.bf16.mxu0 0
  %2748 = vmatpush1.bf16.msra.mxu0 %v2739
  %2749 = vmatprep.subr.bf16.mxu0 0
  %2750 = vmatpush1.bf16.msra.mxu0 %v2745
  %2751 = vmatprep.subr.bf16.mxu0 0
  %2752 = vmatpush1.bf16.msra.mxu0 0
  %2753 = vmatprep.subr.bf16.mxu0 0
  %2754 = vmatpush1.bf16.msra.mxu0 0
  %2755 = vmatprep.subr.bf16.mxu0 0
  %2756 = vmatpush1.bf16.msra.mxu0 0
  %2757 = vmatprep.subr.bf16.mxu0 0
  %2758 = vmatpush1.bf16.msra.mxu0 0
  %2759 = vmatprep.subr.bf16.mxu0 0
  %2760 = vmatpush1.bf16.msra.mxu0 0
  %2761 = vmatprep.subr.bf16.mxu0 0
  %2762 = vmatpush1.bf16.msra.mxu0 0
  %2763 = vmatprep.subr.bf16.mxu0 0
  %2764 = vmatpush1.bf16.msra.mxu0 0
  %2765 = vmatprep.subr.bf16.mxu0 0
  %2766 = vmatpush1.bf16.msra.mxu0 0
  %2767 = vmatprep.subr.bf16.mxu0 0
  %2768 = vmatpush1.bf16.msra.mxu0 0
  %2769 = vmatprep.subr.bf16.mxu0 0
  %2770 = vmatpush1.bf16.msra.mxu0 0
  %2771 = vmatprep.subr.bf16.mxu0 0
  %2772 = vmatpush1.bf16.msra.mxu0 0
  %2773 = vmatprep.subr.bf16.mxu0 0
  %2774 = vmatpush1.bf16.msra.mxu0 0
  %2775 = vmatprep.subr.bf16.mxu0 0
  %2776 = vmatpush1.bf16.msra.mxu0 0
  %2777 = vmatprep.subr.bf16.mxu0 0
  %2778 = vmatpush1.bf16.msra.mxu0 0
  %2779 = vmatprep.mubr.bf16.mxu0 0
  %2780 = vmatmul.mubr.bf16.gmra.mrb[0].mxu0 %v2742
  %v2781 = vpop.f32.mrb[0].mxu0
  %v2782 = vadd.f32 0.0, %v2781
  %v2783 = vpop.f32.mrb[0].mxu0
  %v2784 = vpop.f32.mrb[0].mxu0
  %v2785 = vadd.f32 0.0, %v2784
  %v2786 = vpop.f32.mrb[0].mxu0
  %2787 = vdwg.mxu0
  %v2788 = vrcp.pop %v2734
  %v2789 = vmul.f32 %v2782, %v2788
  %v2790 = vrcp.pop %v2737
  %v2791 = vmul.f32 %v2785, %v2790
  %v2792 = vpack.c.bf16 %v2791, %v2789
  %v2794 = vsel %vm175, %v2792, 0
  %2796 = vmatprep.subr.bf16.mxu0 0
  %2797 = vmatpush1.bf16.msra.mxu0 %v499
  %2798 = vmatprep.subr.bf16.mxu0 0
  %2799 = vmatpush1.bf16.msra.mxu0 %v500
  %2800 = vmatprep.subr.bf16.mxu0 0
  %2801 = vmatpush1.bf16.msra.mxu0 %v501
  %2802 = vmatprep.subr.bf16.mxu0 0
  %2803 = vmatpush1.bf16.msra.mxu0 %v502
  %2804 = vmatprep.subr.bf16.mxu0 0
  %2805 = vmatpush1.bf16.msra.mxu0 0
  %2806 = vmatprep.subr.bf16.mxu0 0
  %2807 = vmatpush1.bf16.msra.mxu0 0
  %2808 = vmatprep.subr.bf16.mxu0 0
  %2809 = vmatpush1.bf16.msra.mxu0 0
  %2810 = vmatprep.subr.bf16.mxu0 0
  %2811 = vmatpush1.bf16.msra.mxu0 0
  %2812 = vmatprep.subr.bf16.mxu0 0
  %2813 = vmatpush1.bf16.msra.mxu0 0
  %2814 = vmatprep.subr.bf16.mxu0 0
  %2815 = vmatpush1.bf16.msra.mxu0 0
  %2816 = vmatprep.subr.bf16.mxu0 0
  %2817 = vmatpush1.bf16.msra.mxu0 0
  %2818 = vmatprep.subr.bf16.mxu0 0
  %2819 = vmatpush1.bf16.msra.mxu0 0
  %2820 = vmatprep.subr.bf16.mxu0 0
  %2821 = vmatpush1.bf16.msra.mxu0 0
  %2822 = vmatprep.subr.bf16.mxu0 0
  %2823 = vmatpush1.bf16.msra.mxu0 0
  %2824 = vmatprep.subr.bf16.mxu0 0
  %2825 = vmatpush1.bf16.msra.mxu0 0
  %2826 = vmatprep.subr.bf16.mxu0 0
  %2827 = vmatpush1.bf16.msra.mxu0 0
  %2828 = vmatprep.mubr.bf16.mxu0 0
  %2829 = vmatmul.mubr.bf16.gmra.mrb[0].mxu0 %v2794
  %v2830 = vpop.f32.mrb[0].mxu0
  %v2831 = vadd.f32 0.0, %v2830
  %v2832 = vpop.f32.mrb[0].mxu0
  %v2833 = vpop.f32.mrb[0].mxu0
  %v2834 = vadd.f32 0.0, %v2833
  %v2835 = vpop.f32.mrb[0].mxu0
  %2836 = vdwg.mxu0
  %v2839 = vrot.slane %v2831, 1
  %v2840 = vrot.slane %v2831, 2
  %v2841 = vrot.slane %v2831, 3
  %v2842 = vrot.slane %v2831, 4
  %v2843 = vrot.slane %v2831, 5
  %v2844 = vrot.slane %v2831, 6
  %v2845 = vrot.slane %v2831, 7
  %v2846 = vrot.slane %v2834, 1
  %v2847 = vrot.slane %v2834, 2
  %v2848 = vrot.slane %v2834, 3
  %v2849 = vrot.slane %v2834, 4
  %v2850 = vrot.slane %v2834, 5
  %v2851 = vrot.slane %v2834, 6
  %v2852 = vrot.slane %v2834, 7
  %v2869 = vadd.f32 %v2475, %v2831
  %v2870 = vadd.f32 %v2476, %v2839
  %v2871 = vadd.f32 %v2477, %v2840
  %v2872 = vadd.f32 %v2478, %v2841
  %v2873 = vadd.f32 %v2479, %v2842
  %v2874 = vadd.f32 %v2480, %v2843
  %v2875 = vadd.f32 %v2481, %v2844
  %v2876 = vadd.f32 %v2482, %v2845
  %v2877 = vadd.f32 %v2483, %v2834
  %v2878 = vadd.f32 %v2484, %v2846
  %v2879 = vadd.f32 %v2485, %v2847
  %v2880 = vadd.f32 %v2486, %v2848
  %v2881 = vadd.f32 %v2487, %v2849
  %v2882 = vadd.f32 %v2488, %v2850
  %v2883 = vadd.f32 %v2489, %v2851
  %v2884 = vadd.f32 %v2490, %v2852
  %v2885 = vadd.f32 %v2869, %v603
  %v2886 = vadd.f32 %v2870, %v603
  %v2887 = vadd.f32 %v2871, %v603
  %v2888 = vadd.f32 %v2872, %v603
  %v2889 = vadd.f32 %v2873, %v603
  %v2890 = vadd.f32 %v2874, %v603
  %v2891 = vadd.f32 %v2875, %v603
  %v2892 = vadd.f32 %v2876, %v603
  %v2893 = vadd.f32 %v2877, %v603
  %v2894 = vadd.f32 %v2878, %v603
  %v2895 = vadd.f32 %v2879, %v603
  %v2896 = vadd.f32 %v2880, %v603
  %v2897 = vadd.f32 %v2881, %v603
  %v2898 = vadd.f32 %v2882, %v603
  %v2899 = vadd.f32 %v2883, %v603
  %v2900 = vadd.f32 %v2884, %v603
  %2901 = vst.msk [vmem:[%s9 + $0x4] sm:$0x1] %vm182, %v2885
  %2902 = vst.msk [vmem:[%s9 + $0xc] sm:$0x1] %vm182, %v2886
  %2903 = vst.msk [vmem:[%s9 + $0x14] sm:$0x1] %vm182, %v2887
  %2904 = vst.msk [vmem:[%s9 + $0x1c] sm:$0x1] %vm182, %v2888
  %2905 = vst.msk [vmem:[%s9 + $0x24] sm:$0x1] %vm182, %v2889
  %2906 = vst.msk [vmem:[%s9 + $0x2c] sm:$0x1] %vm182, %v2890
  %2907 = vst.msk [vmem:[%s9 + $0x34] sm:$0x1] %vm182, %v2891
  %2908 = vst.msk [vmem:[%s9 + $0x3c] sm:$0x1] %vm182, %v2892
  %2909 = vst.msk [vmem:[%s9 + $0x44] sm:$0x1] %vm182, %v2893
  %2910 = vst.msk [vmem:[%s9 + $0x4c] sm:$0x1] %vm182, %v2894
  %2911 = vst.msk [vmem:[%s9 + $0x54] sm:$0x1] %vm182, %v2895
  %2912 = vst.msk [vmem:[%s9 + $0x5c] sm:$0x1] %vm182, %v2896
  %2913 = vst.msk [vmem:[%s9 + $0x64] sm:$0x1] %vm182, %v2897
  %2914 = vst.msk [vmem:[%s9 + $0x6c] sm:$0x1] %vm182, %v2898
  %2915 = vst.msk [vmem:[%s9 + $0x74] sm:$0x1] %vm182, %v2899
  %2916 = vst.msk [vmem:[%s9 + $0x7c] sm:$0x1] %vm182, %v2900
  %v2933 = vrot.slane %v2886, 7
  %v2934 = vsel %vm139, %v2933, %v2885
  %v2935 = vrot.slane %v2887, 6
  %v2936 = vsel %vm142, %v2935, %v2934
  %v2937 = vrot.slane %v2888, 5
  %v2938 = vsel %vm145, %v2937, %v2936
  %v2939 = vrot.slane %v2889, 4
  %v2940 = vsel %vm148, %v2939, %v2938
  %v2941 = vrot.slane %v2890, 3
  %v2942 = vsel %vm151, %v2941, %v2940
  %v2943 = vrot.slane %v2891, 2
  %v2944 = vsel %vm154, %v2943, %v2942
  %v2945 = vrot.slane %v2892, 1
  %v2946 = vsel %vm157, %v2945, %v2944
  %v2947 = vrot.slane %v2894, 7
  %v2948 = vsel %vm139, %v2947, %v2893
  %v2949 = vrot.slane %v2895, 6
  %v2950 = vsel %vm142, %v2949, %v2948
  %v2951 = vrot.slane %v2896, 5
  %v2952 = vsel %vm145, %v2951, %v2950
  %v2953 = vrot.slane %v2897, 4
  %v2954 = vsel %vm148, %v2953, %v2952
  %v2955 = vrot.slane %v2898, 3
  %v2956 = vsel %vm151, %v2955, %v2954
  %v2957 = vrot.slane %v2899, 2
  %v2958 = vsel %vm154, %v2957, %v2956
  %v2959 = vrot.slane %v2900, 1
  %v2960 = vsel %vm157, %v2959, %v2958
  %v2963 = vsel %vm175, %v2946, 0.0
  %v2964 = vsel %vm175, %v2960, 0.0
  %v2965 = vadd.f32 %v2963, %v2964
  %v2966 = vrot.slane %v2965, 4
  %v2967 = vadd.f32 %v2965, %v2966
  %v2968 = vrot.slane %v2967, 2
  %v2969 = vadd.f32 %v2967, %v2968
  %v2970 = vrot.slane %v2969, 1
  %v2971 = vadd.f32 %v2969, %v2970
  %v2972 = vadd.f32 %v2402, %v2971
  %v2973 = vmul.f32 %v2885, %v2885
  %v2974 = vmul.f32 %v2886, %v2886
  %v2975 = vmul.f32 %v2887, %v2887
  %v2976 = vmul.f32 %v2888, %v2888
  %v2977 = vmul.f32 %v2889, %v2889
  %v2978 = vmul.f32 %v2890, %v2890
  %v2979 = vmul.f32 %v2891, %v2891
  %v2980 = vmul.f32 %v2892, %v2892
  %v2981 = vmul.f32 %v2893, %v2893
  %v2982 = vmul.f32 %v2894, %v2894
  %v2983 = vmul.f32 %v2895, %v2895
  %v2984 = vmul.f32 %v2896, %v2896
  %v2985 = vmul.f32 %v2897, %v2897
  %v2986 = vmul.f32 %v2898, %v2898
  %v2987 = vmul.f32 %v2899, %v2899
  %v2988 = vmul.f32 %v2900, %v2900
  %v3005 = vrot.slane %v2974, 7
  %v3006 = vsel %vm139, %v3005, %v2973
  %v3007 = vrot.slane %v2975, 6
  %v3008 = vsel %vm142, %v3007, %v3006
  %v3009 = vrot.slane %v2976, 5
  %v3010 = vsel %vm145, %v3009, %v3008
  %v3011 = vrot.slane %v2977, 4
  %v3012 = vsel %vm148, %v3011, %v3010
  %v3013 = vrot.slane %v2978, 3
  %v3014 = vsel %vm151, %v3013, %v3012
  %v3015 = vrot.slane %v2979, 2
  %v3016 = vsel %vm154, %v3015, %v3014
  %v3017 = vrot.slane %v2980, 1
  %v3018 = vsel %vm157, %v3017, %v3016
  %v3019 = vrot.slane %v2982, 7
  %v3020 = vsel %vm139, %v3019, %v2981
  %v3021 = vrot.slane %v2983, 6
  %v3022 = vsel %vm142, %v3021, %v3020
  %v3023 = vrot.slane %v2984, 5
  %v3024 = vsel %vm145, %v3023, %v3022
  %v3025 = vrot.slane %v2985, 4
  %v3026 = vsel %vm148, %v3025, %v3024
  %v3027 = vrot.slane %v2986, 3
  %v3028 = vsel %vm151, %v3027, %v3026
  %v3029 = vrot.slane %v2987, 2
  %v3030 = vsel %vm154, %v3029, %v3028
  %v3031 = vrot.slane %v2988, 1
  %v3032 = vsel %vm157, %v3031, %v3030
  %v3035 = vsel %vm175, %v3018, 0.0
  %v3036 = vsel %vm175, %v3032, 0.0
  %v3037 = vadd.f32 %v3035, %v3036
  %v3038 = vrot.slane %v3037, 4
  %v3039 = vadd.f32 %v3037, %v3038
  %v3040 = vrot.slane %v3039, 2
  %v3041 = vadd.f32 %v3039, %v3040
  %v3042 = vrot.slane %v3041, 1
  %v3043 = vadd.f32 %v3041, %v3042
  %v3044 = vadd.f32 %v2474, %v3043
  %v3045 = vld [vmem:[%s0 + $0x5] sm:$0x1]
  %v3046 = vld [vmem:[%s0 + $0xd] sm:$0x1]
  %v3047 = vld [vmem:[%s0 + $0x15] sm:$0x1]
  %v3048 = vld [vmem:[%s0 + $0x1d] sm:$0x1]
  %v3049 = vld [vmem:[%s0 + $0x25] sm:$0x1]
  %v3050 = vld [vmem:[%s0 + $0x2d] sm:$0x1]
  %v3051 = vld [vmem:[%s0 + $0x35] sm:$0x1]
  %v3052 = vld [vmem:[%s0 + $0x3d] sm:$0x1]
  %v3053 = vld [vmem:[%s0 + $0x45] sm:$0x1]
  %v3054 = vld [vmem:[%s0 + $0x4d] sm:$0x1]
  %v3055 = vld [vmem:[%s0 + $0x55] sm:$0x1]
  %v3056 = vld [vmem:[%s0 + $0x5d] sm:$0x1]
  %v3057 = vld [vmem:[%s0 + $0x65] sm:$0x1]
  %v3058 = vld [vmem:[%s0 + $0x6d] sm:$0x1]
  %v3059 = vld [vmem:[%s0 + $0x75] sm:$0x1]
  %v3060 = vld [vmem:[%s0 + $0x7d] sm:$0x1]
  %s3061 = scalar_lea.vmem %s1, 5
  %v3062 = vld [vmem:[%s3061] sm:$0x1]
  %v3063 = vadd.f32 %v3045, %v35
  %v3064 = vadd.f32 %v3046, %v76
  %v3065 = vadd.f32 %v3047, %v77
  %v3066 = vadd.f32 %v3048, %v78
  %v3067 = vadd.f32 %v3049, %v79
  %v3068 = vadd.f32 %v3050, %v80
  %v3069 = vadd.f32 %v3051, %v81
  %v3070 = vadd.f32 %v3052, %v82
  %v3071 = vadd.f32 %v3053, %v36
  %v3072 = vadd.f32 %v3054, %v83
  %v3073 = vadd.f32 %v3055, %v84
  %v3074 = vadd.f32 %v3056, %v85
  %v3075 = vadd.f32 %v3057, %v86
  %v3076 = vadd.f32 %v3058, %v87
  %v3077 = vadd.f32 %v3059, %v88
  %v3078 = vadd.f32 %v3060, %v89
  %v3095 = vrot.slane %v3064, 7
  %v3096 = vsel %vm139, %v3095, %v3063
  %v3097 = vrot.slane %v3065, 6
  %v3098 = vsel %vm142, %v3097, %v3096
  %v3099 = vrot.slane %v3066, 5
  %v3100 = vsel %vm145, %v3099, %v3098
  %v3101 = vrot.slane %v3067, 4
  %v3102 = vsel %vm148, %v3101, %v3100
  %v3103 = vrot.slane %v3068, 3
  %v3104 = vsel %vm151, %v3103, %v3102
  %v3105 = vrot.slane %v3069, 2
  %v3106 = vsel %vm154, %v3105, %v3104
  %v3107 = vrot.slane %v3070, 1
  %v3108 = vsel %vm157, %v3107, %v3106
  %v3109 = vrot.slane %v3072, 7
  %v3110 = vsel %vm139, %v3109, %v3071
  %v3111 = vrot.slane %v3073, 6
  %v3112 = vsel %vm142, %v3111, %v3110
  %v3113 = vrot.slane %v3074, 5
  %v3114 = vsel %vm145, %v3113, %v3112
  %v3115 = vrot.slane %v3075, 4
  %v3116 = vsel %vm148, %v3115, %v3114
  %v3117 = vrot.slane %v3076, 3
  %v3118 = vsel %vm151, %v3117, %v3116
  %v3119 = vrot.slane %v3077, 2
  %v3120 = vsel %vm154, %v3119, %v3118
  %v3121 = vrot.slane %v3078, 1
  %v3122 = vsel %vm157, %v3121, %v3120
  %v3125 = vsel %vm175, %v3108, 0.0
  %3126 = vadd.xlane.f32.xlu0 %v3125
  %v3127 = vpop.xlane.xlu0 %3126
  %v3128 = vsel %vm175, %v3122, 0.0
  %3129 = vadd.xlane.f32.xlu0 %v3128
  %v3130 = vpop.xlane.xlu0 %3129
  %v3131 = vsel %vm182, %v3062, 0.0
  %3132 = vadd.xlane.f32.xlu0 %v3131
  %v3133 = vpop.xlane.xlu0 %3132
  %v3134 = vmul.f32 %v3127, %v186
  %v3135 = vmul.f32 %v3130, %v186
  %v3136 = vmul.f32 %v3133, %v186
  %v3137 = vsub.f32 %v3108, %v3134
  %v3138 = vsub.f32 %v3122, %v3135
  %v3139 = vsub.f32 %v3062, %v3136
  %v3140 = vmul.f32 %v3137, %v3137
  %v3141 = vmul.f32 %v3138, %v3138
  %v3142 = vmul.f32 %v3139, %v3139
  %v3143 = vsel %vm175, %v3140, 0.0
  %3144 = vadd.xlane.f32.xlu0 %v3143
  %v3145 = vpop.xlane.xlu0 %3144
  %v3146 = vsel %vm175, %v3141, 0.0
  %3147 = vadd.xlane.f32.xlu0 %v3146
  %v3148 = vpop.xlane.xlu0 %3147
  %v3149 = vsel %vm182, %v3142, 0.0
  %3150 = vadd.xlane.f32.xlu0 %v3149
  %v3151 = vpop.xlane.xlu0 %3150
  %v3152 = vmul.f32 %v3145, %v186
  %v3153 = vmul.f32 %v3148, %v186
  %v3154 = vmul.f32 %v3151, %v186
  %v3155 = vadd.f32 %v3152, 1e-05
  %v3156 = vadd.f32 %v3153, 1e-05
  %v3157 = vadd.f32 %v3154, 1e-05
  %v3158 = vrsqrt.pop %v3155
  %v3159 = vrsqrt.pop %v3156
  %v3160 = vrsqrt.pop %v3157
  %v3161 = vmul.f32 %v3137, %v3158
  %v3162 = vmul.f32 %v3138, %v3159
  %v3163 = vmul.f32 %v3139, %v3160
  %v3164 = vmul.f32 %v3161, %v221
  %v3165 = vmul.f32 %v3162, %v221
  %v3166 = vmul.f32 %v3163, %v221
  %v3167 = vadd.f32 %v3164, %v230
  %v3168 = vadd.f32 %v3165, %v230
  %v3169 = vadd.f32 %v3166, %v230
  %v3170 = vpack.c.bf16 %v3168, %v3167
  %v3171 = vpack.c.bf16 %v3169, %v3169
  %v3173 = vsel %vm175, %v3170, 0
  %v3176 = vsel %vm175, %v3171, 0
  %3178 = vmatprep.subr.bf16.mxu0 %v273
  %3179 = vmatpush1.bf16.msra.mxu0 %v272
  %3180 = vmatprep.subr.bf16.mxu0 %v275
  %3181 = vmatpush1.bf16.msra.mxu0 %v274
  %3182 = vmatprep.subr.bf16.mxu0 %v277
  %3183 = vmatpush1.bf16.msra.mxu0 %v276
  %3184 = vmatprep.subr.bf16.mxu0 %v279
  %3185 = vmatpush1.bf16.msra.mxu0 %v278
  %3186 = vmatprep.subr.bf16.mxu0 0
  %3187 = vmatpush1.bf16.msra.mxu0 0
  %3188 = vmatprep.subr.bf16.mxu0 0
  %3189 = vmatpush1.bf16.msra.mxu0 0
  %3190 = vmatprep.subr.bf16.mxu0 0
  %3191 = vmatpush1.bf16.msra.mxu0 0
  %3192 = vmatprep.subr.bf16.mxu0 0
  %3193 = vmatpush1.bf16.msra.mxu0 0
  %3194 = vmatprep.subr.bf16.mxu0 0
  %3195 = vmatpush1.bf16.msra.mxu0 0
  %3196 = vmatprep.subr.bf16.mxu0 0
  %3197 = vmatpush1.bf16.msra.mxu0 0
  %3198 = vmatprep.subr.bf16.mxu0 0
  %3199 = vmatpush1.bf16.msra.mxu0 0
  %3200 = vmatprep.subr.bf16.mxu0 0
  %3201 = vmatpush1.bf16.msra.mxu0 0
  %3202 = vmatprep.subr.bf16.mxu0 0
  %3203 = vmatpush1.bf16.msra.mxu0 0
  %3204 = vmatprep.subr.bf16.mxu0 0
  %3205 = vmatpush1.bf16.msra.mxu0 0
  %3206 = vmatprep.subr.bf16.mxu0 0
  %3207 = vmatpush1.bf16.msra.mxu0 0
  %3208 = vmatprep.subr.bf16.mxu0 0
  %3209 = vmatpush1.bf16.msra.mxu0 0
  %3210 = vmatprep.mubr.bf16.mxu0 0
  %3211 = vmatmul.mubr.bf16.gmra.mrb[0].mxu0 %v3173
  %v3212 = vpop.f32.mrb[0].mxu0
  %v3213 = vadd.f32 %v241, %v3212
  %v3214 = vpop.f32.mrb[0].mxu0
  %v3215 = vadd.f32 %v245, %v3214
  %v3216 = vpop.f32.mrb[0].mxu0
  %v3217 = vadd.f32 %v241, %v3216
  %v3218 = vpop.f32.mrb[0].mxu0
  %v3219 = vadd.f32 %v245, %v3218
  %3220 = vmatprep.mubr.bf16.mxu0 0
  %3221 = vmatmul.mubr.bf16.gmra.mrb[0].mxu0 %v3176
  %v3222 = vpop.f32.mrb[0].mxu0
  %v3223 = vadd.f32 %v241, %v3222
  %v3224 = vpop.f32.mrb[0].mxu0
  %v3225 = vadd.f32 %v245, %v3224
  %v3226 = vpop.f32.mrb[0].mxu0
  %v3227 = vpop.f32.mrb[0].mxu0
  %3228 = vdwg.mxu0
  %v3229 = vmul.f32 %v3213, 0.125
  %v3230 = vmul.f32 %v3217, 0.125
  %v3231 = vpack.c.bf16 %v3230, %v3229
  %v3232 = vpack.c.bf16 %v3217, %v3213
  %v3233 = vpack.c.bf16 %v3223, %v3223
  %3236 = vrot.lane.b32.xlu0 %v3232, 64
  %v3237 = vpop.permute.xlu0 %3236
  %3238 = vrot.lane.b32.xlu0 %v3233, 64
  %v3239 = vpop.permute.xlu0 %3238
  %v3241 = vsel %vm175, %v3231, 0
  %v3244 = vsel %vm175, %v3237, 0
  %v3247 = vsel %vm175, %v3239, 0
  %3249 = vmatprep.subr.bf16.mxu0 0
  %3250 = vmatpush1.bf16.xpose.msra.mxu0 %v3244
  %3251 = vmatprep.subr.bf16.mxu0 0
  %3252 = vmatpush1.bf16.xpose.msra.mxu0 %v3247
  %3253 = vmatprep.subr.bf16.mxu0 0
  %3254 = vmatpush1.bf16.xpose.msra.mxu0 0
  %3255 = vmatprep.subr.bf16.mxu0 0
  %3256 = vmatpush1.bf16.xpose.msra.mxu0 0
  %3257 = vmatprep.subr.bf16.mxu0 0
  %3258 = vmatpush1.bf16.xpose.msra.mxu0 0
  %3259 = vmatprep.subr.bf16.mxu0 0
  %3260 = vmatpush1.bf16.xpose.msra.mxu0 0
  %3261 = vmatprep.subr.bf16.mxu0 0
  %3262 = vmatpush1.bf16.xpose.msra.mxu0 0
  %3263 = vmatprep.subr.bf16.mxu0 0
  %3264 = vmatpush1.bf16.xpose.msra.mxu0 0
  %3265 = vmatprep.subr.bf16.mxu0 0
  %3266 = vmatpush1.bf16.xpose.msra.mxu0 0
  %3267 = vmatprep.subr.bf16.mxu0 0
  %3268 = vmatpush1.bf16.xpose.msra.mxu0 0
  %3269 = vmatprep.subr.bf16.mxu0 0
  %3270 = vmatpush1.bf16.xpose.msra.mxu0 0
  %3271 = vmatprep.subr.bf16.mxu0 0
  %3272 = vmatpush1.bf16.xpose.msra.mxu0 0
  %3273 = vmatprep.subr.bf16.mxu0 0
  %3274 = vmatpush1.bf16.xpose.msra.mxu0 0
  %3275 = vmatprep.subr.bf16.mxu0 0
  %3276 = vmatpush1.bf16.xpose.msra.mxu0 0
  %3277 = vmatprep.subr.bf16.mxu0 0
  %3278 = vmatpush1.bf16.xpose.msra.mxu0 0
  %3279 = vmatprep.subr.bf16.mxu0 0
  %3280 = vmatpush1.bf16.xpose.msra.mxu0 0
  %3281 = vmatprep.mubr.bf16.mxu0 0
  %3282 = vmatmul.mubr.bf16.gmra.mrb[0].mxu0 %v3241
  %v3283 = vpop.f32.mrb[0].mxu0
  %v3284 = vadd.f32 0.0, %v3283
  %v3285 = vpop.f32.mrb[0].mxu0
  %v3286 = vpop.f32.mrb[0].mxu0
  %v3287 = vadd.f32 0.0, %v3286
  %v3288 = vpop.f32.mrb[0].mxu0
  %3289 = vdwg.mxu0
  %v3290 = vsel %vm406, %v3284, -inf
  %3291 = vmax.xlane.f32.xlu0 %v3290
  %v3292 = vpop.xlane.xlu0 %3291
  %v3293 = vsel %vm406, %v3287, -inf
  %3294 = vmax.xlane.f32.xlu0 %v3293
  %v3295 = vpop.xlane.xlu0 %3294
  %v3296 = vsub.f32 %v3284, %v3292
  %v3297 = vsub.f32 %v3287, %v3295
  %v3298 = vmul.f32 %v3296, 1.442695
  %v3299 = vpow.pop %v3298
  %v3300 = vmul.f32 %v3297, 1.442695
  %v3301 = vpow.pop %v3300
  %v3302 = vsel %vm406, %v3299, 0.0
  %3303 = vadd.xlane.f32.xlu0 %v3302
  %v3304 = vpop.xlane.xlu0 %3303
  %v3305 = vsel %vm406, %v3301, 0.0
  %3306 = vadd.xlane.f32.xlu0 %v3305
  %v3307 = vpop.xlane.xlu0 %3306
  %v3308 = vpack.c.bf16 %v3301, %v3299
  %v3309 = vpack.c.bf16 %v3219, %v3215
  %v3310 = vpack.c.bf16 %v3225, %v3225
  %v3312 = vsel %vm406, %v3308, 0
  %v3315 = vand.u32 %v3310, %v433
  %3317 = vmatprep.subr.bf16.mxu0 0
  %3318 = vmatpush1.bf16.msra.mxu0 %v3309
  %3319 = vmatprep.subr.bf16.mxu0 0
  %3320 = vmatpush1.bf16.msra.mxu0 %v3315
  %3321 = vmatprep.subr.bf16.mxu0 0
  %3322 = vmatpush1.bf16.msra.mxu0 0
  %3323 = vmatprep.subr.bf16.mxu0 0
  %3324 = vmatpush1.bf16.msra.mxu0 0
  %3325 = vmatprep.subr.bf16.mxu0 0
  %3326 = vmatpush1.bf16.msra.mxu0 0
  %3327 = vmatprep.subr.bf16.mxu0 0
  %3328 = vmatpush1.bf16.msra.mxu0 0
  %3329 = vmatprep.subr.bf16.mxu0 0
  %3330 = vmatpush1.bf16.msra.mxu0 0
  %3331 = vmatprep.subr.bf16.mxu0 0
  %3332 = vmatpush1.bf16.msra.mxu0 0
  %3333 = vmatprep.subr.bf16.mxu0 0
  %3334 = vmatpush1.bf16.msra.mxu0 0
  %3335 = vmatprep.subr.bf16.mxu0 0
  %3336 = vmatpush1.bf16.msra.mxu0 0
  %3337 = vmatprep.subr.bf16.mxu0 0
  %3338 = vmatpush1.bf16.msra.mxu0 0
  %3339 = vmatprep.subr.bf16.mxu0 0
  %3340 = vmatpush1.bf16.msra.mxu0 0
  %3341 = vmatprep.subr.bf16.mxu0 0
  %3342 = vmatpush1.bf16.msra.mxu0 0
  %3343 = vmatprep.subr.bf16.mxu0 0
  %3344 = vmatpush1.bf16.msra.mxu0 0
  %3345 = vmatprep.subr.bf16.mxu0 0
  %3346 = vmatpush1.bf16.msra.mxu0 0
  %3347 = vmatprep.subr.bf16.mxu0 0
  %3348 = vmatpush1.bf16.msra.mxu0 0
  %3349 = vmatprep.mubr.bf16.mxu0 0
  %3350 = vmatmul.mubr.bf16.gmra.mrb[0].mxu0 %v3312
  %v3351 = vpop.f32.mrb[0].mxu0
  %v3352 = vadd.f32 0.0, %v3351
  %v3353 = vpop.f32.mrb[0].mxu0
  %v3354 = vpop.f32.mrb[0].mxu0
  %v3355 = vadd.f32 0.0, %v3354
  %v3356 = vpop.f32.mrb[0].mxu0
  %3357 = vdwg.mxu0
  %v3358 = vrcp.pop %v3304
  %v3359 = vmul.f32 %v3352, %v3358
  %v3360 = vrcp.pop %v3307
  %v3361 = vmul.f32 %v3355, %v3360
  %v3362 = vpack.c.bf16 %v3361, %v3359
  %v3364 = vsel %vm175, %v3362, 0
  %3366 = vmatprep.subr.bf16.mxu0 0
  %3367 = vmatpush1.bf16.msra.mxu0 %v499
  %3368 = vmatprep.subr.bf16.mxu0 0
  %3369 = vmatpush1.bf16.msra.mxu0 %v500
  %3370 = vmatprep.subr.bf16.mxu0 0
  %3371 = vmatpush1.bf16.msra.mxu0 %v501
  %3372 = vmatprep.subr.bf16.mxu0 0
  %3373 = vmatpush1.bf16.msra.mxu0 %v502
  %3374 = vmatprep.subr.bf16.mxu0 0
  %3375 = vmatpush1.bf16.msra.mxu0 0
  %3376 = vmatprep.subr.bf16.mxu0 0
  %3377 = vmatpush1.bf16.msra.mxu0 0
  %3378 = vmatprep.subr.bf16.mxu0 0
  %3379 = vmatpush1.bf16.msra.mxu0 0
  %3380 = vmatprep.subr.bf16.mxu0 0
  %3381 = vmatpush1.bf16.msra.mxu0 0
  %3382 = vmatprep.subr.bf16.mxu0 0
  %3383 = vmatpush1.bf16.msra.mxu0 0
  %3384 = vmatprep.subr.bf16.mxu0 0
  %3385 = vmatpush1.bf16.msra.mxu0 0
  %3386 = vmatprep.subr.bf16.mxu0 0
  %3387 = vmatpush1.bf16.msra.mxu0 0
  %3388 = vmatprep.subr.bf16.mxu0 0
  %3389 = vmatpush1.bf16.msra.mxu0 0
  %3390 = vmatprep.subr.bf16.mxu0 0
  %3391 = vmatpush1.bf16.msra.mxu0 0
  %3392 = vmatprep.subr.bf16.mxu0 0
  %3393 = vmatpush1.bf16.msra.mxu0 0
  %3394 = vmatprep.subr.bf16.mxu0 0
  %3395 = vmatpush1.bf16.msra.mxu0 0
  %3396 = vmatprep.subr.bf16.mxu0 0
  %3397 = vmatpush1.bf16.msra.mxu0 0
  %3398 = vmatprep.mubr.bf16.mxu0 0
  %3399 = vmatmul.mubr.bf16.gmra.mrb[0].mxu0 %v3364
  %v3400 = vpop.f32.mrb[0].mxu0
  %v3401 = vadd.f32 0.0, %v3400
  %v3402 = vpop.f32.mrb[0].mxu0
  %v3403 = vpop.f32.mrb[0].mxu0
  %v3404 = vadd.f32 0.0, %v3403
  %v3405 = vpop.f32.mrb[0].mxu0
  %3406 = vdwg.mxu0
  %v3409 = vrot.slane %v3401, 1
  %v3410 = vrot.slane %v3401, 2
  %v3411 = vrot.slane %v3401, 3
  %v3412 = vrot.slane %v3401, 4
  %v3413 = vrot.slane %v3401, 5
  %v3414 = vrot.slane %v3401, 6
  %v3415 = vrot.slane %v3401, 7
  %v3416 = vrot.slane %v3404, 1
  %v3417 = vrot.slane %v3404, 2
  %v3418 = vrot.slane %v3404, 3
  %v3419 = vrot.slane %v3404, 4
  %v3420 = vrot.slane %v3404, 5
  %v3421 = vrot.slane %v3404, 6
  %v3422 = vrot.slane %v3404, 7
  %v3439 = vadd.f32 %v3045, %v3401
  %v3440 = vadd.f32 %v3046, %v3409
  %v3441 = vadd.f32 %v3047, %v3410
  %v3442 = vadd.f32 %v3048, %v3411
  %v3443 = vadd.f32 %v3049, %v3412
  %v3444 = vadd.f32 %v3050, %v3413
  %v3445 = vadd.f32 %v3051, %v3414
  %v3446 = vadd.f32 %v3052, %v3415
  %v3447 = vadd.f32 %v3053, %v3404
  %v3448 = vadd.f32 %v3054, %v3416
  %v3449 = vadd.f32 %v3055, %v3417
  %v3450 = vadd.f32 %v3056, %v3418
  %v3451 = vadd.f32 %v3057, %v3419
  %v3452 = vadd.f32 %v3058, %v3420
  %v3453 = vadd.f32 %v3059, %v3421
  %v3454 = vadd.f32 %v3060, %v3422
  %v3455 = vadd.f32 %v3439, %v603
  %v3456 = vadd.f32 %v3440, %v603
  %v3457 = vadd.f32 %v3441, %v603
  %v3458 = vadd.f32 %v3442, %v603
  %v3459 = vadd.f32 %v3443, %v603
  %v3460 = vadd.f32 %v3444, %v603
  %v3461 = vadd.f32 %v3445, %v603
  %v3462 = vadd.f32 %v3446, %v603
  %v3463 = vadd.f32 %v3447, %v603
  %v3464 = vadd.f32 %v3448, %v603
  %v3465 = vadd.f32 %v3449, %v603
  %v3466 = vadd.f32 %v3450, %v603
  %v3467 = vadd.f32 %v3451, %v603
  %v3468 = vadd.f32 %v3452, %v603
  %v3469 = vadd.f32 %v3453, %v603
  %v3470 = vadd.f32 %v3454, %v603
  %3471 = vst.msk [vmem:[%s9 + $0x5] sm:$0x1] %vm182, %v3455
  %3472 = vst.msk [vmem:[%s9 + $0xd] sm:$0x1] %vm182, %v3456
  %3473 = vst.msk [vmem:[%s9 + $0x15] sm:$0x1] %vm182, %v3457
  %3474 = vst.msk [vmem:[%s9 + $0x1d] sm:$0x1] %vm182, %v3458
  %3475 = vst.msk [vmem:[%s9 + $0x25] sm:$0x1] %vm182, %v3459
  %3476 = vst.msk [vmem:[%s9 + $0x2d] sm:$0x1] %vm182, %v3460
  %3477 = vst.msk [vmem:[%s9 + $0x35] sm:$0x1] %vm182, %v3461
  %3478 = vst.msk [vmem:[%s9 + $0x3d] sm:$0x1] %vm182, %v3462
  %3479 = vst.msk [vmem:[%s9 + $0x45] sm:$0x1] %vm182, %v3463
  %3480 = vst.msk [vmem:[%s9 + $0x4d] sm:$0x1] %vm182, %v3464
  %3481 = vst.msk [vmem:[%s9 + $0x55] sm:$0x1] %vm182, %v3465
  %3482 = vst.msk [vmem:[%s9 + $0x5d] sm:$0x1] %vm182, %v3466
  %3483 = vst.msk [vmem:[%s9 + $0x65] sm:$0x1] %vm182, %v3467
  %3484 = vst.msk [vmem:[%s9 + $0x6d] sm:$0x1] %vm182, %v3468
  %3485 = vst.msk [vmem:[%s9 + $0x75] sm:$0x1] %vm182, %v3469
  %3486 = vst.msk [vmem:[%s9 + $0x7d] sm:$0x1] %vm182, %v3470
  %v3503 = vrot.slane %v3456, 7
  %v3504 = vsel %vm139, %v3503, %v3455
  %v3505 = vrot.slane %v3457, 6
  %v3506 = vsel %vm142, %v3505, %v3504
  %v3507 = vrot.slane %v3458, 5
  %v3508 = vsel %vm145, %v3507, %v3506
  %v3509 = vrot.slane %v3459, 4
  %v3510 = vsel %vm148, %v3509, %v3508
  %v3511 = vrot.slane %v3460, 3
  %v3512 = vsel %vm151, %v3511, %v3510
  %v3513 = vrot.slane %v3461, 2
  %v3514 = vsel %vm154, %v3513, %v3512
  %v3515 = vrot.slane %v3462, 1
  %v3516 = vsel %vm157, %v3515, %v3514
  %v3517 = vrot.slane %v3464, 7
  %v3518 = vsel %vm139, %v3517, %v3463
  %v3519 = vrot.slane %v3465, 6
  %v3520 = vsel %vm142, %v3519, %v3518
  %v3521 = vrot.slane %v3466, 5
  %v3522 = vsel %vm145, %v3521, %v3520
  %v3523 = vrot.slane %v3467, 4
  %v3524 = vsel %vm148, %v3523, %v3522
  %v3525 = vrot.slane %v3468, 3
  %v3526 = vsel %vm151, %v3525, %v3524
  %v3527 = vrot.slane %v3469, 2
  %v3528 = vsel %vm154, %v3527, %v3526
  %v3529 = vrot.slane %v3470, 1
  %v3530 = vsel %vm157, %v3529, %v3528
  %v3533 = vsel %vm175, %v3516, 0.0
  %v3534 = vsel %vm175, %v3530, 0.0
  %v3535 = vadd.f32 %v3533, %v3534
  %v3536 = vrot.slane %v3535, 4
  %v3537 = vadd.f32 %v3535, %v3536
  %v3538 = vrot.slane %v3537, 2
  %v3539 = vadd.f32 %v3537, %v3538
  %v3540 = vrot.slane %v3539, 1
  %v3541 = vadd.f32 %v3539, %v3540
  %v3542 = vadd.f32 %v2972, %v3541
  %v3543 = vmul.f32 %v3455, %v3455
  %v3544 = vmul.f32 %v3456, %v3456
  %v3545 = vmul.f32 %v3457, %v3457
  %v3546 = vmul.f32 %v3458, %v3458
  %v3547 = vmul.f32 %v3459, %v3459
  %v3548 = vmul.f32 %v3460, %v3460
  %v3549 = vmul.f32 %v3461, %v3461
  %v3550 = vmul.f32 %v3462, %v3462
  %v3551 = vmul.f32 %v3463, %v3463
  %v3552 = vmul.f32 %v3464, %v3464
  %v3553 = vmul.f32 %v3465, %v3465
  %v3554 = vmul.f32 %v3466, %v3466
  %v3555 = vmul.f32 %v3467, %v3467
  %v3556 = vmul.f32 %v3468, %v3468
  %v3557 = vmul.f32 %v3469, %v3469
  %v3558 = vmul.f32 %v3470, %v3470
  %v3575 = vrot.slane %v3544, 7
  %v3576 = vsel %vm139, %v3575, %v3543
  %v3577 = vrot.slane %v3545, 6
  %v3578 = vsel %vm142, %v3577, %v3576
  %v3579 = vrot.slane %v3546, 5
  %v3580 = vsel %vm145, %v3579, %v3578
  %v3581 = vrot.slane %v3547, 4
  %v3582 = vsel %vm148, %v3581, %v3580
  %v3583 = vrot.slane %v3548, 3
  %v3584 = vsel %vm151, %v3583, %v3582
  %v3585 = vrot.slane %v3549, 2
  %v3586 = vsel %vm154, %v3585, %v3584
  %v3587 = vrot.slane %v3550, 1
  %v3588 = vsel %vm157, %v3587, %v3586
  %v3589 = vrot.slane %v3552, 7
  %v3590 = vsel %vm139, %v3589, %v3551
  %v3591 = vrot.slane %v3553, 6
  %v3592 = vsel %vm142, %v3591, %v3590
  %v3593 = vrot.slane %v3554, 5
  %v3594 = vsel %vm145, %v3593, %v3592
  %v3595 = vrot.slane %v3555, 4
  %v3596 = vsel %vm148, %v3595, %v3594
  %v3597 = vrot.slane %v3556, 3
  %v3598 = vsel %vm151, %v3597, %v3596
  %v3599 = vrot.slane %v3557, 2
  %v3600 = vsel %vm154, %v3599, %v3598
  %v3601 = vrot.slane %v3558, 1
  %v3602 = vsel %vm157, %v3601, %v3600
  %v3605 = vsel %vm175, %v3588, 0.0
  %v3606 = vsel %vm175, %v3602, 0.0
  %v3607 = vadd.f32 %v3605, %v3606
  %v3608 = vrot.slane %v3607, 4
  %v3609 = vadd.f32 %v3607, %v3608
  %v3610 = vrot.slane %v3609, 2
  %v3611 = vadd.f32 %v3609, %v3610
  %v3612 = vrot.slane %v3611, 1
  %v3613 = vadd.f32 %v3611, %v3612
  %v3614 = vadd.f32 %v3044, %v3613
  %v3615 = vld [vmem:[%s0 + $0x6] sm:$0x1]
  %v3616 = vld [vmem:[%s0 + $0xe] sm:$0x1]
  %v3617 = vld [vmem:[%s0 + $0x16] sm:$0x1]
  %v3618 = vld [vmem:[%s0 + $0x1e] sm:$0x1]
  %v3619 = vld [vmem:[%s0 + $0x26] sm:$0x1]
  %v3620 = vld [vmem:[%s0 + $0x2e] sm:$0x1]
  %v3621 = vld [vmem:[%s0 + $0x36] sm:$0x1]
  %v3622 = vld [vmem:[%s0 + $0x3e] sm:$0x1]
  %v3623 = vld [vmem:[%s0 + $0x46] sm:$0x1]
  %v3624 = vld [vmem:[%s0 + $0x4e] sm:$0x1]
  %v3625 = vld [vmem:[%s0 + $0x56] sm:$0x1]
  %v3626 = vld [vmem:[%s0 + $0x5e] sm:$0x1]
  %v3627 = vld [vmem:[%s0 + $0x66] sm:$0x1]
  %v3628 = vld [vmem:[%s0 + $0x6e] sm:$0x1]
  %v3629 = vld [vmem:[%s0 + $0x76] sm:$0x1]
  %v3630 = vld [vmem:[%s0 + $0x7e] sm:$0x1]
  %s3631 = scalar_lea.vmem %s1, 6
  %v3632 = vld [vmem:[%s3631] sm:$0x1]
  %v3633 = vadd.f32 %v3615, %v35
  %v3634 = vadd.f32 %v3616, %v76
  %v3635 = vadd.f32 %v3617, %v77
  %v3636 = vadd.f32 %v3618, %v78
  %v3637 = vadd.f32 %v3619, %v79
  %v3638 = vadd.f32 %v3620, %v80
  %v3639 = vadd.f32 %v3621, %v81
  %v3640 = vadd.f32 %v3622, %v82
  %v3641 = vadd.f32 %v3623, %v36
  %v3642 = vadd.f32 %v3624, %v83
  %v3643 = vadd.f32 %v3625, %v84
  %v3644 = vadd.f32 %v3626, %v85
  %v3645 = vadd.f32 %v3627, %v86
  %v3646 = vadd.f32 %v3628, %v87
  %v3647 = vadd.f32 %v3629, %v88
  %v3648 = vadd.f32 %v3630, %v89
  %v3665 = vrot.slane %v3634, 7
  %v3666 = vsel %vm139, %v3665, %v3633
  %v3667 = vrot.slane %v3635, 6
  %v3668 = vsel %vm142, %v3667, %v3666
  %v3669 = vrot.slane %v3636, 5
  %v3670 = vsel %vm145, %v3669, %v3668
  %v3671 = vrot.slane %v3637, 4
  %v3672 = vsel %vm148, %v3671, %v3670
  %v3673 = vrot.slane %v3638, 3
  %v3674 = vsel %vm151, %v3673, %v3672
  %v3675 = vrot.slane %v3639, 2
  %v3676 = vsel %vm154, %v3675, %v3674
  %v3677 = vrot.slane %v3640, 1
  %v3678 = vsel %vm157, %v3677, %v3676
  %v3679 = vrot.slane %v3642, 7
  %v3680 = vsel %vm139, %v3679, %v3641
  %v3681 = vrot.slane %v3643, 6
  %v3682 = vsel %vm142, %v3681, %v3680
  %v3683 = vrot.slane %v3644, 5
  %v3684 = vsel %vm145, %v3683, %v3682
  %v3685 = vrot.slane %v3645, 4
  %v3686 = vsel %vm148, %v3685, %v3684
  %v3687 = vrot.slane %v3646, 3
  %v3688 = vsel %vm151, %v3687, %v3686
  %v3689 = vrot.slane %v3647, 2
  %v3690 = vsel %vm154, %v3689, %v3688
  %v3691 = vrot.slane %v3648, 1
  %v3692 = vsel %vm157, %v3691, %v3690
  %v3695 = vsel %vm175, %v3678, 0.0
  %3696 = vadd.xlane.f32.xlu0 %v3695
  %v3697 = vpop.xlane.xlu0 %3696
  %v3698 = vsel %vm175, %v3692, 0.0
  %3699 = vadd.xlane.f32.xlu0 %v3698
  %v3700 = vpop.xlane.xlu0 %3699
  %v3701 = vsel %vm182, %v3632, 0.0
  %3702 = vadd.xlane.f32.xlu0 %v3701
  %v3703 = vpop.xlane.xlu0 %3702
  %v3704 = vmul.f32 %v3697, %v186
  %v3705 = vmul.f32 %v3700, %v186
  %v3706 = vmul.f32 %v3703, %v186
  %v3707 = vsub.f32 %v3678, %v3704
  %v3708 = vsub.f32 %v3692, %v3705
  %v3709 = vsub.f32 %v3632, %v3706
  %v3710 = vmul.f32 %v3707, %v3707
  %v3711 = vmul.f32 %v3708, %v3708
  %v3712 = vmul.f32 %v3709, %v3709
  %v3713 = vsel %vm175, %v3710, 0.0
  %3714 = vadd.xlane.f32.xlu0 %v3713
  %v3715 = vpop.xlane.xlu0 %3714
  %v3716 = vsel %vm175, %v3711, 0.0
  %3717 = vadd.xlane.f32.xlu0 %v3716
  %v3718 = vpop.xlane.xlu0 %3717
  %v3719 = vsel %vm182, %v3712, 0.0
  %3720 = vadd.xlane.f32.xlu0 %v3719
  %v3721 = vpop.xlane.xlu0 %3720
  %v3722 = vmul.f32 %v3715, %v186
  %v3723 = vmul.f32 %v3718, %v186
  %v3724 = vmul.f32 %v3721, %v186
  %v3725 = vadd.f32 %v3722, 1e-05
  %v3726 = vadd.f32 %v3723, 1e-05
  %v3727 = vadd.f32 %v3724, 1e-05
  %v3728 = vrsqrt.pop %v3725
  %v3729 = vrsqrt.pop %v3726
  %v3730 = vrsqrt.pop %v3727
  %v3731 = vmul.f32 %v3707, %v3728
  %v3732 = vmul.f32 %v3708, %v3729
  %v3733 = vmul.f32 %v3709, %v3730
  %v3734 = vmul.f32 %v3731, %v221
  %v3735 = vmul.f32 %v3732, %v221
  %v3736 = vmul.f32 %v3733, %v221
  %v3737 = vadd.f32 %v3734, %v230
  %v3738 = vadd.f32 %v3735, %v230
  %v3739 = vadd.f32 %v3736, %v230
  %v3740 = vpack.c.bf16 %v3738, %v3737
  %v3741 = vpack.c.bf16 %v3739, %v3739
  %v3743 = vsel %vm175, %v3740, 0
  %v3746 = vsel %vm175, %v3741, 0
  %3748 = vmatprep.subr.bf16.mxu0 %v273
  %3749 = vmatpush1.bf16.msra.mxu0 %v272
  %3750 = vmatprep.subr.bf16.mxu0 %v275
  %3751 = vmatpush1.bf16.msra.mxu0 %v274
  %3752 = vmatprep.subr.bf16.mxu0 %v277
  %3753 = vmatpush1.bf16.msra.mxu0 %v276
  %3754 = vmatprep.subr.bf16.mxu0 %v279
  %3755 = vmatpush1.bf16.msra.mxu0 %v278
  %3756 = vmatprep.subr.bf16.mxu0 0
  %3757 = vmatpush1.bf16.msra.mxu0 0
  %3758 = vmatprep.subr.bf16.mxu0 0
  %3759 = vmatpush1.bf16.msra.mxu0 0
  %3760 = vmatprep.subr.bf16.mxu0 0
  %3761 = vmatpush1.bf16.msra.mxu0 0
  %3762 = vmatprep.subr.bf16.mxu0 0
  %3763 = vmatpush1.bf16.msra.mxu0 0
  %3764 = vmatprep.subr.bf16.mxu0 0
  %3765 = vmatpush1.bf16.msra.mxu0 0
  %3766 = vmatprep.subr.bf16.mxu0 0
  %3767 = vmatpush1.bf16.msra.mxu0 0
  %3768 = vmatprep.subr.bf16.mxu0 0
  %3769 = vmatpush1.bf16.msra.mxu0 0
  %3770 = vmatprep.subr.bf16.mxu0 0
  %3771 = vmatpush1.bf16.msra.mxu0 0
  %3772 = vmatprep.subr.bf16.mxu0 0
  %3773 = vmatpush1.bf16.msra.mxu0 0
  %3774 = vmatprep.subr.bf16.mxu0 0
  %3775 = vmatpush1.bf16.msra.mxu0 0
  %3776 = vmatprep.subr.bf16.mxu0 0
  %3777 = vmatpush1.bf16.msra.mxu0 0
  %3778 = vmatprep.subr.bf16.mxu0 0
  %3779 = vmatpush1.bf16.msra.mxu0 0
  %3780 = vmatprep.mubr.bf16.mxu0 0
  %3781 = vmatmul.mubr.bf16.gmra.mrb[0].mxu0 %v3743
  %v3782 = vpop.f32.mrb[0].mxu0
  %v3783 = vadd.f32 %v241, %v3782
  %v3784 = vpop.f32.mrb[0].mxu0
  %v3785 = vadd.f32 %v245, %v3784
  %v3786 = vpop.f32.mrb[0].mxu0
  %v3787 = vadd.f32 %v241, %v3786
  %v3788 = vpop.f32.mrb[0].mxu0
  %v3789 = vadd.f32 %v245, %v3788
  %3790 = vmatprep.mubr.bf16.mxu0 0
  %3791 = vmatmul.mubr.bf16.gmra.mrb[0].mxu0 %v3746
  %v3792 = vpop.f32.mrb[0].mxu0
  %v3793 = vadd.f32 %v241, %v3792
  %v3794 = vpop.f32.mrb[0].mxu0
  %v3795 = vadd.f32 %v245, %v3794
  %v3796 = vpop.f32.mrb[0].mxu0
  %v3797 = vpop.f32.mrb[0].mxu0
  %3798 = vdwg.mxu0
  %v3799 = vmul.f32 %v3783, 0.125
  %v3800 = vmul.f32 %v3787, 0.125
  %v3801 = vpack.c.bf16 %v3800, %v3799
  %v3802 = vpack.c.bf16 %v3787, %v3783
  %v3803 = vpack.c.bf16 %v3793, %v3793
  %3806 = vrot.lane.b32.xlu0 %v3802, 64
  %v3807 = vpop.permute.xlu0 %3806
  %3808 = vrot.lane.b32.xlu0 %v3803, 64
  %v3809 = vpop.permute.xlu0 %3808
  %v3811 = vsel %vm175, %v3801, 0
  %v3814 = vsel %vm175, %v3807, 0
  %v3817 = vsel %vm175, %v3809, 0
  %3819 = vmatprep.subr.bf16.mxu0 0
  %3820 = vmatpush1.bf16.xpose.msra.mxu0 %v3814
  %3821 = vmatprep.subr.bf16.mxu0 0
  %3822 = vmatpush1.bf16.xpose.msra.mxu0 %v3817
  %3823 = vmatprep.subr.bf16.mxu0 0
  %3824 = vmatpush1.bf16.xpose.msra.mxu0 0
  %3825 = vmatprep.subr.bf16.mxu0 0
  %3826 = vmatpush1.bf16.xpose.msra.mxu0 0
  %3827 = vmatprep.subr.bf16.mxu0 0
  %3828 = vmatpush1.bf16.xpose.msra.mxu0 0
  %3829 = vmatprep.subr.bf16.mxu0 0
  %3830 = vmatpush1.bf16.xpose.msra.mxu0 0
  %3831 = vmatprep.subr.bf16.mxu0 0
  %3832 = vmatpush1.bf16.xpose.msra.mxu0 0
  %3833 = vmatprep.subr.bf16.mxu0 0
  %3834 = vmatpush1.bf16.xpose.msra.mxu0 0
  %3835 = vmatprep.subr.bf16.mxu0 0
  %3836 = vmatpush1.bf16.xpose.msra.mxu0 0
  %3837 = vmatprep.subr.bf16.mxu0 0
  %3838 = vmatpush1.bf16.xpose.msra.mxu0 0
  %3839 = vmatprep.subr.bf16.mxu0 0
  %3840 = vmatpush1.bf16.xpose.msra.mxu0 0
  %3841 = vmatprep.subr.bf16.mxu0 0
  %3842 = vmatpush1.bf16.xpose.msra.mxu0 0
  %3843 = vmatprep.subr.bf16.mxu0 0
  %3844 = vmatpush1.bf16.xpose.msra.mxu0 0
  %3845 = vmatprep.subr.bf16.mxu0 0
  %3846 = vmatpush1.bf16.xpose.msra.mxu0 0
  %3847 = vmatprep.subr.bf16.mxu0 0
  %3848 = vmatpush1.bf16.xpose.msra.mxu0 0
  %3849 = vmatprep.subr.bf16.mxu0 0
  %3850 = vmatpush1.bf16.xpose.msra.mxu0 0
  %3851 = vmatprep.mubr.bf16.mxu0 0
  %3852 = vmatmul.mubr.bf16.gmra.mrb[0].mxu0 %v3811
  %v3853 = vpop.f32.mrb[0].mxu0
  %v3854 = vadd.f32 0.0, %v3853
  %v3855 = vpop.f32.mrb[0].mxu0
  %v3856 = vpop.f32.mrb[0].mxu0
  %v3857 = vadd.f32 0.0, %v3856
  %v3858 = vpop.f32.mrb[0].mxu0
  %3859 = vdwg.mxu0
  %v3860 = vsel %vm406, %v3854, -inf
  %3861 = vmax.xlane.f32.xlu0 %v3860
  %v3862 = vpop.xlane.xlu0 %3861
  %v3863 = vsel %vm406, %v3857, -inf
  %3864 = vmax.xlane.f32.xlu0 %v3863
  %v3865 = vpop.xlane.xlu0 %3864
  %v3866 = vsub.f32 %v3854, %v3862
  %v3867 = vsub.f32 %v3857, %v3865
  %v3868 = vmul.f32 %v3866, 1.442695
  %v3869 = vpow.pop %v3868
  %v3870 = vmul.f32 %v3867, 1.442695
  %v3871 = vpow.pop %v3870
  %v3872 = vsel %vm406, %v3869, 0.0
  %3873 = vadd.xlane.f32.xlu0 %v3872
  %v3874 = vpop.xlane.xlu0 %3873
  %v3875 = vsel %vm406, %v3871, 0.0
  %3876 = vadd.xlane.f32.xlu0 %v3875
  %v3877 = vpop.xlane.xlu0 %3876
  %v3878 = vpack.c.bf16 %v3871, %v3869
  %v3879 = vpack.c.bf16 %v3789, %v3785
  %v3880 = vpack.c.bf16 %v3795, %v3795
  %v3882 = vsel %vm406, %v3878, 0
  %v3885 = vand.u32 %v3880, %v433
  %3887 = vmatprep.subr.bf16.mxu0 0
  %3888 = vmatpush1.bf16.msra.mxu0 %v3879
  %3889 = vmatprep.subr.bf16.mxu0 0
  %3890 = vmatpush1.bf16.msra.mxu0 %v3885
  %3891 = vmatprep.subr.bf16.mxu0 0
  %3892 = vmatpush1.bf16.msra.mxu0 0
  %3893 = vmatprep.subr.bf16.mxu0 0
  %3894 = vmatpush1.bf16.msra.mxu0 0
  %3895 = vmatprep.subr.bf16.mxu0 0
  %3896 = vmatpush1.bf16.msra.mxu0 0
  %3897 = vmatprep.subr.bf16.mxu0 0
  %3898 = vmatpush1.bf16.msra.mxu0 0
  %3899 = vmatprep.subr.bf16.mxu0 0
  %3900 = vmatpush1.bf16.msra.mxu0 0
  %3901 = vmatprep.subr.bf16.mxu0 0
  %3902 = vmatpush1.bf16.msra.mxu0 0
  %3903 = vmatprep.subr.bf16.mxu0 0
  %3904 = vmatpush1.bf16.msra.mxu0 0
  %3905 = vmatprep.subr.bf16.mxu0 0
  %3906 = vmatpush1.bf16.msra.mxu0 0
  %3907 = vmatprep.subr.bf16.mxu0 0
  %3908 = vmatpush1.bf16.msra.mxu0 0
  %3909 = vmatprep.subr.bf16.mxu0 0
  %3910 = vmatpush1.bf16.msra.mxu0 0
  %3911 = vmatprep.subr.bf16.mxu0 0
  %3912 = vmatpush1.bf16.msra.mxu0 0
  %3913 = vmatprep.subr.bf16.mxu0 0
  %3914 = vmatpush1.bf16.msra.mxu0 0
  %3915 = vmatprep.subr.bf16.mxu0 0
  %3916 = vmatpush1.bf16.msra.mxu0 0
  %3917 = vmatprep.subr.bf16.mxu0 0
  %3918 = vmatpush1.bf16.msra.mxu0 0
  %3919 = vmatprep.mubr.bf16.mxu0 0
  %3920 = vmatmul.mubr.bf16.gmra.mrb[0].mxu0 %v3882
  %v3921 = vpop.f32.mrb[0].mxu0
  %v3922 = vadd.f32 0.0, %v3921
  %v3923 = vpop.f32.mrb[0].mxu0
  %v3924 = vpop.f32.mrb[0].mxu0
  %v3925 = vadd.f32 0.0, %v3924
  %v3926 = vpop.f32.mrb[0].mxu0
  %3927 = vdwg.mxu0
  %v3928 = vrcp.pop %v3874
  %v3929 = vmul.f32 %v3922, %v3928
  %v3930 = vrcp.pop %v3877
  %v3931 = vmul.f32 %v3925, %v3930
  %v3932 = vpack.c.bf16 %v3931, %v3929
  %v3934 = vsel %vm175, %v3932, 0
  %3936 = vmatprep.subr.bf16.mxu0 0
  %3937 = vmatpush1.bf16.msra.mxu0 %v499
  %3938 = vmatprep.subr.bf16.mxu0 0
  %3939 = vmatpush1.bf16.msra.mxu0 %v500
  %3940 = vmatprep.subr.bf16.mxu0 0
  %3941 = vmatpush1.bf16.msra.mxu0 %v501
  %3942 = vmatprep.subr.bf16.mxu0 0
  %3943 = vmatpush1.bf16.msra.mxu0 %v502
  %3944 = vmatprep.subr.bf16.mxu0 0
  %3945 = vmatpush1.bf16.msra.mxu0 0
  %3946 = vmatprep.subr.bf16.mxu0 0
  %3947 = vmatpush1.bf16.msra.mxu0 0
  %3948 = vmatprep.subr.bf16.mxu0 0
  %3949 = vmatpush1.bf16.msra.mxu0 0
  %3950 = vmatprep.subr.bf16.mxu0 0
  %3951 = vmatpush1.bf16.msra.mxu0 0
  %3952 = vmatprep.subr.bf16.mxu0 0
  %3953 = vmatpush1.bf16.msra.mxu0 0
  %3954 = vmatprep.subr.bf16.mxu0 0
  %3955 = vmatpush1.bf16.msra.mxu0 0
  %3956 = vmatprep.subr.bf16.mxu0 0
  %3957 = vmatpush1.bf16.msra.mxu0 0
  %3958 = vmatprep.subr.bf16.mxu0 0
  %3959 = vmatpush1.bf16.msra.mxu0 0
  %3960 = vmatprep.subr.bf16.mxu0 0
  %3961 = vmatpush1.bf16.msra.mxu0 0
  %3962 = vmatprep.subr.bf16.mxu0 0
  %3963 = vmatpush1.bf16.msra.mxu0 0
  %3964 = vmatprep.subr.bf16.mxu0 0
  %3965 = vmatpush1.bf16.msra.mxu0 0
  %3966 = vmatprep.subr.bf16.mxu0 0
  %3967 = vmatpush1.bf16.msra.mxu0 0
  %3968 = vmatprep.mubr.bf16.mxu0 0
  %3969 = vmatmul.mubr.bf16.gmra.mrb[0].mxu0 %v3934
  %v3970 = vpop.f32.mrb[0].mxu0
  %v3971 = vadd.f32 0.0, %v3970
  %v3972 = vpop.f32.mrb[0].mxu0
  %v3973 = vpop.f32.mrb[0].mxu0
  %v3974 = vadd.f32 0.0, %v3973
  %v3975 = vpop.f32.mrb[0].mxu0
  %3976 = vdwg.mxu0
  %v3979 = vrot.slane %v3971, 1
  %v3980 = vrot.slane %v3971, 2
  %v3981 = vrot.slane %v3971, 3
  %v3982 = vrot.slane %v3971, 4
  %v3983 = vrot.slane %v3971, 5
  %v3984 = vrot.slane %v3971, 6
  %v3985 = vrot.slane %v3971, 7
  %v3986 = vrot.slane %v3974, 1
  %v3987 = vrot.slane %v3974, 2
  %v3988 = vrot.slane %v3974, 3
  %v3989 = vrot.slane %v3974, 4
  %v3990 = vrot.slane %v3974, 5
  %v3991 = vrot.slane %v3974, 6
  %v3992 = vrot.slane %v3974, 7
  %v4009 = vadd.f32 %v3615, %v3971
  %v4010 = vadd.f32 %v3616, %v3979
  %v4011 = vadd.f32 %v3617, %v3980
  %v4012 = vadd.f32 %v3618, %v3981
  %v4013 = vadd.f32 %v3619, %v3982
  %v4014 = vadd.f32 %v3620, %v3983
  %v4015 = vadd.f32 %v3621, %v3984
  %v4016 = vadd.f32 %v3622, %v3985
  %v4017 = vadd.f32 %v3623, %v3974
  %v4018 = vadd.f32 %v3624, %v3986
  %v4019 = vadd.f32 %v3625, %v3987
  %v4020 = vadd.f32 %v3626, %v3988
  %v4021 = vadd.f32 %v3627, %v3989
  %v4022 = vadd.f32 %v3628, %v3990
  %v4023 = vadd.f32 %v3629, %v3991
  %v4024 = vadd.f32 %v3630, %v3992
  %v4025 = vadd.f32 %v4009, %v603
  %v4026 = vadd.f32 %v4010, %v603
  %v4027 = vadd.f32 %v4011, %v603
  %v4028 = vadd.f32 %v4012, %v603
  %v4029 = vadd.f32 %v4013, %v603
  %v4030 = vadd.f32 %v4014, %v603
  %v4031 = vadd.f32 %v4015, %v603
  %v4032 = vadd.f32 %v4016, %v603
  %v4033 = vadd.f32 %v4017, %v603
  %v4034 = vadd.f32 %v4018, %v603
  %v4035 = vadd.f32 %v4019, %v603
  %v4036 = vadd.f32 %v4020, %v603
  %v4037 = vadd.f32 %v4021, %v603
  %v4038 = vadd.f32 %v4022, %v603
  %v4039 = vadd.f32 %v4023, %v603
  %v4040 = vadd.f32 %v4024, %v603
  %4041 = vst.msk [vmem:[%s9 + $0x6] sm:$0x1] %vm182, %v4025
  %4042 = vst.msk [vmem:[%s9 + $0xe] sm:$0x1] %vm182, %v4026
  %4043 = vst.msk [vmem:[%s9 + $0x16] sm:$0x1] %vm182, %v4027
  %4044 = vst.msk [vmem:[%s9 + $0x1e] sm:$0x1] %vm182, %v4028
  %4045 = vst.msk [vmem:[%s9 + $0x26] sm:$0x1] %vm182, %v4029
  %4046 = vst.msk [vmem:[%s9 + $0x2e] sm:$0x1] %vm182, %v4030
  %4047 = vst.msk [vmem:[%s9 + $0x36] sm:$0x1] %vm182, %v4031
  %4048 = vst.msk [vmem:[%s9 + $0x3e] sm:$0x1] %vm182, %v4032
  %4049 = vst.msk [vmem:[%s9 + $0x46] sm:$0x1] %vm182, %v4033
  %4050 = vst.msk [vmem:[%s9 + $0x4e] sm:$0x1] %vm182, %v4034
  %4051 = vst.msk [vmem:[%s9 + $0x56] sm:$0x1] %vm182, %v4035
  %4052 = vst.msk [vmem:[%s9 + $0x5e] sm:$0x1] %vm182, %v4036
  %4053 = vst.msk [vmem:[%s9 + $0x66] sm:$0x1] %vm182, %v4037
  %4054 = vst.msk [vmem:[%s9 + $0x6e] sm:$0x1] %vm182, %v4038
  %4055 = vst.msk [vmem:[%s9 + $0x76] sm:$0x1] %vm182, %v4039
  %4056 = vst.msk [vmem:[%s9 + $0x7e] sm:$0x1] %vm182, %v4040
  %v4073 = vrot.slane %v4026, 7
  %v4074 = vsel %vm139, %v4073, %v4025
  %v4075 = vrot.slane %v4027, 6
  %v4076 = vsel %vm142, %v4075, %v4074
  %v4077 = vrot.slane %v4028, 5
  %v4078 = vsel %vm145, %v4077, %v4076
  %v4079 = vrot.slane %v4029, 4
  %v4080 = vsel %vm148, %v4079, %v4078
  %v4081 = vrot.slane %v4030, 3
  %v4082 = vsel %vm151, %v4081, %v4080
  %v4083 = vrot.slane %v4031, 2
  %v4084 = vsel %vm154, %v4083, %v4082
  %v4085 = vrot.slane %v4032, 1
  %v4086 = vsel %vm157, %v4085, %v4084
  %v4087 = vrot.slane %v4034, 7
  %v4088 = vsel %vm139, %v4087, %v4033
  %v4089 = vrot.slane %v4035, 6
  %v4090 = vsel %vm142, %v4089, %v4088
  %v4091 = vrot.slane %v4036, 5
  %v4092 = vsel %vm145, %v4091, %v4090
  %v4093 = vrot.slane %v4037, 4
  %v4094 = vsel %vm148, %v4093, %v4092
  %v4095 = vrot.slane %v4038, 3
  %v4096 = vsel %vm151, %v4095, %v4094
  %v4097 = vrot.slane %v4039, 2
  %v4098 = vsel %vm154, %v4097, %v4096
  %v4099 = vrot.slane %v4040, 1
  %v4100 = vsel %vm157, %v4099, %v4098
  %v4103 = vsel %vm175, %v4086, 0.0
  %v4104 = vsel %vm175, %v4100, 0.0
  %v4105 = vadd.f32 %v4103, %v4104
  %v4106 = vrot.slane %v4105, 4
  %v4107 = vadd.f32 %v4105, %v4106
  %v4108 = vrot.slane %v4107, 2
  %v4109 = vadd.f32 %v4107, %v4108
  %v4110 = vrot.slane %v4109, 1
  %v4111 = vadd.f32 %v4109, %v4110
  %v4112 = vadd.f32 %v3542, %v4111
  %v4113 = vmul.f32 %v4025, %v4025
  %v4114 = vmul.f32 %v4026, %v4026
  %v4115 = vmul.f32 %v4027, %v4027
  %v4116 = vmul.f32 %v4028, %v4028
  %v4117 = vmul.f32 %v4029, %v4029
  %v4118 = vmul.f32 %v4030, %v4030
  %v4119 = vmul.f32 %v4031, %v4031
  %v4120 = vmul.f32 %v4032, %v4032
  %v4121 = vmul.f32 %v4033, %v4033
  %v4122 = vmul.f32 %v4034, %v4034
  %v4123 = vmul.f32 %v4035, %v4035
  %v4124 = vmul.f32 %v4036, %v4036
  %v4125 = vmul.f32 %v4037, %v4037
  %v4126 = vmul.f32 %v4038, %v4038
  %v4127 = vmul.f32 %v4039, %v4039
  %v4128 = vmul.f32 %v4040, %v4040
  %v4145 = vrot.slane %v4114, 7
  %v4146 = vsel %vm139, %v4145, %v4113
  %v4147 = vrot.slane %v4115, 6
  %v4148 = vsel %vm142, %v4147, %v4146
  %v4149 = vrot.slane %v4116, 5
  %v4150 = vsel %vm145, %v4149, %v4148
  %v4151 = vrot.slane %v4117, 4
  %v4152 = vsel %vm148, %v4151, %v4150
  %v4153 = vrot.slane %v4118, 3
  %v4154 = vsel %vm151, %v4153, %v4152
  %v4155 = vrot.slane %v4119, 2
  %v4156 = vsel %vm154, %v4155, %v4154
  %v4157 = vrot.slane %v4120, 1
  %v4158 = vsel %vm157, %v4157, %v4156
  %v4159 = vrot.slane %v4122, 7
  %v4160 = vsel %vm139, %v4159, %v4121
  %v4161 = vrot.slane %v4123, 6
  %v4162 = vsel %vm142, %v4161, %v4160
  %v4163 = vrot.slane %v4124, 5
  %v4164 = vsel %vm145, %v4163, %v4162
  %v4165 = vrot.slane %v4125, 4
  %v4166 = vsel %vm148, %v4165, %v4164
  %v4167 = vrot.slane %v4126, 3
  %v4168 = vsel %vm151, %v4167, %v4166
  %v4169 = vrot.slane %v4127, 2
  %v4170 = vsel %vm154, %v4169, %v4168
  %v4171 = vrot.slane %v4128, 1
  %v4172 = vsel %vm157, %v4171, %v4170
  %v4175 = vsel %vm175, %v4158, 0.0
  %v4176 = vsel %vm175, %v4172, 0.0
  %v4177 = vadd.f32 %v4175, %v4176
  %v4178 = vrot.slane %v4177, 4
  %v4179 = vadd.f32 %v4177, %v4178
  %v4180 = vrot.slane %v4179, 2
  %v4181 = vadd.f32 %v4179, %v4180
  %v4182 = vrot.slane %v4181, 1
  %v4183 = vadd.f32 %v4181, %v4182
  %v4184 = vadd.f32 %v3614, %v4183
  %v4185 = vld [vmem:[%s0 + $0x7] sm:$0x1]
  %v4186 = vld [vmem:[%s0 + $0xf] sm:$0x1]
  %v4187 = vld [vmem:[%s0 + $0x17] sm:$0x1]
  %v4188 = vld [vmem:[%s0 + $0x1f] sm:$0x1]
  %v4189 = vld [vmem:[%s0 + $0x27] sm:$0x1]
  %v4190 = vld [vmem:[%s0 + $0x2f] sm:$0x1]
  %v4191 = vld [vmem:[%s0 + $0x37] sm:$0x1]
  %v4192 = vld [vmem:[%s0 + $0x3f] sm:$0x1]
  %v4193 = vld [vmem:[%s0 + $0x47] sm:$0x1]
  %v4194 = vld [vmem:[%s0 + $0x4f] sm:$0x1]
  %v4195 = vld [vmem:[%s0 + $0x57] sm:$0x1]
  %v4196 = vld [vmem:[%s0 + $0x5f] sm:$0x1]
  %v4197 = vld [vmem:[%s0 + $0x67] sm:$0x1]
  %v4198 = vld [vmem:[%s0 + $0x6f] sm:$0x1]
  %v4199 = vld [vmem:[%s0 + $0x77] sm:$0x1]
  %v4200 = vld [vmem:[%s0 + $0x7f] sm:$0x1]
  %s4201 = scalar_lea.vmem %s1, 7
  %v4202 = vld [vmem:[%s4201] sm:$0x1]
  %v4203 = vadd.f32 %v4185, %v35
  %v4204 = vadd.f32 %v4186, %v76
  %v4205 = vadd.f32 %v4187, %v77
  %v4206 = vadd.f32 %v4188, %v78
  %v4207 = vadd.f32 %v4189, %v79
  %v4208 = vadd.f32 %v4190, %v80
  %v4209 = vadd.f32 %v4191, %v81
  %v4210 = vadd.f32 %v4192, %v82
  %v4211 = vadd.f32 %v4193, %v36
  %v4212 = vadd.f32 %v4194, %v83
  %v4213 = vadd.f32 %v4195, %v84
  %v4214 = vadd.f32 %v4196, %v85
  %v4215 = vadd.f32 %v4197, %v86
  %v4216 = vadd.f32 %v4198, %v87
  %v4217 = vadd.f32 %v4199, %v88
  %v4218 = vadd.f32 %v4200, %v89
  %v4235 = vrot.slane %v4204, 7
  %v4236 = vsel %vm139, %v4235, %v4203
  %v4237 = vrot.slane %v4205, 6
  %v4238 = vsel %vm142, %v4237, %v4236
  %v4239 = vrot.slane %v4206, 5
  %v4240 = vsel %vm145, %v4239, %v4238
  %v4241 = vrot.slane %v4207, 4
  %v4242 = vsel %vm148, %v4241, %v4240
  %v4243 = vrot.slane %v4208, 3
  %v4244 = vsel %vm151, %v4243, %v4242
  %v4245 = vrot.slane %v4209, 2
  %v4246 = vsel %vm154, %v4245, %v4244
  %v4247 = vrot.slane %v4210, 1
  %v4248 = vsel %vm157, %v4247, %v4246
  %v4249 = vrot.slane %v4212, 7
  %v4250 = vsel %vm139, %v4249, %v4211
  %v4251 = vrot.slane %v4213, 6
  %v4252 = vsel %vm142, %v4251, %v4250
  %v4253 = vrot.slane %v4214, 5
  %v4254 = vsel %vm145, %v4253, %v4252
  %v4255 = vrot.slane %v4215, 4
  %v4256 = vsel %vm148, %v4255, %v4254
  %v4257 = vrot.slane %v4216, 3
  %v4258 = vsel %vm151, %v4257, %v4256
  %v4259 = vrot.slane %v4217, 2
  %v4260 = vsel %vm154, %v4259, %v4258
  %v4261 = vrot.slane %v4218, 1
  %v4262 = vsel %vm157, %v4261, %v4260
  %v4265 = vsel %vm175, %v4248, 0.0
  %4266 = vadd.xlane.f32.xlu0 %v4265
  %v4267 = vpop.xlane.xlu0 %4266
  %v4268 = vsel %vm175, %v4262, 0.0
  %4269 = vadd.xlane.f32.xlu0 %v4268
  %v4270 = vpop.xlane.xlu0 %4269
  %v4271 = vsel %vm182, %v4202, 0.0
  %4272 = vadd.xlane.f32.xlu0 %v4271
  %v4273 = vpop.xlane.xlu0 %4272
  %v4274 = vmul.f32 %v4267, %v186
  %v4275 = vmul.f32 %v4270, %v186
  %v4276 = vmul.f32 %v4273, %v186
  %v4277 = vsub.f32 %v4248, %v4274
  %v4278 = vsub.f32 %v4262, %v4275
  %v4279 = vsub.f32 %v4202, %v4276
  %v4280 = vmul.f32 %v4277, %v4277
  %v4281 = vmul.f32 %v4278, %v4278
  %v4282 = vmul.f32 %v4279, %v4279
  %v4283 = vsel %vm175, %v4280, 0.0
  %4284 = vadd.xlane.f32.xlu0 %v4283
  %v4285 = vpop.xlane.xlu0 %4284
  %v4286 = vsel %vm175, %v4281, 0.0
  %4287 = vadd.xlane.f32.xlu0 %v4286
  %v4288 = vpop.xlane.xlu0 %4287
  %v4289 = vsel %vm182, %v4282, 0.0
  %4290 = vadd.xlane.f32.xlu0 %v4289
  %v4291 = vpop.xlane.xlu0 %4290
  %v4292 = vmul.f32 %v4285, %v186
  %v4293 = vmul.f32 %v4288, %v186
  %v4294 = vmul.f32 %v4291, %v186
  %v4295 = vadd.f32 %v4292, 1e-05
  %v4296 = vadd.f32 %v4293, 1e-05
  %v4297 = vadd.f32 %v4294, 1e-05
  %v4298 = vrsqrt.pop %v4295
  %v4299 = vrsqrt.pop %v4296
  %v4300 = vrsqrt.pop %v4297
  %v4301 = vmul.f32 %v4277, %v4298
  %v4302 = vmul.f32 %v4278, %v4299
  %v4303 = vmul.f32 %v4279, %v4300
  %v4304 = vmul.f32 %v4301, %v221
  %v4305 = vmul.f32 %v4302, %v221
  %v4306 = vmul.f32 %v4303, %v221
  %v4307 = vadd.f32 %v4304, %v230
  %v4308 = vadd.f32 %v4305, %v230
  %v4309 = vadd.f32 %v4306, %v230
  %v4310 = vpack.c.bf16 %v4308, %v4307
  %v4311 = vpack.c.bf16 %v4309, %v4309
  %v4313 = vsel %vm175, %v4310, 0
  %v4316 = vsel %vm175, %v4311, 0
  %4318 = vmatprep.subr.bf16.mxu0 %v273
  %4319 = vmatpush1.bf16.msra.mxu0 %v272
  %4320 = vmatprep.subr.bf16.mxu0 %v275
  %4321 = vmatpush1.bf16.msra.mxu0 %v274
  %4322 = vmatprep.subr.bf16.mxu0 %v277
  %4323 = vmatpush1.bf16.msra.mxu0 %v276
  %4324 = vmatprep.subr.bf16.mxu0 %v279
  %4325 = vmatpush1.bf16.msra.mxu0 %v278
  %4326 = vmatprep.subr.bf16.mxu0 0
  %4327 = vmatpush1.bf16.msra.mxu0 0
  %4328 = vmatprep.subr.bf16.mxu0 0
  %4329 = vmatpush1.bf16.msra.mxu0 0
  %4330 = vmatprep.subr.bf16.mxu0 0
  %4331 = vmatpush1.bf16.msra.mxu0 0
  %4332 = vmatprep.subr.bf16.mxu0 0
  %4333 = vmatpush1.bf16.msra.mxu0 0
  %4334 = vmatprep.subr.bf16.mxu0 0
  %4335 = vmatpush1.bf16.msra.mxu0 0
  %4336 = vmatprep.subr.bf16.mxu0 0
  %4337 = vmatpush1.bf16.msra.mxu0 0
  %4338 = vmatprep.subr.bf16.mxu0 0
  %4339 = vmatpush1.bf16.msra.mxu0 0
  %4340 = vmatprep.subr.bf16.mxu0 0
  %4341 = vmatpush1.bf16.msra.mxu0 0
  %4342 = vmatprep.subr.bf16.mxu0 0
  %4343 = vmatpush1.bf16.msra.mxu0 0
  %4344 = vmatprep.subr.bf16.mxu0 0
  %4345 = vmatpush1.bf16.msra.mxu0 0
  %4346 = vmatprep.subr.bf16.mxu0 0
  %4347 = vmatpush1.bf16.msra.mxu0 0
  %4348 = vmatprep.subr.bf16.mxu0 0
  %4349 = vmatpush1.bf16.msra.mxu0 0
  %4350 = vmatprep.mubr.bf16.mxu0 0
  %4351 = vmatmul.mubr.bf16.gmra.mrb[0].mxu0 %v4313
  %v4352 = vpop.f32.mrb[0].mxu0
  %v4353 = vadd.f32 %v241, %v4352
  %v4354 = vpop.f32.mrb[0].mxu0
  %v4355 = vadd.f32 %v245, %v4354
  %v4356 = vpop.f32.mrb[0].mxu0
  %v4357 = vadd.f32 %v241, %v4356
  %v4358 = vpop.f32.mrb[0].mxu0
  %v4359 = vadd.f32 %v245, %v4358
  %4360 = vmatprep.mubr.bf16.mxu0 0
  %4361 = vmatmul.mubr.bf16.gmra.mrb[0].mxu0 %v4316
  %v4362 = vpop.f32.mrb[0].mxu0
  %v4363 = vadd.f32 %v241, %v4362
  %v4364 = vpop.f32.mrb[0].mxu0
  %v4365 = vadd.f32 %v245, %v4364
  %v4366 = vpop.f32.mrb[0].mxu0
  %v4367 = vpop.f32.mrb[0].mxu0
  %4368 = vdwg.mxu0
  %v4369 = vmul.f32 %v4353, 0.125
  %v4370 = vmul.f32 %v4357, 0.125
  %v4371 = vpack.c.bf16 %v4370, %v4369
  %v4372 = vpack.c.bf16 %v4357, %v4353
  %v4373 = vpack.c.bf16 %v4363, %v4363
  %4376 = vrot.lane.b32.xlu0 %v4372, 64
  %v4377 = vpop.permute.xlu0 %4376
  %4378 = vrot.lane.b32.xlu0 %v4373, 64
  %v4379 = vpop.permute.xlu0 %4378
  %v4381 = vsel %vm175, %v4371, 0
  %v4384 = vsel %vm175, %v4377, 0
  %v4387 = vsel %vm175, %v4379, 0
  %4389 = vmatprep.subr.bf16.mxu0 0
  %4390 = vmatpush1.bf16.xpose.msra.mxu0 %v4384
  %4391 = vmatprep.subr.bf16.mxu0 0
  %4392 = vmatpush1.bf16.xpose.msra.mxu0 %v4387
  %4393 = vmatprep.subr.bf16.mxu0 0
  %4394 = vmatpush1.bf16.xpose.msra.mxu0 0
  %4395 = vmatprep.subr.bf16.mxu0 0
  %4396 = vmatpush1.bf16.xpose.msra.mxu0 0
  %4397 = vmatprep.subr.bf16.mxu0 0
  %4398 = vmatpush1.bf16.xpose.msra.mxu0 0
  %4399 = vmatprep.subr.bf16.mxu0 0
  %4400 = vmatpush1.bf16.xpose.msra.mxu0 0
  %4401 = vmatprep.subr.bf16.mxu0 0
  %4402 = vmatpush1.bf16.xpose.msra.mxu0 0
  %4403 = vmatprep.subr.bf16.mxu0 0
  %4404 = vmatpush1.bf16.xpose.msra.mxu0 0
  %4405 = vmatprep.subr.bf16.mxu0 0
  %4406 = vmatpush1.bf16.xpose.msra.mxu0 0
  %4407 = vmatprep.subr.bf16.mxu0 0
  %4408 = vmatpush1.bf16.xpose.msra.mxu0 0
  %4409 = vmatprep.subr.bf16.mxu0 0
  %4410 = vmatpush1.bf16.xpose.msra.mxu0 0
  %4411 = vmatprep.subr.bf16.mxu0 0
  %4412 = vmatpush1.bf16.xpose.msra.mxu0 0
  %4413 = vmatprep.subr.bf16.mxu0 0
  %4414 = vmatpush1.bf16.xpose.msra.mxu0 0
  %4415 = vmatprep.subr.bf16.mxu0 0
  %4416 = vmatpush1.bf16.xpose.msra.mxu0 0
  %4417 = vmatprep.subr.bf16.mxu0 0
  %4418 = vmatpush1.bf16.xpose.msra.mxu0 0
  %4419 = vmatprep.subr.bf16.mxu0 0
  %4420 = vmatpush1.bf16.xpose.msra.mxu0 0
  %4421 = vmatprep.mubr.bf16.mxu0 0
  %4422 = vmatmul.mubr.bf16.gmra.mrb[0].mxu0 %v4381
  %v4423 = vpop.f32.mrb[0].mxu0
  %v4424 = vadd.f32 0.0, %v4423
  %v4425 = vpop.f32.mrb[0].mxu0
  %v4426 = vpop.f32.mrb[0].mxu0
  %v4427 = vadd.f32 0.0, %v4426
  %v4428 = vpop.f32.mrb[0].mxu0
  %4429 = vdwg.mxu0
  %v4430 = vsel %vm406, %v4424, -inf
  %4431 = vmax.xlane.f32.xlu0 %v4430
  %v4432 = vpop.xlane.xlu0 %4431
  %v4433 = vsel %vm406, %v4427, -inf
  %4434 = vmax.xlane.f32.xlu0 %v4433
  %v4435 = vpop.xlane.xlu0 %4434
  %v4436 = vsub.f32 %v4424, %v4432
  %v4437 = vsub.f32 %v4427, %v4435
  %v4438 = vmul.f32 %v4436, 1.442695
  %v4439 = vpow.pop %v4438
  %v4440 = vmul.f32 %v4437, 1.442695
  %v4441 = vpow.pop %v4440
  %v4442 = vsel %vm406, %v4439, 0.0
  %4443 = vadd.xlane.f32.xlu0 %v4442
  %v4444 = vpop.xlane.xlu0 %4443
  %v4445 = vsel %vm406, %v4441, 0.0
  %4446 = vadd.xlane.f32.xlu0 %v4445
  %v4447 = vpop.xlane.xlu0 %4446
  %v4448 = vpack.c.bf16 %v4441, %v4439
  %v4449 = vpack.c.bf16 %v4359, %v4355
  %v4450 = vpack.c.bf16 %v4365, %v4365
  %v4452 = vsel %vm406, %v4448, 0
  %v4455 = vand.u32 %v4450, %v433
  %4457 = vmatprep.subr.bf16.mxu0 0
  %4458 = vmatpush1.bf16.msra.mxu0 %v4449
  %4459 = vmatprep.subr.bf16.mxu0 0
  %4460 = vmatpush1.bf16.msra.mxu0 %v4455
  %4461 = vmatprep.subr.bf16.mxu0 0
  %4462 = vmatpush1.bf16.msra.mxu0 0
  %4463 = vmatprep.subr.bf16.mxu0 0
  %4464 = vmatpush1.bf16.msra.mxu0 0
  %4465 = vmatprep.subr.bf16.mxu0 0
  %4466 = vmatpush1.bf16.msra.mxu0 0
  %4467 = vmatprep.subr.bf16.mxu0 0
  %4468 = vmatpush1.bf16.msra.mxu0 0
  %4469 = vmatprep.subr.bf16.mxu0 0
  %4470 = vmatpush1.bf16.msra.mxu0 0
  %4471 = vmatprep.subr.bf16.mxu0 0
  %4472 = vmatpush1.bf16.msra.mxu0 0
  %4473 = vmatprep.subr.bf16.mxu0 0
  %4474 = vmatpush1.bf16.msra.mxu0 0
  %4475 = vmatprep.subr.bf16.mxu0 0
  %4476 = vmatpush1.bf16.msra.mxu0 0
  %4477 = vmatprep.subr.bf16.mxu0 0
  %4478 = vmatpush1.bf16.msra.mxu0 0
  %4479 = vmatprep.subr.bf16.mxu0 0
  %4480 = vmatpush1.bf16.msra.mxu0 0
  %4481 = vmatprep.subr.bf16.mxu0 0
  %4482 = vmatpush1.bf16.msra.mxu0 0
  %4483 = vmatprep.subr.bf16.mxu0 0
  %4484 = vmatpush1.bf16.msra.mxu0 0
  %4485 = vmatprep.subr.bf16.mxu0 0
  %4486 = vmatpush1.bf16.msra.mxu0 0
  %4487 = vmatprep.subr.bf16.mxu0 0
  %4488 = vmatpush1.bf16.msra.mxu0 0
  %4489 = vmatprep.mubr.bf16.mxu0 0
  %4490 = vmatmul.mubr.bf16.gmra.mrb[0].mxu0 %v4452
  %v4491 = vpop.f32.mrb[0].mxu0
  %v4492 = vadd.f32 0.0, %v4491
  %v4493 = vpop.f32.mrb[0].mxu0
  %v4494 = vpop.f32.mrb[0].mxu0
  %v4495 = vadd.f32 0.0, %v4494
  %v4496 = vpop.f32.mrb[0].mxu0
  %4497 = vdwg.mxu0
  %v4498 = vrcp.pop %v4444
  %v4499 = vmul.f32 %v4492, %v4498
  %v4500 = vrcp.pop %v4447
  %v4501 = vmul.f32 %v4495, %v4500
  %v4502 = vpack.c.bf16 %v4501, %v4499
  %v4504 = vsel %vm175, %v4502, 0
  %4506 = vmatprep.subr.bf16.mxu0 0
  %4507 = vmatpush1.bf16.msra.mxu0 %v499
  %4508 = vmatprep.subr.bf16.mxu0 0
  %4509 = vmatpush1.bf16.msra.mxu0 %v500
  %4510 = vmatprep.subr.bf16.mxu0 0
  %4511 = vmatpush1.bf16.msra.mxu0 %v501
  %4512 = vmatprep.subr.bf16.mxu0 0
  %4513 = vmatpush1.bf16.msra.mxu0 %v502
  %4514 = vmatprep.subr.bf16.mxu0 0
  %4515 = vmatpush1.bf16.msra.mxu0 0
  %4516 = vmatprep.subr.bf16.mxu0 0
  %4517 = vmatpush1.bf16.msra.mxu0 0
  %4518 = vmatprep.subr.bf16.mxu0 0
  %4519 = vmatpush1.bf16.msra.mxu0 0
  %4520 = vmatprep.subr.bf16.mxu0 0
  %4521 = vmatpush1.bf16.msra.mxu0 0
  %4522 = vmatprep.subr.bf16.mxu0 0
  %4523 = vmatpush1.bf16.msra.mxu0 0
  %4524 = vmatprep.subr.bf16.mxu0 0
  %4525 = vmatpush1.bf16.msra.mxu0 0
  %4526 = vmatprep.subr.bf16.mxu0 0
  %4527 = vmatpush1.bf16.msra.mxu0 0
  %4528 = vmatprep.subr.bf16.mxu0 0
  %4529 = vmatpush1.bf16.msra.mxu0 0
  %4530 = vmatprep.subr.bf16.mxu0 0
  %4531 = vmatpush1.bf16.msra.mxu0 0
  %4532 = vmatprep.subr.bf16.mxu0 0
  %4533 = vmatpush1.bf16.msra.mxu0 0
  %4534 = vmatprep.subr.bf16.mxu0 0
  %4535 = vmatpush1.bf16.msra.mxu0 0
  %4536 = vmatprep.subr.bf16.mxu0 0
  %4537 = vmatpush1.bf16.msra.mxu0 0
  %4538 = vmatprep.mubr.bf16.mxu0 0
  %4539 = vmatmul.mubr.bf16.gmra.mrb[0].mxu0 %v4504
  %v4540 = vpop.f32.mrb[0].mxu0
  %v4541 = vadd.f32 0.0, %v4540
  %v4542 = vpop.f32.mrb[0].mxu0
  %v4543 = vpop.f32.mrb[0].mxu0
  %v4544 = vadd.f32 0.0, %v4543
  %v4545 = vpop.f32.mrb[0].mxu0
  %4546 = vdwg.mxu0
  %v4549 = vrot.slane %v4541, 1
  %v4550 = vrot.slane %v4541, 2
  %v4551 = vrot.slane %v4541, 3
  %v4552 = vrot.slane %v4541, 4
  %v4553 = vrot.slane %v4541, 5
  %v4554 = vrot.slane %v4541, 6
  %v4555 = vrot.slane %v4541, 7
  %v4556 = vrot.slane %v4544, 1
  %v4557 = vrot.slane %v4544, 2
  %v4558 = vrot.slane %v4544, 3
  %v4559 = vrot.slane %v4544, 4
  %v4560 = vrot.slane %v4544, 5
  %v4561 = vrot.slane %v4544, 6
  %v4562 = vrot.slane %v4544, 7
  %v4579 = vadd.f32 %v4185, %v4541
  %v4580 = vadd.f32 %v4186, %v4549
  %v4581 = vadd.f32 %v4187, %v4550
  %v4582 = vadd.f32 %v4188, %v4551
  %v4583 = vadd.f32 %v4189, %v4552
  %v4584 = vadd.f32 %v4190, %v4553
  %v4585 = vadd.f32 %v4191, %v4554
  %v4586 = vadd.f32 %v4192, %v4555
  %v4587 = vadd.f32 %v4193, %v4544
  %v4588 = vadd.f32 %v4194, %v4556
  %v4589 = vadd.f32 %v4195, %v4557
  %v4590 = vadd.f32 %v4196, %v4558
  %v4591 = vadd.f32 %v4197, %v4559
  %v4592 = vadd.f32 %v4198, %v4560
  %v4593 = vadd.f32 %v4199, %v4561
  %v4594 = vadd.f32 %v4200, %v4562
  %v4595 = vadd.f32 %v4579, %v603
  %v4596 = vadd.f32 %v4580, %v603
  %v4597 = vadd.f32 %v4581, %v603
  %v4598 = vadd.f32 %v4582, %v603
  %v4599 = vadd.f32 %v4583, %v603
  %v4600 = vadd.f32 %v4584, %v603
  %v4601 = vadd.f32 %v4585, %v603
  %v4602 = vadd.f32 %v4586, %v603
  %v4603 = vadd.f32 %v4587, %v603
  %v4604 = vadd.f32 %v4588, %v603
  %v4605 = vadd.f32 %v4589, %v603
  %v4606 = vadd.f32 %v4590, %v603
  %v4607 = vadd.f32 %v4591, %v603
  %v4608 = vadd.f32 %v4592, %v603
  %v4609 = vadd.f32 %v4593, %v603
  %v4610 = vadd.f32 %v4594, %v603
  %4611 = vst.msk [vmem:[%s9 + $0x7] sm:$0x1] %vm182, %v4595
  %4612 = vst.msk [vmem:[%s9 + $0xf] sm:$0x1] %vm182, %v4596
  %4613 = vst.msk [vmem:[%s9 + $0x17] sm:$0x1] %vm182, %v4597
  %4614 = vst.msk [vmem:[%s9 + $0x1f] sm:$0x1] %vm182, %v4598
  %4615 = vst.msk [vmem:[%s9 + $0x27] sm:$0x1] %vm182, %v4599
  %4616 = vst.msk [vmem:[%s9 + $0x2f] sm:$0x1] %vm182, %v4600
  %4617 = vst.msk [vmem:[%s9 + $0x37] sm:$0x1] %vm182, %v4601
  %4618 = vst.msk [vmem:[%s9 + $0x3f] sm:$0x1] %vm182, %v4602
  %4619 = vst.msk [vmem:[%s9 + $0x47] sm:$0x1] %vm182, %v4603
  %4620 = vst.msk [vmem:[%s9 + $0x4f] sm:$0x1] %vm182, %v4604
  %4621 = vst.msk [vmem:[%s9 + $0x57] sm:$0x1] %vm182, %v4605
  %4622 = vst.msk [vmem:[%s9 + $0x5f] sm:$0x1] %vm182, %v4606
  %4623 = vst.msk [vmem:[%s9 + $0x67] sm:$0x1] %vm182, %v4607
  %4624 = vst.msk [vmem:[%s9 + $0x6f] sm:$0x1] %vm182, %v4608
  %4625 = vst.msk [vmem:[%s9 + $0x77] sm:$0x1] %vm182, %v4609
  %4626 = vst.msk [vmem:[%s9 + $0x7f] sm:$0x1] %vm182, %v4610
  %v4643 = vrot.slane %v4596, 7
  %v4644 = vsel %vm139, %v4643, %v4595
  %v4645 = vrot.slane %v4597, 6
  %v4646 = vsel %vm142, %v4645, %v4644
  %v4647 = vrot.slane %v4598, 5
  %v4648 = vsel %vm145, %v4647, %v4646
  %v4649 = vrot.slane %v4599, 4
  %v4650 = vsel %vm148, %v4649, %v4648
  %v4651 = vrot.slane %v4600, 3
  %v4652 = vsel %vm151, %v4651, %v4650
  %v4653 = vrot.slane %v4601, 2
  %v4654 = vsel %vm154, %v4653, %v4652
  %v4655 = vrot.slane %v4602, 1
  %v4656 = vsel %vm157, %v4655, %v4654
  %v4657 = vrot.slane %v4604, 7
  %v4658 = vsel %vm139, %v4657, %v4603
  %v4659 = vrot.slane %v4605, 6
  %v4660 = vsel %vm142, %v4659, %v4658
  %v4661 = vrot.slane %v4606, 5
  %v4662 = vsel %vm145, %v4661, %v4660
  %v4663 = vrot.slane %v4607, 4
  %v4664 = vsel %vm148, %v4663, %v4662
  %v4665 = vrot.slane %v4608, 3
  %v4666 = vsel %vm151, %v4665, %v4664
  %v4667 = vrot.slane %v4609, 2
  %v4668 = vsel %vm154, %v4667, %v4666
  %v4669 = vrot.slane %v4610, 1
  %v4670 = vsel %vm157, %v4669, %v4668
  %v4673 = vsel %vm175, %v4656, 0.0
  %v4674 = vsel %vm175, %v4670, 0.0
  %v4675 = vadd.f32 %v4673, %v4674
  %v4676 = vrot.slane %v4675, 4
  %v4677 = vadd.f32 %v4675, %v4676
  %v4678 = vrot.slane %v4677, 2
  %v4679 = vadd.f32 %v4677, %v4678
  %v4680 = vrot.slane %v4679, 1
  %v4681 = vadd.f32 %v4679, %v4680
  %v4682 = vadd.f32 %v4112, %v4681
  %v4683 = vmul.f32 %v4595, %v4595
  %v4684 = vmul.f32 %v4596, %v4596
  %v4685 = vmul.f32 %v4597, %v4597
  %v4686 = vmul.f32 %v4598, %v4598
  %v4687 = vmul.f32 %v4599, %v4599
  %v4688 = vmul.f32 %v4600, %v4600
  %v4689 = vmul.f32 %v4601, %v4601
  %v4690 = vmul.f32 %v4602, %v4602
  %v4691 = vmul.f32 %v4603, %v4603
  %v4692 = vmul.f32 %v4604, %v4604
  %v4693 = vmul.f32 %v4605, %v4605
  %v4694 = vmul.f32 %v4606, %v4606
  %v4695 = vmul.f32 %v4607, %v4607
  %v4696 = vmul.f32 %v4608, %v4608
  %v4697 = vmul.f32 %v4609, %v4609
  %v4698 = vmul.f32 %v4610, %v4610
  %v4715 = vrot.slane %v4684, 7
  %v4716 = vsel %vm139, %v4715, %v4683
  %v4717 = vrot.slane %v4685, 6
  %v4718 = vsel %vm142, %v4717, %v4716
  %v4719 = vrot.slane %v4686, 5
  %v4720 = vsel %vm145, %v4719, %v4718
  %v4721 = vrot.slane %v4687, 4
  %v4722 = vsel %vm148, %v4721, %v4720
  %v4723 = vrot.slane %v4688, 3
  %v4724 = vsel %vm151, %v4723, %v4722
  %v4725 = vrot.slane %v4689, 2
  %v4726 = vsel %vm154, %v4725, %v4724
  %v4727 = vrot.slane %v4690, 1
  %v4728 = vsel %vm157, %v4727, %v4726
  %v4729 = vrot.slane %v4692, 7
  %v4730 = vsel %vm139, %v4729, %v4691
  %v4731 = vrot.slane %v4693, 6
  %v4732 = vsel %vm142, %v4731, %v4730
  %v4733 = vrot.slane %v4694, 5
  %v4734 = vsel %vm145, %v4733, %v4732
  %v4735 = vrot.slane %v4695, 4
  %v4736 = vsel %vm148, %v4735, %v4734
  %v4737 = vrot.slane %v4696, 3
  %v4738 = vsel %vm151, %v4737, %v4736
  %v4739 = vrot.slane %v4697, 2
  %v4740 = vsel %vm154, %v4739, %v4738
  %v4741 = vrot.slane %v4698, 1
  %v4742 = vsel %vm157, %v4741, %v4740
  %v4745 = vsel %vm175, %v4728, 0.0
  %v4746 = vsel %vm175, %v4742, 0.0
  %v4747 = vadd.f32 %v4745, %v4746
  %v4748 = vrot.slane %v4747, 4
  %v4749 = vadd.f32 %v4747, %v4748
  %v4750 = vrot.slane %v4749, 2
  %v4751 = vadd.f32 %v4749, %v4750
  %v4752 = vrot.slane %v4751, 1
  %v4753 = vadd.f32 %v4751, %v4752
  %v4754 = vadd.f32 %v4184, %v4753
  %v4756 = vrot.slane %v4754, 7
  %v4758 = vsel %vm431, %v4682, %v4756
  %vm4759 = vcmask 1041408
  %v4760 = vsel %vm4759, %v4758, 0.0
  %4761 = vst.msk [vmem:[%s10] sm:$0xff] %vm175, %v4760
  // Predicated region
  $region38: #{attn_c_block_forward.6} parent=0 // pred_check
    _
  $region39: #{attn_c_block_forward.6} parent=0 // pred_check_branch
    %4763 = sbr.rel (0) target = $region41
  $region40: #{attn_c_block_forward.6} parent=0 // pred_region
    _
  $region41: #{attn_c_block_forward.6} parent=0 // pred_fallthru
    _
  // Predicated region
  $region42: #{attn_c_block_forward.6} parent=0 // pred_check
    _
  $region43: #{attn_c_block_forward.6} parent=0 // pred_check_branch
    %4765 = sbr.rel (0) target = $region45
  $region44: #{attn_c_block_forward.6} parent=0 // pred_region
    _
  $region45: #{attn_c_block_forward.6} parent=0 // pred_fallthru
    _
  // Predicated region
  $region46: #{attn_c_block_forward.6} parent=0 // pred_check
    _
  $region47: #{attn_c_block_forward.6} parent=0 // pred_check_branch
    %4767 = sbr.rel (0) target = $region49
  $region48: #{attn_c_block_forward.6} parent=0 // pred_region
    _
  $region49: #{attn_c_block_forward.6} parent=0 // pred_fallthru
    _
  // Predicated region
  $region50: #{attn_c_block_forward.6} parent=0 // pred_check
    _
  $region51: #{attn_c_block_forward.6} parent=0 // pred_check_branch
    %4769 = sbr.rel (0) target = $region53
  $region52: #{attn_c_block_forward.6} parent=0 // pred_region
    _
  $region53: #{attn_c_block_forward.6} parent=0 // pred_fallthru
    _

</llo_original>
